<compile_context>
chip_gen: v5e
topology: v5e:2x2
jax: 0.10.0
libtpu: 0.0.40
codegen_flags: <defaults>
</compile_context>

<pallas_src>
import jax
import jax.numpy as jnp
from jax.experimental import pallas as pl
from jax.experimental.pallas import tpu as pltpu

KH, KW = 5, 5
STRIDE = 2
PAD = 2
C = 72          # fixed by the module: Conv2d(72, 72, ..., groups=72)
LANES = 128     # channel axis padded to a full lane tile
WTAP_ROWS = 32  # KH*KW = 25 weight rows padded to a full sublane tile


def _make_kernel(toh, wo):
    """Kernel for `toh` output rows per grid step, `wo` output columns."""

    def kernel(x4_ref, w_ref, o_ref):
        # x4_ref: (2, 2, HPH, WPH, LANES)  phase-decomposed zero-padded input
        # w_ref : (WTAP_ROWS, LANES)       depthwise taps, row kh*KW + kw
        # o_ref : (toh, wo, LANES)         output rows for this grid step
        oh_base = pl.program_id(0) * toh

        # Hoist weights once; 25 replicated tap rows reused by every output row.
        w_all = w_ref[...]
        w_rows = [w_all[kh * KW + kw] for kh in range(KH) for kw in range(KW)]

        for t in range(toh):                       # one output row at a time
            acc = jnp.zeros((wo, LANES), jnp.float32)
            for kh in range(KH):
                ph, ih = kh % 2, kh // 2
                r = oh_base + t + ih               # phase-row index (dynamic)
                for pw in range(2):                # W phase
                    # Full-width phase row, ReLU fused on load (relu(0) == 0).
                    row = jnp.maximum(x4_ref[ph, pw, r, :, :], 0.0)  # (WPH, LANES)
                    for iw in range((KW - pw + 1) // 2):
                        kw = 2 * iw + pw
                        patch = row[iw:iw + wo, :]                   # contiguous slice
                        acc = acc + patch * w_rows[kh * KW + kw]
            o_ref[t] = acc.astype(o_ref.dtype)

    return kernel


@jax.jit
def relu_dwconv(x_nchw, w_oihw):
    """x_nchw: (1, C, H, W) f32, w_oihw: (C, 1, KH, KW) f32 -> (1, C, Ho, Wo)."""
    n, c, h, w = x_nchw.shape
    assert n == 1 and c == C
    ho = (h + 2 * PAD - KH) // STRIDE + 1
    wo = (w + 2 * PAD - KW) // STRIDE + 1

    # Padded extents so that every tap's phase index is in range and the 2x2
    # phase split is exact: 2 * (n_out + (k-1)//2).
    hp = 2 * (ho + (KH - 1) // 2)
    wp = 2 * (wo + (KW - 1) // 2)
    hph, wph = hp // 2, wp // 2

    # --- layout prep (one fused XLA copy chain): NCHW -> HWC, zero-pad space
    #     and channels (72 -> 128), 2x2 stride-2 phase decomposition. ---
    x_hwc = jnp.transpose(x_nchw[0], (1, 2, 0))                            # (H, W, C)
    x_pad = jnp.pad(x_hwc, ((PAD, hp - h - PAD),
                            (PAD, wp - w - PAD),
                            (0, LANES - c)))                               # (hp, wp, 128)
    x4 = x_pad.reshape(hph, 2, wph, 2, LANES).transpose(1, 3, 0, 2, 4)     # (2,2,hph,wph,128)

    w_taps = jnp.transpose(w_oihw[:, 0], (1, 2, 0)).reshape(KH * KW, c)    # (25, C)
    w_taps = jnp.pad(w_taps, ((0, WTAP_ROWS - KH * KW), (0, LANES - c)))   # (32, 128)

    # Two output-row blocks -> "parallel" grid axis (v7x megacore); negligible
    # per-step overhead on single-TC chips.
    n_blk = 2 if ho % 2 == 0 else 1
    toh = ho // n_blk

    flops = 2 * ho * wo * c * KH * KW
    bytes_accessed = (x4.size + w_taps.size + ho * wo * LANES) * 4

    out_hwc = pl.pallas_call(
        _make_kernel(toh, wo),
        out_shape=jax.ShapeDtypeStruct((ho, wo, LANES), x_nchw.dtype),
        grid=(n_blk,),
        in_specs=[
            pl.BlockSpec((2, 2, hph, wph, LANES), lambda i: (0, 0, 0, 0, 0)),
            pl.BlockSpec((WTAP_ROWS, LANES), lambda i: (0, 0)),
        ],
        out_specs=pl.BlockSpec((toh, wo, LANES), lambda i: (i, 0, 0)),
        compiler_params=pltpu.CompilerParams(
            dimension_semantics=("parallel",)),
        cost_estimate=pl.CostEstimate(
            flops=flops, transcendentals=0, bytes_accessed=bytes_accessed),
    )(x4, w_taps)

    # Lane-dense output -> slice channels back to 72 and restore NCHW.
    return jnp.transpose(out_hwc[:, :, :c], (2, 0, 1))[None]


def _reference(x_nchw, w_oihw):
    """Pure-JAX reference: ReLU + depthwise conv via lax.conv_general_dilated."""
    x = jnp.maximum(x_nchw, 0.0)
    return jax.lax.conv_general_dilated(
        x, w_oihw,
        window_strides=(STRIDE, STRIDE),
        padding=((PAD, PAD), (PAD, PAD)),
        dimension_numbers=("NCHW", "OIHW", "NCHW"),
        feature_group_count=C,
    )


if __name__ == "__main__":
    key = jax.random.PRNGKey(0)
    kx, kw_key = jax.random.split(key)

    # Shape implied by the module spec: (1, 72, 56, 56) -> (1, 72, 28, 28).
    H = W = 56
    x = jax.random.normal(kx, (1, C, H, W), dtype=jnp.float32)
    weight = jax.random.normal(kw_key, (C, 1, KH, KW), dtype=jnp.float32) * 0.1

    out = jax.block_until_ready(relu_dwconv(x, weight))
    ref = jax.block_until_ready(_reference(x, weight))

    assert out.shape == ref.shape, (out.shape, ref.shape)
    assert jnp.allclose(out, ref, atol=1e-4, rtol=1e-4), "mismatch vs reference"

    print("KERNEL_OK")
</pallas_src>

<mosaic_0001>
module attributes {stable_mosaic.version = 11 : i64} {
  func.func @kernel(%arg0: i32, %arg1: memref<2x2x30x30x128xf32, #tpu.memory_space<vmem>>, %arg2: memref<32x128xf32, #tpu.memory_space<vmem>>, %arg3: memref<14x28x128xf32, #tpu.memory_space<vmem>>) attributes {dimension_semantics = [#tpu.dimension_semantics<parallel>], iteration_bounds = array<i64: 2>, scalar_prefetch = 0 : i64, scratch_operands = 0 : i64, tpu.core_type = #tpu.core_type<tc>, window_params = [{pipeline_mode = #tpu.pipeline_mode<synchronous>, transform_indices = @transform_0, window_bounds = array<i64: 2, 2, 30, 30, 128>}, {pipeline_mode = #tpu.pipeline_mode<synchronous>, transform_indices = @transform_1, window_bounds = array<i64: 32, 128>}, {transform_indices = @transform_2, window_bounds = array<i64: 14, 28, 128>}]} {
    %c14_i32 = arith.constant 14 : i32
    %0 = arith.muli %arg0, %c14_i32 : i32
    %c0 = arith.constant 0 : index
    %c0_0 = arith.constant 0 : index
    %1 = vector.load %arg2[%c0, %c0_0] : memref<32x128xf32, #tpu.memory_space<vmem>>, vector<32x128xf32>
    %2 = vector.extract_strided_slice %1 {offsets = [0, 0], sizes = [1, 128], strides = [1, 1]} : vector<32x128xf32> to vector<1x128xf32>
    %3 = vector.shape_cast %2 : vector<1x128xf32> to vector<128xf32>
    %4 = vector.extract_strided_slice %1 {offsets = [1, 0], sizes = [1, 128], strides = [1, 1]} : vector<32x128xf32> to vector<1x128xf32>
    %5 = vector.shape_cast %4 : vector<1x128xf32> to vector<128xf32>
    %6 = vector.extract_strided_slice %1 {offsets = [2, 0], sizes = [1, 128], strides = [1, 1]} : vector<32x128xf32> to vector<1x128xf32>
    %7 = vector.shape_cast %6 : vector<1x128xf32> to vector<128xf32>
    %8 = vector.extract_strided_slice %1 {offsets = [3, 0], sizes = [1, 128], strides = [1, 1]} : vector<32x128xf32> to vector<1x128xf32>
    %9 = vector.shape_cast %8 : vector<1x128xf32> to vector<128xf32>
    %10 = vector.extract_strided_slice %1 {offsets = [4, 0], sizes = [1, 128], strides = [1, 1]} : vector<32x128xf32> to vector<1x128xf32>
    %11 = vector.shape_cast %10 : vector<1x128xf32> to vector<128xf32>
    %12 = vector.extract_strided_slice %1 {offsets = [5, 0], sizes = [1, 128], strides = [1, 1]} : vector<32x128xf32> to vector<1x128xf32>
    %13 = vector.shape_cast %12 : vector<1x128xf32> to vector<128xf32>
    %14 = vector.extract_strided_slice %1 {offsets = [6, 0], sizes = [1, 128], strides = [1, 1]} : vector<32x128xf32> to vector<1x128xf32>
    %15 = vector.shape_cast %14 : vector<1x128xf32> to vector<128xf32>
    %16 = vector.extract_strided_slice %1 {offsets = [7, 0], sizes = [1, 128], strides = [1, 1]} : vector<32x128xf32> to vector<1x128xf32>
    %17 = vector.shape_cast %16 : vector<1x128xf32> to vector<128xf32>
    %18 = vector.extract_strided_slice %1 {offsets = [8, 0], sizes = [1, 128], strides = [1, 1]} : vector<32x128xf32> to vector<1x128xf32>
    %19 = vector.shape_cast %18 : vector<1x128xf32> to vector<128xf32>
    %20 = vector.extract_strided_slice %1 {offsets = [9, 0], sizes = [1, 128], strides = [1, 1]} : vector<32x128xf32> to vector<1x128xf32>
    %21 = vector.shape_cast %20 : vector<1x128xf32> to vector<128xf32>
    %22 = vector.extract_strided_slice %1 {offsets = [10, 0], sizes = [1, 128], strides = [1, 1]} : vector<32x128xf32> to vector<1x128xf32>
    %23 = vector.shape_cast %22 : vector<1x128xf32> to vector<128xf32>
    %24 = vector.extract_strided_slice %1 {offsets = [11, 0], sizes = [1, 128], strides = [1, 1]} : vector<32x128xf32> to vector<1x128xf32>
    %25 = vector.shape_cast %24 : vector<1x128xf32> to vector<128xf32>
    %26 = vector.extract_strided_slice %1 {offsets = [12, 0], sizes = [1, 128], strides = [1, 1]} : vector<32x128xf32> to vector<1x128xf32>
    %27 = vector.shape_cast %26 : vector<1x128xf32> to vector<128xf32>
    %28 = vector.extract_strided_slice %1 {offsets = [13, 0], sizes = [1, 128], strides = [1, 1]} : vector<32x128xf32> to vector<1x128xf32>
    %29 = vector.shape_cast %28 : vector<1x128xf32> to vector<128xf32>
    %30 = vector.extract_strided_slice %1 {offsets = [14, 0], sizes = [1, 128], strides = [1, 1]} : vector<32x128xf32> to vector<1x128xf32>
    %31 = vector.shape_cast %30 : vector<1x128xf32> to vector<128xf32>
    %32 = vector.extract_strided_slice %1 {offsets = [15, 0], sizes = [1, 128], strides = [1, 1]} : vector<32x128xf32> to vector<1x128xf32>
    %33 = vector.shape_cast %32 : vector<1x128xf32> to vector<128xf32>
    %34 = vector.extract_strided_slice %1 {offsets = [16, 0], sizes = [1, 128], strides = [1, 1]} : vector<32x128xf32> to vector<1x128xf32>
    %35 = vector.shape_cast %34 : vector<1x128xf32> to vector<128xf32>
    %36 = vector.extract_strided_slice %1 {offsets = [17, 0], sizes = [1, 128], strides = [1, 1]} : vector<32x128xf32> to vector<1x128xf32>
    %37 = vector.shape_cast %36 : vector<1x128xf32> to vector<128xf32>
    %38 = vector.extract_strided_slice %1 {offsets = [18, 0], sizes = [1, 128], strides = [1, 1]} : vector<32x128xf32> to vector<1x128xf32>
    %39 = vector.shape_cast %38 : vector<1x128xf32> to vector<128xf32>
    %40 = vector.extract_strided_slice %1 {offsets = [19, 0], sizes = [1, 128], strides = [1, 1]} : vector<32x128xf32> to vector<1x128xf32>
    %41 = vector.shape_cast %40 : vector<1x128xf32> to vector<128xf32>
    %42 = vector.extract_strided_slice %1 {offsets = [20, 0], sizes = [1, 128], strides = [1, 1]} : vector<32x128xf32> to vector<1x128xf32>
    %43 = vector.shape_cast %42 : vector<1x128xf32> to vector<128xf32>
    %44 = vector.extract_strided_slice %1 {offsets = [21, 0], sizes = [1, 128], strides = [1, 1]} : vector<32x128xf32> to vector<1x128xf32>
    %45 = vector.shape_cast %44 : vector<1x128xf32> to vector<128xf32>
    %46 = vector.extract_strided_slice %1 {offsets = [22, 0], sizes = [1, 128], strides = [1, 1]} : vector<32x128xf32> to vector<1x128xf32>
    %47 = vector.shape_cast %46 : vector<1x128xf32> to vector<128xf32>
    %48 = vector.extract_strided_slice %1 {offsets = [23, 0], sizes = [1, 128], strides = [1, 1]} : vector<32x128xf32> to vector<1x128xf32>
    %49 = vector.shape_cast %48 : vector<1x128xf32> to vector<128xf32>
    %50 = vector.extract_strided_slice %1 {offsets = [24, 0], sizes = [1, 128], strides = [1, 1]} : vector<32x128xf32> to vector<1x128xf32>
    %51 = vector.shape_cast %50 : vector<1x128xf32> to vector<128xf32>
    %cst = arith.constant 0.000000e+00 : f32
    %52 = vector.broadcast %cst : f32 to vector<28x128xf32>
    %c0_i32 = arith.constant 0 : i32
    %53 = arith.addi %0, %c0_i32 : i32
    %c0_i32_1 = arith.constant 0 : i32
    %54 = arith.addi %53, %c0_i32_1 : i32
    %c0_2 = arith.constant 0 : index
    %c0_3 = arith.constant 0 : index
    %55 = arith.index_cast %54 : i32 to index
    %c0_4 = arith.constant 0 : index
    %c0_5 = arith.constant 0 : index
    %56 = vector.load %arg1[%c0_2, %c0_3, %55, %c0_4, %c0_5] : memref<2x2x30x30x128xf32, #tpu.memory_space<vmem>>, vector<1x1x1x30x128xf32>
    %57 = vector.shape_cast %56 : vector<1x1x1x30x128xf32> to vector<30x128xf32>
    %cst_6 = arith.constant 0.000000e+00 : f32
    %58 = vector.broadcast %cst_6 : f32 to vector<30x128xf32>
    %59 = arith.maximumf %57, %58 : vector<30x128xf32>
    %60 = vector.extract_strided_slice %59 {offsets = [0, 0], sizes = [28, 128], strides = [1, 1]} : vector<30x128xf32> to vector<28x128xf32>
    %61 = vector.shape_cast %3 : vector<128xf32> to vector<1x128xf32>
    %62 = vector.broadcast %61 : vector<1x128xf32> to vector<28x128xf32>
    %63 = arith.mulf %60, %62 : vector<28x128xf32>
    %64 = arith.addf %52, %63 : vector<28x128xf32>
    %65 = vector.extract_strided_slice %59 {offsets = [1, 0], sizes = [28, 128], strides = [1, 1]} : vector<30x128xf32> to vector<28x128xf32>
    %66 = vector.shape_cast %7 : vector<128xf32> to vector<1x128xf32>
    %67 = vector.broadcast %66 : vector<1x128xf32> to vector<28x128xf32>
    %68 = arith.mulf %65, %67 : vector<28x128xf32>
    %69 = arith.addf %64, %68 : vector<28x128xf32>
    %70 = vector.extract_strided_slice %59 {offsets = [2, 0], sizes = [28, 128], strides = [1, 1]} : vector<30x128xf32> to vector<28x128xf32>
    %71 = vector.shape_cast %11 : vector<128xf32> to vector<1x128xf32>
    %72 = vector.broadcast %71 : vector<1x128xf32> to vector<28x128xf32>
    %73 = arith.mulf %70, %72 : vector<28x128xf32>
    %74 = arith.addf %69, %73 : vector<28x128xf32>
    %c0_7 = arith.constant 0 : index
    %c1 = arith.constant 1 : index
    %75 = arith.index_cast %54 : i32 to index
    %c0_8 = arith.constant 0 : index
    %c0_9 = arith.constant 0 : index
    %76 = vector.load %arg1[%c0_7, %c1, %75, %c0_8, %c0_9] : memref<2x2x30x30x128xf32, #tpu.memory_space<vmem>>, vector<1x1x1x30x128xf32>
    %77 = vector.shape_cast %76 : vector<1x1x1x30x128xf32> to vector<30x128xf32>
    %cst_10 = arith.constant 0.000000e+00 : f32
    %78 = vector.broadcast %cst_10 : f32 to vector<30x128xf32>
    %79 = arith.maximumf %77, %78 : vector<30x128xf32>
    %80 = vector.extract_strided_slice %79 {offsets = [0, 0], sizes = [28, 128], strides = [1, 1]} : vector<30x128xf32> to vector<28x128xf32>
    %81 = vector.shape_cast %5 : vector<128xf32> to vector<1x128xf32>
    %82 = vector.broadcast %81 : vector<1x128xf32> to vector<28x128xf32>
    %83 = arith.mulf %80, %82 : vector<28x128xf32>
    %84 = arith.addf %74, %83 : vector<28x128xf32>
    %85 = vector.extract_strided_slice %79 {offsets = [1, 0], sizes = [28, 128], strides = [1, 1]} : vector<30x128xf32> to vector<28x128xf32>
    %86 = vector.shape_cast %9 : vector<128xf32> to vector<1x128xf32>
    %87 = vector.broadcast %86 : vector<1x128xf32> to vector<28x128xf32>
    %88 = arith.mulf %85, %87 : vector<28x128xf32>
    %89 = arith.addf %84, %88 : vector<28x128xf32>
    %c0_i32_11 = arith.constant 0 : i32
    %90 = arith.addi %0, %c0_i32_11 : i32
    %c0_i32_12 = arith.constant 0 : i32
    %91 = arith.addi %90, %c0_i32_12 : i32
    %c1_13 = arith.constant 1 : index
    %c0_14 = arith.constant 0 : index
    %92 = arith.index_cast %91 : i32 to index
    %c0_15 = arith.constant 0 : index
    %c0_16 = arith.constant 0 : index
    %93 = vector.load %arg1[%c1_13, %c0_14, %92, %c0_15, %c0_16] : memref<2x2x30x30x128xf32, #tpu.memory_space<vmem>>, vector<1x1x1x30x128xf32>
    %94 = vector.shape_cast %93 : vector<1x1x1x30x128xf32> to vector<30x128xf32>
    %cst_17 = arith.constant 0.000000e+00 : f32
    %95 = vector.broadcast %cst_17 : f32 to vector<30x128xf32>
    %96 = arith.maximumf %94, %95 : vector<30x128xf32>
    %97 = vector.extract_strided_slice %96 {offsets = [0, 0], sizes = [28, 128], strides = [1, 1]} : vector<30x128xf32> to vector<28x128xf32>
    %98 = vector.shape_cast %13 : vector<128xf32> to vector<1x128xf32>
    %99 = vector.broadcast %98 : vector<1x128xf32> to vector<28x128xf32>
    %100 = arith.mulf %97, %99 : vector<28x128xf32>
    %101 = arith.addf %89, %100 : vector<28x128xf32>
    %102 = vector.extract_strided_slice %96 {offsets = [1, 0], sizes = [28, 128], strides = [1, 1]} : vector<30x128xf32> to vector<28x128xf32>
    %103 = vector.shape_cast %17 : vector<128xf32> to vector<1x128xf32>
    %104 = vector.broadcast %103 : vector<1x128xf32> to vector<28x128xf32>
    %105 = arith.mulf %102, %104 : vector<28x128xf32>
    %106 = arith.addf %101, %105 : vector<28x128xf32>
    %107 = vector.extract_strided_slice %96 {offsets = [2, 0], sizes = [28, 128], strides = [1, 1]} : vector<30x128xf32> to vector<28x128xf32>
    %108 = vector.shape_cast %21 : vector<128xf32> to vector<1x128xf32>
    %109 = vector.broadcast %108 : vector<1x128xf32> to vector<28x128xf32>
    %110 = arith.mulf %107, %109 : vector<28x128xf32>
    %111 = arith.addf %106, %110 : vector<28x128xf32>
    %c1_18 = arith.constant 1 : index
    %c1_19 = arith.constant 1 : index
    %112 = arith.index_cast %91 : i32 to index
    %c0_20 = arith.constant 0 : index
    %c0_21 = arith.constant 0 : index
    %113 = vector.load %arg1[%c1_18, %c1_19, %112, %c0_20, %c0_21] : memref<2x2x30x30x128xf32, #tpu.memory_space<vmem>>, vector<1x1x1x30x128xf32>
    %114 = vector.shape_cast %113 : vector<1x1x1x30x128xf32> to vector<30x128xf32>
    %cst_22 = arith.constant 0.000000e+00 : f32
    %115 = vector.broadcast %cst_22 : f32 to vector<30x128xf32>
    %116 = arith.maximumf %114, %115 : vector<30x128xf32>
    %117 = vector.extract_strided_slice %116 {offsets = [0, 0], sizes = [28, 128], strides = [1, 1]} : vector<30x128xf32> to vector<28x128xf32>
    %118 = vector.shape_cast %15 : vector<128xf32> to vector<1x128xf32>
    %119 = vector.broadcast %118 : vector<1x128xf32> to vector<28x128xf32>
    %120 = arith.mulf %117, %119 : vector<28x128xf32>
    %121 = arith.addf %111, %120 : vector<28x128xf32>
    %122 = vector.extract_strided_slice %116 {offsets = [1, 0], sizes = [28, 128], strides = [1, 1]} : vector<30x128xf32> to vector<28x128xf32>
    %123 = vector.shape_cast %19 : vector<128xf32> to vector<1x128xf32>
    %124 = vector.broadcast %123 : vector<1x128xf32> to vector<28x128xf32>
    %125 = arith.mulf %122, %124 : vector<28x128xf32>
    %126 = arith.addf %121, %125 : vector<28x128xf32>
    %c0_i32_23 = arith.constant 0 : i32
    %127 = arith.addi %0, %c0_i32_23 : i32
    %c1_i32 = arith.constant 1 : i32
    %128 = arith.addi %127, %c1_i32 : i32
    %c0_24 = arith.constant 0 : index
    %c0_25 = arith.constant 0 : index
    %129 = arith.index_cast %128 : i32 to index
    %c0_26 = arith.constant 0 : index
    %c0_27 = arith.constant 0 : index
    %130 = vector.load %arg1[%c0_24, %c0_25, %129, %c0_26, %c0_27] : memref<2x2x30x30x128xf32, #tpu.memory_space<vmem>>, vector<1x1x1x30x128xf32>
    %131 = vector.shape_cast %130 : vector<1x1x1x30x128xf32> to vector<30x128xf32>
    %cst_28 = arith.constant 0.000000e+00 : f32
    %132 = vector.broadcast %cst_28 : f32 to vector<30x128xf32>
    %133 = arith.maximumf %131, %132 : vector<30x128xf32>
    %134 = vector.extract_strided_slice %133 {offsets = [0, 0], sizes = [28, 128], strides = [1, 1]} : vector<30x128xf32> to vector<28x128xf32>
    %135 = vector.shape_cast %23 : vector<128xf32> to vector<1x128xf32>
    %136 = vector.broadcast %135 : vector<1x128xf32> to vector<28x128xf32>
    %137 = arith.mulf %134, %136 : vector<28x128xf32>
    %138 = arith.addf %126, %137 : vector<28x128xf32>
    %139 = vector.extract_strided_slice %133 {offsets = [1, 0], sizes = [28, 128], strides = [1, 1]} : vector<30x128xf32> to vector<28x128xf32>
    %140 = vector.shape_cast %27 : vector<128xf32> to vector<1x128xf32>
    %141 = vector.broadcast %140 : vector<1x128xf32> to vector<28x128xf32>
    %142 = arith.mulf %139, %141 : vector<28x128xf32>
    %143 = arith.addf %138, %142 : vector<28x128xf32>
    %144 = vector.extract_strided_slice %133 {offsets = [2, 0], sizes = [28, 128], strides = [1, 1]} : vector<30x128xf32> to vector<28x128xf32>
    %145 = vector.shape_cast %31 : vector<128xf32> to vector<1x128xf32>
    %146 = vector.broadcast %145 : vector<1x128xf32> to vector<28x128xf32>
    %147 = arith.mulf %144, %146 : vector<28x128xf32>
    %148 = arith.addf %143, %147 : vector<28x128xf32>
    %c0_29 = arith.constant 0 : index
    %c1_30 = arith.constant 1 : index
    %149 = arith.index_cast %128 : i32 to index
    %c0_31 = arith.constant 0 : index
    %c0_32 = arith.constant 0 : index
    %150 = vector.load %arg1[%c0_29, %c1_30, %149, %c0_31, %c0_32] : memref<2x2x30x30x128xf32, #tpu.memory_space<vmem>>, vector<1x1x1x30x128xf32>
    %151 = vector.shape_cast %150 : vector<1x1x1x30x128xf32> to vector<30x128xf32>
    %cst_33 = arith.constant 0.000000e+00 : f32
    %152 = vector.broadcast %cst_33 : f32 to vector<30x128xf32>
    %153 = arith.maximumf %151, %152 : vector<30x128xf32>
    %154 = vector.extract_strided_slice %153 {offsets = [0, 0], sizes = [28, 128], strides = [1, 1]} : vector<30x128xf32> to vector<28x128xf32>
    %155 = vector.shape_cast %25 : vector<128xf32> to vector<1x128xf32>
    %156 = vector.broadcast %155 : vector<1x128xf32> to vector<28x128xf32>
    %157 = arith.mulf %154, %156 : vector<28x128xf32>
    %158 = arith.addf %148, %157 : vector<28x128xf32>
    %159 = vector.extract_strided_slice %153 {offsets = [1, 0], sizes = [28, 128], strides = [1, 1]} : vector<30x128xf32> to vector<28x128xf32>
    %160 = vector.shape_cast %29 : vector<128xf32> to vector<1x128xf32>
    %161 = vector.broadcast %160 : vector<1x128xf32> to vector<28x128xf32>
    %162 = arith.mulf %159, %161 : vector<28x128xf32>
    %163 = arith.addf %158, %162 : vector<28x128xf32>
    %c0_i32_34 = arith.constant 0 : i32
    %164 = arith.addi %0, %c0_i32_34 : i32
    %c1_i32_35 = arith.constant 1 : i32
    %165 = arith.addi %164, %c1_i32_35 : i32
    %c1_36 = arith.constant 1 : index
    %c0_37 = arith.constant 0 : index
    %166 = arith.index_cast %165 : i32 to index
    %c0_38 = arith.constant 0 : index
    %c0_39 = arith.constant 0 : index
    %167 = vector.load %arg1[%c1_36, %c0_37, %166, %c0_38, %c0_39] : memref<2x2x30x30x128xf32, #tpu.memory_space<vmem>>, vector<1x1x1x30x128xf32>
    %168 = vector.shape_cast %167 : vector<1x1x1x30x128xf32> to vector<30x128xf32>
    %cst_40 = arith.constant 0.000000e+00 : f32
    %169 = vector.broadcast %cst_40 : f32 to vector<30x128xf32>
    %170 = arith.maximumf %168, %169 : vector<30x128xf32>
    %171 = vector.extract_strided_slice %170 {offsets = [0, 0], sizes = [28, 128], strides = [1, 1]} : vector<30x128xf32> to vector<28x128xf32>
    %172 = vector.shape_cast %33 : vector<128xf32> to vector<1x128xf32>
    %173 = vector.broadcast %172 : vector<1x128xf32> to vector<28x128xf32>
    %174 = arith.mulf %171, %173 : vector<28x128xf32>
    %175 = arith.addf %163, %174 : vector<28x128xf32>
    %176 = vector.extract_strided_slice %170 {offsets = [1, 0], sizes = [28, 128], strides = [1, 1]} : vector<30x128xf32> to vector<28x128xf32>
    %177 = vector.shape_cast %37 : vector<128xf32> to vector<1x128xf32>
    %178 = vector.broadcast %177 : vector<1x128xf32> to vector<28x128xf32>
    %179 = arith.mulf %176, %178 : vector<28x128xf32>
    %180 = arith.addf %175, %179 : vector<28x128xf32>
    %181 = vector.extract_strided_slice %170 {offsets = [2, 0], sizes = [28, 128], strides = [1, 1]} : vector<30x128xf32> to vector<28x128xf32>
    %182 = vector.shape_cast %41 : vector<128xf32> to vector<1x128xf32>
    %183 = vector.broadcast %182 : vector<1x128xf32> to vector<28x128xf32>
    %184 = arith.mulf %181, %183 : vector<28x128xf32>
    %185 = arith.addf %180, %184 : vector<28x128xf32>
    %c1_41 = arith.constant 1 : index
    %c1_42 = arith.constant 1 : index
    %186 = arith.index_cast %165 : i32 to index
    %c0_43 = arith.constant 0 : index
    %c0_44 = arith.constant 0 : index
    %187 = vector.load %arg1[%c1_41, %c1_42, %186, %c0_43, %c0_44] : memref<2x2x30x30x128xf32, #tpu.memory_space<vmem>>, vector<1x1x1x30x128xf32>
    %188 = vector.shape_cast %187 : vector<1x1x1x30x128xf32> to vector<30x128xf32>
    %cst_45 = arith.constant 0.000000e+00 : f32
    %189 = vector.broadcast %cst_45 : f32 to vector<30x128xf32>
    %190 = arith.maximumf %188, %189 : vector<30x128xf32>
    %191 = vector.extract_strided_slice %190 {offsets = [0, 0], sizes = [28, 128], strides = [1, 1]} : vector<30x128xf32> to vector<28x128xf32>
    %192 = vector.shape_cast %35 : vector<128xf32> to vector<1x128xf32>
    %193 = vector.broadcast %192 : vector<1x128xf32> to vector<28x128xf32>
    %194 = arith.mulf %191, %193 : vector<28x128xf32>
    %195 = arith.addf %185, %194 : vector<28x128xf32>
    %196 = vector.extract_strided_slice %190 {offsets = [1, 0], sizes = [28, 128], strides = [1, 1]} : vector<30x128xf32> to vector<28x128xf32>
    %197 = vector.shape_cast %39 : vector<128xf32> to vector<1x128xf32>
    %198 = vector.broadcast %197 : vector<1x128xf32> to vector<28x128xf32>
    %199 = arith.mulf %196, %198 : vector<28x128xf32>
    %200 = arith.addf %195, %199 : vector<28x128xf32>
    %c0_i32_46 = arith.constant 0 : i32
    %201 = arith.addi %0, %c0_i32_46 : i32
    %c2_i32 = arith.constant 2 : i32
    %202 = arith.addi %201, %c2_i32 : i32
    %c0_47 = arith.constant 0 : index
    %c0_48 = arith.constant 0 : index
    %203 = arith.index_cast %202 : i32 to index
    %c0_49 = arith.constant 0 : index
    %c0_50 = arith.constant 0 : index
    %204 = vector.load %arg1[%c0_47, %c0_48, %203, %c0_49, %c0_50] : memref<2x2x30x30x128xf32, #tpu.memory_space<vmem>>, vector<1x1x1x30x128xf32>
    %205 = vector.shape_cast %204 : vector<1x1x1x30x128xf32> to vector<30x128xf32>
    %cst_51 = arith.constant 0.000000e+00 : f32
    %206 = vector.broadcast %cst_51 : f32 to vector<30x128xf32>
    %207 = arith.maximumf %205, %206 : vector<30x128xf32>
    %208 = vector.extract_strided_slice %207 {offsets = [0, 0], sizes = [28, 128], strides = [1, 1]} : vector<30x128xf32> to vector<28x128xf32>
    %209 = vector.shape_cast %43 : vector<128xf32> to vector<1x128xf32>
    %210 = vector.broadcast %209 : vector<1x128xf32> to vector<28x128xf32>
    %211 = arith.mulf %208, %210 : vector<28x128xf32>
    %212 = arith.addf %200, %211 : vector<28x128xf32>
    %213 = vector.extract_strided_slice %207 {offsets = [1, 0], sizes = [28, 128], strides = [1, 1]} : vector<30x128xf32> to vector<28x128xf32>
    %214 = vector.shape_cast %47 : vector<128xf32> to vector<1x128xf32>
    %215 = vector.broadcast %214 : vector<1x128xf32> to vector<28x128xf32>
    %216 = arith.mulf %213, %215 : vector<28x128xf32>
    %217 = arith.addf %212, %216 : vector<28x128xf32>
    %218 = vector.extract_strided_slice %207 {offsets = [2, 0], sizes = [28, 128], strides = [1, 1]} : vector<30x128xf32> to vector<28x128xf32>
    %219 = vector.shape_cast %51 : vector<128xf32> to vector<1x128xf32>
    %220 = vector.broadcast %219 : vector<1x128xf32> to vector<28x128xf32>
    %221 = arith.mulf %218, %220 : vector<28x128xf32>
    %222 = arith.addf %217, %221 : vector<28x128xf32>
    %c0_52 = arith.constant 0 : index
    %c1_53 = arith.constant 1 : index
    %223 = arith.index_cast %202 : i32 to index
    %c0_54 = arith.constant 0 : index
    %c0_55 = arith.constant 0 : index
    %224 = vector.load %arg1[%c0_52, %c1_53, %223, %c0_54, %c0_55] : memref<2x2x30x30x128xf32, #tpu.memory_space<vmem>>, vector<1x1x1x30x128xf32>
    %225 = vector.shape_cast %224 : vector<1x1x1x30x128xf32> to vector<30x128xf32>
    %cst_56 = arith.constant 0.000000e+00 : f32
    %226 = vector.broadcast %cst_56 : f32 to vector<30x128xf32>
    %227 = arith.maximumf %225, %226 : vector<30x128xf32>
    %228 = vector.extract_strided_slice %227 {offsets = [0, 0], sizes = [28, 128], strides = [1, 1]} : vector<30x128xf32> to vector<28x128xf32>
    %229 = vector.shape_cast %45 : vector<128xf32> to vector<1x128xf32>
    %230 = vector.broadcast %229 : vector<1x128xf32> to vector<28x128xf32>
    %231 = arith.mulf %228, %230 : vector<28x128xf32>
    %232 = arith.addf %222, %231 : vector<28x128xf32>
    %233 = vector.extract_strided_slice %227 {offsets = [1, 0], sizes = [28, 128], strides = [1, 1]} : vector<30x128xf32> to vector<28x128xf32>
    %234 = vector.shape_cast %49 : vector<128xf32> to vector<1x128xf32>
    %235 = vector.broadcast %234 : vector<1x128xf32> to vector<28x128xf32>
    %236 = arith.mulf %233, %235 : vector<28x128xf32>
    %237 = arith.addf %232, %236 : vector<28x128xf32>
    %c0_57 = arith.constant 0 : index
    %c0_58 = arith.constant 0 : index
    %c0_59 = arith.constant 0 : index
    %238 = vector.load %arg3[%c0_57, %c0_58, %c0_59] : memref<14x28x128xf32, #tpu.memory_space<vmem>>, vector<1x28x128xf32>
    %239 = vector.shape_cast %238 : vector<1x28x128xf32> to vector<28x128xf32>
    %240 = vector.shape_cast %237 : vector<28x128xf32> to vector<1x28x128xf32>
    tpu.vector_store %arg3[%c0_57, %c0_58, %c0_59], %240 {strides = array<i32>} : memref<14x28x128xf32, #tpu.memory_space<vmem>>, vector<1x28x128xf32>,
    %cst_60 = arith.constant 0.000000e+00 : f32
    %241 = vector.broadcast %cst_60 : f32 to vector<28x128xf32>
    %c1_i32_61 = arith.constant 1 : i32
    %242 = arith.addi %0, %c1_i32_61 : i32
    %c0_i32_62 = arith.constant 0 : i32
    %243 = arith.addi %242, %c0_i32_62 : i32
    %c0_63 = arith.constant 0 : index
    %c0_64 = arith.constant 0 : index
    %244 = arith.index_cast %243 : i32 to index
    %c0_65 = arith.constant 0 : index
    %c0_66 = arith.constant 0 : index
    %245 = vector.load %arg1[%c0_63, %c0_64, %244, %c0_65, %c0_66] : memref<2x2x30x30x128xf32, #tpu.memory_space<vmem>>, vector<1x1x1x30x128xf32>
    %246 = vector.shape_cast %245 : vector<1x1x1x30x128xf32> to vector<30x128xf32>
    %cst_67 = arith.constant 0.000000e+00 : f32
    %247 = vector.broadcast %cst_67 : f32 to vector<30x128xf32>
    %248 = arith.maximumf %246, %247 : vector<30x128xf32>
    %249 = vector.extract_strided_slice %248 {offsets = [0, 0], sizes = [28, 128], strides = [1, 1]} : vector<30x128xf32> to vector<28x128xf32>
    %250 = vector.shape_cast %3 : vector<128xf32> to vector<1x128xf32>
    %251 = vector.broadcast %250 : vector<1x128xf32> to vector<28x128xf32>
    %252 = arith.mulf %249, %251 : vector<28x128xf32>
    %253 = arith.addf %241, %252 : vector<28x128xf32>
    %254 = vector.extract_strided_slice %248 {offsets = [1, 0], sizes = [28, 128], strides = [1, 1]} : vector<30x128xf32> to vector<28x128xf32>
    %255 = vector.shape_cast %7 : vector<128xf32> to vector<1x128xf32>
    %256 = vector.broadcast %255 : vector<1x128xf32> to vector<28x128xf32>
    %257 = arith.mulf %254, %256 : vector<28x128xf32>
    %258 = arith.addf %253, %257 : vector<28x128xf32>
    %259 = vector.extract_strided_slice %248 {offsets = [2, 0], sizes = [28, 128], strides = [1, 1]} : vector<30x128xf32> to vector<28x128xf32>
    %260 = vector.shape_cast %11 : vector<128xf32> to vector<1x128xf32>
    %261 = vector.broadcast %260 : vector<1x128xf32> to vector<28x128xf32>
    %262 = arith.mulf %259, %261 : vector<28x128xf32>
    %263 = arith.addf %258, %262 : vector<28x128xf32>
    %c0_68 = arith.constant 0 : index
    %c1_69 = arith.constant 1 : index
    %264 = arith.index_cast %243 : i32 to index
    %c0_70 = arith.constant 0 : index
    %c0_71 = arith.constant 0 : index
    %265 = vector.load %arg1[%c0_68, %c1_69, %264, %c0_70, %c0_71] : memref<2x2x30x30x128xf32, #tpu.memory_space<vmem>>, vector<1x1x1x30x128xf32>
    %266 = vector.shape_cast %265 : vector<1x1x1x30x128xf32> to vector<30x128xf32>
    %cst_72 = arith.constant 0.000000e+00 : f32
    %267 = vector.broadcast %cst_72 : f32 to vector<30x128xf32>
    %268 = arith.maximumf %266, %267 : vector<30x128xf32>
    %269 = vector.extract_strided_slice %268 {offsets = [0, 0], sizes = [28, 128], strides = [1, 1]} : vector<30x128xf32> to vector<28x128xf32>
    %270 = vector.shape_cast %5 : vector<128xf32> to vector<1x128xf32>
    %271 = vector.broadcast %270 : vector<1x128xf32> to vector<28x128xf32>
    %272 = arith.mulf %269, %271 : vector<28x128xf32>
    %273 = arith.addf %263, %272 : vector<28x128xf32>
    %274 = vector.extract_strided_slice %268 {offsets = [1, 0], sizes = [28, 128], strides = [1, 1]} : vector<30x128xf32> to vector<28x128xf32>
    %275 = vector.shape_cast %9 : vector<128xf32> to vector<1x128xf32>
    %276 = vector.broadcast %275 : vector<1x128xf32> to vector<28x128xf32>
    %277 = arith.mulf %274, %276 : vector<28x128xf32>
    %278 = arith.addf %273, %277 : vector<28x128xf32>
    %c1_i32_73 = arith.constant 1 : i32
    %279 = arith.addi %0, %c1_i32_73 : i32
    %c0_i32_74 = arith.constant 0 : i32
    %280 = arith.addi %279, %c0_i32_74 : i32
    %c1_75 = arith.constant 1 : index
    %c0_76 = arith.constant 0 : index
    %281 = arith.index_cast %280 : i32 to index
    %c0_77 = arith.constant 0 : index
    %c0_78 = arith.constant 0 : index
    %282 = vector.load %arg1[%c1_75, %c0_76, %281, %c0_77, %c0_78] : memref<2x2x30x30x128xf32, #tpu.memory_space<vmem>>, vector<1x1x1x30x128xf32>
    %283 = vector.shape_cast %282 : vector<1x1x1x30x128xf32> to vector<30x128xf32>
    %cst_79 = arith.constant 0.000000e+00 : f32
    %284 = vector.broadcast %cst_79 : f32 to vector<30x128xf32>
    %285 = arith.maximumf %283, %284 : vector<30x128xf32>
    %286 = vector.extract_strided_slice %285 {offsets = [0, 0], sizes = [28, 128], strides = [1, 1]} : vector<30x128xf32> to vector<28x128xf32>
    %287 = vector.shape_cast %13 : vector<128xf32> to vector<1x128xf32>
    %288 = vector.broadcast %287 : vector<1x128xf32> to vector<28x128xf32>
    %289 = arith.mulf %286, %288 : vector<28x128xf32>
    %290 = arith.addf %278, %289 : vector<28x128xf32>
    %291 = vector.extract_strided_slice %285 {offsets = [1, 0], sizes = [28, 128], strides = [1, 1]} : vector<30x128xf32> to vector<28x128xf32>
    %292 = vector.shape_cast %17 : vector<128xf32> to vector<1x128xf32>
    %293 = vector.broadcast %292 : vector<1x128xf32> to vector<28x128xf32>
    %294 = arith.mulf %291, %293 : vector<28x128xf32>
    %295 = arith.addf %290, %294 : vector<28x128xf32>
    %296 = vector.extract_strided_slice %285 {offsets = [2, 0], sizes = [28, 128], strides = [1, 1]} : vector<30x128xf32> to vector<28x128xf32>
    %297 = vector.shape_cast %21 : vector<128xf32> to vector<1x128xf32>
    %298 = vector.broadcast %297 : vector<1x128xf32> to vector<28x128xf32>
    %299 = arith.mulf %296, %298 : vector<28x128xf32>
    %300 = arith.addf %295, %299 : vector<28x128xf32>
    %c1_80 = arith.constant 1 : index
    %c1_81 = arith.constant 1 : index
    %301 = arith.index_cast %280 : i32 to index
    %c0_82 = arith.constant 0 : index
    %c0_83 = arith.constant 0 : index
    %302 = vector.load %arg1[%c1_80, %c1_81, %301, %c0_82, %c0_83] : memref<2x2x30x30x128xf32, #tpu.memory_space<vmem>>, vector<1x1x1x30x128xf32>
    %303 = vector.shape_cast %302 : vector<1x1x1x30x128xf32> to vector<30x128xf32>
    %cst_84 = arith.constant 0.000000e+00 : f32
    %304 = vector.broadcast %cst_84 : f32 to vector<30x128xf32>
    %305 = arith.maximumf %303, %304 : vector<30x128xf32>
    %306 = vector.extract_strided_slice %305 {offsets = [0, 0], sizes = [28, 128], strides = [1, 1]} : vector<30x128xf32> to vector<28x128xf32>
    %307 = vector.shape_cast %15 : vector<128xf32> to vector<1x128xf32>
    %308 = vector.broadcast %307 : vector<1x128xf32> to vector<28x128xf32>
    %309 = arith.mulf %306, %308 : vector<28x128xf32>
    %310 = arith.addf %300, %309 : vector<28x128xf32>
    %311 = vector.extract_strided_slice %305 {offsets = [1, 0], sizes = [28, 128], strides = [1, 1]} : vector<30x128xf32> to vector<28x128xf32>
    %312 = vector.shape_cast %19 : vector<128xf32> to vector<1x128xf32>
    %313 = vector.broadcast %312 : vector<1x128xf32> to vector<28x128xf32>
    %314 = arith.mulf %311, %313 : vector<28x128xf32>
    %315 = arith.addf %310, %314 : vector<28x128xf32>
    %c1_i32_85 = arith.constant 1 : i32
    %316 = arith.addi %0, %c1_i32_85 : i32
    %c1_i32_86 = arith.constant 1 : i32
    %317 = arith.addi %316, %c1_i32_86 : i32
    %c0_87 = arith.constant 0 : index
    %c0_88 = arith.constant 0 : index
    %318 = arith.index_cast %317 : i32 to index
    %c0_89 = arith.constant 0 : index
    %c0_90 = arith.constant 0 : index
    %319 = vector.load %arg1[%c0_87, %c0_88, %318, %c0_89, %c0_90] : memref<2x2x30x30x128xf32, #tpu.memory_space<vmem>>, vector<1x1x1x30x128xf32>
    %320 = vector.shape_cast %319 : vector<1x1x1x30x128xf32> to vector<30x128xf32>
    %cst_91 = arith.constant 0.000000e+00 : f32
    %321 = vector.broadcast %cst_91 : f32 to vector<30x128xf32>
    %322 = arith.maximumf %320, %321 : vector<30x128xf32>
    %323 = vector.extract_strided_slice %322 {offsets = [0, 0], sizes = [28, 128], strides = [1, 1]} : vector<30x128xf32> to vector<28x128xf32>
    %324 = vector.shape_cast %23 : vector<128xf32> to vector<1x128xf32>
    %325 = vector.broadcast %324 : vector<1x128xf32> to vector<28x128xf32>
    %326 = arith.mulf %323, %325 : vector<28x128xf32>
    %327 = arith.addf %315, %326 : vector<28x128xf32>
    %328 = vector.extract_strided_slice %322 {offsets = [1, 0], sizes = [28, 128], strides = [1, 1]} : vector<30x128xf32> to vector<28x128xf32>
    %329 = vector.shape_cast %27 : vector<128xf32> to vector<1x128xf32>
    %330 = vector.broadcast %329 : vector<1x128xf32> to vector<28x128xf32>
    %331 = arith.mulf %328, %330 : vector<28x128xf32>
    %332 = arith.addf %327, %331 : vector<28x128xf32>
    %333 = vector.extract_strided_slice %322 {offsets = [2, 0], sizes = [28, 128], strides = [1, 1]} : vector<30x128xf32> to vector<28x128xf32>
    %334 = vector.shape_cast %31 : vector<128xf32> to vector<1x128xf32>
    %335 = vector.broadcast %334 : vector<1x128xf32> to vector<28x128xf32>
    %336 = arith.mulf %333, %335 : vector<28x128xf32>
    %337 = arith.addf %332, %336 : vector<28x128xf32>
    %c0_92 = arith.constant 0 : index
    %c1_93 = arith.constant 1 : index
    %338 = arith.index_cast %317 : i32 to index
    %c0_94 = arith.constant 0 : index
    %c0_95 = arith.constant 0 : index
    %339 = vector.load %arg1[%c0_92, %c1_93, %338, %c0_94, %c0_95] : memref<2x2x30x30x128xf32, #tpu.memory_space<vmem>>, vector<1x1x1x30x128xf32>
    %340 = vector.shape_cast %339 : vector<1x1x1x30x128xf32> to vector<30x128xf32>
    %cst_96 = arith.constant 0.000000e+00 : f32
    %341 = vector.broadcast %cst_96 : f32 to vector<30x128xf32>
    %342 = arith.maximumf %340, %341 : vector<30x128xf32>
    %343 = vector.extract_strided_slice %342 {offsets = [0, 0], sizes = [28, 128], strides = [1, 1]} : vector<30x128xf32> to vector<28x128xf32>
    %344 = vector.shape_cast %25 : vector<128xf32> to vector<1x128xf32>
    %345 = vector.broadcast %344 : vector<1x128xf32> to vector<28x128xf32>
    %346 = arith.mulf %343, %345 : vector<28x128xf32>
    %347 = arith.addf %337, %346 : vector<28x128xf32>
    %348 = vector.extract_strided_slice %342 {offsets = [1, 0], sizes = [28, 128], strides = [1, 1]} : vector<30x128xf32> to vector<28x128xf32>
    %349 = vector.shape_cast %29 : vector<128xf32> to vector<1x128xf32>
    %350 = vector.broadcast %349 : vector<1x128xf32> to vector<28x128xf32>
    %351 = arith.mulf %348, %350 : vector<28x128xf32>
    %352 = arith.addf %347, %351 : vector<28x128xf32>
    %c1_i32_97 = arith.constant 1 : i32
    %353 = arith.addi %0, %c1_i32_97 : i32
    %c1_i32_98 = arith.constant 1 : i32
    %354 = arith.addi %353, %c1_i32_98 : i32
    %c1_99 = arith.constant 1 : index
    %c0_100 = arith.constant 0 : index
    %355 = arith.index_cast %354 : i32 to index
    %c0_101 = arith.constant 0 : index
    %c0_102 = arith.constant 0 : index
    %356 = vector.load %arg1[%c1_99, %c0_100, %355, %c0_101, %c0_102] : memref<2x2x30x30x128xf32, #tpu.memory_space<vmem>>, vector<1x1x1x30x128xf32>
    %357 = vector.shape_cast %356 : vector<1x1x1x30x128xf32> to vector<30x128xf32>
    %cst_103 = arith.constant 0.000000e+00 : f32
    %358 = vector.broadcast %cst_103 : f32 to vector<30x128xf32>
    %359 = arith.maximumf %357, %358 : vector<30x128xf32>
    %360 = vector.extract_strided_slice %359 {offsets = [0, 0], sizes = [28, 128], strides = [1, 1]} : vector<30x128xf32> to vector<28x128xf32>
    %361 = vector.shape_cast %33 : vector<128xf32> to vector<1x128xf32>
    %362 = vector.broadcast %361 : vector<1x128xf32> to vector<28x128xf32>
    %363 = arith.mulf %360, %362 : vector<28x128xf32>
    %364 = arith.addf %352, %363 : vector<28x128xf32>
    %365 = vector.extract_strided_slice %359 {offsets = [1, 0], sizes = [28, 128], strides = [1, 1]} : vector<30x128xf32> to vector<28x128xf32>
    %366 = vector.shape_cast %37 : vector<128xf32> to vector<1x128xf32>
    %367 = vector.broadcast %366 : vector<1x128xf32> to vector<28x128xf32>
    %368 = arith.mulf %365, %367 : vector<28x128xf32>
    %369 = arith.addf %364, %368 : vector<28x128xf32>
    %370 = vector.extract_strided_slice %359 {offsets = [2, 0], sizes = [28, 128], strides = [1, 1]} : vector<30x128xf32> to vector<28x128xf32>
    %371 = vector.shape_cast %41 : vector<128xf32> to vector<1x128xf32>
    %372 = vector.broadcast %371 : vector<1x128xf32> to vector<28x128xf32>
    %373 = arith.mulf %370, %372 : vector<28x128xf32>
    %374 = arith.addf %369, %373 : vector<28x128xf32>
    %c1_104 = arith.constant 1 : index
    %c1_105 = arith.constant 1 : index
    %375 = arith.index_cast %354 : i32 to index
    %c0_106 = arith.constant 0 : index
    %c0_107 = arith.constant 0 : index
    %376 = vector.load %arg1[%c1_104, %c1_105, %375, %c0_106, %c0_107] : memref<2x2x30x30x128xf32, #tpu.memory_space<vmem>>, vector<1x1x1x30x128xf32>
    %377 = vector.shape_cast %376 : vector<1x1x1x30x128xf32> to vector<30x128xf32>
    %cst_108 = arith.constant 0.000000e+00 : f32
    %378 = vector.broadcast %cst_108 : f32 to vector<30x128xf32>
    %379 = arith.maximumf %377, %378 : vector<30x128xf32>
    %380 = vector.extract_strided_slice %379 {offsets = [0, 0], sizes = [28, 128], strides = [1, 1]} : vector<30x128xf32> to vector<28x128xf32>
    %381 = vector.shape_cast %35 : vector<128xf32> to vector<1x128xf32>
    %382 = vector.broadcast %381 : vector<1x128xf32> to vector<28x128xf32>
    %383 = arith.mulf %380, %382 : vector<28x128xf32>
    %384 = arith.addf %374, %383 : vector<28x128xf32>
    %385 = vector.extract_strided_slice %379 {offsets = [1, 0], sizes = [28, 128], strides = [1, 1]} : vector<30x128xf32> to vector<28x128xf32>
    %386 = vector.shape_cast %39 : vector<128xf32> to vector<1x128xf32>
    %387 = vector.broadcast %386 : vector<1x128xf32> to vector<28x128xf32>
    %388 = arith.mulf %385, %387 : vector<28x128xf32>
    %389 = arith.addf %384, %388 : vector<28x128xf32>
    %c1_i32_109 = arith.constant 1 : i32
    %390 = arith.addi %0, %c1_i32_109 : i32
    %c2_i32_110 = arith.constant 2 : i32
    %391 = arith.addi %390, %c2_i32_110 : i32
    %c0_111 = arith.constant 0 : index
    %c0_112 = arith.constant 0 : index
    %392 = arith.index_cast %391 : i32 to index
    %c0_113 = arith.constant 0 : index
    %c0_114 = arith.constant 0 : index
    %393 = vector.load %arg1[%c0_111, %c0_112, %392, %c0_113, %c0_114] : memref<2x2x30x30x128xf32, #tpu.memory_space<vmem>>, vector<1x1x1x30x128xf32>
    %394 = vector.shape_cast %393 : vector<1x1x1x30x128xf32> to vector<30x128xf32>
    %cst_115 = arith.constant 0.000000e+00 : f32
    %395 = vector.broadcast %cst_115 : f32 to vector<30x128xf32>
    %396 = arith.maximumf %394, %395 : vector<30x128xf32>
    %397 = vector.extract_strided_slice %396 {offsets = [0, 0], sizes = [28, 128], strides = [1, 1]} : vector<30x128xf32> to vector<28x128xf32>
    %398 = vector.shape_cast %43 : vector<128xf32> to vector<1x128xf32>
    %399 = vector.broadcast %398 : vector<1x128xf32> to vector<28x128xf32>
    %400 = arith.mulf %397, %399 : vector<28x128xf32>
    %401 = arith.addf %389, %400 : vector<28x128xf32>
    %402 = vector.extract_strided_slice %396 {offsets = [1, 0], sizes = [28, 128], strides = [1, 1]} : vector<30x128xf32> to vector<28x128xf32>
    %403 = vector.shape_cast %47 : vector<128xf32> to vector<1x128xf32>
    %404 = vector.broadcast %403 : vector<1x128xf32> to vector<28x128xf32>
    %405 = arith.mulf %402, %404 : vector<28x128xf32>
    %406 = arith.addf %401, %405 : vector<28x128xf32>
    %407 = vector.extract_strided_slice %396 {offsets = [2, 0], sizes = [28, 128], strides = [1, 1]} : vector<30x128xf32> to vector<28x128xf32>
    %408 = vector.shape_cast %51 : vector<128xf32> to vector<1x128xf32>
    %409 = vector.broadcast %408 : vector<1x128xf32> to vector<28x128xf32>
    %410 = arith.mulf %407, %409 : vector<28x128xf32>
    %411 = arith.addf %406, %410 : vector<28x128xf32>
    %c0_116 = arith.constant 0 : index
    %c1_117 = arith.constant 1 : index
    %412 = arith.index_cast %391 : i32 to index
    %c0_118 = arith.constant 0 : index
    %c0_119 = arith.constant 0 : index
    %413 = vector.load %arg1[%c0_116, %c1_117, %412, %c0_118, %c0_119] : memref<2x2x30x30x128xf32, #tpu.memory_space<vmem>>, vector<1x1x1x30x128xf32>
    %414 = vector.shape_cast %413 : vector<1x1x1x30x128xf32> to vector<30x128xf32>
    %cst_120 = arith.constant 0.000000e+00 : f32
    %415 = vector.broadcast %cst_120 : f32 to vector<30x128xf32>
    %416 = arith.maximumf %414, %415 : vector<30x128xf32>
    %417 = vector.extract_strided_slice %416 {offsets = [0, 0], sizes = [28, 128], strides = [1, 1]} : vector<30x128xf32> to vector<28x128xf32>
    %418 = vector.shape_cast %45 : vector<128xf32> to vector<1x128xf32>
    %419 = vector.broadcast %418 : vector<1x128xf32> to vector<28x128xf32>
    %420 = arith.mulf %417, %419 : vector<28x128xf32>
    %421 = arith.addf %411, %420 : vector<28x128xf32>
    %422 = vector.extract_strided_slice %416 {offsets = [1, 0], sizes = [28, 128], strides = [1, 1]} : vector<30x128xf32> to vector<28x128xf32>
    %423 = vector.shape_cast %49 : vector<128xf32> to vector<1x128xf32>
    %424 = vector.broadcast %423 : vector<1x128xf32> to vector<28x128xf32>
    %425 = arith.mulf %422, %424 : vector<28x128xf32>
    %426 = arith.addf %421, %425 : vector<28x128xf32>
    %c1_121 = arith.constant 1 : index
    %c0_122 = arith.constant 0 : index
    %c0_123 = arith.constant 0 : index
    %427 = vector.load %arg3[%c1_121, %c0_122, %c0_123] : memref<14x28x128xf32, #tpu.memory_space<vmem>>, vector<1x28x128xf32>
    %428 = vector.shape_cast %427 : vector<1x28x128xf32> to vector<28x128xf32>
    %429 = vector.shape_cast %426 : vector<28x128xf32> to vector<1x28x128xf32>
    tpu.vector_store %arg3[%c1_121, %c0_122, %c0_123], %429 {strides = array<i32>} : memref<14x28x128xf32, #tpu.memory_space<vmem>>, vector<1x28x128xf32>,
    %cst_124 = arith.constant 0.000000e+00 : f32
    %430 = vector.broadcast %cst_124 : f32 to vector<28x128xf32>
    %c2_i32_125 = arith.constant 2 : i32
    %431 = arith.addi %0, %c2_i32_125 : i32
    %c0_i32_126 = arith.constant 0 : i32
    %432 = arith.addi %431, %c0_i32_126 : i32
    %c0_127 = arith.constant 0 : index
    %c0_128 = arith.constant 0 : index
    %433 = arith.index_cast %432 : i32 to index
    %c0_129 = arith.constant 0 : index
    %c0_130 = arith.constant 0 : index
    %434 = vector.load %arg1[%c0_127, %c0_128, %433, %c0_129, %c0_130] : memref<2x2x30x30x128xf32, #tpu.memory_space<vmem>>, vector<1x1x1x30x128xf32>
    %435 = vector.shape_cast %434 : vector<1x1x1x30x128xf32> to vector<30x128xf32>
    %cst_131 = arith.constant 0.000000e+00 : f32
    %436 = vector.broadcast %cst_131 : f32 to vector<30x128xf32>
    %437 = arith.maximumf %435, %436 : vector<30x128xf32>
    %438 = vector.extract_strided_slice %437 {offsets = [0, 0], sizes = [28, 128], strides = [1, 1]} : vector<30x128xf32> to vector<28x128xf32>
    %439 = vector.shape_cast %3 : vector<128xf32> to vector<1x128xf32>
    %440 = vector.broadcast %439 : vector<1x128xf32> to vector<28x128xf32>
    %441 = arith.mulf %438, %440 : vector<28x128xf32>
    %442 = arith.addf %430, %441 : vector<28x128xf32>
    %443 = vector.extract_strided_slice %437 {offsets = [1, 0], sizes = [28, 128], strides = [1, 1]} : vector<30x128xf32> to vector<28x128xf32>
    %444 = vector.shape_cast %7 : vector<128xf32> to vector<1x128xf32>
    %445 = vector.broadcast %444 : vector<1x128xf32> to vector<28x128xf32>
    %446 = arith.mulf %443, %445 : vector<28x128xf32>
    %447 = arith.addf %442, %446 : vector<28x128xf32>
    %448 = vector.extract_strided_slice %437 {offsets = [2, 0], sizes = [28, 128], strides = [1, 1]} : vector<30x128xf32> to vector<28x128xf32>
    %449 = vector.shape_cast %11 : vector<128xf32> to vector<1x128xf32>
    %450 = vector.broadcast %449 : vector<1x128xf32> to vector<28x128xf32>
    %451 = arith.mulf %448, %450 : vector<28x128xf32>
    %452 = arith.addf %447, %451 : vector<28x128xf32>
    %c0_132 = arith.constant 0 : index
    %c1_133 = arith.constant 1 : index
    %453 = arith.index_cast %432 : i32 to index
    %c0_134 = arith.constant 0 : index
    %c0_135 = arith.constant 0 : index
    %454 = vector.load %arg1[%c0_132, %c1_133, %453, %c0_134, %c0_135] : memref<2x2x30x30x128xf32, #tpu.memory_space<vmem>>, vector<1x1x1x30x128xf32>
    %455 = vector.shape_cast %454 : vector<1x1x1x30x128xf32> to vector<30x128xf32>
    %cst_136 = arith.constant 0.000000e+00 : f32
    %456 = vector.broadcast %cst_136 : f32 to vector<30x128xf32>
    %457 = arith.maximumf %455, %456 : vector<30x128xf32>
    %458 = vector.extract_strided_slice %457 {offsets = [0, 0], sizes = [28, 128], strides = [1, 1]} : vector<30x128xf32> to vector<28x128xf32>
    %459 = vector.shape_cast %5 : vector<128xf32> to vector<1x128xf32>
    %460 = vector.broadcast %459 : vector<1x128xf32> to vector<28x128xf32>
    %461 = arith.mulf %458, %460 : vector<28x128xf32>
    %462 = arith.addf %452, %461 : vector<28x128xf32>
    %463 = vector.extract_strided_slice %457 {offsets = [1, 0], sizes = [28, 128], strides = [1, 1]} : vector<30x128xf32> to vector<28x128xf32>
    %464 = vector.shape_cast %9 : vector<128xf32> to vector<1x128xf32>
    %465 = vector.broadcast %464 : vector<1x128xf32> to vector<28x128xf32>
    %466 = arith.mulf %463, %465 : vector<28x128xf32>
    %467 = arith.addf %462, %466 : vector<28x128xf32>
    %c2_i32_137 = arith.constant 2 : i32
    %468 = arith.addi %0, %c2_i32_137 : i32
    %c0_i32_138 = arith.constant 0 : i32
    %469 = arith.addi %468, %c0_i32_138 : i32
    %c1_139 = arith.constant 1 : index
    %c0_140 = arith.constant 0 : index
    %470 = arith.index_cast %469 : i32 to index
    %c0_141 = arith.constant 0 : index
    %c0_142 = arith.constant 0 : index
    %471 = vector.load %arg1[%c1_139, %c0_140, %470, %c0_141, %c0_142] : memref<2x2x30x30x128xf32, #tpu.memory_space<vmem>>, vector<1x1x1x30x128xf32>
    %472 = vector.shape_cast %471 : vector<1x1x1x30x128xf32> to vector<30x128xf32>
    %cst_143 = arith.constant 0.000000e+00 : f32
    %473 = vector.broadcast %cst_143 : f32 to vector<30x128xf32>
    %474 = arith.maximumf %472, %473 : vector<30x128xf32>
    %475 = vector.extract_strided_slice %474 {offsets = [0, 0], sizes = [28, 128], strides = [1, 1]} : vector<30x128xf32> to vector<28x128xf32>
    %476 = vector.shape_cast %13 : vector<128xf32> to vector<1x128xf32>
    %477 = vector.broadcast %476 : vector<1x128xf32> to vector<28x128xf32>
    %478 = arith.mulf %475, %477 : vector<28x128xf32>
    %479 = arith.addf %467, %478 : vector<28x128xf32>
    %480 = vector.extract_strided_slice %474 {offsets = [1, 0], sizes = [28, 128], strides = [1, 1]} : vector<30x128xf32> to vector<28x128xf32>
    %481 = vector.shape_cast %17 : vector<128xf32> to vector<1x128xf32>
    %482 = vector.broadcast %481 : vector<1x128xf32> to vector<28x128xf32>
    %483 = arith.mulf %480, %482 : vector<28x128xf32>
    %484 = arith.addf %479, %483 : vector<28x128xf32>
    %485 = vector.extract_strided_slice %474 {offsets = [2, 0], sizes = [28, 128], strides = [1, 1]} : vector<30x128xf32> to vector<28x128xf32>
    %486 = vector.shape_cast %21 : vector<128xf32> to vector<1x128xf32>
    %487 = vector.broadcast %486 : vector<1x128xf32> to vector<28x128xf32>
    %488 = arith.mulf %485, %487 : vector<28x128xf32>
    %489 = arith.addf %484, %488 : vector<28x128xf32>
    %c1_144 = arith.constant 1 : index
    %c1_145 = arith.constant 1 : index
    %490 = arith.index_cast %469 : i32 to index
    %c0_146 = arith.constant 0 : index
    %c0_147 = arith.constant 0 : index
    %491 = vector.load %arg1[%c1_144, %c1_145, %490, %c0_146, %c0_147] : memref<2x2x30x30x128xf32, #tpu.memory_space<vmem>>, vector<1x1x1x30x128xf32>
    %492 = vector.shape_cast %491 : vector<1x1x1x30x128xf32> to vector<30x128xf32>
    %cst_148 = arith.constant 0.000000e+00 : f32
    %493 = vector.broadcast %cst_148 : f32 to vector<30x128xf32>
    %494 = arith.maximumf %492, %493 : vector<30x128xf32>
    %495 = vector.extract_strided_slice %494 {offsets = [0, 0], sizes = [28, 128], strides = [1, 1]} : vector<30x128xf32> to vector<28x128xf32>
    %496 = vector.shape_cast %15 : vector<128xf32> to vector<1x128xf32>
    %497 = vector.broadcast %496 : vector<1x128xf32> to vector<28x128xf32>
    %498 = arith.mulf %495, %497 : vector<28x128xf32>
    %499 = arith.addf %489, %498 : vector<28x128xf32>
    %500 = vector.extract_strided_slice %494 {offsets = [1, 0], sizes = [28, 128], strides = [1, 1]} : vector<30x128xf32> to vector<28x128xf32>
    %501 = vector.shape_cast %19 : vector<128xf32> to vector<1x128xf32>
    %502 = vector.broadcast %501 : vector<1x128xf32> to vector<28x128xf32>
    %503 = arith.mulf %500, %502 : vector<28x128xf32>
    %504 = arith.addf %499, %503 : vector<28x128xf32>
    %c2_i32_149 = arith.constant 2 : i32
    %505 = arith.addi %0, %c2_i32_149 : i32
    %c1_i32_150 = arith.constant 1 : i32
    %506 = arith.addi %505, %c1_i32_150 : i32
    %c0_151 = arith.constant 0 : index
    %c0_152 = arith.constant 0 : index
    %507 = arith.index_cast %506 : i32 to index
    %c0_153 = arith.constant 0 : index
    %c0_154 = arith.constant 0 : index
    %508 = vector.load %arg1[%c0_151, %c0_152, %507, %c0_153, %c0_154] : memref<2x2x30x30x128xf32, #tpu.memory_space<vmem>>, vector<1x1x1x30x128xf32>
    %509 = vector.shape_cast %508 : vector<1x1x1x30x128xf32> to vector<30x128xf32>
    %cst_155 = arith.constant 0.000000e+00 : f32
    %510 = vector.broadcast %cst_155 : f32 to vector<30x128xf32>
    %511 = arith.maximumf %509, %510 : vector<30x128xf32>
    %512 = vector.extract_strided_slice %511 {offsets = [0, 0], sizes = [28, 128], strides = [1, 1]} : vector<30x128xf32> to vector<28x128xf32>
    %513 = vector.shape_cast %23 : vector<128xf32> to vector<1x128xf32>
    %514 = vector.broadcast %513 : vector<1x128xf32> to vector<28x128xf32>
    %515 = arith.mulf %512, %514 : vector<28x128xf32>
    %516 = arith.addf %504, %515 : vector<28x128xf32>
    %517 = vector.extract_strided_slice %511 {offsets = [1, 0], sizes = [28, 128], strides = [1, 1]} : vector<30x128xf32> to vector<28x128xf32>
    %518 = vector.shape_cast %27 : vector<128xf32> to vector<1x128xf32>
    %519 = vector.broadcast %518 : vector<1x128xf32> to vector<28x128xf32>
    %520 = arith.mulf %517, %519 : vector<28x128xf32>
    %521 = arith.addf %516, %520 : vector<28x128xf32>
    %522 = vector.extract_strided_slice %511 {offsets = [2, 0], sizes = [28, 128], strides = [1, 1]} : vector<30x128xf32> to vector<28x128xf32>
    %523 = vector.shape_cast %31 : vector<128xf32> to vector<1x128xf32>
    %524 = vector.broadcast %523 : vector<1x128xf32> to vector<28x128xf32>
    %525 = arith.mulf %522, %524 : vector<28x128xf32>
    %526 = arith.addf %521, %525 : vector<28x128xf32>
    %c0_156 = arith.constant 0 : index
    %c1_157 = arith.constant 1 : index
    %527 = arith.index_cast %506 : i32 to index
    %c0_158 = arith.constant 0 : index
    %c0_159 = arith.constant 0 : index
    %528 = vector.load %arg1[%c0_156, %c1_157, %527, %c0_158, %c0_159] : memref<2x2x30x30x128xf32, #tpu.memory_space<vmem>>, vector<1x1x1x30x128xf32>
    %529 = vector.shape_cast %528 : vector<1x1x1x30x128xf32> to vector<30x128xf32>
    %cst_160 = arith.constant 0.000000e+00 : f32
    %530 = vector.broadcast %cst_160 : f32 to vector<30x128xf32>
    %531 = arith.maximumf %529, %530 : vector<30x128xf32>
    %532 = vector.extract_strided_slice %531 {offsets = [0, 0], sizes = [28, 128], strides = [1, 1]} : vector<30x128xf32> to vector<28x128xf32>
    %533 = vector.shape_cast %25 : vector<128xf32> to vector<1x128xf32>
    %534 = vector.broadcast %533 : vector<1x128xf32> to vector<28x128xf32>
    %535 = arith.mulf %532, %534 : vector<28x128xf32>
    %536 = arith.addf %526, %535 : vector<28x128xf32>
    %537 = vector.extract_strided_slice %531 {offsets = [1, 0], sizes = [28, 128], strides = [1, 1]} : vector<30x128xf32> to vector<28x128xf32>
    %538 = vector.shape_cast %29 : vector<128xf32> to vector<1x128xf32>
    %539 = vector.broadcast %538 : vector<1x128xf32> to vector<28x128xf32>
    %540 = arith.mulf %537, %539 : vector<28x128xf32>
    %541 = arith.addf %536, %540 : vector<28x128xf32>
    %c2_i32_161 = arith.constant 2 : i32
    %542 = arith.addi %0, %c2_i32_161 : i32
    %c1_i32_162 = arith.constant 1 : i32
    %543 = arith.addi %542, %c1_i32_162 : i32
    %c1_163 = arith.constant 1 : index
    %c0_164 = arith.constant 0 : index
    %544 = arith.index_cast %543 : i32 to index
    %c0_165 = arith.constant 0 : index
    %c0_166 = arith.constant 0 : index
    %545 = vector.load %arg1[%c1_163, %c0_164, %544, %c0_165, %c0_166] : memref<2x2x30x30x128xf32, #tpu.memory_space<vmem>>, vector<1x1x1x30x128xf32>
    %546 = vector.shape_cast %545 : vector<1x1x1x30x128xf32> to vector<30x128xf32>
    %cst_167 = arith.constant 0.000000e+00 : f32
    %547 = vector.broadcast %cst_167 : f32 to vector<30x128xf32>
    %548 = arith.maximumf %546, %547 : vector<30x128xf32>
    %549 = vector.extract_strided_slice %548 {offsets = [0, 0], sizes = [28, 128], strides = [1, 1]} : vector<30x128xf32> to vector<28x128xf32>
    %550 = vector.shape_cast %33 : vector<128xf32> to vector<1x128xf32>
    %551 = vector.broadcast %550 : vector<1x128xf32> to vector<28x128xf32>
    %552 = arith.mulf %549, %551 : vector<28x128xf32>
    %553 = arith.addf %541, %552 : vector<28x128xf32>
    %554 = vector.extract_strided_slice %548 {offsets = [1, 0], sizes = [28, 128], strides = [1, 1]} : vector<30x128xf32> to vector<28x128xf32>
    %555 = vector.shape_cast %37 : vector<128xf32> to vector<1x128xf32>
    %556 = vector.broadcast %555 : vector<1x128xf32> to vector<28x128xf32>
    %557 = arith.mulf %554, %556 : vector<28x128xf32>
    %558 = arith.addf %553, %557 : vector<28x128xf32>
    %559 = vector.extract_strided_slice %548 {offsets = [2, 0], sizes = [28, 128], strides = [1, 1]} : vector<30x128xf32> to vector<28x128xf32>
    %560 = vector.shape_cast %41 : vector<128xf32> to vector<1x128xf32>
    %561 = vector.broadcast %560 : vector<1x128xf32> to vector<28x128xf32>
    %562 = arith.mulf %559, %561 : vector<28x128xf32>
    %563 = arith.addf %558, %562 : vector<28x128xf32>
    %c1_168 = arith.constant 1 : index
    %c1_169 = arith.constant 1 : index
    %564 = arith.index_cast %543 : i32 to index
    %c0_170 = arith.constant 0 : index
    %c0_171 = arith.constant 0 : index
    %565 = vector.load %arg1[%c1_168, %c1_169, %564, %c0_170, %c0_171] : memref<2x2x30x30x128xf32, #tpu.memory_space<vmem>>, vector<1x1x1x30x128xf32>
    %566 = vector.shape_cast %565 : vector<1x1x1x30x128xf32> to vector<30x128xf32>
    %cst_172 = arith.constant 0.000000e+00 : f32
    %567 = vector.broadcast %cst_172 : f32 to vector<30x128xf32>
    %568 = arith.maximumf %566, %567 : vector<30x128xf32>
    %569 = vector.extract_strided_slice %568 {offsets = [0, 0], sizes = [28, 128], strides = [1, 1]} : vector<30x128xf32> to vector<28x128xf32>
    %570 = vector.shape_cast %35 : vector<128xf32> to vector<1x128xf32>
    %571 = vector.broadcast %570 : vector<1x128xf32> to vector<28x128xf32>
    %572 = arith.mulf %569, %571 : vector<28x128xf32>
    %573 = arith.addf %563, %572 : vector<28x128xf32>
    %574 = vector.extract_strided_slice %568 {offsets = [1, 0], sizes = [28, 128], strides = [1, 1]} : vector<30x128xf32> to vector<28x128xf32>
    %575 = vector.shape_cast %39 : vector<128xf32> to vector<1x128xf32>
    %576 = vector.broadcast %575 : vector<1x128xf32> to vector<28x128xf32>
    %577 = arith.mulf %574, %576 : vector<28x128xf32>
    %578 = arith.addf %573, %577 : vector<28x128xf32>
    %c2_i32_173 = arith.constant 2 : i32
    %579 = arith.addi %0, %c2_i32_173 : i32
    %c2_i32_174 = arith.constant 2 : i32
    %580 = arith.addi %579, %c2_i32_174 : i32
    %c0_175 = arith.constant 0 : index
    %c0_176 = arith.constant 0 : index
    %581 = arith.index_cast %580 : i32 to index
    %c0_177 = arith.constant 0 : index
    %c0_178 = arith.constant 0 : index
    %582 = vector.load %arg1[%c0_175, %c0_176, %581, %c0_177, %c0_178] : memref<2x2x30x30x128xf32, #tpu.memory_space<vmem>>, vector<1x1x1x30x128xf32>
    %583 = vector.shape_cast %582 : vector<1x1x1x30x128xf32> to vector<30x128xf32>
    %cst_179 = arith.constant 0.000000e+00 : f32
    %584 = vector.broadcast %cst_179 : f32 to vector<30x128xf32>
    %585 = arith.maximumf %583, %584 : vector<30x128xf32>
    %586 = vector.extract_strided_slice %585 {offsets = [0, 0], sizes = [28, 128], strides = [1, 1]} : vector<30x128xf32> to vector<28x128xf32>
    %587 = vector.shape_cast %43 : vector<128xf32> to vector<1x128xf32>
    %588 = vector.broadcast %587 : vector<1x128xf32> to vector<28x128xf32>
    %589 = arith.mulf %586, %588 : vector<28x128xf32>
    %590 = arith.addf %578, %589 : vector<28x128xf32>
    %591 = vector.extract_strided_slice %585 {offsets = [1, 0], sizes = [28, 128], strides = [1, 1]} : vector<30x128xf32> to vector<28x128xf32>
    %592 = vector.shape_cast %47 : vector<128xf32> to vector<1x128xf32>
    %593 = vector.broadcast %592 : vector<1x128xf32> to vector<28x128xf32>
    %594 = arith.mulf %591, %593 : vector<28x128xf32>
    %595 = arith.addf %590, %594 : vector<28x128xf32>
    %596 = vector.extract_strided_slice %585 {offsets = [2, 0], sizes = [28, 128], strides = [1, 1]} : vector<30x128xf32> to vector<28x128xf32>
    %597 = vector.shape_cast %51 : vector<128xf32> to vector<1x128xf32>
    %598 = vector.broadcast %597 : vector<1x128xf32> to vector<28x128xf32>
    %599 = arith.mulf %596, %598 : vector<28x128xf32>
    %600 = arith.addf %595, %599 : vector<28x128xf32>
    %c0_180 = arith.constant 0 : index
    %c1_181 = arith.constant 1 : index
    %601 = arith.index_cast %580 : i32 to index
    %c0_182 = arith.constant 0 : index
    %c0_183 = arith.constant 0 : index
    %602 = vector.load %arg1[%c0_180, %c1_181, %601, %c0_182, %c0_183] : memref<2x2x30x30x128xf32, #tpu.memory_space<vmem>>, vector<1x1x1x30x128xf32>
    %603 = vector.shape_cast %602 : vector<1x1x1x30x128xf32> to vector<30x128xf32>
    %cst_184 = arith.constant 0.000000e+00 : f32
    %604 = vector.broadcast %cst_184 : f32 to vector<30x128xf32>
    %605 = arith.maximumf %603, %604 : vector<30x128xf32>
    %606 = vector.extract_strided_slice %605 {offsets = [0, 0], sizes = [28, 128], strides = [1, 1]} : vector<30x128xf32> to vector<28x128xf32>
    %607 = vector.shape_cast %45 : vector<128xf32> to vector<1x128xf32>
    %608 = vector.broadcast %607 : vector<1x128xf32> to vector<28x128xf32>
    %609 = arith.mulf %606, %608 : vector<28x128xf32>
    %610 = arith.addf %600, %609 : vector<28x128xf32>
    %611 = vector.extract_strided_slice %605 {offsets = [1, 0], sizes = [28, 128], strides = [1, 1]} : vector<30x128xf32> to vector<28x128xf32>
    %612 = vector.shape_cast %49 : vector<128xf32> to vector<1x128xf32>
    %613 = vector.broadcast %612 : vector<1x128xf32> to vector<28x128xf32>
    %614 = arith.mulf %611, %613 : vector<28x128xf32>
    %615 = arith.addf %610, %614 : vector<28x128xf32>
    %c2 = arith.constant 2 : index
    %c0_185 = arith.constant 0 : index
    %c0_186 = arith.constant 0 : index
    %616 = vector.load %arg3[%c2, %c0_185, %c0_186] : memref<14x28x128xf32, #tpu.memory_space<vmem>>, vector<1x28x128xf32>
    %617 = vector.shape_cast %616 : vector<1x28x128xf32> to vector<28x128xf32>
    %618 = vector.shape_cast %615 : vector<28x128xf32> to vector<1x28x128xf32>
    tpu.vector_store %arg3[%c2, %c0_185, %c0_186], %618 {strides = array<i32>} : memref<14x28x128xf32, #tpu.memory_space<vmem>>, vector<1x28x128xf32>,
    %cst_187 = arith.constant 0.000000e+00 : f32
    %619 = vector.broadcast %cst_187 : f32 to vector<28x128xf32>
    %c3_i32 = arith.constant 3 : i32
    %620 = arith.addi %0, %c3_i32 : i32
    %c0_i32_188 = arith.constant 0 : i32
    %621 = arith.addi %620, %c0_i32_188 : i32
    %c0_189 = arith.constant 0 : index
    %c0_190 = arith.constant 0 : index
    %622 = arith.index_cast %621 : i32 to index
    %c0_191 = arith.constant 0 : index
    %c0_192 = arith.constant 0 : index
    %623 = vector.load %arg1[%c0_189, %c0_190, %622, %c0_191, %c0_192] : memref<2x2x30x30x128xf32, #tpu.memory_space<vmem>>, vector<1x1x1x30x128xf32>
    %624 = vector.shape_cast %623 : vector<1x1x1x30x128xf32> to vector<30x128xf32>
    %cst_193 = arith.constant 0.000000e+00 : f32
    %625 = vector.broadcast %cst_193 : f32 to vector<30x128xf32>
    %626 = arith.maximumf %624, %625 : vector<30x128xf32>
    %627 = vector.extract_strided_slice %626 {offsets = [0, 0], sizes = [28, 128], strides = [1, 1]} : vector<30x128xf32> to vector<28x128xf32>
    %628 = vector.shape_cast %3 : vector<128xf32> to vector<1x128xf32>
    %629 = vector.broadcast %628 : vector<1x128xf32> to vector<28x128xf32>
    %630 = arith.mulf %627, %629 : vector<28x128xf32>
    %631 = arith.addf %619, %630 : vector<28x128xf32>
    %632 = vector.extract_strided_slice %626 {offsets = [1, 0], sizes = [28, 128], strides = [1, 1]} : vector<30x128xf32> to vector<28x128xf32>
    %633 = vector.shape_cast %7 : vector<128xf32> to vector<1x128xf32>
    %634 = vector.broadcast %633 : vector<1x128xf32> to vector<28x128xf32>
    %635 = arith.mulf %632, %634 : vector<28x128xf32>
    %636 = arith.addf %631, %635 : vector<28x128xf32>
    %637 = vector.extract_strided_slice %626 {offsets = [2, 0], sizes = [28, 128], strides = [1, 1]} : vector<30x128xf32> to vector<28x128xf32>
    %638 = vector.shape_cast %11 : vector<128xf32> to vector<1x128xf32>
    %639 = vector.broadcast %638 : vector<1x128xf32> to vector<28x128xf32>
    %640 = arith.mulf %637, %639 : vector<28x128xf32>
    %641 = arith.addf %636, %640 : vector<28x128xf32>
    %c0_194 = arith.constant 0 : index
    %c1_195 = arith.constant 1 : index
    %642 = arith.index_cast %621 : i32 to index
    %c0_196 = arith.constant 0 : index
    %c0_197 = arith.constant 0 : index
    %643 = vector.load %arg1[%c0_194, %c1_195, %642, %c0_196, %c0_197] : memref<2x2x30x30x128xf32, #tpu.memory_space<vmem>>, vector<1x1x1x30x128xf32>
    %644 = vector.shape_cast %643 : vector<1x1x1x30x128xf32> to vector<30x128xf32>
    %cst_198 = arith.constant 0.000000e+00 : f32
    %645 = vector.broadcast %cst_198 : f32 to vector<30x128xf32>
    %646 = arith.maximumf %644, %645 : vector<30x128xf32>
    %647 = vector.extract_strided_slice %646 {offsets = [0, 0], sizes = [28, 128], strides = [1, 1]} : vector<30x128xf32> to vector<28x128xf32>
    %648 = vector.shape_cast %5 : vector<128xf32> to vector<1x128xf32>
    %649 = vector.broadcast %648 : vector<1x128xf32> to vector<28x128xf32>
    %650 = arith.mulf %647, %649 : vector<28x128xf32>
    %651 = arith.addf %641, %650 : vector<28x128xf32>
    %652 = vector.extract_strided_slice %646 {offsets = [1, 0], sizes = [28, 128], strides = [1, 1]} : vector<30x128xf32> to vector<28x128xf32>
    %653 = vector.shape_cast %9 : vector<128xf32> to vector<1x128xf32>
    %654 = vector.broadcast %653 : vector<1x128xf32> to vector<28x128xf32>
    %655 = arith.mulf %652, %654 : vector<28x128xf32>
    %656 = arith.addf %651, %655 : vector<28x128xf32>
    %c3_i32_199 = arith.constant 3 : i32
    %657 = arith.addi %0, %c3_i32_199 : i32
    %c0_i32_200 = arith.constant 0 : i32
    %658 = arith.addi %657, %c0_i32_200 : i32
    %c1_201 = arith.constant 1 : index
    %c0_202 = arith.constant 0 : index
    %659 = arith.index_cast %658 : i32 to index
    %c0_203 = arith.constant 0 : index
    %c0_204 = arith.constant 0 : index
    %660 = vector.load %arg1[%c1_201, %c0_202, %659, %c0_203, %c0_204] : memref<2x2x30x30x128xf32, #tpu.memory_space<vmem>>, vector<1x1x1x30x128xf32>
    %661 = vector.shape_cast %660 : vector<1x1x1x30x128xf32> to vector<30x128xf32>
    %cst_205 = arith.constant 0.000000e+00 : f32
    %662 = vector.broadcast %cst_205 : f32 to vector<30x128xf32>
    %663 = arith.maximumf %661, %662 : vector<30x128xf32>
    %664 = vector.extract_strided_slice %663 {offsets = [0, 0], sizes = [28, 128], strides = [1, 1]} : vector<30x128xf32> to vector<28x128xf32>
    %665 = vector.shape_cast %13 : vector<128xf32> to vector<1x128xf32>
    %666 = vector.broadcast %665 : vector<1x128xf32> to vector<28x128xf32>
    %667 = arith.mulf %664, %666 : vector<28x128xf32>
    %668 = arith.addf %656, %667 : vector<28x128xf32>
    %669 = vector.extract_strided_slice %663 {offsets = [1, 0], sizes = [28, 128], strides = [1, 1]} : vector<30x128xf32> to vector<28x128xf32>
    %670 = vector.shape_cast %17 : vector<128xf32> to vector<1x128xf32>
    %671 = vector.broadcast %670 : vector<1x128xf32> to vector<28x128xf32>
    %672 = arith.mulf %669, %671 : vector<28x128xf32>
    %673 = arith.addf %668, %672 : vector<28x128xf32>
    %674 = vector.extract_strided_slice %663 {offsets = [2, 0], sizes = [28, 128], strides = [1, 1]} : vector<30x128xf32> to vector<28x128xf32>
    %675 = vector.shape_cast %21 : vector<128xf32> to vector<1x128xf32>
    %676 = vector.broadcast %675 : vector<1x128xf32> to vector<28x128xf32>
    %677 = arith.mulf %674, %676 : vector<28x128xf32>
    %678 = arith.addf %673, %677 : vector<28x128xf32>
    %c1_206 = arith.constant 1 : index
    %c1_207 = arith.constant 1 : index
    %679 = arith.index_cast %658 : i32 to index
    %c0_208 = arith.constant 0 : index
    %c0_209 = arith.constant 0 : index
    %680 = vector.load %arg1[%c1_206, %c1_207, %679, %c0_208, %c0_209] : memref<2x2x30x30x128xf32, #tpu.memory_space<vmem>>, vector<1x1x1x30x128xf32>
    %681 = vector.shape_cast %680 : vector<1x1x1x30x128xf32> to vector<30x128xf32>
    %cst_210 = arith.constant 0.000000e+00 : f32
    %682 = vector.broadcast %cst_210 : f32 to vector<30x128xf32>
    %683 = arith.maximumf %681, %682 : vector<30x128xf32>
    %684 = vector.extract_strided_slice %683 {offsets = [0, 0], sizes = [28, 128], strides = [1, 1]} : vector<30x128xf32> to vector<28x128xf32>
    %685 = vector.shape_cast %15 : vector<128xf32> to vector<1x128xf32>
    %686 = vector.broadcast %685 : vector<1x128xf32> to vector<28x128xf32>
    %687 = arith.mulf %684, %686 : vector<28x128xf32>
    %688 = arith.addf %678, %687 : vector<28x128xf32>
    %689 = vector.extract_strided_slice %683 {offsets = [1, 0], sizes = [28, 128], strides = [1, 1]} : vector<30x128xf32> to vector<28x128xf32>
    %690 = vector.shape_cast %19 : vector<128xf32> to vector<1x128xf32>
    %691 = vector.broadcast %690 : vector<1x128xf32> to vector<28x128xf32>
    %692 = arith.mulf %689, %691 : vector<28x128xf32>
    %693 = arith.addf %688, %692 : vector<28x128xf32>
    %c3_i32_211 = arith.constant 3 : i32
    %694 = arith.addi %0, %c3_i32_211 : i32
    %c1_i32_212 = arith.constant 1 : i32
    %695 = arith.addi %694, %c1_i32_212 : i32
    %c0_213 = arith.constant 0 : index
    %c0_214 = arith.constant 0 : index
    %696 = arith.index_cast %695 : i32 to index
    %c0_215 = arith.constant 0 : index
    %c0_216 = arith.constant 0 : index
    %697 = vector.load %arg1[%c0_213, %c0_214, %696, %c0_215, %c0_216] : memref<2x2x30x30x128xf32, #tpu.memory_space<vmem>>, vector<1x1x1x30x128xf32>
    %698 = vector.shape_cast %697 : vector<1x1x1x30x128xf32> to vector<30x128xf32>
    %cst_217 = arith.constant 0.000000e+00 : f32
    %699 = vector.broadcast %cst_217 : f32 to vector<30x128xf32>
    %700 = arith.maximumf %698, %699 : vector<30x128xf32>
    %701 = vector.extract_strided_slice %700 {offsets = [0, 0], sizes = [28, 128], strides = [1, 1]} : vector<30x128xf32> to vector<28x128xf32>
    %702 = vector.shape_cast %23 : vector<128xf32> to vector<1x128xf32>
    %703 = vector.broadcast %702 : vector<1x128xf32> to vector<28x128xf32>
    %704 = arith.mulf %701, %703 : vector<28x128xf32>
    %705 = arith.addf %693, %704 : vector<28x128xf32>
    %706 = vector.extract_strided_slice %700 {offsets = [1, 0], sizes = [28, 128], strides = [1, 1]} : vector<30x128xf32> to vector<28x128xf32>
    %707 = vector.shape_cast %27 : vector<128xf32> to vector<1x128xf32>
    %708 = vector.broadcast %707 : vector<1x128xf32> to vector<28x128xf32>
    %709 = arith.mulf %706, %708 : vector<28x128xf32>
    %710 = arith.addf %705, %709 : vector<28x128xf32>
    %711 = vector.extract_strided_slice %700 {offsets = [2, 0], sizes = [28, 128], strides = [1, 1]} : vector<30x128xf32> to vector<28x128xf32>
    %712 = vector.shape_cast %31 : vector<128xf32> to vector<1x128xf32>
    %713 = vector.broadcast %712 : vector<1x128xf32> to vector<28x128xf32>
    %714 = arith.mulf %711, %713 : vector<28x128xf32>
    %715 = arith.addf %710, %714 : vector<28x128xf32>
    %c0_218 = arith.constant 0 : index
    %c1_219 = arith.constant 1 : index
    %716 = arith.index_cast %695 : i32 to index
    %c0_220 = arith.constant 0 : index
    %c0_221 = arith.constant 0 : index
    %717 = vector.load %arg1[%c0_218, %c1_219, %716, %c0_220, %c0_221] : memref<2x2x30x30x128xf32, #tpu.memory_space<vmem>>, vector<1x1x1x30x128xf32>
    %718 = vector.shape_cast %717 : vector<1x1x1x30x128xf32> to vector<30x128xf32>
    %cst_222 = arith.constant 0.000000e+00 : f32
    %719 = vector.broadcast %cst_222 : f32 to vector<30x128xf32>
    %720 = arith.maximumf %718, %719 : vector<30x128xf32>
    %721 = vector.extract_strided_slice %720 {offsets = [0, 0], sizes = [28, 128], strides = [1, 1]} : vector<30x128xf32> to vector<28x128xf32>
    %722 = vector.shape_cast %25 : vector<128xf32> to vector<1x128xf32>
    %723 = vector.broadcast %722 : vector<1x128xf32> to vector<28x128xf32>
    %724 = arith.mulf %721, %723 : vector<28x128xf32>
    %725 = arith.addf %715, %724 : vector<28x128xf32>
    %726 = vector.extract_strided_slice %720 {offsets = [1, 0], sizes = [28, 128], strides = [1, 1]} : vector<30x128xf32> to vector<28x128xf32>
    %727 = vector.shape_cast %29 : vector<128xf32> to vector<1x128xf32>
    %728 = vector.broadcast %727 : vector<1x128xf32> to vector<28x128xf32>
    %729 = arith.mulf %726, %728 : vector<28x128xf32>
    %730 = arith.addf %725, %729 : vector<28x128xf32>
    %c3_i32_223 = arith.constant 3 : i32
    %731 = arith.addi %0, %c3_i32_223 : i32
    %c1_i32_224 = arith.constant 1 : i32
    %732 = arith.addi %731, %c1_i32_224 : i32
    %c1_225 = arith.constant 1 : index
    %c0_226 = arith.constant 0 : index
    %733 = arith.index_cast %732 : i32 to index
    %c0_227 = arith.constant 0 : index
    %c0_228 = arith.constant 0 : index
    %734 = vector.load %arg1[%c1_225, %c0_226, %733, %c0_227, %c0_228] : memref<2x2x30x30x128xf32, #tpu.memory_space<vmem>>, vector<1x1x1x30x128xf32>
    %735 = vector.shape_cast %734 : vector<1x1x1x30x128xf32> to vector<30x128xf32>
    %cst_229 = arith.constant 0.000000e+00 : f32
    %736 = vector.broadcast %cst_229 : f32 to vector<30x128xf32>
    %737 = arith.maximumf %735, %736 : vector<30x128xf32>
    %738 = vector.extract_strided_slice %737 {offsets = [0, 0], sizes = [28, 128], strides = [1, 1]} : vector<30x128xf32> to vector<28x128xf32>
    %739 = vector.shape_cast %33 : vector<128xf32> to vector<1x128xf32>
    %740 = vector.broadcast %739 : vector<1x128xf32> to vector<28x128xf32>
    %741 = arith.mulf %738, %740 : vector<28x128xf32>
    %742 = arith.addf %730, %741 : vector<28x128xf32>
    %743 = vector.extract_strided_slice %737 {offsets = [1, 0], sizes = [28, 128], strides = [1, 1]} : vector<30x128xf32> to vector<28x128xf32>
    %744 = vector.shape_cast %37 : vector<128xf32> to vector<1x128xf32>
    %745 = vector.broadcast %744 : vector<1x128xf32> to vector<28x128xf32>
    %746 = arith.mulf %743, %745 : vector<28x128xf32>
    %747 = arith.addf %742, %746 : vector<28x128xf32>
    %748 = vector.extract_strided_slice %737 {offsets = [2, 0], sizes = [28, 128], strides = [1, 1]} : vector<30x128xf32> to vector<28x128xf32>
    %749 = vector.shape_cast %41 : vector<128xf32> to vector<1x128xf32>
    %750 = vector.broadcast %749 : vector<1x128xf32> to vector<28x128xf32>
    %751 = arith.mulf %748, %750 : vector<28x128xf32>
    %752 = arith.addf %747, %751 : vector<28x128xf32>
    %c1_230 = arith.constant 1 : index
    %c1_231 = arith.constant 1 : index
    %753 = arith.index_cast %732 : i32 to index
    %c0_232 = arith.constant 0 : index
    %c0_233 = arith.constant 0 : index
    %754 = vector.load %arg1[%c1_230, %c1_231, %753, %c0_232, %c0_233] : memref<2x2x30x30x128xf32, #tpu.memory_space<vmem>>, vector<1x1x1x30x128xf32>
    %755 = vector.shape_cast %754 : vector<1x1x1x30x128xf32> to vector<30x128xf32>
    %cst_234 = arith.constant 0.000000e+00 : f32
    %756 = vector.broadcast %cst_234 : f32 to vector<30x128xf32>
    %757 = arith.maximumf %755, %756 : vector<30x128xf32>
    %758 = vector.extract_strided_slice %757 {offsets = [0, 0], sizes = [28, 128], strides = [1, 1]} : vector<30x128xf32> to vector<28x128xf32>
    %759 = vector.shape_cast %35 : vector<128xf32> to vector<1x128xf32>
    %760 = vector.broadcast %759 : vector<1x128xf32> to vector<28x128xf32>
    %761 = arith.mulf %758, %760 : vector<28x128xf32>
    %762 = arith.addf %752, %761 : vector<28x128xf32>
    %763 = vector.extract_strided_slice %757 {offsets = [1, 0], sizes = [28, 128], strides = [1, 1]} : vector<30x128xf32> to vector<28x128xf32>
    %764 = vector.shape_cast %39 : vector<128xf32> to vector<1x128xf32>
    %765 = vector.broadcast %764 : vector<1x128xf32> to vector<28x128xf32>
    %766 = arith.mulf %763, %765 : vector<28x128xf32>
    %767 = arith.addf %762, %766 : vector<28x128xf32>
    %c3_i32_235 = arith.constant 3 : i32
    %768 = arith.addi %0, %c3_i32_235 : i32
    %c2_i32_236 = arith.constant 2 : i32
    %769 = arith.addi %768, %c2_i32_236 : i32
    %c0_237 = arith.constant 0 : index
    %c0_238 = arith.constant 0 : index
    %770 = arith.index_cast %769 : i32 to index
    %c0_239 = arith.constant 0 : index
    %c0_240 = arith.constant 0 : index
    %771 = vector.load %arg1[%c0_237, %c0_238, %770, %c0_239, %c0_240] : memref<2x2x30x30x128xf32, #tpu.memory_space<vmem>>, vector<1x1x1x30x128xf32>
    %772 = vector.shape_cast %771 : vector<1x1x1x30x128xf32> to vector<30x128xf32>
    %cst_241 = arith.constant 0.000000e+00 : f32
    %773 = vector.broadcast %cst_241 : f32 to vector<30x128xf32>
    %774 = arith.maximumf %772, %773 : vector<30x128xf32>
    %775 = vector.extract_strided_slice %774 {offsets = [0, 0], sizes = [28, 128], strides = [1, 1]} : vector<30x128xf32> to vector<28x128xf32>
    %776 = vector.shape_cast %43 : vector<128xf32> to vector<1x128xf32>
    %777 = vector.broadcast %776 : vector<1x128xf32> to vector<28x128xf32>
    %778 = arith.mulf %775, %777 : vector<28x128xf32>
    %779 = arith.addf %767, %778 : vector<28x128xf32>
    %780 = vector.extract_strided_slice %774 {offsets = [1, 0], sizes = [28, 128], strides = [1, 1]} : vector<30x128xf32> to vector<28x128xf32>
    %781 = vector.shape_cast %47 : vector<128xf32> to vector<1x128xf32>
    %782 = vector.broadcast %781 : vector<1x128xf32> to vector<28x128xf32>
    %783 = arith.mulf %780, %782 : vector<28x128xf32>
    %784 = arith.addf %779, %783 : vector<28x128xf32>
    %785 = vector.extract_strided_slice %774 {offsets = [2, 0], sizes = [28, 128], strides = [1, 1]} : vector<30x128xf32> to vector<28x128xf32>
    %786 = vector.shape_cast %51 : vector<128xf32> to vector<1x128xf32>
    %787 = vector.broadcast %786 : vector<1x128xf32> to vector<28x128xf32>
    %788 = arith.mulf %785, %787 : vector<28x128xf32>
    %789 = arith.addf %784, %788 : vector<28x128xf32>
    %c0_242 = arith.constant 0 : index
    %c1_243 = arith.constant 1 : index
    %790 = arith.index_cast %769 : i32 to index
    %c0_244 = arith.constant 0 : index
    %c0_245 = arith.constant 0 : index
    %791 = vector.load %arg1[%c0_242, %c1_243, %790, %c0_244, %c0_245] : memref<2x2x30x30x128xf32, #tpu.memory_space<vmem>>, vector<1x1x1x30x128xf32>
    %792 = vector.shape_cast %791 : vector<1x1x1x30x128xf32> to vector<30x128xf32>
    %cst_246 = arith.constant 0.000000e+00 : f32
    %793 = vector.broadcast %cst_246 : f32 to vector<30x128xf32>
    %794 = arith.maximumf %792, %793 : vector<30x128xf32>
    %795 = vector.extract_strided_slice %794 {offsets = [0, 0], sizes = [28, 128], strides = [1, 1]} : vector<30x128xf32> to vector<28x128xf32>
    %796 = vector.shape_cast %45 : vector<128xf32> to vector<1x128xf32>
    %797 = vector.broadcast %796 : vector<1x128xf32> to vector<28x128xf32>
    %798 = arith.mulf %795, %797 : vector<28x128xf32>
    %799 = arith.addf %789, %798 : vector<28x128xf32>
    %800 = vector.extract_strided_slice %794 {offsets = [1, 0], sizes = [28, 128], strides = [1, 1]} : vector<30x128xf32> to vector<28x128xf32>
    %801 = vector.shape_cast %49 : vector<128xf32> to vector<1x128xf32>
    %802 = vector.broadcast %801 : vector<1x128xf32> to vector<28x128xf32>
    %803 = arith.mulf %800, %802 : vector<28x128xf32>
    %804 = arith.addf %799, %803 : vector<28x128xf32>
    %c3 = arith.constant 3 : index
    %c0_247 = arith.constant 0 : index
    %c0_248 = arith.constant 0 : index
    %805 = vector.load %arg3[%c3, %c0_247, %c0_248] : memref<14x28x128xf32, #tpu.memory_space<vmem>>, vector<1x28x128xf32>
    %806 = vector.shape_cast %805 : vector<1x28x128xf32> to vector<28x128xf32>
    %807 = vector.shape_cast %804 : vector<28x128xf32> to vector<1x28x128xf32>
    tpu.vector_store %arg3[%c3, %c0_247, %c0_248], %807 {strides = array<i32>} : memref<14x28x128xf32, #tpu.memory_space<vmem>>, vector<1x28x128xf32>,
    %cst_249 = arith.constant 0.000000e+00 : f32
    %808 = vector.broadcast %cst_249 : f32 to vector<28x128xf32>
    %c4_i32 = arith.constant 4 : i32
    %809 = arith.addi %0, %c4_i32 : i32
    %c0_i32_250 = arith.constant 0 : i32
    %810 = arith.addi %809, %c0_i32_250 : i32
    %c0_251 = arith.constant 0 : index
    %c0_252 = arith.constant 0 : index
    %811 = arith.index_cast %810 : i32 to index
    %c0_253 = arith.constant 0 : index
    %c0_254 = arith.constant 0 : index
    %812 = vector.load %arg1[%c0_251, %c0_252, %811, %c0_253, %c0_254] : memref<2x2x30x30x128xf32, #tpu.memory_space<vmem>>, vector<1x1x1x30x128xf32>
    %813 = vector.shape_cast %812 : vector<1x1x1x30x128xf32> to vector<30x128xf32>
    %cst_255 = arith.constant 0.000000e+00 : f32
    %814 = vector.broadcast %cst_255 : f32 to vector<30x128xf32>
    %815 = arith.maximumf %813, %814 : vector<30x128xf32>
    %816 = vector.extract_strided_slice %815 {offsets = [0, 0], sizes = [28, 128], strides = [1, 1]} : vector<30x128xf32> to vector<28x128xf32>
    %817 = vector.shape_cast %3 : vector<128xf32> to vector<1x128xf32>
    %818 = vector.broadcast %817 : vector<1x128xf32> to vector<28x128xf32>
    %819 = arith.mulf %816, %818 : vector<28x128xf32>
    %820 = arith.addf %808, %819 : vector<28x128xf32>
    %821 = vector.extract_strided_slice %815 {offsets = [1, 0], sizes = [28, 128], strides = [1, 1]} : vector<30x128xf32> to vector<28x128xf32>
    %822 = vector.shape_cast %7 : vector<128xf32> to vector<1x128xf32>
    %823 = vector.broadcast %822 : vector<1x128xf32> to vector<28x128xf32>
    %824 = arith.mulf %821, %823 : vector<28x128xf32>
    %825 = arith.addf %820, %824 : vector<28x128xf32>
    %826 = vector.extract_strided_slice %815 {offsets = [2, 0], sizes = [28, 128], strides = [1, 1]} : vector<30x128xf32> to vector<28x128xf32>
    %827 = vector.shape_cast %11 : vector<128xf32> to vector<1x128xf32>
    %828 = vector.broadcast %827 : vector<1x128xf32> to vector<28x128xf32>
    %829 = arith.mulf %826, %828 : vector<28x128xf32>
    %830 = arith.addf %825, %829 : vector<28x128xf32>
    %c0_256 = arith.constant 0 : index
    %c1_257 = arith.constant 1 : index
    %831 = arith.index_cast %810 : i32 to index
    %c0_258 = arith.constant 0 : index
    %c0_259 = arith.constant 0 : index
    %832 = vector.load %arg1[%c0_256, %c1_257, %831, %c0_258, %c0_259] : memref<2x2x30x30x128xf32, #tpu.memory_space<vmem>>, vector<1x1x1x30x128xf32>
    %833 = vector.shape_cast %832 : vector<1x1x1x30x128xf32> to vector<30x128xf32>
    %cst_260 = arith.constant 0.000000e+00 : f32
    %834 = vector.broadcast %cst_260 : f32 to vector<30x128xf32>
    %835 = arith.maximumf %833, %834 : vector<30x128xf32>
    %836 = vector.extract_strided_slice %835 {offsets = [0, 0], sizes = [28, 128], strides = [1, 1]} : vector<30x128xf32> to vector<28x128xf32>
    %837 = vector.shape_cast %5 : vector<128xf32> to vector<1x128xf32>
    %838 = vector.broadcast %837 : vector<1x128xf32> to vector<28x128xf32>
    %839 = arith.mulf %836, %838 : vector<28x128xf32>
    %840 = arith.addf %830, %839 : vector<28x128xf32>
    %841 = vector.extract_strided_slice %835 {offsets = [1, 0], sizes = [28, 128], strides = [1, 1]} : vector<30x128xf32> to vector<28x128xf32>
    %842 = vector.shape_cast %9 : vector<128xf32> to vector<1x128xf32>
    %843 = vector.broadcast %842 : vector<1x128xf32> to vector<28x128xf32>
    %844 = arith.mulf %841, %843 : vector<28x128xf32>
    %845 = arith.addf %840, %844 : vector<28x128xf32>
    %c4_i32_261 = arith.constant 4 : i32
    %846 = arith.addi %0, %c4_i32_261 : i32
    %c0_i32_262 = arith.constant 0 : i32
    %847 = arith.addi %846, %c0_i32_262 : i32
    %c1_263 = arith.constant 1 : index
    %c0_264 = arith.constant 0 : index
    %848 = arith.index_cast %847 : i32 to index
    %c0_265 = arith.constant 0 : index
    %c0_266 = arith.constant 0 : index
    %849 = vector.load %arg1[%c1_263, %c0_264, %848, %c0_265, %c0_266] : memref<2x2x30x30x128xf32, #tpu.memory_space<vmem>>, vector<1x1x1x30x128xf32>
    %850 = vector.shape_cast %849 : vector<1x1x1x30x128xf32> to vector<30x128xf32>
    %cst_267 = arith.constant 0.000000e+00 : f32
    %851 = vector.broadcast %cst_267 : f32 to vector<30x128xf32>
    %852 = arith.maximumf %850, %851 : vector<30x128xf32>
    %853 = vector.extract_strided_slice %852 {offsets = [0, 0], sizes = [28, 128], strides = [1, 1]} : vector<30x128xf32> to vector<28x128xf32>
    %854 = vector.shape_cast %13 : vector<128xf32> to vector<1x128xf32>
    %855 = vector.broadcast %854 : vector<1x128xf32> to vector<28x128xf32>
    %856 = arith.mulf %853, %855 : vector<28x128xf32>
    %857 = arith.addf %845, %856 : vector<28x128xf32>
    %858 = vector.extract_strided_slice %852 {offsets = [1, 0], sizes = [28, 128], strides = [1, 1]} : vector<30x128xf32> to vector<28x128xf32>
    %859 = vector.shape_cast %17 : vector<128xf32> to vector<1x128xf32>
    %860 = vector.broadcast %859 : vector<1x128xf32> to vector<28x128xf32>
    %861 = arith.mulf %858, %860 : vector<28x128xf32>
    %862 = arith.addf %857, %861 : vector<28x128xf32>
    %863 = vector.extract_strided_slice %852 {offsets = [2, 0], sizes = [28, 128], strides = [1, 1]} : vector<30x128xf32> to vector<28x128xf32>
    %864 = vector.shape_cast %21 : vector<128xf32> to vector<1x128xf32>
    %865 = vector.broadcast %864 : vector<1x128xf32> to vector<28x128xf32>
    %866 = arith.mulf %863, %865 : vector<28x128xf32>
    %867 = arith.addf %862, %866 : vector<28x128xf32>
    %c1_268 = arith.constant 1 : index
    %c1_269 = arith.constant 1 : index
    %868 = arith.index_cast %847 : i32 to index
    %c0_270 = arith.constant 0 : index
    %c0_271 = arith.constant 0 : index
    %869 = vector.load %arg1[%c1_268, %c1_269, %868, %c0_270, %c0_271] : memref<2x2x30x30x128xf32, #tpu.memory_space<vmem>>, vector<1x1x1x30x128xf32>
    %870 = vector.shape_cast %869 : vector<1x1x1x30x128xf32> to vector<30x128xf32>
    %cst_272 = arith.constant 0.000000e+00 : f32
    %871 = vector.broadcast %cst_272 : f32 to vector<30x128xf32>
    %872 = arith.maximumf %870, %871 : vector<30x128xf32>
    %873 = vector.extract_strided_slice %872 {offsets = [0, 0], sizes = [28, 128], strides = [1, 1]} : vector<30x128xf32> to vector<28x128xf32>
    %874 = vector.shape_cast %15 : vector<128xf32> to vector<1x128xf32>
    %875 = vector.broadcast %874 : vector<1x128xf32> to vector<28x128xf32>
    %876 = arith.mulf %873, %875 : vector<28x128xf32>
    %877 = arith.addf %867, %876 : vector<28x128xf32>
    %878 = vector.extract_strided_slice %872 {offsets = [1, 0], sizes = [28, 128], strides = [1, 1]} : vector<30x128xf32> to vector<28x128xf32>
    %879 = vector.shape_cast %19 : vector<128xf32> to vector<1x128xf32>
    %880 = vector.broadcast %879 : vector<1x128xf32> to vector<28x128xf32>
    %881 = arith.mulf %878, %880 : vector<28x128xf32>
    %882 = arith.addf %877, %881 : vector<28x128xf32>
    %c4_i32_273 = arith.constant 4 : i32
    %883 = arith.addi %0, %c4_i32_273 : i32
    %c1_i32_274 = arith.constant 1 : i32
    %884 = arith.addi %883, %c1_i32_274 : i32
    %c0_275 = arith.constant 0 : index
    %c0_276 = arith.constant 0 : index
    %885 = arith.index_cast %884 : i32 to index
    %c0_277 = arith.constant 0 : index
    %c0_278 = arith.constant 0 : index
    %886 = vector.load %arg1[%c0_275, %c0_276, %885, %c0_277, %c0_278] : memref<2x2x30x30x128xf32, #tpu.memory_space<vmem>>, vector<1x1x1x30x128xf32>
    %887 = vector.shape_cast %886 : vector<1x1x1x30x128xf32> to vector<30x128xf32>
    %cst_279 = arith.constant 0.000000e+00 : f32
    %888 = vector.broadcast %cst_279 : f32 to vector<30x128xf32>
    %889 = arith.maximumf %887, %888 : vector<30x128xf32>
    %890 = vector.extract_strided_slice %889 {offsets = [0, 0], sizes = [28, 128], strides = [1, 1]} : vector<30x128xf32> to vector<28x128xf32>
    %891 = vector.shape_cast %23 : vector<128xf32> to vector<1x128xf32>
    %892 = vector.broadcast %891 : vector<1x128xf32> to vector<28x128xf32>
    %893 = arith.mulf %890, %892 : vector<28x128xf32>
    %894 = arith.addf %882, %893 : vector<28x128xf32>
    %895 = vector.extract_strided_slice %889 {offsets = [1, 0], sizes = [28, 128], strides = [1, 1]} : vector<30x128xf32> to vector<28x128xf32>
    %896 = vector.shape_cast %27 : vector<128xf32> to vector<1x128xf32>
    %897 = vector.broadcast %896 : vector<1x128xf32> to vector<28x128xf32>
    %898 = arith.mulf %895, %897 : vector<28x128xf32>
    %899 = arith.addf %894, %898 : vector<28x128xf32>
    %900 = vector.extract_strided_slice %889 {offsets = [2, 0], sizes = [28, 128], strides = [1, 1]} : vector<30x128xf32> to vector<28x128xf32>
    %901 = vector.shape_cast %31 : vector<128xf32> to vector<1x128xf32>
    %902 = vector.broadcast %901 : vector<1x128xf32> to vector<28x128xf32>
    %903 = arith.mulf %900, %902 : vector<28x128xf32>
    %904 = arith.addf %899, %903 : vector<28x128xf32>
    %c0_280 = arith.constant 0 : index
    %c1_281 = arith.constant 1 : index
    %905 = arith.index_cast %884 : i32 to index
    %c0_282 = arith.constant 0 : index
    %c0_283 = arith.constant 0 : index
    %906 = vector.load %arg1[%c0_280, %c1_281, %905, %c0_282, %c0_283] : memref<2x2x30x30x128xf32, #tpu.memory_space<vmem>>, vector<1x1x1x30x128xf32>
    %907 = vector.shape_cast %906 : vector<1x1x1x30x128xf32> to vector<30x128xf32>
    %cst_284 = arith.constant 0.000000e+00 : f32
    %908 = vector.broadcast %cst_284 : f32 to vector<30x128xf32>
    %909 = arith.maximumf %907, %908 : vector<30x128xf32>
    %910 = vector.extract_strided_slice %909 {offsets = [0, 0], sizes = [28, 128], strides = [1, 1]} : vector<30x128xf32> to vector<28x128xf32>
    %911 = vector.shape_cast %25 : vector<128xf32> to vector<1x128xf32>
    %912 = vector.broadcast %911 : vector<1x128xf32> to vector<28x128xf32>
    %913 = arith.mulf %910, %912 : vector<28x128xf32>
    %914 = arith.addf %904, %913 : vector<28x128xf32>
    %915 = vector.extract_strided_slice %909 {offsets = [1, 0], sizes = [28, 128], strides = [1, 1]} : vector<30x128xf32> to vector<28x128xf32>
    %916 = vector.shape_cast %29 : vector<128xf32> to vector<1x128xf32>
    %917 = vector.broadcast %916 : vector<1x128xf32> to vector<28x128xf32>
    %918 = arith.mulf %915, %917 : vector<28x128xf32>
    %919 = arith.addf %914, %918 : vector<28x128xf32>
    %c4_i32_285 = arith.constant 4 : i32
    %920 = arith.addi %0, %c4_i32_285 : i32
    %c1_i32_286 = arith.constant 1 : i32
    %921 = arith.addi %920, %c1_i32_286 : i32
    %c1_287 = arith.constant 1 : index
    %c0_288 = arith.constant 0 : index
    %922 = arith.index_cast %921 : i32 to index
    %c0_289 = arith.constant 0 : index
    %c0_290 = arith.constant 0 : index
    %923 = vector.load %arg1[%c1_287, %c0_288, %922, %c0_289, %c0_290] : memref<2x2x30x30x128xf32, #tpu.memory_space<vmem>>, vector<1x1x1x30x128xf32>
    %924 = vector.shape_cast %923 : vector<1x1x1x30x128xf32> to vector<30x128xf32>
    %cst_291 = arith.constant 0.000000e+00 : f32
    %925 = vector.broadcast %cst_291 : f32 to vector<30x128xf32>
    %926 = arith.maximumf %924, %925 : vector<30x128xf32>
    %927 = vector.extract_strided_slice %926 {offsets = [0, 0], sizes = [28, 128], strides = [1, 1]} : vector<30x128xf32> to vector<28x128xf32>
    %928 = vector.shape_cast %33 : vector<128xf32> to vector<1x128xf32>
    %929 = vector.broadcast %928 : vector<1x128xf32> to vector<28x128xf32>
    %930 = arith.mulf %927, %929 : vector<28x128xf32>
    %931 = arith.addf %919, %930 : vector<28x128xf32>
    %932 = vector.extract_strided_slice %926 {offsets = [1, 0], sizes = [28, 128], strides = [1, 1]} : vector<30x128xf32> to vector<28x128xf32>
    %933 = vector.shape_cast %37 : vector<128xf32> to vector<1x128xf32>
    %934 = vector.broadcast %933 : vector<1x128xf32> to vector<28x128xf32>
    %935 = arith.mulf %932, %934 : vector<28x128xf32>
    %936 = arith.addf %931, %935 : vector<28x128xf32>
    %937 = vector.extract_strided_slice %926 {offsets = [2, 0], sizes = [28, 128], strides = [1, 1]} : vector<30x128xf32> to vector<28x128xf32>
    %938 = vector.shape_cast %41 : vector<128xf32> to vector<1x128xf32>
    %939 = vector.broadcast %938 : vector<1x128xf32> to vector<28x128xf32>
    %940 = arith.mulf %937, %939 : vector<28x128xf32>
    %941 = arith.addf %936, %940 : vector<28x128xf32>
    %c1_292 = arith.constant 1 : index
    %c1_293 = arith.constant 1 : index
    %942 = arith.index_cast %921 : i32 to index
    %c0_294 = arith.constant 0 : index
    %c0_295 = arith.constant 0 : index
    %943 = vector.load %arg1[%c1_292, %c1_293, %942, %c0_294, %c0_295] : memref<2x2x30x30x128xf32, #tpu.memory_space<vmem>>, vector<1x1x1x30x128xf32>
    %944 = vector.shape_cast %943 : vector<1x1x1x30x128xf32> to vector<30x128xf32>
    %cst_296 = arith.constant 0.000000e+00 : f32
    %945 = vector.broadcast %cst_296 : f32 to vector<30x128xf32>
    %946 = arith.maximumf %944, %945 : vector<30x128xf32>
    %947 = vector.extract_strided_slice %946 {offsets = [0, 0], sizes = [28, 128], strides = [1, 1]} : vector<30x128xf32> to vector<28x128xf32>
    %948 = vector.shape_cast %35 : vector<128xf32> to vector<1x128xf32>
    %949 = vector.broadcast %948 : vector<1x128xf32> to vector<28x128xf32>
    %950 = arith.mulf %947, %949 : vector<28x128xf32>
    %951 = arith.addf %941, %950 : vector<28x128xf32>
    %952 = vector.extract_strided_slice %946 {offsets = [1, 0], sizes = [28, 128], strides = [1, 1]} : vector<30x128xf32> to vector<28x128xf32>
    %953 = vector.shape_cast %39 : vector<128xf32> to vector<1x128xf32>
    %954 = vector.broadcast %953 : vector<1x128xf32> to vector<28x128xf32>
    %955 = arith.mulf %952, %954 : vector<28x128xf32>
    %956 = arith.addf %951, %955 : vector<28x128xf32>
    %c4_i32_297 = arith.constant 4 : i32
    %957 = arith.addi %0, %c4_i32_297 : i32
    %c2_i32_298 = arith.constant 2 : i32
    %958 = arith.addi %957, %c2_i32_298 : i32
    %c0_299 = arith.constant 0 : index
    %c0_300 = arith.constant 0 : index
    %959 = arith.index_cast %958 : i32 to index
    %c0_301 = arith.constant 0 : index
    %c0_302 = arith.constant 0 : index
    %960 = vector.load %arg1[%c0_299, %c0_300, %959, %c0_301, %c0_302] : memref<2x2x30x30x128xf32, #tpu.memory_space<vmem>>, vector<1x1x1x30x128xf32>
    %961 = vector.shape_cast %960 : vector<1x1x1x30x128xf32> to vector<30x128xf32>
    %cst_303 = arith.constant 0.000000e+00 : f32
    %962 = vector.broadcast %cst_303 : f32 to vector<30x128xf32>
    %963 = arith.maximumf %961, %962 : vector<30x128xf32>
    %964 = vector.extract_strided_slice %963 {offsets = [0, 0], sizes = [28, 128], strides = [1, 1]} : vector<30x128xf32> to vector<28x128xf32>
    %965 = vector.shape_cast %43 : vector<128xf32> to vector<1x128xf32>
    %966 = vector.broadcast %965 : vector<1x128xf32> to vector<28x128xf32>
    %967 = arith.mulf %964, %966 : vector<28x128xf32>
    %968 = arith.addf %956, %967 : vector<28x128xf32>
    %969 = vector.extract_strided_slice %963 {offsets = [1, 0], sizes = [28, 128], strides = [1, 1]} : vector<30x128xf32> to vector<28x128xf32>
    %970 = vector.shape_cast %47 : vector<128xf32> to vector<1x128xf32>
    %971 = vector.broadcast %970 : vector<1x128xf32> to vector<28x128xf32>
    %972 = arith.mulf %969, %971 : vector<28x128xf32>
    %973 = arith.addf %968, %972 : vector<28x128xf32>
    %974 = vector.extract_strided_slice %963 {offsets = [2, 0], sizes = [28, 128], strides = [1, 1]} : vector<30x128xf32> to vector<28x128xf32>
    %975 = vector.shape_cast %51 : vector<128xf32> to vector<1x128xf32>
    %976 = vector.broadcast %975 : vector<1x128xf32> to vector<28x128xf32>
    %977 = arith.mulf %974, %976 : vector<28x128xf32>
    %978 = arith.addf %973, %977 : vector<28x128xf32>
    %c0_304 = arith.constant 0 : index
    %c1_305 = arith.constant 1 : index
    %979 = arith.index_cast %958 : i32 to index
    %c0_306 = arith.constant 0 : index
    %c0_307 = arith.constant 0 : index
    %980 = vector.load %arg1[%c0_304, %c1_305, %979, %c0_306, %c0_307] : memref<2x2x30x30x128xf32, #tpu.memory_space<vmem>>, vector<1x1x1x30x128xf32>
    %981 = vector.shape_cast %980 : vector<1x1x1x30x128xf32> to vector<30x128xf32>
    %cst_308 = arith.constant 0.000000e+00 : f32
    %982 = vector.broadcast %cst_308 : f32 to vector<30x128xf32>
    %983 = arith.maximumf %981, %982 : vector<30x128xf32>
    %984 = vector.extract_strided_slice %983 {offsets = [0, 0], sizes = [28, 128], strides = [1, 1]} : vector<30x128xf32> to vector<28x128xf32>
    %985 = vector.shape_cast %45 : vector<128xf32> to vector<1x128xf32>
    %986 = vector.broadcast %985 : vector<1x128xf32> to vector<28x128xf32>
    %987 = arith.mulf %984, %986 : vector<28x128xf32>
    %988 = arith.addf %978, %987 : vector<28x128xf32>
    %989 = vector.extract_strided_slice %983 {offsets = [1, 0], sizes = [28, 128], strides = [1, 1]} : vector<30x128xf32> to vector<28x128xf32>
    %990 = vector.shape_cast %49 : vector<128xf32> to vector<1x128xf32>
    %991 = vector.broadcast %990 : vector<1x128xf32> to vector<28x128xf32>
    %992 = arith.mulf %989, %991 : vector<28x128xf32>
    %993 = arith.addf %988, %992 : vector<28x128xf32>
    %c4 = arith.constant 4 : index
    %c0_309 = arith.constant 0 : index
    %c0_310 = arith.constant 0 : index
    %994 = vector.load %arg3[%c4, %c0_309, %c0_310] : memref<14x28x128xf32, #tpu.memory_space<vmem>>, vector<1x28x128xf32>
    %995 = vector.shape_cast %994 : vector<1x28x128xf32> to vector<28x128xf32>
    %996 = vector.shape_cast %993 : vector<28x128xf32> to vector<1x28x128xf32>
    tpu.vector_store %arg3[%c4, %c0_309, %c0_310], %996 {strides = array<i32>} : memref<14x28x128xf32, #tpu.memory_space<vmem>>, vector<1x28x128xf32>,
    %cst_311 = arith.constant 0.000000e+00 : f32
    %997 = vector.broadcast %cst_311 : f32 to vector<28x128xf32>
    %c5_i32 = arith.constant 5 : i32
    %998 = arith.addi %0, %c5_i32 : i32
    %c0_i32_312 = arith.constant 0 : i32
    %999 = arith.addi %998, %c0_i32_312 : i32
    %c0_313 = arith.constant 0 : index
    %c0_314 = arith.constant 0 : index
    %1000 = arith.index_cast %999 : i32 to index
    %c0_315 = arith.constant 0 : index
    %c0_316 = arith.constant 0 : index
    %1001 = vector.load %arg1[%c0_313, %c0_314, %1000, %c0_315, %c0_316] : memref<2x2x30x30x128xf32, #tpu.memory_space<vmem>>, vector<1x1x1x30x128xf32>
    %1002 = vector.shape_cast %1001 : vector<1x1x1x30x128xf32> to vector<30x128xf32>
    %cst_317 = arith.constant 0.000000e+00 : f32
    %1003 = vector.broadcast %cst_317 : f32 to vector<30x128xf32>
    %1004 = arith.maximumf %1002, %1003 : vector<30x128xf32>
    %1005 = vector.extract_strided_slice %1004 {offsets = [0, 0], sizes = [28, 128], strides = [1, 1]} : vector<30x128xf32> to vector<28x128xf32>
    %1006 = vector.shape_cast %3 : vector<128xf32> to vector<1x128xf32>
    %1007 = vector.broadcast %1006 : vector<1x128xf32> to vector<28x128xf32>
    %1008 = arith.mulf %1005, %1007 : vector<28x128xf32>
    %1009 = arith.addf %997, %1008 : vector<28x128xf32>
    %1010 = vector.extract_strided_slice %1004 {offsets = [1, 0], sizes = [28, 128], strides = [1, 1]} : vector<30x128xf32> to vector<28x128xf32>
    %1011 = vector.shape_cast %7 : vector<128xf32> to vector<1x128xf32>
    %1012 = vector.broadcast %1011 : vector<1x128xf32> to vector<28x128xf32>
    %1013 = arith.mulf %1010, %1012 : vector<28x128xf32>
    %1014 = arith.addf %1009, %1013 : vector<28x128xf32>
    %1015 = vector.extract_strided_slice %1004 {offsets = [2, 0], sizes = [28, 128], strides = [1, 1]} : vector<30x128xf32> to vector<28x128xf32>
    %1016 = vector.shape_cast %11 : vector<128xf32> to vector<1x128xf32>
    %1017 = vector.broadcast %1016 : vector<1x128xf32> to vector<28x128xf32>
    %1018 = arith.mulf %1015, %1017 : vector<28x128xf32>
    %1019 = arith.addf %1014, %1018 : vector<28x128xf32>
    %c0_318 = arith.constant 0 : index
    %c1_319 = arith.constant 1 : index
    %1020 = arith.index_cast %999 : i32 to index
    %c0_320 = arith.constant 0 : index
    %c0_321 = arith.constant 0 : index
    %1021 = vector.load %arg1[%c0_318, %c1_319, %1020, %c0_320, %c0_321] : memref<2x2x30x30x128xf32, #tpu.memory_space<vmem>>, vector<1x1x1x30x128xf32>
    %1022 = vector.shape_cast %1021 : vector<1x1x1x30x128xf32> to vector<30x128xf32>
    %cst_322 = arith.constant 0.000000e+00 : f32
    %1023 = vector.broadcast %cst_322 : f32 to vector<30x128xf32>
    %1024 = arith.maximumf %1022, %1023 : vector<30x128xf32>
    %1025 = vector.extract_strided_slice %1024 {offsets = [0, 0], sizes = [28, 128], strides = [1, 1]} : vector<30x128xf32> to vector<28x128xf32>
    %1026 = vector.shape_cast %5 : vector<128xf32> to vector<1x128xf32>
    %1027 = vector.broadcast %1026 : vector<1x128xf32> to vector<28x128xf32>
    %1028 = arith.mulf %1025, %1027 : vector<28x128xf32>
    %1029 = arith.addf %1019, %1028 : vector<28x128xf32>
    %1030 = vector.extract_strided_slice %1024 {offsets = [1, 0], sizes = [28, 128], strides = [1, 1]} : vector<30x128xf32> to vector<28x128xf32>
    %1031 = vector.shape_cast %9 : vector<128xf32> to vector<1x128xf32>
    %1032 = vector.broadcast %1031 : vector<1x128xf32> to vector<28x128xf32>
    %1033 = arith.mulf %1030, %1032 : vector<28x128xf32>
    %1034 = arith.addf %1029, %1033 : vector<28x128xf32>
    %c5_i32_323 = arith.constant 5 : i32
    %1035 = arith.addi %0, %c5_i32_323 : i32
    %c0_i32_324 = arith.constant 0 : i32
    %1036 = arith.addi %1035, %c0_i32_324 : i32
    %c1_325 = arith.constant 1 : index
    %c0_326 = arith.constant 0 : index
    %1037 = arith.index_cast %1036 : i32 to index
    %c0_327 = arith.constant 0 : index
    %c0_328 = arith.constant 0 : index
    %1038 = vector.load %arg1[%c1_325, %c0_326, %1037, %c0_327, %c0_328] : memref<2x2x30x30x128xf32, #tpu.memory_space<vmem>>, vector<1x1x1x30x128xf32>
    %1039 = vector.shape_cast %1038 : vector<1x1x1x30x128xf32> to vector<30x128xf32>
    %cst_329 = arith.constant 0.000000e+00 : f32
    %1040 = vector.broadcast %cst_329 : f32 to vector<30x128xf32>
    %1041 = arith.maximumf %1039, %1040 : vector<30x128xf32>
    %1042 = vector.extract_strided_slice %1041 {offsets = [0, 0], sizes = [28, 128], strides = [1, 1]} : vector<30x128xf32> to vector<28x128xf32>
    %1043 = vector.shape_cast %13 : vector<128xf32> to vector<1x128xf32>
    %1044 = vector.broadcast %1043 : vector<1x128xf32> to vector<28x128xf32>
    %1045 = arith.mulf %1042, %1044 : vector<28x128xf32>
    %1046 = arith.addf %1034, %1045 : vector<28x128xf32>
    %1047 = vector.extract_strided_slice %1041 {offsets = [1, 0], sizes = [28, 128], strides = [1, 1]} : vector<30x128xf32> to vector<28x128xf32>
    %1048 = vector.shape_cast %17 : vector<128xf32> to vector<1x128xf32>
    %1049 = vector.broadcast %1048 : vector<1x128xf32> to vector<28x128xf32>
    %1050 = arith.mulf %1047, %1049 : vector<28x128xf32>
    %1051 = arith.addf %1046, %1050 : vector<28x128xf32>
    %1052 = vector.extract_strided_slice %1041 {offsets = [2, 0], sizes = [28, 128], strides = [1, 1]} : vector<30x128xf32> to vector<28x128xf32>
    %1053 = vector.shape_cast %21 : vector<128xf32> to vector<1x128xf32>
    %1054 = vector.broadcast %1053 : vector<1x128xf32> to vector<28x128xf32>
    %1055 = arith.mulf %1052, %1054 : vector<28x128xf32>
    %1056 = arith.addf %1051, %1055 : vector<28x128xf32>
    %c1_330 = arith.constant 1 : index
    %c1_331 = arith.constant 1 : index
    %1057 = arith.index_cast %1036 : i32 to index
    %c0_332 = arith.constant 0 : index
    %c0_333 = arith.constant 0 : index
    %1058 = vector.load %arg1[%c1_330, %c1_331, %1057, %c0_332, %c0_333] : memref<2x2x30x30x128xf32, #tpu.memory_space<vmem>>, vector<1x1x1x30x128xf32>
    %1059 = vector.shape_cast %1058 : vector<1x1x1x30x128xf32> to vector<30x128xf32>
    %cst_334 = arith.constant 0.000000e+00 : f32
    %1060 = vector.broadcast %cst_334 : f32 to vector<30x128xf32>
    %1061 = arith.maximumf %1059, %1060 : vector<30x128xf32>
    %1062 = vector.extract_strided_slice %1061 {offsets = [0, 0], sizes = [28, 128], strides = [1, 1]} : vector<30x128xf32> to vector<28x128xf32>
    %1063 = vector.shape_cast %15 : vector<128xf32> to vector<1x128xf32>
    %1064 = vector.broadcast %1063 : vector<1x128xf32> to vector<28x128xf32>
    %1065 = arith.mulf %1062, %1064 : vector<28x128xf32>
    %1066 = arith.addf %1056, %1065 : vector<28x128xf32>
    %1067 = vector.extract_strided_slice %1061 {offsets = [1, 0], sizes = [28, 128], strides = [1, 1]} : vector<30x128xf32> to vector<28x128xf32>
    %1068 = vector.shape_cast %19 : vector<128xf32> to vector<1x128xf32>
    %1069 = vector.broadcast %1068 : vector<1x128xf32> to vector<28x128xf32>
    %1070 = arith.mulf %1067, %1069 : vector<28x128xf32>
    %1071 = arith.addf %1066, %1070 : vector<28x128xf32>
    %c5_i32_335 = arith.constant 5 : i32
    %1072 = arith.addi %0, %c5_i32_335 : i32
    %c1_i32_336 = arith.constant 1 : i32
    %1073 = arith.addi %1072, %c1_i32_336 : i32
    %c0_337 = arith.constant 0 : index
    %c0_338 = arith.constant 0 : index
    %1074 = arith.index_cast %1073 : i32 to index
    %c0_339 = arith.constant 0 : index
    %c0_340 = arith.constant 0 : index
    %1075 = vector.load %arg1[%c0_337, %c0_338, %1074, %c0_339, %c0_340] : memref<2x2x30x30x128xf32, #tpu.memory_space<vmem>>, vector<1x1x1x30x128xf32>
    %1076 = vector.shape_cast %1075 : vector<1x1x1x30x128xf32> to vector<30x128xf32>
    %cst_341 = arith.constant 0.000000e+00 : f32
    %1077 = vector.broadcast %cst_341 : f32 to vector<30x128xf32>
    %1078 = arith.maximumf %1076, %1077 : vector<30x128xf32>
    %1079 = vector.extract_strided_slice %1078 {offsets = [0, 0], sizes = [28, 128], strides = [1, 1]} : vector<30x128xf32> to vector<28x128xf32>
    %1080 = vector.shape_cast %23 : vector<128xf32> to vector<1x128xf32>
    %1081 = vector.broadcast %1080 : vector<1x128xf32> to vector<28x128xf32>
    %1082 = arith.mulf %1079, %1081 : vector<28x128xf32>
    %1083 = arith.addf %1071, %1082 : vector<28x128xf32>
    %1084 = vector.extract_strided_slice %1078 {offsets = [1, 0], sizes = [28, 128], strides = [1, 1]} : vector<30x128xf32> to vector<28x128xf32>
    %1085 = vector.shape_cast %27 : vector<128xf32> to vector<1x128xf32>
    %1086 = vector.broadcast %1085 : vector<1x128xf32> to vector<28x128xf32>
    %1087 = arith.mulf %1084, %1086 : vector<28x128xf32>
    %1088 = arith.addf %1083, %1087 : vector<28x128xf32>
    %1089 = vector.extract_strided_slice %1078 {offsets = [2, 0], sizes = [28, 128], strides = [1, 1]} : vector<30x128xf32> to vector<28x128xf32>
    %1090 = vector.shape_cast %31 : vector<128xf32> to vector<1x128xf32>
    %1091 = vector.broadcast %1090 : vector<1x128xf32> to vector<28x128xf32>
    %1092 = arith.mulf %1089, %1091 : vector<28x128xf32>
    %1093 = arith.addf %1088, %1092 : vector<28x128xf32>
    %c0_342 = arith.constant 0 : index
    %c1_343 = arith.constant 1 : index
    %1094 = arith.index_cast %1073 : i32 to index
    %c0_344 = arith.constant 0 : index
    %c0_345 = arith.constant 0 : index
    %1095 = vector.load %arg1[%c0_342, %c1_343, %1094, %c0_344, %c0_345] : memref<2x2x30x30x128xf32, #tpu.memory_space<vmem>>, vector<1x1x1x30x128xf32>
    %1096 = vector.shape_cast %1095 : vector<1x1x1x30x128xf32> to vector<30x128xf32>
    %cst_346 = arith.constant 0.000000e+00 : f32
    %1097 = vector.broadcast %cst_346 : f32 to vector<30x128xf32>
    %1098 = arith.maximumf %1096, %1097 : vector<30x128xf32>
    %1099 = vector.extract_strided_slice %1098 {offsets = [0, 0], sizes = [28, 128], strides = [1, 1]} : vector<30x128xf32> to vector<28x128xf32>
    %1100 = vector.shape_cast %25 : vector<128xf32> to vector<1x128xf32>
    %1101 = vector.broadcast %1100 : vector<1x128xf32> to vector<28x128xf32>
    %1102 = arith.mulf %1099, %1101 : vector<28x128xf32>
    %1103 = arith.addf %1093, %1102 : vector<28x128xf32>
    %1104 = vector.extract_strided_slice %1098 {offsets = [1, 0], sizes = [28, 128], strides = [1, 1]} : vector<30x128xf32> to vector<28x128xf32>
    %1105 = vector.shape_cast %29 : vector<128xf32> to vector<1x128xf32>
    %1106 = vector.broadcast %1105 : vector<1x128xf32> to vector<28x128xf32>
    %1107 = arith.mulf %1104, %1106 : vector<28x128xf32>
    %1108 = arith.addf %1103, %1107 : vector<28x128xf32>
    %c5_i32_347 = arith.constant 5 : i32
    %1109 = arith.addi %0, %c5_i32_347 : i32
    %c1_i32_348 = arith.constant 1 : i32
    %1110 = arith.addi %1109, %c1_i32_348 : i32
    %c1_349 = arith.constant 1 : index
    %c0_350 = arith.constant 0 : index
    %1111 = arith.index_cast %1110 : i32 to index
    %c0_351 = arith.constant 0 : index
    %c0_352 = arith.constant 0 : index
    %1112 = vector.load %arg1[%c1_349, %c0_350, %1111, %c0_351, %c0_352] : memref<2x2x30x30x128xf32, #tpu.memory_space<vmem>>, vector<1x1x1x30x128xf32>
    %1113 = vector.shape_cast %1112 : vector<1x1x1x30x128xf32> to vector<30x128xf32>
    %cst_353 = arith.constant 0.000000e+00 : f32
    %1114 = vector.broadcast %cst_353 : f32 to vector<30x128xf32>
    %1115 = arith.maximumf %1113, %1114 : vector<30x128xf32>
    %1116 = vector.extract_strided_slice %1115 {offsets = [0, 0], sizes = [28, 128], strides = [1, 1]} : vector<30x128xf32> to vector<28x128xf32>
    %1117 = vector.shape_cast %33 : vector<128xf32> to vector<1x128xf32>
    %1118 = vector.broadcast %1117 : vector<1x128xf32> to vector<28x128xf32>
    %1119 = arith.mulf %1116, %1118 : vector<28x128xf32>
    %1120 = arith.addf %1108, %1119 : vector<28x128xf32>
    %1121 = vector.extract_strided_slice %1115 {offsets = [1, 0], sizes = [28, 128], strides = [1, 1]} : vector<30x128xf32> to vector<28x128xf32>
    %1122 = vector.shape_cast %37 : vector<128xf32> to vector<1x128xf32>
    %1123 = vector.broadcast %1122 : vector<1x128xf32> to vector<28x128xf32>
    %1124 = arith.mulf %1121, %1123 : vector<28x128xf32>
    %1125 = arith.addf %1120, %1124 : vector<28x128xf32>
    %1126 = vector.extract_strided_slice %1115 {offsets = [2, 0], sizes = [28, 128], strides = [1, 1]} : vector<30x128xf32> to vector<28x128xf32>
    %1127 = vector.shape_cast %41 : vector<128xf32> to vector<1x128xf32>
    %1128 = vector.broadcast %1127 : vector<1x128xf32> to vector<28x128xf32>
    %1129 = arith.mulf %1126, %1128 : vector<28x128xf32>
    %1130 = arith.addf %1125, %1129 : vector<28x128xf32>
    %c1_354 = arith.constant 1 : index
    %c1_355 = arith.constant 1 : index
    %1131 = arith.index_cast %1110 : i32 to index
    %c0_356 = arith.constant 0 : index
    %c0_357 = arith.constant 0 : index
    %1132 = vector.load %arg1[%c1_354, %c1_355, %1131, %c0_356, %c0_357] : memref<2x2x30x30x128xf32, #tpu.memory_space<vmem>>, vector<1x1x1x30x128xf32>
    %1133 = vector.shape_cast %1132 : vector<1x1x1x30x128xf32> to vector<30x128xf32>
    %cst_358 = arith.constant 0.000000e+00 : f32
    %1134 = vector.broadcast %cst_358 : f32 to vector<30x128xf32>
    %1135 = arith.maximumf %1133, %1134 : vector<30x128xf32>
    %1136 = vector.extract_strided_slice %1135 {offsets = [0, 0], sizes = [28, 128], strides = [1, 1]} : vector<30x128xf32> to vector<28x128xf32>
    %1137 = vector.shape_cast %35 : vector<128xf32> to vector<1x128xf32>
    %1138 = vector.broadcast %1137 : vector<1x128xf32> to vector<28x128xf32>
    %1139 = arith.mulf %1136, %1138 : vector<28x128xf32>
    %1140 = arith.addf %1130, %1139 : vector<28x128xf32>
    %1141 = vector.extract_strided_slice %1135 {offsets = [1, 0], sizes = [28, 128], strides = [1, 1]} : vector<30x128xf32> to vector<28x128xf32>
    %1142 = vector.shape_cast %39 : vector<128xf32> to vector<1x128xf32>
    %1143 = vector.broadcast %1142 : vector<1x128xf32> to vector<28x128xf32>
    %1144 = arith.mulf %1141, %1143 : vector<28x128xf32>
    %1145 = arith.addf %1140, %1144 : vector<28x128xf32>
    %c5_i32_359 = arith.constant 5 : i32
    %1146 = arith.addi %0, %c5_i32_359 : i32
    %c2_i32_360 = arith.constant 2 : i32
    %1147 = arith.addi %1146, %c2_i32_360 : i32
    %c0_361 = arith.constant 0 : index
    %c0_362 = arith.constant 0 : index
    %1148 = arith.index_cast %1147 : i32 to index
    %c0_363 = arith.constant 0 : index
    %c0_364 = arith.constant 0 : index
    %1149 = vector.load %arg1[%c0_361, %c0_362, %1148, %c0_363, %c0_364] : memref<2x2x30x30x128xf32, #tpu.memory_space<vmem>>, vector<1x1x1x30x128xf32>
    %1150 = vector.shape_cast %1149 : vector<1x1x1x30x128xf32> to vector<30x128xf32>
    %cst_365 = arith.constant 0.000000e+00 : f32
    %1151 = vector.broadcast %cst_365 : f32 to vector<30x128xf32>
    %1152 = arith.maximumf %1150, %1151 : vector<30x128xf32>
    %1153 = vector.extract_strided_slice %1152 {offsets = [0, 0], sizes = [28, 128], strides = [1, 1]} : vector<30x128xf32> to vector<28x128xf32>
    %1154 = vector.shape_cast %43 : vector<128xf32> to vector<1x128xf32>
    %1155 = vector.broadcast %1154 : vector<1x128xf32> to vector<28x128xf32>
    %1156 = arith.mulf %1153, %1155 : vector<28x128xf32>
    %1157 = arith.addf %1145, %1156 : vector<28x128xf32>
    %1158 = vector.extract_strided_slice %1152 {offsets = [1, 0], sizes = [28, 128], strides = [1, 1]} : vector<30x128xf32> to vector<28x128xf32>
    %1159 = vector.shape_cast %47 : vector<128xf32> to vector<1x128xf32>
    %1160 = vector.broadcast %1159 : vector<1x128xf32> to vector<28x128xf32>
    %1161 = arith.mulf %1158, %1160 : vector<28x128xf32>
    %1162 = arith.addf %1157, %1161 : vector<28x128xf32>
    %1163 = vector.extract_strided_slice %1152 {offsets = [2, 0], sizes = [28, 128], strides = [1, 1]} : vector<30x128xf32> to vector<28x128xf32>
    %1164 = vector.shape_cast %51 : vector<128xf32> to vector<1x128xf32>
    %1165 = vector.broadcast %1164 : vector<1x128xf32> to vector<28x128xf32>
    %1166 = arith.mulf %1163, %1165 : vector<28x128xf32>
    %1167 = arith.addf %1162, %1166 : vector<28x128xf32>
    %c0_366 = arith.constant 0 : index
    %c1_367 = arith.constant 1 : index
    %1168 = arith.index_cast %1147 : i32 to index
    %c0_368 = arith.constant 0 : index
    %c0_369 = arith.constant 0 : index
    %1169 = vector.load %arg1[%c0_366, %c1_367, %1168, %c0_368, %c0_369] : memref<2x2x30x30x128xf32, #tpu.memory_space<vmem>>, vector<1x1x1x30x128xf32>
    %1170 = vector.shape_cast %1169 : vector<1x1x1x30x128xf32> to vector<30x128xf32>
    %cst_370 = arith.constant 0.000000e+00 : f32
    %1171 = vector.broadcast %cst_370 : f32 to vector<30x128xf32>
    %1172 = arith.maximumf %1170, %1171 : vector<30x128xf32>
    %1173 = vector.extract_strided_slice %1172 {offsets = [0, 0], sizes = [28, 128], strides = [1, 1]} : vector<30x128xf32> to vector<28x128xf32>
    %1174 = vector.shape_cast %45 : vector<128xf32> to vector<1x128xf32>
    %1175 = vector.broadcast %1174 : vector<1x128xf32> to vector<28x128xf32>
    %1176 = arith.mulf %1173, %1175 : vector<28x128xf32>
    %1177 = arith.addf %1167, %1176 : vector<28x128xf32>
    %1178 = vector.extract_strided_slice %1172 {offsets = [1, 0], sizes = [28, 128], strides = [1, 1]} : vector<30x128xf32> to vector<28x128xf32>
    %1179 = vector.shape_cast %49 : vector<128xf32> to vector<1x128xf32>
    %1180 = vector.broadcast %1179 : vector<1x128xf32> to vector<28x128xf32>
    %1181 = arith.mulf %1178, %1180 : vector<28x128xf32>
    %1182 = arith.addf %1177, %1181 : vector<28x128xf32>
    %c5 = arith.constant 5 : index
    %c0_371 = arith.constant 0 : index
    %c0_372 = arith.constant 0 : index
    %1183 = vector.load %arg3[%c5, %c0_371, %c0_372] : memref<14x28x128xf32, #tpu.memory_space<vmem>>, vector<1x28x128xf32>
    %1184 = vector.shape_cast %1183 : vector<1x28x128xf32> to vector<28x128xf32>
    %1185 = vector.shape_cast %1182 : vector<28x128xf32> to vector<1x28x128xf32>
    tpu.vector_store %arg3[%c5, %c0_371, %c0_372], %1185 {strides = array<i32>} : memref<14x28x128xf32, #tpu.memory_space<vmem>>, vector<1x28x128xf32>,
    %cst_373 = arith.constant 0.000000e+00 : f32
    %1186 = vector.broadcast %cst_373 : f32 to vector<28x128xf32>
    %c6_i32 = arith.constant 6 : i32
    %1187 = arith.addi %0, %c6_i32 : i32
    %c0_i32_374 = arith.constant 0 : i32
    %1188 = arith.addi %1187, %c0_i32_374 : i32
    %c0_375 = arith.constant 0 : index
    %c0_376 = arith.constant 0 : index
    %1189 = arith.index_cast %1188 : i32 to index
    %c0_377 = arith.constant 0 : index
    %c0_378 = arith.constant 0 : index
    %1190 = vector.load %arg1[%c0_375, %c0_376, %1189, %c0_377, %c0_378] : memref<2x2x30x30x128xf32, #tpu.memory_space<vmem>>, vector<1x1x1x30x128xf32>
    %1191 = vector.shape_cast %1190 : vector<1x1x1x30x128xf32> to vector<30x128xf32>
    %cst_379 = arith.constant 0.000000e+00 : f32
    %1192 = vector.broadcast %cst_379 : f32 to vector<30x128xf32>
    %1193 = arith.maximumf %1191, %1192 : vector<30x128xf32>
    %1194 = vector.extract_strided_slice %1193 {offsets = [0, 0], sizes = [28, 128], strides = [1, 1]} : vector<30x128xf32> to vector<28x128xf32>
    %1195 = vector.shape_cast %3 : vector<128xf32> to vector<1x128xf32>
    %1196 = vector.broadcast %1195 : vector<1x128xf32> to vector<28x128xf32>
    %1197 = arith.mulf %1194, %1196 : vector<28x128xf32>
    %1198 = arith.addf %1186, %1197 : vector<28x128xf32>
    %1199 = vector.extract_strided_slice %1193 {offsets = [1, 0], sizes = [28, 128], strides = [1, 1]} : vector<30x128xf32> to vector<28x128xf32>
    %1200 = vector.shape_cast %7 : vector<128xf32> to vector<1x128xf32>
    %1201 = vector.broadcast %1200 : vector<1x128xf32> to vector<28x128xf32>
    %1202 = arith.mulf %1199, %1201 : vector<28x128xf32>
    %1203 = arith.addf %1198, %1202 : vector<28x128xf32>
    %1204 = vector.extract_strided_slice %1193 {offsets = [2, 0], sizes = [28, 128], strides = [1, 1]} : vector<30x128xf32> to vector<28x128xf32>
    %1205 = vector.shape_cast %11 : vector<128xf32> to vector<1x128xf32>
    %1206 = vector.broadcast %1205 : vector<1x128xf32> to vector<28x128xf32>
    %1207 = arith.mulf %1204, %1206 : vector<28x128xf32>
    %1208 = arith.addf %1203, %1207 : vector<28x128xf32>
    %c0_380 = arith.constant 0 : index
    %c1_381 = arith.constant 1 : index
    %1209 = arith.index_cast %1188 : i32 to index
    %c0_382 = arith.constant 0 : index
    %c0_383 = arith.constant 0 : index
    %1210 = vector.load %arg1[%c0_380, %c1_381, %1209, %c0_382, %c0_383] : memref<2x2x30x30x128xf32, #tpu.memory_space<vmem>>, vector<1x1x1x30x128xf32>
    %1211 = vector.shape_cast %1210 : vector<1x1x1x30x128xf32> to vector<30x128xf32>
    %cst_384 = arith.constant 0.000000e+00 : f32
    %1212 = vector.broadcast %cst_384 : f32 to vector<30x128xf32>
    %1213 = arith.maximumf %1211, %1212 : vector<30x128xf32>
    %1214 = vector.extract_strided_slice %1213 {offsets = [0, 0], sizes = [28, 128], strides = [1, 1]} : vector<30x128xf32> to vector<28x128xf32>
    %1215 = vector.shape_cast %5 : vector<128xf32> to vector<1x128xf32>
    %1216 = vector.broadcast %1215 : vector<1x128xf32> to vector<28x128xf32>
    %1217 = arith.mulf %1214, %1216 : vector<28x128xf32>
    %1218 = arith.addf %1208, %1217 : vector<28x128xf32>
    %1219 = vector.extract_strided_slice %1213 {offsets = [1, 0], sizes = [28, 128], strides = [1, 1]} : vector<30x128xf32> to vector<28x128xf32>
    %1220 = vector.shape_cast %9 : vector<128xf32> to vector<1x128xf32>
    %1221 = vector.broadcast %1220 : vector<1x128xf32> to vector<28x128xf32>
    %1222 = arith.mulf %1219, %1221 : vector<28x128xf32>
    %1223 = arith.addf %1218, %1222 : vector<28x128xf32>
    %c6_i32_385 = arith.constant 6 : i32
    %1224 = arith.addi %0, %c6_i32_385 : i32
    %c0_i32_386 = arith.constant 0 : i32
    %1225 = arith.addi %1224, %c0_i32_386 : i32
    %c1_387 = arith.constant 1 : index
    %c0_388 = arith.constant 0 : index
    %1226 = arith.index_cast %1225 : i32 to index
    %c0_389 = arith.constant 0 : index
    %c0_390 = arith.constant 0 : index
    %1227 = vector.load %arg1[%c1_387, %c0_388, %1226, %c0_389, %c0_390] : memref<2x2x30x30x128xf32, #tpu.memory_space<vmem>>, vector<1x1x1x30x128xf32>
    %1228 = vector.shape_cast %1227 : vector<1x1x1x30x128xf32> to vector<30x128xf32>
    %cst_391 = arith.constant 0.000000e+00 : f32
    %1229 = vector.broadcast %cst_391 : f32 to vector<30x128xf32>
    %1230 = arith.maximumf %1228, %1229 : vector<30x128xf32>
    %1231 = vector.extract_strided_slice %1230 {offsets = [0, 0], sizes = [28, 128], strides = [1, 1]} : vector<30x128xf32> to vector<28x128xf32>
    %1232 = vector.shape_cast %13 : vector<128xf32> to vector<1x128xf32>
    %1233 = vector.broadcast %1232 : vector<1x128xf32> to vector<28x128xf32>
    %1234 = arith.mulf %1231, %1233 : vector<28x128xf32>
    %1235 = arith.addf %1223, %1234 : vector<28x128xf32>
    %1236 = vector.extract_strided_slice %1230 {offsets = [1, 0], sizes = [28, 128], strides = [1, 1]} : vector<30x128xf32> to vector<28x128xf32>
    %1237 = vector.shape_cast %17 : vector<128xf32> to vector<1x128xf32>
    %1238 = vector.broadcast %1237 : vector<1x128xf32> to vector<28x128xf32>
    %1239 = arith.mulf %1236, %1238 : vector<28x128xf32>
    %1240 = arith.addf %1235, %1239 : vector<28x128xf32>
    %1241 = vector.extract_strided_slice %1230 {offsets = [2, 0], sizes = [28, 128], strides = [1, 1]} : vector<30x128xf32> to vector<28x128xf32>
    %1242 = vector.shape_cast %21 : vector<128xf32> to vector<1x128xf32>
    %1243 = vector.broadcast %1242 : vector<1x128xf32> to vector<28x128xf32>
    %1244 = arith.mulf %1241, %1243 : vector<28x128xf32>
    %1245 = arith.addf %1240, %1244 : vector<28x128xf32>
    %c1_392 = arith.constant 1 : index
    %c1_393 = arith.constant 1 : index
    %1246 = arith.index_cast %1225 : i32 to index
    %c0_394 = arith.constant 0 : index
    %c0_395 = arith.constant 0 : index
    %1247 = vector.load %arg1[%c1_392, %c1_393, %1246, %c0_394, %c0_395] : memref<2x2x30x30x128xf32, #tpu.memory_space<vmem>>, vector<1x1x1x30x128xf32>
    %1248 = vector.shape_cast %1247 : vector<1x1x1x30x128xf32> to vector<30x128xf32>
    %cst_396 = arith.constant 0.000000e+00 : f32
    %1249 = vector.broadcast %cst_396 : f32 to vector<30x128xf32>
    %1250 = arith.maximumf %1248, %1249 : vector<30x128xf32>
    %1251 = vector.extract_strided_slice %1250 {offsets = [0, 0], sizes = [28, 128], strides = [1, 1]} : vector<30x128xf32> to vector<28x128xf32>
    %1252 = vector.shape_cast %15 : vector<128xf32> to vector<1x128xf32>
    %1253 = vector.broadcast %1252 : vector<1x128xf32> to vector<28x128xf32>
    %1254 = arith.mulf %1251, %1253 : vector<28x128xf32>
    %1255 = arith.addf %1245, %1254 : vector<28x128xf32>
    %1256 = vector.extract_strided_slice %1250 {offsets = [1, 0], sizes = [28, 128], strides = [1, 1]} : vector<30x128xf32> to vector<28x128xf32>
    %1257 = vector.shape_cast %19 : vector<128xf32> to vector<1x128xf32>
    %1258 = vector.broadcast %1257 : vector<1x128xf32> to vector<28x128xf32>
    %1259 = arith.mulf %1256, %1258 : vector<28x128xf32>
    %1260 = arith.addf %1255, %1259 : vector<28x128xf32>
    %c6_i32_397 = arith.constant 6 : i32
    %1261 = arith.addi %0, %c6_i32_397 : i32
    %c1_i32_398 = arith.constant 1 : i32
    %1262 = arith.addi %1261, %c1_i32_398 : i32
    %c0_399 = arith.constant 0 : index
    %c0_400 = arith.constant 0 : index
    %1263 = arith.index_cast %1262 : i32 to index
    %c0_401 = arith.constant 0 : index
    %c0_402 = arith.constant 0 : index
    %1264 = vector.load %arg1[%c0_399, %c0_400, %1263, %c0_401, %c0_402] : memref<2x2x30x30x128xf32, #tpu.memory_space<vmem>>, vector<1x1x1x30x128xf32>
    %1265 = vector.shape_cast %1264 : vector<1x1x1x30x128xf32> to vector<30x128xf32>
    %cst_403 = arith.constant 0.000000e+00 : f32
    %1266 = vector.broadcast %cst_403 : f32 to vector<30x128xf32>
    %1267 = arith.maximumf %1265, %1266 : vector<30x128xf32>
    %1268 = vector.extract_strided_slice %1267 {offsets = [0, 0], sizes = [28, 128], strides = [1, 1]} : vector<30x128xf32> to vector<28x128xf32>
    %1269 = vector.shape_cast %23 : vector<128xf32> to vector<1x128xf32>
    %1270 = vector.broadcast %1269 : vector<1x128xf32> to vector<28x128xf32>
    %1271 = arith.mulf %1268, %1270 : vector<28x128xf32>
    %1272 = arith.addf %1260, %1271 : vector<28x128xf32>
    %1273 = vector.extract_strided_slice %1267 {offsets = [1, 0], sizes = [28, 128], strides = [1, 1]} : vector<30x128xf32> to vector<28x128xf32>
    %1274 = vector.shape_cast %27 : vector<128xf32> to vector<1x128xf32>
    %1275 = vector.broadcast %1274 : vector<1x128xf32> to vector<28x128xf32>
    %1276 = arith.mulf %1273, %1275 : vector<28x128xf32>
    %1277 = arith.addf %1272, %1276 : vector<28x128xf32>
    %1278 = vector.extract_strided_slice %1267 {offsets = [2, 0], sizes = [28, 128], strides = [1, 1]} : vector<30x128xf32> to vector<28x128xf32>
    %1279 = vector.shape_cast %31 : vector<128xf32> to vector<1x128xf32>
    %1280 = vector.broadcast %1279 : vector<1x128xf32> to vector<28x128xf32>
    %1281 = arith.mulf %1278, %1280 : vector<28x128xf32>
    %1282 = arith.addf %1277, %1281 : vector<28x128xf32>
    %c0_404 = arith.constant 0 : index
    %c1_405 = arith.constant 1 : index
    %1283 = arith.index_cast %1262 : i32 to index
    %c0_406 = arith.constant 0 : index
    %c0_407 = arith.constant 0 : index
    %1284 = vector.load %arg1[%c0_404, %c1_405, %1283, %c0_406, %c0_407] : memref<2x2x30x30x128xf32, #tpu.memory_space<vmem>>, vector<1x1x1x30x128xf32>
    %1285 = vector.shape_cast %1284 : vector<1x1x1x30x128xf32> to vector<30x128xf32>
    %cst_408 = arith.constant 0.000000e+00 : f32
    %1286 = vector.broadcast %cst_408 : f32 to vector<30x128xf32>
    %1287 = arith.maximumf %1285, %1286 : vector<30x128xf32>
    %1288 = vector.extract_strided_slice %1287 {offsets = [0, 0], sizes = [28, 128], strides = [1, 1]} : vector<30x128xf32> to vector<28x128xf32>
    %1289 = vector.shape_cast %25 : vector<128xf32> to vector<1x128xf32>
    %1290 = vector.broadcast %1289 : vector<1x128xf32> to vector<28x128xf32>
    %1291 = arith.mulf %1288, %1290 : vector<28x128xf32>
    %1292 = arith.addf %1282, %1291 : vector<28x128xf32>
    %1293 = vector.extract_strided_slice %1287 {offsets = [1, 0], sizes = [28, 128], strides = [1, 1]} : vector<30x128xf32> to vector<28x128xf32>
    %1294 = vector.shape_cast %29 : vector<128xf32> to vector<1x128xf32>
    %1295 = vector.broadcast %1294 : vector<1x128xf32> to vector<28x128xf32>
    %1296 = arith.mulf %1293, %1295 : vector<28x128xf32>
    %1297 = arith.addf %1292, %1296 : vector<28x128xf32>
    %c6_i32_409 = arith.constant 6 : i32
    %1298 = arith.addi %0, %c6_i32_409 : i32
    %c1_i32_410 = arith.constant 1 : i32
    %1299 = arith.addi %1298, %c1_i32_410 : i32
    %c1_411 = arith.constant 1 : index
    %c0_412 = arith.constant 0 : index
    %1300 = arith.index_cast %1299 : i32 to index
    %c0_413 = arith.constant 0 : index
    %c0_414 = arith.constant 0 : index
    %1301 = vector.load %arg1[%c1_411, %c0_412, %1300, %c0_413, %c0_414] : memref<2x2x30x30x128xf32, #tpu.memory_space<vmem>>, vector<1x1x1x30x128xf32>
    %1302 = vector.shape_cast %1301 : vector<1x1x1x30x128xf32> to vector<30x128xf32>
    %cst_415 = arith.constant 0.000000e+00 : f32
    %1303 = vector.broadcast %cst_415 : f32 to vector<30x128xf32>
    %1304 = arith.maximumf %1302, %1303 : vector<30x128xf32>
    %1305 = vector.extract_strided_slice %1304 {offsets = [0, 0], sizes = [28, 128], strides = [1, 1]} : vector<30x128xf32> to vector<28x128xf32>
    %1306 = vector.shape_cast %33 : vector<128xf32> to vector<1x128xf32>
    %1307 = vector.broadcast %1306 : vector<1x128xf32> to vector<28x128xf32>
    %1308 = arith.mulf %1305, %1307 : vector<28x128xf32>
    %1309 = arith.addf %1297, %1308 : vector<28x128xf32>
    %1310 = vector.extract_strided_slice %1304 {offsets = [1, 0], sizes = [28, 128], strides = [1, 1]} : vector<30x128xf32> to vector<28x128xf32>
    %1311 = vector.shape_cast %37 : vector<128xf32> to vector<1x128xf32>
    %1312 = vector.broadcast %1311 : vector<1x128xf32> to vector<28x128xf32>
    %1313 = arith.mulf %1310, %1312 : vector<28x128xf32>
    %1314 = arith.addf %1309, %1313 : vector<28x128xf32>
    %1315 = vector.extract_strided_slice %1304 {offsets = [2, 0], sizes = [28, 128], strides = [1, 1]} : vector<30x128xf32> to vector<28x128xf32>
    %1316 = vector.shape_cast %41 : vector<128xf32> to vector<1x128xf32>
    %1317 = vector.broadcast %1316 : vector<1x128xf32> to vector<28x128xf32>
    %1318 = arith.mulf %1315, %1317 : vector<28x128xf32>
    %1319 = arith.addf %1314, %1318 : vector<28x128xf32>
    %c1_416 = arith.constant 1 : index
    %c1_417 = arith.constant 1 : index
    %1320 = arith.index_cast %1299 : i32 to index
    %c0_418 = arith.constant 0 : index
    %c0_419 = arith.constant 0 : index
    %1321 = vector.load %arg1[%c1_416, %c1_417, %1320, %c0_418, %c0_419] : memref<2x2x30x30x128xf32, #tpu.memory_space<vmem>>, vector<1x1x1x30x128xf32>
    %1322 = vector.shape_cast %1321 : vector<1x1x1x30x128xf32> to vector<30x128xf32>
    %cst_420 = arith.constant 0.000000e+00 : f32
    %1323 = vector.broadcast %cst_420 : f32 to vector<30x128xf32>
    %1324 = arith.maximumf %1322, %1323 : vector<30x128xf32>
    %1325 = vector.extract_strided_slice %1324 {offsets = [0, 0], sizes = [28, 128], strides = [1, 1]} : vector<30x128xf32> to vector<28x128xf32>
    %1326 = vector.shape_cast %35 : vector<128xf32> to vector<1x128xf32>
    %1327 = vector.broadcast %1326 : vector<1x128xf32> to vector<28x128xf32>
    %1328 = arith.mulf %1325, %1327 : vector<28x128xf32>
    %1329 = arith.addf %1319, %1328 : vector<28x128xf32>
    %1330 = vector.extract_strided_slice %1324 {offsets = [1, 0], sizes = [28, 128], strides = [1, 1]} : vector<30x128xf32> to vector<28x128xf32>
    %1331 = vector.shape_cast %39 : vector<128xf32> to vector<1x128xf32>
    %1332 = vector.broadcast %1331 : vector<1x128xf32> to vector<28x128xf32>
    %1333 = arith.mulf %1330, %1332 : vector<28x128xf32>
    %1334 = arith.addf %1329, %1333 : vector<28x128xf32>
    %c6_i32_421 = arith.constant 6 : i32
    %1335 = arith.addi %0, %c6_i32_421 : i32
    %c2_i32_422 = arith.constant 2 : i32
    %1336 = arith.addi %1335, %c2_i32_422 : i32
    %c0_423 = arith.constant 0 : index
    %c0_424 = arith.constant 0 : index
    %1337 = arith.index_cast %1336 : i32 to index
    %c0_425 = arith.constant 0 : index
    %c0_426 = arith.constant 0 : index
    %1338 = vector.load %arg1[%c0_423, %c0_424, %1337, %c0_425, %c0_426] : memref<2x2x30x30x128xf32, #tpu.memory_space<vmem>>, vector<1x1x1x30x128xf32>
    %1339 = vector.shape_cast %1338 : vector<1x1x1x30x128xf32> to vector<30x128xf32>
    %cst_427 = arith.constant 0.000000e+00 : f32
    %1340 = vector.broadcast %cst_427 : f32 to vector<30x128xf32>
    %1341 = arith.maximumf %1339, %1340 : vector<30x128xf32>
    %1342 = vector.extract_strided_slice %1341 {offsets = [0, 0], sizes = [28, 128], strides = [1, 1]} : vector<30x128xf32> to vector<28x128xf32>
    %1343 = vector.shape_cast %43 : vector<128xf32> to vector<1x128xf32>
    %1344 = vector.broadcast %1343 : vector<1x128xf32> to vector<28x128xf32>
    %1345 = arith.mulf %1342, %1344 : vector<28x128xf32>
    %1346 = arith.addf %1334, %1345 : vector<28x128xf32>
    %1347 = vector.extract_strided_slice %1341 {offsets = [1, 0], sizes = [28, 128], strides = [1, 1]} : vector<30x128xf32> to vector<28x128xf32>
    %1348 = vector.shape_cast %47 : vector<128xf32> to vector<1x128xf32>
    %1349 = vector.broadcast %1348 : vector<1x128xf32> to vector<28x128xf32>
    %1350 = arith.mulf %1347, %1349 : vector<28x128xf32>
    %1351 = arith.addf %1346, %1350 : vector<28x128xf32>
    %1352 = vector.extract_strided_slice %1341 {offsets = [2, 0], sizes = [28, 128], strides = [1, 1]} : vector<30x128xf32> to vector<28x128xf32>
    %1353 = vector.shape_cast %51 : vector<128xf32> to vector<1x128xf32>
    %1354 = vector.broadcast %1353 : vector<1x128xf32> to vector<28x128xf32>
    %1355 = arith.mulf %1352, %1354 : vector<28x128xf32>
    %1356 = arith.addf %1351, %1355 : vector<28x128xf32>
    %c0_428 = arith.constant 0 : index
    %c1_429 = arith.constant 1 : index
    %1357 = arith.index_cast %1336 : i32 to index
    %c0_430 = arith.constant 0 : index
    %c0_431 = arith.constant 0 : index
    %1358 = vector.load %arg1[%c0_428, %c1_429, %1357, %c0_430, %c0_431] : memref<2x2x30x30x128xf32, #tpu.memory_space<vmem>>, vector<1x1x1x30x128xf32>
    %1359 = vector.shape_cast %1358 : vector<1x1x1x30x128xf32> to vector<30x128xf32>
    %cst_432 = arith.constant 0.000000e+00 : f32
    %1360 = vector.broadcast %cst_432 : f32 to vector<30x128xf32>
    %1361 = arith.maximumf %1359, %1360 : vector<30x128xf32>
    %1362 = vector.extract_strided_slice %1361 {offsets = [0, 0], sizes = [28, 128], strides = [1, 1]} : vector<30x128xf32> to vector<28x128xf32>
    %1363 = vector.shape_cast %45 : vector<128xf32> to vector<1x128xf32>
    %1364 = vector.broadcast %1363 : vector<1x128xf32> to vector<28x128xf32>
    %1365 = arith.mulf %1362, %1364 : vector<28x128xf32>
    %1366 = arith.addf %1356, %1365 : vector<28x128xf32>
    %1367 = vector.extract_strided_slice %1361 {offsets = [1, 0], sizes = [28, 128], strides = [1, 1]} : vector<30x128xf32> to vector<28x128xf32>
    %1368 = vector.shape_cast %49 : vector<128xf32> to vector<1x128xf32>
    %1369 = vector.broadcast %1368 : vector<1x128xf32> to vector<28x128xf32>
    %1370 = arith.mulf %1367, %1369 : vector<28x128xf32>
    %1371 = arith.addf %1366, %1370 : vector<28x128xf32>
    %c6 = arith.constant 6 : index
    %c0_433 = arith.constant 0 : index
    %c0_434 = arith.constant 0 : index
    %1372 = vector.load %arg3[%c6, %c0_433, %c0_434] : memref<14x28x128xf32, #tpu.memory_space<vmem>>, vector<1x28x128xf32>
    %1373 = vector.shape_cast %1372 : vector<1x28x128xf32> to vector<28x128xf32>
    %1374 = vector.shape_cast %1371 : vector<28x128xf32> to vector<1x28x128xf32>
    tpu.vector_store %arg3[%c6, %c0_433, %c0_434], %1374 {strides = array<i32>} : memref<14x28x128xf32, #tpu.memory_space<vmem>>, vector<1x28x128xf32>,
    %cst_435 = arith.constant 0.000000e+00 : f32
    %1375 = vector.broadcast %cst_435 : f32 to vector<28x128xf32>
    %c7_i32 = arith.constant 7 : i32
    %1376 = arith.addi %0, %c7_i32 : i32
    %c0_i32_436 = arith.constant 0 : i32
    %1377 = arith.addi %1376, %c0_i32_436 : i32
    %c0_437 = arith.constant 0 : index
    %c0_438 = arith.constant 0 : index
    %1378 = arith.index_cast %1377 : i32 to index
    %c0_439 = arith.constant 0 : index
    %c0_440 = arith.constant 0 : index
    %1379 = vector.load %arg1[%c0_437, %c0_438, %1378, %c0_439, %c0_440] : memref<2x2x30x30x128xf32, #tpu.memory_space<vmem>>, vector<1x1x1x30x128xf32>
    %1380 = vector.shape_cast %1379 : vector<1x1x1x30x128xf32> to vector<30x128xf32>
    %cst_441 = arith.constant 0.000000e+00 : f32
    %1381 = vector.broadcast %cst_441 : f32 to vector<30x128xf32>
    %1382 = arith.maximumf %1380, %1381 : vector<30x128xf32>
    %1383 = vector.extract_strided_slice %1382 {offsets = [0, 0], sizes = [28, 128], strides = [1, 1]} : vector<30x128xf32> to vector<28x128xf32>
    %1384 = vector.shape_cast %3 : vector<128xf32> to vector<1x128xf32>
    %1385 = vector.broadcast %1384 : vector<1x128xf32> to vector<28x128xf32>
    %1386 = arith.mulf %1383, %1385 : vector<28x128xf32>
    %1387 = arith.addf %1375, %1386 : vector<28x128xf32>
    %1388 = vector.extract_strided_slice %1382 {offsets = [1, 0], sizes = [28, 128], strides = [1, 1]} : vector<30x128xf32> to vector<28x128xf32>
    %1389 = vector.shape_cast %7 : vector<128xf32> to vector<1x128xf32>
    %1390 = vector.broadcast %1389 : vector<1x128xf32> to vector<28x128xf32>
    %1391 = arith.mulf %1388, %1390 : vector<28x128xf32>
    %1392 = arith.addf %1387, %1391 : vector<28x128xf32>
    %1393 = vector.extract_strided_slice %1382 {offsets = [2, 0], sizes = [28, 128], strides = [1, 1]} : vector<30x128xf32> to vector<28x128xf32>
    %1394 = vector.shape_cast %11 : vector<128xf32> to vector<1x128xf32>
    %1395 = vector.broadcast %1394 : vector<1x128xf32> to vector<28x128xf32>
    %1396 = arith.mulf %1393, %1395 : vector<28x128xf32>
    %1397 = arith.addf %1392, %1396 : vector<28x128xf32>
    %c0_442 = arith.constant 0 : index
    %c1_443 = arith.constant 1 : index
    %1398 = arith.index_cast %1377 : i32 to index
    %c0_444 = arith.constant 0 : index
    %c0_445 = arith.constant 0 : index
    %1399 = vector.load %arg1[%c0_442, %c1_443, %1398, %c0_444, %c0_445] : memref<2x2x30x30x128xf32, #tpu.memory_space<vmem>>, vector<1x1x1x30x128xf32>
    %1400 = vector.shape_cast %1399 : vector<1x1x1x30x128xf32> to vector<30x128xf32>
    %cst_446 = arith.constant 0.000000e+00 : f32
    %1401 = vector.broadcast %cst_446 : f32 to vector<30x128xf32>
    %1402 = arith.maximumf %1400, %1401 : vector<30x128xf32>
    %1403 = vector.extract_strided_slice %1402 {offsets = [0, 0], sizes = [28, 128], strides = [1, 1]} : vector<30x128xf32> to vector<28x128xf32>
    %1404 = vector.shape_cast %5 : vector<128xf32> to vector<1x128xf32>
    %1405 = vector.broadcast %1404 : vector<1x128xf32> to vector<28x128xf32>
    %1406 = arith.mulf %1403, %1405 : vector<28x128xf32>
    %1407 = arith.addf %1397, %1406 : vector<28x128xf32>
    %1408 = vector.extract_strided_slice %1402 {offsets = [1, 0], sizes = [28, 128], strides = [1, 1]} : vector<30x128xf32> to vector<28x128xf32>
    %1409 = vector.shape_cast %9 : vector<128xf32> to vector<1x128xf32>
    %1410 = vector.broadcast %1409 : vector<1x128xf32> to vector<28x128xf32>
    %1411 = arith.mulf %1408, %1410 : vector<28x128xf32>
    %1412 = arith.addf %1407, %1411 : vector<28x128xf32>
    %c7_i32_447 = arith.constant 7 : i32
    %1413 = arith.addi %0, %c7_i32_447 : i32
    %c0_i32_448 = arith.constant 0 : i32
    %1414 = arith.addi %1413, %c0_i32_448 : i32
    %c1_449 = arith.constant 1 : index
    %c0_450 = arith.constant 0 : index
    %1415 = arith.index_cast %1414 : i32 to index
    %c0_451 = arith.constant 0 : index
    %c0_452 = arith.constant 0 : index
    %1416 = vector.load %arg1[%c1_449, %c0_450, %1415, %c0_451, %c0_452] : memref<2x2x30x30x128xf32, #tpu.memory_space<vmem>>, vector<1x1x1x30x128xf32>
    %1417 = vector.shape_cast %1416 : vector<1x1x1x30x128xf32> to vector<30x128xf32>
    %cst_453 = arith.constant 0.000000e+00 : f32
    %1418 = vector.broadcast %cst_453 : f32 to vector<30x128xf32>
    %1419 = arith.maximumf %1417, %1418 : vector<30x128xf32>
    %1420 = vector.extract_strided_slice %1419 {offsets = [0, 0], sizes = [28, 128], strides = [1, 1]} : vector<30x128xf32> to vector<28x128xf32>
    %1421 = vector.shape_cast %13 : vector<128xf32> to vector<1x128xf32>
    %1422 = vector.broadcast %1421 : vector<1x128xf32> to vector<28x128xf32>
    %1423 = arith.mulf %1420, %1422 : vector<28x128xf32>
    %1424 = arith.addf %1412, %1423 : vector<28x128xf32>
    %1425 = vector.extract_strided_slice %1419 {offsets = [1, 0], sizes = [28, 128], strides = [1, 1]} : vector<30x128xf32> to vector<28x128xf32>
    %1426 = vector.shape_cast %17 : vector<128xf32> to vector<1x128xf32>
    %1427 = vector.broadcast %1426 : vector<1x128xf32> to vector<28x128xf32>
    %1428 = arith.mulf %1425, %1427 : vector<28x128xf32>
    %1429 = arith.addf %1424, %1428 : vector<28x128xf32>
    %1430 = vector.extract_strided_slice %1419 {offsets = [2, 0], sizes = [28, 128], strides = [1, 1]} : vector<30x128xf32> to vector<28x128xf32>
    %1431 = vector.shape_cast %21 : vector<128xf32> to vector<1x128xf32>
    %1432 = vector.broadcast %1431 : vector<1x128xf32> to vector<28x128xf32>
    %1433 = arith.mulf %1430, %1432 : vector<28x128xf32>
    %1434 = arith.addf %1429, %1433 : vector<28x128xf32>
    %c1_454 = arith.constant 1 : index
    %c1_455 = arith.constant 1 : index
    %1435 = arith.index_cast %1414 : i32 to index
    %c0_456 = arith.constant 0 : index
    %c0_457 = arith.constant 0 : index
    %1436 = vector.load %arg1[%c1_454, %c1_455, %1435, %c0_456, %c0_457] : memref<2x2x30x30x128xf32, #tpu.memory_space<vmem>>, vector<1x1x1x30x128xf32>
    %1437 = vector.shape_cast %1436 : vector<1x1x1x30x128xf32> to vector<30x128xf32>
    %cst_458 = arith.constant 0.000000e+00 : f32
    %1438 = vector.broadcast %cst_458 : f32 to vector<30x128xf32>
    %1439 = arith.maximumf %1437, %1438 : vector<30x128xf32>
    %1440 = vector.extract_strided_slice %1439 {offsets = [0, 0], sizes = [28, 128], strides = [1, 1]} : vector<30x128xf32> to vector<28x128xf32>
    %1441 = vector.shape_cast %15 : vector<128xf32> to vector<1x128xf32>
    %1442 = vector.broadcast %1441 : vector<1x128xf32> to vector<28x128xf32>
    %1443 = arith.mulf %1440, %1442 : vector<28x128xf32>
    %1444 = arith.addf %1434, %1443 : vector<28x128xf32>
    %1445 = vector.extract_strided_slice %1439 {offsets = [1, 0], sizes = [28, 128], strides = [1, 1]} : vector<30x128xf32> to vector<28x128xf32>
    %1446 = vector.shape_cast %19 : vector<128xf32> to vector<1x128xf32>
    %1447 = vector.broadcast %1446 : vector<1x128xf32> to vector<28x128xf32>
    %1448 = arith.mulf %1445, %1447 : vector<28x128xf32>
    %1449 = arith.addf %1444, %1448 : vector<28x128xf32>
    %c7_i32_459 = arith.constant 7 : i32
    %1450 = arith.addi %0, %c7_i32_459 : i32
    %c1_i32_460 = arith.constant 1 : i32
    %1451 = arith.addi %1450, %c1_i32_460 : i32
    %c0_461 = arith.constant 0 : index
    %c0_462 = arith.constant 0 : index
    %1452 = arith.index_cast %1451 : i32 to index
    %c0_463 = arith.constant 0 : index
    %c0_464 = arith.constant 0 : index
    %1453 = vector.load %arg1[%c0_461, %c0_462, %1452, %c0_463, %c0_464] : memref<2x2x30x30x128xf32, #tpu.memory_space<vmem>>, vector<1x1x1x30x128xf32>
    %1454 = vector.shape_cast %1453 : vector<1x1x1x30x128xf32> to vector<30x128xf32>
    %cst_465 = arith.constant 0.000000e+00 : f32
    %1455 = vector.broadcast %cst_465 : f32 to vector<30x128xf32>
    %1456 = arith.maximumf %1454, %1455 : vector<30x128xf32>
    %1457 = vector.extract_strided_slice %1456 {offsets = [0, 0], sizes = [28, 128], strides = [1, 1]} : vector<30x128xf32> to vector<28x128xf32>
    %1458 = vector.shape_cast %23 : vector<128xf32> to vector<1x128xf32>
    %1459 = vector.broadcast %1458 : vector<1x128xf32> to vector<28x128xf32>
    %1460 = arith.mulf %1457, %1459 : vector<28x128xf32>
    %1461 = arith.addf %1449, %1460 : vector<28x128xf32>
    %1462 = vector.extract_strided_slice %1456 {offsets = [1, 0], sizes = [28, 128], strides = [1, 1]} : vector<30x128xf32> to vector<28x128xf32>
    %1463 = vector.shape_cast %27 : vector<128xf32> to vector<1x128xf32>
    %1464 = vector.broadcast %1463 : vector<1x128xf32> to vector<28x128xf32>
    %1465 = arith.mulf %1462, %1464 : vector<28x128xf32>
    %1466 = arith.addf %1461, %1465 : vector<28x128xf32>
    %1467 = vector.extract_strided_slice %1456 {offsets = [2, 0], sizes = [28, 128], strides = [1, 1]} : vector<30x128xf32> to vector<28x128xf32>
    %1468 = vector.shape_cast %31 : vector<128xf32> to vector<1x128xf32>
    %1469 = vector.broadcast %1468 : vector<1x128xf32> to vector<28x128xf32>
    %1470 = arith.mulf %1467, %1469 : vector<28x128xf32>
    %1471 = arith.addf %1466, %1470 : vector<28x128xf32>
    %c0_466 = arith.constant 0 : index
    %c1_467 = arith.constant 1 : index
    %1472 = arith.index_cast %1451 : i32 to index
    %c0_468 = arith.constant 0 : index
    %c0_469 = arith.constant 0 : index
    %1473 = vector.load %arg1[%c0_466, %c1_467, %1472, %c0_468, %c0_469] : memref<2x2x30x30x128xf32, #tpu.memory_space<vmem>>, vector<1x1x1x30x128xf32>
    %1474 = vector.shape_cast %1473 : vector<1x1x1x30x128xf32> to vector<30x128xf32>
    %cst_470 = arith.constant 0.000000e+00 : f32
    %1475 = vector.broadcast %cst_470 : f32 to vector<30x128xf32>
    %1476 = arith.maximumf %1474, %1475 : vector<30x128xf32>
    %1477 = vector.extract_strided_slice %1476 {offsets = [0, 0], sizes = [28, 128], strides = [1, 1]} : vector<30x128xf32> to vector<28x128xf32>
    %1478 = vector.shape_cast %25 : vector<128xf32> to vector<1x128xf32>
    %1479 = vector.broadcast %1478 : vector<1x128xf32> to vector<28x128xf32>
    %1480 = arith.mulf %1477, %1479 : vector<28x128xf32>
    %1481 = arith.addf %1471, %1480 : vector<28x128xf32>
    %1482 = vector.extract_strided_slice %1476 {offsets = [1, 0], sizes = [28, 128], strides = [1, 1]} : vector<30x128xf32> to vector<28x128xf32>
    %1483 = vector.shape_cast %29 : vector<128xf32> to vector<1x128xf32>
    %1484 = vector.broadcast %1483 : vector<1x128xf32> to vector<28x128xf32>
    %1485 = arith.mulf %1482, %1484 : vector<28x128xf32>
    %1486 = arith.addf %1481, %1485 : vector<28x128xf32>
    %c7_i32_471 = arith.constant 7 : i32
    %1487 = arith.addi %0, %c7_i32_471 : i32
    %c1_i32_472 = arith.constant 1 : i32
    %1488 = arith.addi %1487, %c1_i32_472 : i32
    %c1_473 = arith.constant 1 : index
    %c0_474 = arith.constant 0 : index
    %1489 = arith.index_cast %1488 : i32 to index
    %c0_475 = arith.constant 0 : index
    %c0_476 = arith.constant 0 : index
    %1490 = vector.load %arg1[%c1_473, %c0_474, %1489, %c0_475, %c0_476] : memref<2x2x30x30x128xf32, #tpu.memory_space<vmem>>, vector<1x1x1x30x128xf32>
    %1491 = vector.shape_cast %1490 : vector<1x1x1x30x128xf32> to vector<30x128xf32>
    %cst_477 = arith.constant 0.000000e+00 : f32
    %1492 = vector.broadcast %cst_477 : f32 to vector<30x128xf32>
    %1493 = arith.maximumf %1491, %1492 : vector<30x128xf32>
    %1494 = vector.extract_strided_slice %1493 {offsets = [0, 0], sizes = [28, 128], strides = [1, 1]} : vector<30x128xf32> to vector<28x128xf32>
    %1495 = vector.shape_cast %33 : vector<128xf32> to vector<1x128xf32>
    %1496 = vector.broadcast %1495 : vector<1x128xf32> to vector<28x128xf32>
    %1497 = arith.mulf %1494, %1496 : vector<28x128xf32>
    %1498 = arith.addf %1486, %1497 : vector<28x128xf32>
    %1499 = vector.extract_strided_slice %1493 {offsets = [1, 0], sizes = [28, 128], strides = [1, 1]} : vector<30x128xf32> to vector<28x128xf32>
    %1500 = vector.shape_cast %37 : vector<128xf32> to vector<1x128xf32>
    %1501 = vector.broadcast %1500 : vector<1x128xf32> to vector<28x128xf32>
    %1502 = arith.mulf %1499, %1501 : vector<28x128xf32>
    %1503 = arith.addf %1498, %1502 : vector<28x128xf32>
    %1504 = vector.extract_strided_slice %1493 {offsets = [2, 0], sizes = [28, 128], strides = [1, 1]} : vector<30x128xf32> to vector<28x128xf32>
    %1505 = vector.shape_cast %41 : vector<128xf32> to vector<1x128xf32>
    %1506 = vector.broadcast %1505 : vector<1x128xf32> to vector<28x128xf32>
    %1507 = arith.mulf %1504, %1506 : vector<28x128xf32>
    %1508 = arith.addf %1503, %1507 : vector<28x128xf32>
    %c1_478 = arith.constant 1 : index
    %c1_479 = arith.constant 1 : index
    %1509 = arith.index_cast %1488 : i32 to index
    %c0_480 = arith.constant 0 : index
    %c0_481 = arith.constant 0 : index
    %1510 = vector.load %arg1[%c1_478, %c1_479, %1509, %c0_480, %c0_481] : memref<2x2x30x30x128xf32, #tpu.memory_space<vmem>>, vector<1x1x1x30x128xf32>
    %1511 = vector.shape_cast %1510 : vector<1x1x1x30x128xf32> to vector<30x128xf32>
    %cst_482 = arith.constant 0.000000e+00 : f32
    %1512 = vector.broadcast %cst_482 : f32 to vector<30x128xf32>
    %1513 = arith.maximumf %1511, %1512 : vector<30x128xf32>
    %1514 = vector.extract_strided_slice %1513 {offsets = [0, 0], sizes = [28, 128], strides = [1, 1]} : vector<30x128xf32> to vector<28x128xf32>
    %1515 = vector.shape_cast %35 : vector<128xf32> to vector<1x128xf32>
    %1516 = vector.broadcast %1515 : vector<1x128xf32> to vector<28x128xf32>
    %1517 = arith.mulf %1514, %1516 : vector<28x128xf32>
    %1518 = arith.addf %1508, %1517 : vector<28x128xf32>
    %1519 = vector.extract_strided_slice %1513 {offsets = [1, 0], sizes = [28, 128], strides = [1, 1]} : vector<30x128xf32> to vector<28x128xf32>
    %1520 = vector.shape_cast %39 : vector<128xf32> to vector<1x128xf32>
    %1521 = vector.broadcast %1520 : vector<1x128xf32> to vector<28x128xf32>
    %1522 = arith.mulf %1519, %1521 : vector<28x128xf32>
    %1523 = arith.addf %1518, %1522 : vector<28x128xf32>
    %c7_i32_483 = arith.constant 7 : i32
    %1524 = arith.addi %0, %c7_i32_483 : i32
    %c2_i32_484 = arith.constant 2 : i32
    %1525 = arith.addi %1524, %c2_i32_484 : i32
    %c0_485 = arith.constant 0 : index
    %c0_486 = arith.constant 0 : index
    %1526 = arith.index_cast %1525 : i32 to index
    %c0_487 = arith.constant 0 : index
    %c0_488 = arith.constant 0 : index
    %1527 = vector.load %arg1[%c0_485, %c0_486, %1526, %c0_487, %c0_488] : memref<2x2x30x30x128xf32, #tpu.memory_space<vmem>>, vector<1x1x1x30x128xf32>
    %1528 = vector.shape_cast %1527 : vector<1x1x1x30x128xf32> to vector<30x128xf32>
    %cst_489 = arith.constant 0.000000e+00 : f32
    %1529 = vector.broadcast %cst_489 : f32 to vector<30x128xf32>
    %1530 = arith.maximumf %1528, %1529 : vector<30x128xf32>
    %1531 = vector.extract_strided_slice %1530 {offsets = [0, 0], sizes = [28, 128], strides = [1, 1]} : vector<30x128xf32> to vector<28x128xf32>
    %1532 = vector.shape_cast %43 : vector<128xf32> to vector<1x128xf32>
    %1533 = vector.broadcast %1532 : vector<1x128xf32> to vector<28x128xf32>
    %1534 = arith.mulf %1531, %1533 : vector<28x128xf32>
    %1535 = arith.addf %1523, %1534 : vector<28x128xf32>
    %1536 = vector.extract_strided_slice %1530 {offsets = [1, 0], sizes = [28, 128], strides = [1, 1]} : vector<30x128xf32> to vector<28x128xf32>
    %1537 = vector.shape_cast %47 : vector<128xf32> to vector<1x128xf32>
    %1538 = vector.broadcast %1537 : vector<1x128xf32> to vector<28x128xf32>
    %1539 = arith.mulf %1536, %1538 : vector<28x128xf32>
    %1540 = arith.addf %1535, %1539 : vector<28x128xf32>
    %1541 = vector.extract_strided_slice %1530 {offsets = [2, 0], sizes = [28, 128], strides = [1, 1]} : vector<30x128xf32> to vector<28x128xf32>
    %1542 = vector.shape_cast %51 : vector<128xf32> to vector<1x128xf32>
    %1543 = vector.broadcast %1542 : vector<1x128xf32> to vector<28x128xf32>
    %1544 = arith.mulf %1541, %1543 : vector<28x128xf32>
    %1545 = arith.addf %1540, %1544 : vector<28x128xf32>
    %c0_490 = arith.constant 0 : index
    %c1_491 = arith.constant 1 : index
    %1546 = arith.index_cast %1525 : i32 to index
    %c0_492 = arith.constant 0 : index
    %c0_493 = arith.constant 0 : index
    %1547 = vector.load %arg1[%c0_490, %c1_491, %1546, %c0_492, %c0_493] : memref<2x2x30x30x128xf32, #tpu.memory_space<vmem>>, vector<1x1x1x30x128xf32>
    %1548 = vector.shape_cast %1547 : vector<1x1x1x30x128xf32> to vector<30x128xf32>
    %cst_494 = arith.constant 0.000000e+00 : f32
    %1549 = vector.broadcast %cst_494 : f32 to vector<30x128xf32>
    %1550 = arith.maximumf %1548, %1549 : vector<30x128xf32>
    %1551 = vector.extract_strided_slice %1550 {offsets = [0, 0], sizes = [28, 128], strides = [1, 1]} : vector<30x128xf32> to vector<28x128xf32>
    %1552 = vector.shape_cast %45 : vector<128xf32> to vector<1x128xf32>
    %1553 = vector.broadcast %1552 : vector<1x128xf32> to vector<28x128xf32>
    %1554 = arith.mulf %1551, %1553 : vector<28x128xf32>
    %1555 = arith.addf %1545, %1554 : vector<28x128xf32>
    %1556 = vector.extract_strided_slice %1550 {offsets = [1, 0], sizes = [28, 128], strides = [1, 1]} : vector<30x128xf32> to vector<28x128xf32>
    %1557 = vector.shape_cast %49 : vector<128xf32> to vector<1x128xf32>
    %1558 = vector.broadcast %1557 : vector<1x128xf32> to vector<28x128xf32>
    %1559 = arith.mulf %1556, %1558 : vector<28x128xf32>
    %1560 = arith.addf %1555, %1559 : vector<28x128xf32>
    %c7 = arith.constant 7 : index
    %c0_495 = arith.constant 0 : index
    %c0_496 = arith.constant 0 : index
    %1561 = vector.load %arg3[%c7, %c0_495, %c0_496] : memref<14x28x128xf32, #tpu.memory_space<vmem>>, vector<1x28x128xf32>
    %1562 = vector.shape_cast %1561 : vector<1x28x128xf32> to vector<28x128xf32>
    %1563 = vector.shape_cast %1560 : vector<28x128xf32> to vector<1x28x128xf32>
    tpu.vector_store %arg3[%c7, %c0_495, %c0_496], %1563 {strides = array<i32>} : memref<14x28x128xf32, #tpu.memory_space<vmem>>, vector<1x28x128xf32>,
    %cst_497 = arith.constant 0.000000e+00 : f32
    %1564 = vector.broadcast %cst_497 : f32 to vector<28x128xf32>
    %c8_i32 = arith.constant 8 : i32
    %1565 = arith.addi %0, %c8_i32 : i32
    %c0_i32_498 = arith.constant 0 : i32
    %1566 = arith.addi %1565, %c0_i32_498 : i32
    %c0_499 = arith.constant 0 : index
    %c0_500 = arith.constant 0 : index
    %1567 = arith.index_cast %1566 : i32 to index
    %c0_501 = arith.constant 0 : index
    %c0_502 = arith.constant 0 : index
    %1568 = vector.load %arg1[%c0_499, %c0_500, %1567, %c0_501, %c0_502] : memref<2x2x30x30x128xf32, #tpu.memory_space<vmem>>, vector<1x1x1x30x128xf32>
    %1569 = vector.shape_cast %1568 : vector<1x1x1x30x128xf32> to vector<30x128xf32>
    %cst_503 = arith.constant 0.000000e+00 : f32
    %1570 = vector.broadcast %cst_503 : f32 to vector<30x128xf32>
    %1571 = arith.maximumf %1569, %1570 : vector<30x128xf32>
    %1572 = vector.extract_strided_slice %1571 {offsets = [0, 0], sizes = [28, 128], strides = [1, 1]} : vector<30x128xf32> to vector<28x128xf32>
    %1573 = vector.shape_cast %3 : vector<128xf32> to vector<1x128xf32>
    %1574 = vector.broadcast %1573 : vector<1x128xf32> to vector<28x128xf32>
    %1575 = arith.mulf %1572, %1574 : vector<28x128xf32>
    %1576 = arith.addf %1564, %1575 : vector<28x128xf32>
    %1577 = vector.extract_strided_slice %1571 {offsets = [1, 0], sizes = [28, 128], strides = [1, 1]} : vector<30x128xf32> to vector<28x128xf32>
    %1578 = vector.shape_cast %7 : vector<128xf32> to vector<1x128xf32>
    %1579 = vector.broadcast %1578 : vector<1x128xf32> to vector<28x128xf32>
    %1580 = arith.mulf %1577, %1579 : vector<28x128xf32>
    %1581 = arith.addf %1576, %1580 : vector<28x128xf32>
    %1582 = vector.extract_strided_slice %1571 {offsets = [2, 0], sizes = [28, 128], strides = [1, 1]} : vector<30x128xf32> to vector<28x128xf32>
    %1583 = vector.shape_cast %11 : vector<128xf32> to vector<1x128xf32>
    %1584 = vector.broadcast %1583 : vector<1x128xf32> to vector<28x128xf32>
    %1585 = arith.mulf %1582, %1584 : vector<28x128xf32>
    %1586 = arith.addf %1581, %1585 : vector<28x128xf32>
    %c0_504 = arith.constant 0 : index
    %c1_505 = arith.constant 1 : index
    %1587 = arith.index_cast %1566 : i32 to index
    %c0_506 = arith.constant 0 : index
    %c0_507 = arith.constant 0 : index
    %1588 = vector.load %arg1[%c0_504, %c1_505, %1587, %c0_506, %c0_507] : memref<2x2x30x30x128xf32, #tpu.memory_space<vmem>>, vector<1x1x1x30x128xf32>
    %1589 = vector.shape_cast %1588 : vector<1x1x1x30x128xf32> to vector<30x128xf32>
    %cst_508 = arith.constant 0.000000e+00 : f32
    %1590 = vector.broadcast %cst_508 : f32 to vector<30x128xf32>
    %1591 = arith.maximumf %1589, %1590 : vector<30x128xf32>
    %1592 = vector.extract_strided_slice %1591 {offsets = [0, 0], sizes = [28, 128], strides = [1, 1]} : vector<30x128xf32> to vector<28x128xf32>
    %1593 = vector.shape_cast %5 : vector<128xf32> to vector<1x128xf32>
    %1594 = vector.broadcast %1593 : vector<1x128xf32> to vector<28x128xf32>
    %1595 = arith.mulf %1592, %1594 : vector<28x128xf32>
    %1596 = arith.addf %1586, %1595 : vector<28x128xf32>
    %1597 = vector.extract_strided_slice %1591 {offsets = [1, 0], sizes = [28, 128], strides = [1, 1]} : vector<30x128xf32> to vector<28x128xf32>
    %1598 = vector.shape_cast %9 : vector<128xf32> to vector<1x128xf32>
    %1599 = vector.broadcast %1598 : vector<1x128xf32> to vector<28x128xf32>
    %1600 = arith.mulf %1597, %1599 : vector<28x128xf32>
    %1601 = arith.addf %1596, %1600 : vector<28x128xf32>
    %c8_i32_509 = arith.constant 8 : i32
    %1602 = arith.addi %0, %c8_i32_509 : i32
    %c0_i32_510 = arith.constant 0 : i32
    %1603 = arith.addi %1602, %c0_i32_510 : i32
    %c1_511 = arith.constant 1 : index
    %c0_512 = arith.constant 0 : index
    %1604 = arith.index_cast %1603 : i32 to index
    %c0_513 = arith.constant 0 : index
    %c0_514 = arith.constant 0 : index
    %1605 = vector.load %arg1[%c1_511, %c0_512, %1604, %c0_513, %c0_514] : memref<2x2x30x30x128xf32, #tpu.memory_space<vmem>>, vector<1x1x1x30x128xf32>
    %1606 = vector.shape_cast %1605 : vector<1x1x1x30x128xf32> to vector<30x128xf32>
    %cst_515 = arith.constant 0.000000e+00 : f32
    %1607 = vector.broadcast %cst_515 : f32 to vector<30x128xf32>
    %1608 = arith.maximumf %1606, %1607 : vector<30x128xf32>
    %1609 = vector.extract_strided_slice %1608 {offsets = [0, 0], sizes = [28, 128], strides = [1, 1]} : vector<30x128xf32> to vector<28x128xf32>
    %1610 = vector.shape_cast %13 : vector<128xf32> to vector<1x128xf32>
    %1611 = vector.broadcast %1610 : vector<1x128xf32> to vector<28x128xf32>
    %1612 = arith.mulf %1609, %1611 : vector<28x128xf32>
    %1613 = arith.addf %1601, %1612 : vector<28x128xf32>
    %1614 = vector.extract_strided_slice %1608 {offsets = [1, 0], sizes = [28, 128], strides = [1, 1]} : vector<30x128xf32> to vector<28x128xf32>
    %1615 = vector.shape_cast %17 : vector<128xf32> to vector<1x128xf32>
    %1616 = vector.broadcast %1615 : vector<1x128xf32> to vector<28x128xf32>
    %1617 = arith.mulf %1614, %1616 : vector<28x128xf32>
    %1618 = arith.addf %1613, %1617 : vector<28x128xf32>
    %1619 = vector.extract_strided_slice %1608 {offsets = [2, 0], sizes = [28, 128], strides = [1, 1]} : vector<30x128xf32> to vector<28x128xf32>
    %1620 = vector.shape_cast %21 : vector<128xf32> to vector<1x128xf32>
    %1621 = vector.broadcast %1620 : vector<1x128xf32> to vector<28x128xf32>
    %1622 = arith.mulf %1619, %1621 : vector<28x128xf32>
    %1623 = arith.addf %1618, %1622 : vector<28x128xf32>
    %c1_516 = arith.constant 1 : index
    %c1_517 = arith.constant 1 : index
    %1624 = arith.index_cast %1603 : i32 to index
    %c0_518 = arith.constant 0 : index
    %c0_519 = arith.constant 0 : index
    %1625 = vector.load %arg1[%c1_516, %c1_517, %1624, %c0_518, %c0_519] : memref<2x2x30x30x128xf32, #tpu.memory_space<vmem>>, vector<1x1x1x30x128xf32>
    %1626 = vector.shape_cast %1625 : vector<1x1x1x30x128xf32> to vector<30x128xf32>
    %cst_520 = arith.constant 0.000000e+00 : f32
    %1627 = vector.broadcast %cst_520 : f32 to vector<30x128xf32>
    %1628 = arith.maximumf %1626, %1627 : vector<30x128xf32>
    %1629 = vector.extract_strided_slice %1628 {offsets = [0, 0], sizes = [28, 128], strides = [1, 1]} : vector<30x128xf32> to vector<28x128xf32>
    %1630 = vector.shape_cast %15 : vector<128xf32> to vector<1x128xf32>
    %1631 = vector.broadcast %1630 : vector<1x128xf32> to vector<28x128xf32>
    %1632 = arith.mulf %1629, %1631 : vector<28x128xf32>
    %1633 = arith.addf %1623, %1632 : vector<28x128xf32>
    %1634 = vector.extract_strided_slice %1628 {offsets = [1, 0], sizes = [28, 128], strides = [1, 1]} : vector<30x128xf32> to vector<28x128xf32>
    %1635 = vector.shape_cast %19 : vector<128xf32> to vector<1x128xf32>
    %1636 = vector.broadcast %1635 : vector<1x128xf32> to vector<28x128xf32>
    %1637 = arith.mulf %1634, %1636 : vector<28x128xf32>
    %1638 = arith.addf %1633, %1637 : vector<28x128xf32>
    %c8_i32_521 = arith.constant 8 : i32
    %1639 = arith.addi %0, %c8_i32_521 : i32
    %c1_i32_522 = arith.constant 1 : i32
    %1640 = arith.addi %1639, %c1_i32_522 : i32
    %c0_523 = arith.constant 0 : index
    %c0_524 = arith.constant 0 : index
    %1641 = arith.index_cast %1640 : i32 to index
    %c0_525 = arith.constant 0 : index
    %c0_526 = arith.constant 0 : index
    %1642 = vector.load %arg1[%c0_523, %c0_524, %1641, %c0_525, %c0_526] : memref<2x2x30x30x128xf32, #tpu.memory_space<vmem>>, vector<1x1x1x30x128xf32>
    %1643 = vector.shape_cast %1642 : vector<1x1x1x30x128xf32> to vector<30x128xf32>
    %cst_527 = arith.constant 0.000000e+00 : f32
    %1644 = vector.broadcast %cst_527 : f32 to vector<30x128xf32>
    %1645 = arith.maximumf %1643, %1644 : vector<30x128xf32>
    %1646 = vector.extract_strided_slice %1645 {offsets = [0, 0], sizes = [28, 128], strides = [1, 1]} : vector<30x128xf32> to vector<28x128xf32>
    %1647 = vector.shape_cast %23 : vector<128xf32> to vector<1x128xf32>
    %1648 = vector.broadcast %1647 : vector<1x128xf32> to vector<28x128xf32>
    %1649 = arith.mulf %1646, %1648 : vector<28x128xf32>
    %1650 = arith.addf %1638, %1649 : vector<28x128xf32>
    %1651 = vector.extract_strided_slice %1645 {offsets = [1, 0], sizes = [28, 128], strides = [1, 1]} : vector<30x128xf32> to vector<28x128xf32>
    %1652 = vector.shape_cast %27 : vector<128xf32> to vector<1x128xf32>
    %1653 = vector.broadcast %1652 : vector<1x128xf32> to vector<28x128xf32>
    %1654 = arith.mulf %1651, %1653 : vector<28x128xf32>
    %1655 = arith.addf %1650, %1654 : vector<28x128xf32>
    %1656 = vector.extract_strided_slice %1645 {offsets = [2, 0], sizes = [28, 128], strides = [1, 1]} : vector<30x128xf32> to vector<28x128xf32>
    %1657 = vector.shape_cast %31 : vector<128xf32> to vector<1x128xf32>
    %1658 = vector.broadcast %1657 : vector<1x128xf32> to vector<28x128xf32>
    %1659 = arith.mulf %1656, %1658 : vector<28x128xf32>
    %1660 = arith.addf %1655, %1659 : vector<28x128xf32>
    %c0_528 = arith.constant 0 : index
    %c1_529 = arith.constant 1 : index
    %1661 = arith.index_cast %1640 : i32 to index
    %c0_530 = arith.constant 0 : index
    %c0_531 = arith.constant 0 : index
    %1662 = vector.load %arg1[%c0_528, %c1_529, %1661, %c0_530, %c0_531] : memref<2x2x30x30x128xf32, #tpu.memory_space<vmem>>, vector<1x1x1x30x128xf32>
    %1663 = vector.shape_cast %1662 : vector<1x1x1x30x128xf32> to vector<30x128xf32>
    %cst_532 = arith.constant 0.000000e+00 : f32
    %1664 = vector.broadcast %cst_532 : f32 to vector<30x128xf32>
    %1665 = arith.maximumf %1663, %1664 : vector<30x128xf32>
    %1666 = vector.extract_strided_slice %1665 {offsets = [0, 0], sizes = [28, 128], strides = [1, 1]} : vector<30x128xf32> to vector<28x128xf32>
    %1667 = vector.shape_cast %25 : vector<128xf32> to vector<1x128xf32>
    %1668 = vector.broadcast %1667 : vector<1x128xf32> to vector<28x128xf32>
    %1669 = arith.mulf %1666, %1668 : vector<28x128xf32>
    %1670 = arith.addf %1660, %1669 : vector<28x128xf32>
    %1671 = vector.extract_strided_slice %1665 {offsets = [1, 0], sizes = [28, 128], strides = [1, 1]} : vector<30x128xf32> to vector<28x128xf32>
    %1672 = vector.shape_cast %29 : vector<128xf32> to vector<1x128xf32>
    %1673 = vector.broadcast %1672 : vector<1x128xf32> to vector<28x128xf32>
    %1674 = arith.mulf %1671, %1673 : vector<28x128xf32>
    %1675 = arith.addf %1670, %1674 : vector<28x128xf32>
    %c8_i32_533 = arith.constant 8 : i32
    %1676 = arith.addi %0, %c8_i32_533 : i32
    %c1_i32_534 = arith.constant 1 : i32
    %1677 = arith.addi %1676, %c1_i32_534 : i32
    %c1_535 = arith.constant 1 : index
    %c0_536 = arith.constant 0 : index
    %1678 = arith.index_cast %1677 : i32 to index
    %c0_537 = arith.constant 0 : index
    %c0_538 = arith.constant 0 : index
    %1679 = vector.load %arg1[%c1_535, %c0_536, %1678, %c0_537, %c0_538] : memref<2x2x30x30x128xf32, #tpu.memory_space<vmem>>, vector<1x1x1x30x128xf32>
    %1680 = vector.shape_cast %1679 : vector<1x1x1x30x128xf32> to vector<30x128xf32>
    %cst_539 = arith.constant 0.000000e+00 : f32
    %1681 = vector.broadcast %cst_539 : f32 to vector<30x128xf32>
    %1682 = arith.maximumf %1680, %1681 : vector<30x128xf32>
    %1683 = vector.extract_strided_slice %1682 {offsets = [0, 0], sizes = [28, 128], strides = [1, 1]} : vector<30x128xf32> to vector<28x128xf32>
    %1684 = vector.shape_cast %33 : vector<128xf32> to vector<1x128xf32>
    %1685 = vector.broadcast %1684 : vector<1x128xf32> to vector<28x128xf32>
    %1686 = arith.mulf %1683, %1685 : vector<28x128xf32>
    %1687 = arith.addf %1675, %1686 : vector<28x128xf32>
    %1688 = vector.extract_strided_slice %1682 {offsets = [1, 0], sizes = [28, 128], strides = [1, 1]} : vector<30x128xf32> to vector<28x128xf32>
    %1689 = vector.shape_cast %37 : vector<128xf32> to vector<1x128xf32>
    %1690 = vector.broadcast %1689 : vector<1x128xf32> to vector<28x128xf32>
    %1691 = arith.mulf %1688, %1690 : vector<28x128xf32>
    %1692 = arith.addf %1687, %1691 : vector<28x128xf32>
    %1693 = vector.extract_strided_slice %1682 {offsets = [2, 0], sizes = [28, 128], strides = [1, 1]} : vector<30x128xf32> to vector<28x128xf32>
    %1694 = vector.shape_cast %41 : vector<128xf32> to vector<1x128xf32>
    %1695 = vector.broadcast %1694 : vector<1x128xf32> to vector<28x128xf32>
    %1696 = arith.mulf %1693, %1695 : vector<28x128xf32>
    %1697 = arith.addf %1692, %1696 : vector<28x128xf32>
    %c1_540 = arith.constant 1 : index
    %c1_541 = arith.constant 1 : index
    %1698 = arith.index_cast %1677 : i32 to index
    %c0_542 = arith.constant 0 : index
    %c0_543 = arith.constant 0 : index
    %1699 = vector.load %arg1[%c1_540, %c1_541, %1698, %c0_542, %c0_543] : memref<2x2x30x30x128xf32, #tpu.memory_space<vmem>>, vector<1x1x1x30x128xf32>
    %1700 = vector.shape_cast %1699 : vector<1x1x1x30x128xf32> to vector<30x128xf32>
    %cst_544 = arith.constant 0.000000e+00 : f32
    %1701 = vector.broadcast %cst_544 : f32 to vector<30x128xf32>
    %1702 = arith.maximumf %1700, %1701 : vector<30x128xf32>
    %1703 = vector.extract_strided_slice %1702 {offsets = [0, 0], sizes = [28, 128], strides = [1, 1]} : vector<30x128xf32> to vector<28x128xf32>
    %1704 = vector.shape_cast %35 : vector<128xf32> to vector<1x128xf32>
    %1705 = vector.broadcast %1704 : vector<1x128xf32> to vector<28x128xf32>
    %1706 = arith.mulf %1703, %1705 : vector<28x128xf32>
    %1707 = arith.addf %1697, %1706 : vector<28x128xf32>
    %1708 = vector.extract_strided_slice %1702 {offsets = [1, 0], sizes = [28, 128], strides = [1, 1]} : vector<30x128xf32> to vector<28x128xf32>
    %1709 = vector.shape_cast %39 : vector<128xf32> to vector<1x128xf32>
    %1710 = vector.broadcast %1709 : vector<1x128xf32> to vector<28x128xf32>
    %1711 = arith.mulf %1708, %1710 : vector<28x128xf32>
    %1712 = arith.addf %1707, %1711 : vector<28x128xf32>
    %c8_i32_545 = arith.constant 8 : i32
    %1713 = arith.addi %0, %c8_i32_545 : i32
    %c2_i32_546 = arith.constant 2 : i32
    %1714 = arith.addi %1713, %c2_i32_546 : i32
    %c0_547 = arith.constant 0 : index
    %c0_548 = arith.constant 0 : index
    %1715 = arith.index_cast %1714 : i32 to index
    %c0_549 = arith.constant 0 : index
    %c0_550 = arith.constant 0 : index
    %1716 = vector.load %arg1[%c0_547, %c0_548, %1715, %c0_549, %c0_550] : memref<2x2x30x30x128xf32, #tpu.memory_space<vmem>>, vector<1x1x1x30x128xf32>
    %1717 = vector.shape_cast %1716 : vector<1x1x1x30x128xf32> to vector<30x128xf32>
    %cst_551 = arith.constant 0.000000e+00 : f32
    %1718 = vector.broadcast %cst_551 : f32 to vector<30x128xf32>
    %1719 = arith.maximumf %1717, %1718 : vector<30x128xf32>
    %1720 = vector.extract_strided_slice %1719 {offsets = [0, 0], sizes = [28, 128], strides = [1, 1]} : vector<30x128xf32> to vector<28x128xf32>
    %1721 = vector.shape_cast %43 : vector<128xf32> to vector<1x128xf32>
    %1722 = vector.broadcast %1721 : vector<1x128xf32> to vector<28x128xf32>
    %1723 = arith.mulf %1720, %1722 : vector<28x128xf32>
    %1724 = arith.addf %1712, %1723 : vector<28x128xf32>
    %1725 = vector.extract_strided_slice %1719 {offsets = [1, 0], sizes = [28, 128], strides = [1, 1]} : vector<30x128xf32> to vector<28x128xf32>
    %1726 = vector.shape_cast %47 : vector<128xf32> to vector<1x128xf32>
    %1727 = vector.broadcast %1726 : vector<1x128xf32> to vector<28x128xf32>
    %1728 = arith.mulf %1725, %1727 : vector<28x128xf32>
    %1729 = arith.addf %1724, %1728 : vector<28x128xf32>
    %1730 = vector.extract_strided_slice %1719 {offsets = [2, 0], sizes = [28, 128], strides = [1, 1]} : vector<30x128xf32> to vector<28x128xf32>
    %1731 = vector.shape_cast %51 : vector<128xf32> to vector<1x128xf32>
    %1732 = vector.broadcast %1731 : vector<1x128xf32> to vector<28x128xf32>
    %1733 = arith.mulf %1730, %1732 : vector<28x128xf32>
    %1734 = arith.addf %1729, %1733 : vector<28x128xf32>
    %c0_552 = arith.constant 0 : index
    %c1_553 = arith.constant 1 : index
    %1735 = arith.index_cast %1714 : i32 to index
    %c0_554 = arith.constant 0 : index
    %c0_555 = arith.constant 0 : index
    %1736 = vector.load %arg1[%c0_552, %c1_553, %1735, %c0_554, %c0_555] : memref<2x2x30x30x128xf32, #tpu.memory_space<vmem>>, vector<1x1x1x30x128xf32>
    %1737 = vector.shape_cast %1736 : vector<1x1x1x30x128xf32> to vector<30x128xf32>
    %cst_556 = arith.constant 0.000000e+00 : f32
    %1738 = vector.broadcast %cst_556 : f32 to vector<30x128xf32>
    %1739 = arith.maximumf %1737, %1738 : vector<30x128xf32>
    %1740 = vector.extract_strided_slice %1739 {offsets = [0, 0], sizes = [28, 128], strides = [1, 1]} : vector<30x128xf32> to vector<28x128xf32>
    %1741 = vector.shape_cast %45 : vector<128xf32> to vector<1x128xf32>
    %1742 = vector.broadcast %1741 : vector<1x128xf32> to vector<28x128xf32>
    %1743 = arith.mulf %1740, %1742 : vector<28x128xf32>
    %1744 = arith.addf %1734, %1743 : vector<28x128xf32>
    %1745 = vector.extract_strided_slice %1739 {offsets = [1, 0], sizes = [28, 128], strides = [1, 1]} : vector<30x128xf32> to vector<28x128xf32>
    %1746 = vector.shape_cast %49 : vector<128xf32> to vector<1x128xf32>
    %1747 = vector.broadcast %1746 : vector<1x128xf32> to vector<28x128xf32>
    %1748 = arith.mulf %1745, %1747 : vector<28x128xf32>
    %1749 = arith.addf %1744, %1748 : vector<28x128xf32>
    %c8 = arith.constant 8 : index
    %c0_557 = arith.constant 0 : index
    %c0_558 = arith.constant 0 : index
    %1750 = vector.load %arg3[%c8, %c0_557, %c0_558] : memref<14x28x128xf32, #tpu.memory_space<vmem>>, vector<1x28x128xf32>
    %1751 = vector.shape_cast %1750 : vector<1x28x128xf32> to vector<28x128xf32>
    %1752 = vector.shape_cast %1749 : vector<28x128xf32> to vector<1x28x128xf32>
    tpu.vector_store %arg3[%c8, %c0_557, %c0_558], %1752 {strides = array<i32>} : memref<14x28x128xf32, #tpu.memory_space<vmem>>, vector<1x28x128xf32>,
    %cst_559 = arith.constant 0.000000e+00 : f32
    %1753 = vector.broadcast %cst_559 : f32 to vector<28x128xf32>
    %c9_i32 = arith.constant 9 : i32
    %1754 = arith.addi %0, %c9_i32 : i32
    %c0_i32_560 = arith.constant 0 : i32
    %1755 = arith.addi %1754, %c0_i32_560 : i32
    %c0_561 = arith.constant 0 : index
    %c0_562 = arith.constant 0 : index
    %1756 = arith.index_cast %1755 : i32 to index
    %c0_563 = arith.constant 0 : index
    %c0_564 = arith.constant 0 : index
    %1757 = vector.load %arg1[%c0_561, %c0_562, %1756, %c0_563, %c0_564] : memref<2x2x30x30x128xf32, #tpu.memory_space<vmem>>, vector<1x1x1x30x128xf32>
    %1758 = vector.shape_cast %1757 : vector<1x1x1x30x128xf32> to vector<30x128xf32>
    %cst_565 = arith.constant 0.000000e+00 : f32
    %1759 = vector.broadcast %cst_565 : f32 to vector<30x128xf32>
    %1760 = arith.maximumf %1758, %1759 : vector<30x128xf32>
    %1761 = vector.extract_strided_slice %1760 {offsets = [0, 0], sizes = [28, 128], strides = [1, 1]} : vector<30x128xf32> to vector<28x128xf32>
    %1762 = vector.shape_cast %3 : vector<128xf32> to vector<1x128xf32>
    %1763 = vector.broadcast %1762 : vector<1x128xf32> to vector<28x128xf32>
    %1764 = arith.mulf %1761, %1763 : vector<28x128xf32>
    %1765 = arith.addf %1753, %1764 : vector<28x128xf32>
    %1766 = vector.extract_strided_slice %1760 {offsets = [1, 0], sizes = [28, 128], strides = [1, 1]} : vector<30x128xf32> to vector<28x128xf32>
    %1767 = vector.shape_cast %7 : vector<128xf32> to vector<1x128xf32>
    %1768 = vector.broadcast %1767 : vector<1x128xf32> to vector<28x128xf32>
    %1769 = arith.mulf %1766, %1768 : vector<28x128xf32>
    %1770 = arith.addf %1765, %1769 : vector<28x128xf32>
    %1771 = vector.extract_strided_slice %1760 {offsets = [2, 0], sizes = [28, 128], strides = [1, 1]} : vector<30x128xf32> to vector<28x128xf32>
    %1772 = vector.shape_cast %11 : vector<128xf32> to vector<1x128xf32>
    %1773 = vector.broadcast %1772 : vector<1x128xf32> to vector<28x128xf32>
    %1774 = arith.mulf %1771, %1773 : vector<28x128xf32>
    %1775 = arith.addf %1770, %1774 : vector<28x128xf32>
    %c0_566 = arith.constant 0 : index
    %c1_567 = arith.constant 1 : index
    %1776 = arith.index_cast %1755 : i32 to index
    %c0_568 = arith.constant 0 : index
    %c0_569 = arith.constant 0 : index
    %1777 = vector.load %arg1[%c0_566, %c1_567, %1776, %c0_568, %c0_569] : memref<2x2x30x30x128xf32, #tpu.memory_space<vmem>>, vector<1x1x1x30x128xf32>
    %1778 = vector.shape_cast %1777 : vector<1x1x1x30x128xf32> to vector<30x128xf32>
    %cst_570 = arith.constant 0.000000e+00 : f32
    %1779 = vector.broadcast %cst_570 : f32 to vector<30x128xf32>
    %1780 = arith.maximumf %1778, %1779 : vector<30x128xf32>
    %1781 = vector.extract_strided_slice %1780 {offsets = [0, 0], sizes = [28, 128], strides = [1, 1]} : vector<30x128xf32> to vector<28x128xf32>
    %1782 = vector.shape_cast %5 : vector<128xf32> to vector<1x128xf32>
    %1783 = vector.broadcast %1782 : vector<1x128xf32> to vector<28x128xf32>
    %1784 = arith.mulf %1781, %1783 : vector<28x128xf32>
    %1785 = arith.addf %1775, %1784 : vector<28x128xf32>
    %1786 = vector.extract_strided_slice %1780 {offsets = [1, 0], sizes = [28, 128], strides = [1, 1]} : vector<30x128xf32> to vector<28x128xf32>
    %1787 = vector.shape_cast %9 : vector<128xf32> to vector<1x128xf32>
    %1788 = vector.broadcast %1787 : vector<1x128xf32> to vector<28x128xf32>
    %1789 = arith.mulf %1786, %1788 : vector<28x128xf32>
    %1790 = arith.addf %1785, %1789 : vector<28x128xf32>
    %c9_i32_571 = arith.constant 9 : i32
    %1791 = arith.addi %0, %c9_i32_571 : i32
    %c0_i32_572 = arith.constant 0 : i32
    %1792 = arith.addi %1791, %c0_i32_572 : i32
    %c1_573 = arith.constant 1 : index
    %c0_574 = arith.constant 0 : index
    %1793 = arith.index_cast %1792 : i32 to index
    %c0_575 = arith.constant 0 : index
    %c0_576 = arith.constant 0 : index
    %1794 = vector.load %arg1[%c1_573, %c0_574, %1793, %c0_575, %c0_576] : memref<2x2x30x30x128xf32, #tpu.memory_space<vmem>>, vector<1x1x1x30x128xf32>
    %1795 = vector.shape_cast %1794 : vector<1x1x1x30x128xf32> to vector<30x128xf32>
    %cst_577 = arith.constant 0.000000e+00 : f32
    %1796 = vector.broadcast %cst_577 : f32 to vector<30x128xf32>
    %1797 = arith.maximumf %1795, %1796 : vector<30x128xf32>
    %1798 = vector.extract_strided_slice %1797 {offsets = [0, 0], sizes = [28, 128], strides = [1, 1]} : vector<30x128xf32> to vector<28x128xf32>
    %1799 = vector.shape_cast %13 : vector<128xf32> to vector<1x128xf32>
    %1800 = vector.broadcast %1799 : vector<1x128xf32> to vector<28x128xf32>
    %1801 = arith.mulf %1798, %1800 : vector<28x128xf32>
    %1802 = arith.addf %1790, %1801 : vector<28x128xf32>
    %1803 = vector.extract_strided_slice %1797 {offsets = [1, 0], sizes = [28, 128], strides = [1, 1]} : vector<30x128xf32> to vector<28x128xf32>
    %1804 = vector.shape_cast %17 : vector<128xf32> to vector<1x128xf32>
    %1805 = vector.broadcast %1804 : vector<1x128xf32> to vector<28x128xf32>
    %1806 = arith.mulf %1803, %1805 : vector<28x128xf32>
    %1807 = arith.addf %1802, %1806 : vector<28x128xf32>
    %1808 = vector.extract_strided_slice %1797 {offsets = [2, 0], sizes = [28, 128], strides = [1, 1]} : vector<30x128xf32> to vector<28x128xf32>
    %1809 = vector.shape_cast %21 : vector<128xf32> to vector<1x128xf32>
    %1810 = vector.broadcast %1809 : vector<1x128xf32> to vector<28x128xf32>
    %1811 = arith.mulf %1808, %1810 : vector<28x128xf32>
    %1812 = arith.addf %1807, %1811 : vector<28x128xf32>
    %c1_578 = arith.constant 1 : index
    %c1_579 = arith.constant 1 : index
    %1813 = arith.index_cast %1792 : i32 to index
    %c0_580 = arith.constant 0 : index
    %c0_581 = arith.constant 0 : index
    %1814 = vector.load %arg1[%c1_578, %c1_579, %1813, %c0_580, %c0_581] : memref<2x2x30x30x128xf32, #tpu.memory_space<vmem>>, vector<1x1x1x30x128xf32>
    %1815 = vector.shape_cast %1814 : vector<1x1x1x30x128xf32> to vector<30x128xf32>
    %cst_582 = arith.constant 0.000000e+00 : f32
    %1816 = vector.broadcast %cst_582 : f32 to vector<30x128xf32>
    %1817 = arith.maximumf %1815, %1816 : vector<30x128xf32>
    %1818 = vector.extract_strided_slice %1817 {offsets = [0, 0], sizes = [28, 128], strides = [1, 1]} : vector<30x128xf32> to vector<28x128xf32>
    %1819 = vector.shape_cast %15 : vector<128xf32> to vector<1x128xf32>
    %1820 = vector.broadcast %1819 : vector<1x128xf32> to vector<28x128xf32>
    %1821 = arith.mulf %1818, %1820 : vector<28x128xf32>
    %1822 = arith.addf %1812, %1821 : vector<28x128xf32>
    %1823 = vector.extract_strided_slice %1817 {offsets = [1, 0], sizes = [28, 128], strides = [1, 1]} : vector<30x128xf32> to vector<28x128xf32>
    %1824 = vector.shape_cast %19 : vector<128xf32> to vector<1x128xf32>
    %1825 = vector.broadcast %1824 : vector<1x128xf32> to vector<28x128xf32>
    %1826 = arith.mulf %1823, %1825 : vector<28x128xf32>
    %1827 = arith.addf %1822, %1826 : vector<28x128xf32>
    %c9_i32_583 = arith.constant 9 : i32
    %1828 = arith.addi %0, %c9_i32_583 : i32
    %c1_i32_584 = arith.constant 1 : i32
    %1829 = arith.addi %1828, %c1_i32_584 : i32
    %c0_585 = arith.constant 0 : index
    %c0_586 = arith.constant 0 : index
    %1830 = arith.index_cast %1829 : i32 to index
    %c0_587 = arith.constant 0 : index
    %c0_588 = arith.constant 0 : index
    %1831 = vector.load %arg1[%c0_585, %c0_586, %1830, %c0_587, %c0_588] : memref<2x2x30x30x128xf32, #tpu.memory_space<vmem>>, vector<1x1x1x30x128xf32>
    %1832 = vector.shape_cast %1831 : vector<1x1x1x30x128xf32> to vector<30x128xf32>
    %cst_589 = arith.constant 0.000000e+00 : f32
    %1833 = vector.broadcast %cst_589 : f32 to vector<30x128xf32>
    %1834 = arith.maximumf %1832, %1833 : vector<30x128xf32>
    %1835 = vector.extract_strided_slice %1834 {offsets = [0, 0], sizes = [28, 128], strides = [1, 1]} : vector<30x128xf32> to vector<28x128xf32>
    %1836 = vector.shape_cast %23 : vector<128xf32> to vector<1x128xf32>
    %1837 = vector.broadcast %1836 : vector<1x128xf32> to vector<28x128xf32>
    %1838 = arith.mulf %1835, %1837 : vector<28x128xf32>
    %1839 = arith.addf %1827, %1838 : vector<28x128xf32>
    %1840 = vector.extract_strided_slice %1834 {offsets = [1, 0], sizes = [28, 128], strides = [1, 1]} : vector<30x128xf32> to vector<28x128xf32>
    %1841 = vector.shape_cast %27 : vector<128xf32> to vector<1x128xf32>
    %1842 = vector.broadcast %1841 : vector<1x128xf32> to vector<28x128xf32>
    %1843 = arith.mulf %1840, %1842 : vector<28x128xf32>
    %1844 = arith.addf %1839, %1843 : vector<28x128xf32>
    %1845 = vector.extract_strided_slice %1834 {offsets = [2, 0], sizes = [28, 128], strides = [1, 1]} : vector<30x128xf32> to vector<28x128xf32>
    %1846 = vector.shape_cast %31 : vector<128xf32> to vector<1x128xf32>
    %1847 = vector.broadcast %1846 : vector<1x128xf32> to vector<28x128xf32>
    %1848 = arith.mulf %1845, %1847 : vector<28x128xf32>
    %1849 = arith.addf %1844, %1848 : vector<28x128xf32>
    %c0_590 = arith.constant 0 : index
    %c1_591 = arith.constant 1 : index
    %1850 = arith.index_cast %1829 : i32 to index
    %c0_592 = arith.constant 0 : index
    %c0_593 = arith.constant 0 : index
    %1851 = vector.load %arg1[%c0_590, %c1_591, %1850, %c0_592, %c0_593] : memref<2x2x30x30x128xf32, #tpu.memory_space<vmem>>, vector<1x1x1x30x128xf32>
    %1852 = vector.shape_cast %1851 : vector<1x1x1x30x128xf32> to vector<30x128xf32>
    %cst_594 = arith.constant 0.000000e+00 : f32
    %1853 = vector.broadcast %cst_594 : f32 to vector<30x128xf32>
    %1854 = arith.maximumf %1852, %1853 : vector<30x128xf32>
    %1855 = vector.extract_strided_slice %1854 {offsets = [0, 0], sizes = [28, 128], strides = [1, 1]} : vector<30x128xf32> to vector<28x128xf32>
    %1856 = vector.shape_cast %25 : vector<128xf32> to vector<1x128xf32>
    %1857 = vector.broadcast %1856 : vector<1x128xf32> to vector<28x128xf32>
    %1858 = arith.mulf %1855, %1857 : vector<28x128xf32>
    %1859 = arith.addf %1849, %1858 : vector<28x128xf32>
    %1860 = vector.extract_strided_slice %1854 {offsets = [1, 0], sizes = [28, 128], strides = [1, 1]} : vector<30x128xf32> to vector<28x128xf32>
    %1861 = vector.shape_cast %29 : vector<128xf32> to vector<1x128xf32>
    %1862 = vector.broadcast %1861 : vector<1x128xf32> to vector<28x128xf32>
    %1863 = arith.mulf %1860, %1862 : vector<28x128xf32>
    %1864 = arith.addf %1859, %1863 : vector<28x128xf32>
    %c9_i32_595 = arith.constant 9 : i32
    %1865 = arith.addi %0, %c9_i32_595 : i32
    %c1_i32_596 = arith.constant 1 : i32
    %1866 = arith.addi %1865, %c1_i32_596 : i32
    %c1_597 = arith.constant 1 : index
    %c0_598 = arith.constant 0 : index
    %1867 = arith.index_cast %1866 : i32 to index
    %c0_599 = arith.constant 0 : index
    %c0_600 = arith.constant 0 : index
    %1868 = vector.load %arg1[%c1_597, %c0_598, %1867, %c0_599, %c0_600] : memref<2x2x30x30x128xf32, #tpu.memory_space<vmem>>, vector<1x1x1x30x128xf32>
    %1869 = vector.shape_cast %1868 : vector<1x1x1x30x128xf32> to vector<30x128xf32>
    %cst_601 = arith.constant 0.000000e+00 : f32
    %1870 = vector.broadcast %cst_601 : f32 to vector<30x128xf32>
    %1871 = arith.maximumf %1869, %1870 : vector<30x128xf32>
    %1872 = vector.extract_strided_slice %1871 {offsets = [0, 0], sizes = [28, 128], strides = [1, 1]} : vector<30x128xf32> to vector<28x128xf32>
    %1873 = vector.shape_cast %33 : vector<128xf32> to vector<1x128xf32>
    %1874 = vector.broadcast %1873 : vector<1x128xf32> to vector<28x128xf32>
    %1875 = arith.mulf %1872, %1874 : vector<28x128xf32>
    %1876 = arith.addf %1864, %1875 : vector<28x128xf32>
    %1877 = vector.extract_strided_slice %1871 {offsets = [1, 0], sizes = [28, 128], strides = [1, 1]} : vector<30x128xf32> to vector<28x128xf32>
    %1878 = vector.shape_cast %37 : vector<128xf32> to vector<1x128xf32>
    %1879 = vector.broadcast %1878 : vector<1x128xf32> to vector<28x128xf32>
    %1880 = arith.mulf %1877, %1879 : vector<28x128xf32>
    %1881 = arith.addf %1876, %1880 : vector<28x128xf32>
    %1882 = vector.extract_strided_slice %1871 {offsets = [2, 0], sizes = [28, 128], strides = [1, 1]} : vector<30x128xf32> to vector<28x128xf32>
    %1883 = vector.shape_cast %41 : vector<128xf32> to vector<1x128xf32>
    %1884 = vector.broadcast %1883 : vector<1x128xf32> to vector<28x128xf32>
    %1885 = arith.mulf %1882, %1884 : vector<28x128xf32>
    %1886 = arith.addf %1881, %1885 : vector<28x128xf32>
    %c1_602 = arith.constant 1 : index
    %c1_603 = arith.constant 1 : index
    %1887 = arith.index_cast %1866 : i32 to index
    %c0_604 = arith.constant 0 : index
    %c0_605 = arith.constant 0 : index
    %1888 = vector.load %arg1[%c1_602, %c1_603, %1887, %c0_604, %c0_605] : memref<2x2x30x30x128xf32, #tpu.memory_space<vmem>>, vector<1x1x1x30x128xf32>
    %1889 = vector.shape_cast %1888 : vector<1x1x1x30x128xf32> to vector<30x128xf32>
    %cst_606 = arith.constant 0.000000e+00 : f32
    %1890 = vector.broadcast %cst_606 : f32 to vector<30x128xf32>
    %1891 = arith.maximumf %1889, %1890 : vector<30x128xf32>
    %1892 = vector.extract_strided_slice %1891 {offsets = [0, 0], sizes = [28, 128], strides = [1, 1]} : vector<30x128xf32> to vector<28x128xf32>
    %1893 = vector.shape_cast %35 : vector<128xf32> to vector<1x128xf32>
    %1894 = vector.broadcast %1893 : vector<1x128xf32> to vector<28x128xf32>
    %1895 = arith.mulf %1892, %1894 : vector<28x128xf32>
    %1896 = arith.addf %1886, %1895 : vector<28x128xf32>
    %1897 = vector.extract_strided_slice %1891 {offsets = [1, 0], sizes = [28, 128], strides = [1, 1]} : vector<30x128xf32> to vector<28x128xf32>
    %1898 = vector.shape_cast %39 : vector<128xf32> to vector<1x128xf32>
    %1899 = vector.broadcast %1898 : vector<1x128xf32> to vector<28x128xf32>
    %1900 = arith.mulf %1897, %1899 : vector<28x128xf32>
    %1901 = arith.addf %1896, %1900 : vector<28x128xf32>
    %c9_i32_607 = arith.constant 9 : i32
    %1902 = arith.addi %0, %c9_i32_607 : i32
    %c2_i32_608 = arith.constant 2 : i32
    %1903 = arith.addi %1902, %c2_i32_608 : i32
    %c0_609 = arith.constant 0 : index
    %c0_610 = arith.constant 0 : index
    %1904 = arith.index_cast %1903 : i32 to index
    %c0_611 = arith.constant 0 : index
    %c0_612 = arith.constant 0 : index
    %1905 = vector.load %arg1[%c0_609, %c0_610, %1904, %c0_611, %c0_612] : memref<2x2x30x30x128xf32, #tpu.memory_space<vmem>>, vector<1x1x1x30x128xf32>
    %1906 = vector.shape_cast %1905 : vector<1x1x1x30x128xf32> to vector<30x128xf32>
    %cst_613 = arith.constant 0.000000e+00 : f32
    %1907 = vector.broadcast %cst_613 : f32 to vector<30x128xf32>
    %1908 = arith.maximumf %1906, %1907 : vector<30x128xf32>
    %1909 = vector.extract_strided_slice %1908 {offsets = [0, 0], sizes = [28, 128], strides = [1, 1]} : vector<30x128xf32> to vector<28x128xf32>
    %1910 = vector.shape_cast %43 : vector<128xf32> to vector<1x128xf32>
    %1911 = vector.broadcast %1910 : vector<1x128xf32> to vector<28x128xf32>
    %1912 = arith.mulf %1909, %1911 : vector<28x128xf32>
    %1913 = arith.addf %1901, %1912 : vector<28x128xf32>
    %1914 = vector.extract_strided_slice %1908 {offsets = [1, 0], sizes = [28, 128], strides = [1, 1]} : vector<30x128xf32> to vector<28x128xf32>
    %1915 = vector.shape_cast %47 : vector<128xf32> to vector<1x128xf32>
    %1916 = vector.broadcast %1915 : vector<1x128xf32> to vector<28x128xf32>
    %1917 = arith.mulf %1914, %1916 : vector<28x128xf32>
    %1918 = arith.addf %1913, %1917 : vector<28x128xf32>
    %1919 = vector.extract_strided_slice %1908 {offsets = [2, 0], sizes = [28, 128], strides = [1, 1]} : vector<30x128xf32> to vector<28x128xf32>
    %1920 = vector.shape_cast %51 : vector<128xf32> to vector<1x128xf32>
    %1921 = vector.broadcast %1920 : vector<1x128xf32> to vector<28x128xf32>
    %1922 = arith.mulf %1919, %1921 : vector<28x128xf32>
    %1923 = arith.addf %1918, %1922 : vector<28x128xf32>
    %c0_614 = arith.constant 0 : index
    %c1_615 = arith.constant 1 : index
    %1924 = arith.index_cast %1903 : i32 to index
    %c0_616 = arith.constant 0 : index
    %c0_617 = arith.constant 0 : index
    %1925 = vector.load %arg1[%c0_614, %c1_615, %1924, %c0_616, %c0_617] : memref<2x2x30x30x128xf32, #tpu.memory_space<vmem>>, vector<1x1x1x30x128xf32>
    %1926 = vector.shape_cast %1925 : vector<1x1x1x30x128xf32> to vector<30x128xf32>
    %cst_618 = arith.constant 0.000000e+00 : f32
    %1927 = vector.broadcast %cst_618 : f32 to vector<30x128xf32>
    %1928 = arith.maximumf %1926, %1927 : vector<30x128xf32>
    %1929 = vector.extract_strided_slice %1928 {offsets = [0, 0], sizes = [28, 128], strides = [1, 1]} : vector<30x128xf32> to vector<28x128xf32>
    %1930 = vector.shape_cast %45 : vector<128xf32> to vector<1x128xf32>
    %1931 = vector.broadcast %1930 : vector<1x128xf32> to vector<28x128xf32>
    %1932 = arith.mulf %1929, %1931 : vector<28x128xf32>
    %1933 = arith.addf %1923, %1932 : vector<28x128xf32>
    %1934 = vector.extract_strided_slice %1928 {offsets = [1, 0], sizes = [28, 128], strides = [1, 1]} : vector<30x128xf32> to vector<28x128xf32>
    %1935 = vector.shape_cast %49 : vector<128xf32> to vector<1x128xf32>
    %1936 = vector.broadcast %1935 : vector<1x128xf32> to vector<28x128xf32>
    %1937 = arith.mulf %1934, %1936 : vector<28x128xf32>
    %1938 = arith.addf %1933, %1937 : vector<28x128xf32>
    %c9 = arith.constant 9 : index
    %c0_619 = arith.constant 0 : index
    %c0_620 = arith.constant 0 : index
    %1939 = vector.load %arg3[%c9, %c0_619, %c0_620] : memref<14x28x128xf32, #tpu.memory_space<vmem>>, vector<1x28x128xf32>
    %1940 = vector.shape_cast %1939 : vector<1x28x128xf32> to vector<28x128xf32>
    %1941 = vector.shape_cast %1938 : vector<28x128xf32> to vector<1x28x128xf32>
    tpu.vector_store %arg3[%c9, %c0_619, %c0_620], %1941 {strides = array<i32>} : memref<14x28x128xf32, #tpu.memory_space<vmem>>, vector<1x28x128xf32>,
    %cst_621 = arith.constant 0.000000e+00 : f32
    %1942 = vector.broadcast %cst_621 : f32 to vector<28x128xf32>
    %c10_i32 = arith.constant 10 : i32
    %1943 = arith.addi %0, %c10_i32 : i32
    %c0_i32_622 = arith.constant 0 : i32
    %1944 = arith.addi %1943, %c0_i32_622 : i32
    %c0_623 = arith.constant 0 : index
    %c0_624 = arith.constant 0 : index
    %1945 = arith.index_cast %1944 : i32 to index
    %c0_625 = arith.constant 0 : index
    %c0_626 = arith.constant 0 : index
    %1946 = vector.load %arg1[%c0_623, %c0_624, %1945, %c0_625, %c0_626] : memref<2x2x30x30x128xf32, #tpu.memory_space<vmem>>, vector<1x1x1x30x128xf32>
    %1947 = vector.shape_cast %1946 : vector<1x1x1x30x128xf32> to vector<30x128xf32>
    %cst_627 = arith.constant 0.000000e+00 : f32
    %1948 = vector.broadcast %cst_627 : f32 to vector<30x128xf32>
    %1949 = arith.maximumf %1947, %1948 : vector<30x128xf32>
    %1950 = vector.extract_strided_slice %1949 {offsets = [0, 0], sizes = [28, 128], strides = [1, 1]} : vector<30x128xf32> to vector<28x128xf32>
    %1951 = vector.shape_cast %3 : vector<128xf32> to vector<1x128xf32>
    %1952 = vector.broadcast %1951 : vector<1x128xf32> to vector<28x128xf32>
    %1953 = arith.mulf %1950, %1952 : vector<28x128xf32>
    %1954 = arith.addf %1942, %1953 : vector<28x128xf32>
    %1955 = vector.extract_strided_slice %1949 {offsets = [1, 0], sizes = [28, 128], strides = [1, 1]} : vector<30x128xf32> to vector<28x128xf32>
    %1956 = vector.shape_cast %7 : vector<128xf32> to vector<1x128xf32>
    %1957 = vector.broadcast %1956 : vector<1x128xf32> to vector<28x128xf32>
    %1958 = arith.mulf %1955, %1957 : vector<28x128xf32>
    %1959 = arith.addf %1954, %1958 : vector<28x128xf32>
    %1960 = vector.extract_strided_slice %1949 {offsets = [2, 0], sizes = [28, 128], strides = [1, 1]} : vector<30x128xf32> to vector<28x128xf32>
    %1961 = vector.shape_cast %11 : vector<128xf32> to vector<1x128xf32>
    %1962 = vector.broadcast %1961 : vector<1x128xf32> to vector<28x128xf32>
    %1963 = arith.mulf %1960, %1962 : vector<28x128xf32>
    %1964 = arith.addf %1959, %1963 : vector<28x128xf32>
    %c0_628 = arith.constant 0 : index
    %c1_629 = arith.constant 1 : index
    %1965 = arith.index_cast %1944 : i32 to index
    %c0_630 = arith.constant 0 : index
    %c0_631 = arith.constant 0 : index
    %1966 = vector.load %arg1[%c0_628, %c1_629, %1965, %c0_630, %c0_631] : memref<2x2x30x30x128xf32, #tpu.memory_space<vmem>>, vector<1x1x1x30x128xf32>
    %1967 = vector.shape_cast %1966 : vector<1x1x1x30x128xf32> to vector<30x128xf32>
    %cst_632 = arith.constant 0.000000e+00 : f32
    %1968 = vector.broadcast %cst_632 : f32 to vector<30x128xf32>
    %1969 = arith.maximumf %1967, %1968 : vector<30x128xf32>
    %1970 = vector.extract_strided_slice %1969 {offsets = [0, 0], sizes = [28, 128], strides = [1, 1]} : vector<30x128xf32> to vector<28x128xf32>
    %1971 = vector.shape_cast %5 : vector<128xf32> to vector<1x128xf32>
    %1972 = vector.broadcast %1971 : vector<1x128xf32> to vector<28x128xf32>
    %1973 = arith.mulf %1970, %1972 : vector<28x128xf32>
    %1974 = arith.addf %1964, %1973 : vector<28x128xf32>
    %1975 = vector.extract_strided_slice %1969 {offsets = [1, 0], sizes = [28, 128], strides = [1, 1]} : vector<30x128xf32> to vector<28x128xf32>
    %1976 = vector.shape_cast %9 : vector<128xf32> to vector<1x128xf32>
    %1977 = vector.broadcast %1976 : vector<1x128xf32> to vector<28x128xf32>
    %1978 = arith.mulf %1975, %1977 : vector<28x128xf32>
    %1979 = arith.addf %1974, %1978 : vector<28x128xf32>
    %c10_i32_633 = arith.constant 10 : i32
    %1980 = arith.addi %0, %c10_i32_633 : i32
    %c0_i32_634 = arith.constant 0 : i32
    %1981 = arith.addi %1980, %c0_i32_634 : i32
    %c1_635 = arith.constant 1 : index
    %c0_636 = arith.constant 0 : index
    %1982 = arith.index_cast %1981 : i32 to index
    %c0_637 = arith.constant 0 : index
    %c0_638 = arith.constant 0 : index
    %1983 = vector.load %arg1[%c1_635, %c0_636, %1982, %c0_637, %c0_638] : memref<2x2x30x30x128xf32, #tpu.memory_space<vmem>>, vector<1x1x1x30x128xf32>
    %1984 = vector.shape_cast %1983 : vector<1x1x1x30x128xf32> to vector<30x128xf32>
    %cst_639 = arith.constant 0.000000e+00 : f32
    %1985 = vector.broadcast %cst_639 : f32 to vector<30x128xf32>
    %1986 = arith.maximumf %1984, %1985 : vector<30x128xf32>
    %1987 = vector.extract_strided_slice %1986 {offsets = [0, 0], sizes = [28, 128], strides = [1, 1]} : vector<30x128xf32> to vector<28x128xf32>
    %1988 = vector.shape_cast %13 : vector<128xf32> to vector<1x128xf32>
    %1989 = vector.broadcast %1988 : vector<1x128xf32> to vector<28x128xf32>
    %1990 = arith.mulf %1987, %1989 : vector<28x128xf32>
    %1991 = arith.addf %1979, %1990 : vector<28x128xf32>
    %1992 = vector.extract_strided_slice %1986 {offsets = [1, 0], sizes = [28, 128], strides = [1, 1]} : vector<30x128xf32> to vector<28x128xf32>
    %1993 = vector.shape_cast %17 : vector<128xf32> to vector<1x128xf32>
    %1994 = vector.broadcast %1993 : vector<1x128xf32> to vector<28x128xf32>
    %1995 = arith.mulf %1992, %1994 : vector<28x128xf32>
    %1996 = arith.addf %1991, %1995 : vector<28x128xf32>
    %1997 = vector.extract_strided_slice %1986 {offsets = [2, 0], sizes = [28, 128], strides = [1, 1]} : vector<30x128xf32> to vector<28x128xf32>
    %1998 = vector.shape_cast %21 : vector<128xf32> to vector<1x128xf32>
    %1999 = vector.broadcast %1998 : vector<1x128xf32> to vector<28x128xf32>
    %2000 = arith.mulf %1997, %1999 : vector<28x128xf32>
    %2001 = arith.addf %1996, %2000 : vector<28x128xf32>
    %c1_640 = arith.constant 1 : index
    %c1_641 = arith.constant 1 : index
    %2002 = arith.index_cast %1981 : i32 to index
    %c0_642 = arith.constant 0 : index
    %c0_643 = arith.constant 0 : index
    %2003 = vector.load %arg1[%c1_640, %c1_641, %2002, %c0_642, %c0_643] : memref<2x2x30x30x128xf32, #tpu.memory_space<vmem>>, vector<1x1x1x30x128xf32>
    %2004 = vector.shape_cast %2003 : vector<1x1x1x30x128xf32> to vector<30x128xf32>
    %cst_644 = arith.constant 0.000000e+00 : f32
    %2005 = vector.broadcast %cst_644 : f32 to vector<30x128xf32>
    %2006 = arith.maximumf %2004, %2005 : vector<30x128xf32>
    %2007 = vector.extract_strided_slice %2006 {offsets = [0, 0], sizes = [28, 128], strides = [1, 1]} : vector<30x128xf32> to vector<28x128xf32>
    %2008 = vector.shape_cast %15 : vector<128xf32> to vector<1x128xf32>
    %2009 = vector.broadcast %2008 : vector<1x128xf32> to vector<28x128xf32>
    %2010 = arith.mulf %2007, %2009 : vector<28x128xf32>
    %2011 = arith.addf %2001, %2010 : vector<28x128xf32>
    %2012 = vector.extract_strided_slice %2006 {offsets = [1, 0], sizes = [28, 128], strides = [1, 1]} : vector<30x128xf32> to vector<28x128xf32>
    %2013 = vector.shape_cast %19 : vector<128xf32> to vector<1x128xf32>
    %2014 = vector.broadcast %2013 : vector<1x128xf32> to vector<28x128xf32>
    %2015 = arith.mulf %2012, %2014 : vector<28x128xf32>
    %2016 = arith.addf %2011, %2015 : vector<28x128xf32>
    %c10_i32_645 = arith.constant 10 : i32
    %2017 = arith.addi %0, %c10_i32_645 : i32
    %c1_i32_646 = arith.constant 1 : i32
    %2018 = arith.addi %2017, %c1_i32_646 : i32
    %c0_647 = arith.constant 0 : index
    %c0_648 = arith.constant 0 : index
    %2019 = arith.index_cast %2018 : i32 to index
    %c0_649 = arith.constant 0 : index
    %c0_650 = arith.constant 0 : index
    %2020 = vector.load %arg1[%c0_647, %c0_648, %2019, %c0_649, %c0_650] : memref<2x2x30x30x128xf32, #tpu.memory_space<vmem>>, vector<1x1x1x30x128xf32>
    %2021 = vector.shape_cast %2020 : vector<1x1x1x30x128xf32> to vector<30x128xf32>
    %cst_651 = arith.constant 0.000000e+00 : f32
    %2022 = vector.broadcast %cst_651 : f32 to vector<30x128xf32>
    %2023 = arith.maximumf %2021, %2022 : vector<30x128xf32>
    %2024 = vector.extract_strided_slice %2023 {offsets = [0, 0], sizes = [28, 128], strides = [1, 1]} : vector<30x128xf32> to vector<28x128xf32>
    %2025 = vector.shape_cast %23 : vector<128xf32> to vector<1x128xf32>
    %2026 = vector.broadcast %2025 : vector<1x128xf32> to vector<28x128xf32>
    %2027 = arith.mulf %2024, %2026 : vector<28x128xf32>
    %2028 = arith.addf %2016, %2027 : vector<28x128xf32>
    %2029 = vector.extract_strided_slice %2023 {offsets = [1, 0], sizes = [28, 128], strides = [1, 1]} : vector<30x128xf32> to vector<28x128xf32>
    %2030 = vector.shape_cast %27 : vector<128xf32> to vector<1x128xf32>
    %2031 = vector.broadcast %2030 : vector<1x128xf32> to vector<28x128xf32>
    %2032 = arith.mulf %2029, %2031 : vector<28x128xf32>
    %2033 = arith.addf %2028, %2032 : vector<28x128xf32>
    %2034 = vector.extract_strided_slice %2023 {offsets = [2, 0], sizes = [28, 128], strides = [1, 1]} : vector<30x128xf32> to vector<28x128xf32>
    %2035 = vector.shape_cast %31 : vector<128xf32> to vector<1x128xf32>
    %2036 = vector.broadcast %2035 : vector<1x128xf32> to vector<28x128xf32>
    %2037 = arith.mulf %2034, %2036 : vector<28x128xf32>
    %2038 = arith.addf %2033, %2037 : vector<28x128xf32>
    %c0_652 = arith.constant 0 : index
    %c1_653 = arith.constant 1 : index
    %2039 = arith.index_cast %2018 : i32 to index
    %c0_654 = arith.constant 0 : index
    %c0_655 = arith.constant 0 : index
    %2040 = vector.load %arg1[%c0_652, %c1_653, %2039, %c0_654, %c0_655] : memref<2x2x30x30x128xf32, #tpu.memory_space<vmem>>, vector<1x1x1x30x128xf32>
    %2041 = vector.shape_cast %2040 : vector<1x1x1x30x128xf32> to vector<30x128xf32>
    %cst_656 = arith.constant 0.000000e+00 : f32
    %2042 = vector.broadcast %cst_656 : f32 to vector<30x128xf32>
    %2043 = arith.maximumf %2041, %2042 : vector<30x128xf32>
    %2044 = vector.extract_strided_slice %2043 {offsets = [0, 0], sizes = [28, 128], strides = [1, 1]} : vector<30x128xf32> to vector<28x128xf32>
    %2045 = vector.shape_cast %25 : vector<128xf32> to vector<1x128xf32>
    %2046 = vector.broadcast %2045 : vector<1x128xf32> to vector<28x128xf32>
    %2047 = arith.mulf %2044, %2046 : vector<28x128xf32>
    %2048 = arith.addf %2038, %2047 : vector<28x128xf32>
    %2049 = vector.extract_strided_slice %2043 {offsets = [1, 0], sizes = [28, 128], strides = [1, 1]} : vector<30x128xf32> to vector<28x128xf32>
    %2050 = vector.shape_cast %29 : vector<128xf32> to vector<1x128xf32>
    %2051 = vector.broadcast %2050 : vector<1x128xf32> to vector<28x128xf32>
    %2052 = arith.mulf %2049, %2051 : vector<28x128xf32>
    %2053 = arith.addf %2048, %2052 : vector<28x128xf32>
    %c10_i32_657 = arith.constant 10 : i32
    %2054 = arith.addi %0, %c10_i32_657 : i32
    %c1_i32_658 = arith.constant 1 : i32
    %2055 = arith.addi %2054, %c1_i32_658 : i32
    %c1_659 = arith.constant 1 : index
    %c0_660 = arith.constant 0 : index
    %2056 = arith.index_cast %2055 : i32 to index
    %c0_661 = arith.constant 0 : index
    %c0_662 = arith.constant 0 : index
    %2057 = vector.load %arg1[%c1_659, %c0_660, %2056, %c0_661, %c0_662] : memref<2x2x30x30x128xf32, #tpu.memory_space<vmem>>, vector<1x1x1x30x128xf32>
    %2058 = vector.shape_cast %2057 : vector<1x1x1x30x128xf32> to vector<30x128xf32>
    %cst_663 = arith.constant 0.000000e+00 : f32
    %2059 = vector.broadcast %cst_663 : f32 to vector<30x128xf32>
    %2060 = arith.maximumf %2058, %2059 : vector<30x128xf32>
    %2061 = vector.extract_strided_slice %2060 {offsets = [0, 0], sizes = [28, 128], strides = [1, 1]} : vector<30x128xf32> to vector<28x128xf32>
    %2062 = vector.shape_cast %33 : vector<128xf32> to vector<1x128xf32>
    %2063 = vector.broadcast %2062 : vector<1x128xf32> to vector<28x128xf32>
    %2064 = arith.mulf %2061, %2063 : vector<28x128xf32>
    %2065 = arith.addf %2053, %2064 : vector<28x128xf32>
    %2066 = vector.extract_strided_slice %2060 {offsets = [1, 0], sizes = [28, 128], strides = [1, 1]} : vector<30x128xf32> to vector<28x128xf32>
    %2067 = vector.shape_cast %37 : vector<128xf32> to vector<1x128xf32>
    %2068 = vector.broadcast %2067 : vector<1x128xf32> to vector<28x128xf32>
    %2069 = arith.mulf %2066, %2068 : vector<28x128xf32>
    %2070 = arith.addf %2065, %2069 : vector<28x128xf32>
    %2071 = vector.extract_strided_slice %2060 {offsets = [2, 0], sizes = [28, 128], strides = [1, 1]} : vector<30x128xf32> to vector<28x128xf32>
    %2072 = vector.shape_cast %41 : vector<128xf32> to vector<1x128xf32>
    %2073 = vector.broadcast %2072 : vector<1x128xf32> to vector<28x128xf32>
    %2074 = arith.mulf %2071, %2073 : vector<28x128xf32>
    %2075 = arith.addf %2070, %2074 : vector<28x128xf32>
    %c1_664 = arith.constant 1 : index
    %c1_665 = arith.constant 1 : index
    %2076 = arith.index_cast %2055 : i32 to index
    %c0_666 = arith.constant 0 : index
    %c0_667 = arith.constant 0 : index
    %2077 = vector.load %arg1[%c1_664, %c1_665, %2076, %c0_666, %c0_667] : memref<2x2x30x30x128xf32, #tpu.memory_space<vmem>>, vector<1x1x1x30x128xf32>
    %2078 = vector.shape_cast %2077 : vector<1x1x1x30x128xf32> to vector<30x128xf32>
    %cst_668 = arith.constant 0.000000e+00 : f32
    %2079 = vector.broadcast %cst_668 : f32 to vector<30x128xf32>
    %2080 = arith.maximumf %2078, %2079 : vector<30x128xf32>
    %2081 = vector.extract_strided_slice %2080 {offsets = [0, 0], sizes = [28, 128], strides = [1, 1]} : vector<30x128xf32> to vector<28x128xf32>
    %2082 = vector.shape_cast %35 : vector<128xf32> to vector<1x128xf32>
    %2083 = vector.broadcast %2082 : vector<1x128xf32> to vector<28x128xf32>
    %2084 = arith.mulf %2081, %2083 : vector<28x128xf32>
    %2085 = arith.addf %2075, %2084 : vector<28x128xf32>
    %2086 = vector.extract_strided_slice %2080 {offsets = [1, 0], sizes = [28, 128], strides = [1, 1]} : vector<30x128xf32> to vector<28x128xf32>
    %2087 = vector.shape_cast %39 : vector<128xf32> to vector<1x128xf32>
    %2088 = vector.broadcast %2087 : vector<1x128xf32> to vector<28x128xf32>
    %2089 = arith.mulf %2086, %2088 : vector<28x128xf32>
    %2090 = arith.addf %2085, %2089 : vector<28x128xf32>
    %c10_i32_669 = arith.constant 10 : i32
    %2091 = arith.addi %0, %c10_i32_669 : i32
    %c2_i32_670 = arith.constant 2 : i32
    %2092 = arith.addi %2091, %c2_i32_670 : i32
    %c0_671 = arith.constant 0 : index
    %c0_672 = arith.constant 0 : index
    %2093 = arith.index_cast %2092 : i32 to index
    %c0_673 = arith.constant 0 : index
    %c0_674 = arith.constant 0 : index
    %2094 = vector.load %arg1[%c0_671, %c0_672, %2093, %c0_673, %c0_674] : memref<2x2x30x30x128xf32, #tpu.memory_space<vmem>>, vector<1x1x1x30x128xf32>
    %2095 = vector.shape_cast %2094 : vector<1x1x1x30x128xf32> to vector<30x128xf32>
    %cst_675 = arith.constant 0.000000e+00 : f32
    %2096 = vector.broadcast %cst_675 : f32 to vector<30x128xf32>
    %2097 = arith.maximumf %2095, %2096 : vector<30x128xf32>
    %2098 = vector.extract_strided_slice %2097 {offsets = [0, 0], sizes = [28, 128], strides = [1, 1]} : vector<30x128xf32> to vector<28x128xf32>
    %2099 = vector.shape_cast %43 : vector<128xf32> to vector<1x128xf32>
    %2100 = vector.broadcast %2099 : vector<1x128xf32> to vector<28x128xf32>
    %2101 = arith.mulf %2098, %2100 : vector<28x128xf32>
    %2102 = arith.addf %2090, %2101 : vector<28x128xf32>
    %2103 = vector.extract_strided_slice %2097 {offsets = [1, 0], sizes = [28, 128], strides = [1, 1]} : vector<30x128xf32> to vector<28x128xf32>
    %2104 = vector.shape_cast %47 : vector<128xf32> to vector<1x128xf32>
    %2105 = vector.broadcast %2104 : vector<1x128xf32> to vector<28x128xf32>
    %2106 = arith.mulf %2103, %2105 : vector<28x128xf32>
    %2107 = arith.addf %2102, %2106 : vector<28x128xf32>
    %2108 = vector.extract_strided_slice %2097 {offsets = [2, 0], sizes = [28, 128], strides = [1, 1]} : vector<30x128xf32> to vector<28x128xf32>
    %2109 = vector.shape_cast %51 : vector<128xf32> to vector<1x128xf32>
    %2110 = vector.broadcast %2109 : vector<1x128xf32> to vector<28x128xf32>
    %2111 = arith.mulf %2108, %2110 : vector<28x128xf32>
    %2112 = arith.addf %2107, %2111 : vector<28x128xf32>
    %c0_676 = arith.constant 0 : index
    %c1_677 = arith.constant 1 : index
    %2113 = arith.index_cast %2092 : i32 to index
    %c0_678 = arith.constant 0 : index
    %c0_679 = arith.constant 0 : index
    %2114 = vector.load %arg1[%c0_676, %c1_677, %2113, %c0_678, %c0_679] : memref<2x2x30x30x128xf32, #tpu.memory_space<vmem>>, vector<1x1x1x30x128xf32>
    %2115 = vector.shape_cast %2114 : vector<1x1x1x30x128xf32> to vector<30x128xf32>
    %cst_680 = arith.constant 0.000000e+00 : f32
    %2116 = vector.broadcast %cst_680 : f32 to vector<30x128xf32>
    %2117 = arith.maximumf %2115, %2116 : vector<30x128xf32>
    %2118 = vector.extract_strided_slice %2117 {offsets = [0, 0], sizes = [28, 128], strides = [1, 1]} : vector<30x128xf32> to vector<28x128xf32>
    %2119 = vector.shape_cast %45 : vector<128xf32> to vector<1x128xf32>
    %2120 = vector.broadcast %2119 : vector<1x128xf32> to vector<28x128xf32>
    %2121 = arith.mulf %2118, %2120 : vector<28x128xf32>
    %2122 = arith.addf %2112, %2121 : vector<28x128xf32>
    %2123 = vector.extract_strided_slice %2117 {offsets = [1, 0], sizes = [28, 128], strides = [1, 1]} : vector<30x128xf32> to vector<28x128xf32>
    %2124 = vector.shape_cast %49 : vector<128xf32> to vector<1x128xf32>
    %2125 = vector.broadcast %2124 : vector<1x128xf32> to vector<28x128xf32>
    %2126 = arith.mulf %2123, %2125 : vector<28x128xf32>
    %2127 = arith.addf %2122, %2126 : vector<28x128xf32>
    %c10 = arith.constant 10 : index
    %c0_681 = arith.constant 0 : index
    %c0_682 = arith.constant 0 : index
    %2128 = vector.load %arg3[%c10, %c0_681, %c0_682] : memref<14x28x128xf32, #tpu.memory_space<vmem>>, vector<1x28x128xf32>
    %2129 = vector.shape_cast %2128 : vector<1x28x128xf32> to vector<28x128xf32>
    %2130 = vector.shape_cast %2127 : vector<28x128xf32> to vector<1x28x128xf32>
    tpu.vector_store %arg3[%c10, %c0_681, %c0_682], %2130 {strides = array<i32>} : memref<14x28x128xf32, #tpu.memory_space<vmem>>, vector<1x28x128xf32>,
    %cst_683 = arith.constant 0.000000e+00 : f32
    %2131 = vector.broadcast %cst_683 : f32 to vector<28x128xf32>
    %c11_i32 = arith.constant 11 : i32
    %2132 = arith.addi %0, %c11_i32 : i32
    %c0_i32_684 = arith.constant 0 : i32
    %2133 = arith.addi %2132, %c0_i32_684 : i32
    %c0_685 = arith.constant 0 : index
    %c0_686 = arith.constant 0 : index
    %2134 = arith.index_cast %2133 : i32 to index
    %c0_687 = arith.constant 0 : index
    %c0_688 = arith.constant 0 : index
    %2135 = vector.load %arg1[%c0_685, %c0_686, %2134, %c0_687, %c0_688] : memref<2x2x30x30x128xf32, #tpu.memory_space<vmem>>, vector<1x1x1x30x128xf32>
    %2136 = vector.shape_cast %2135 : vector<1x1x1x30x128xf32> to vector<30x128xf32>
    %cst_689 = arith.constant 0.000000e+00 : f32
    %2137 = vector.broadcast %cst_689 : f32 to vector<30x128xf32>
    %2138 = arith.maximumf %2136, %2137 : vector<30x128xf32>
    %2139 = vector.extract_strided_slice %2138 {offsets = [0, 0], sizes = [28, 128], strides = [1, 1]} : vector<30x128xf32> to vector<28x128xf32>
    %2140 = vector.shape_cast %3 : vector<128xf32> to vector<1x128xf32>
    %2141 = vector.broadcast %2140 : vector<1x128xf32> to vector<28x128xf32>
    %2142 = arith.mulf %2139, %2141 : vector<28x128xf32>
    %2143 = arith.addf %2131, %2142 : vector<28x128xf32>
    %2144 = vector.extract_strided_slice %2138 {offsets = [1, 0], sizes = [28, 128], strides = [1, 1]} : vector<30x128xf32> to vector<28x128xf32>
    %2145 = vector.shape_cast %7 : vector<128xf32> to vector<1x128xf32>
    %2146 = vector.broadcast %2145 : vector<1x128xf32> to vector<28x128xf32>
    %2147 = arith.mulf %2144, %2146 : vector<28x128xf32>
    %2148 = arith.addf %2143, %2147 : vector<28x128xf32>
    %2149 = vector.extract_strided_slice %2138 {offsets = [2, 0], sizes = [28, 128], strides = [1, 1]} : vector<30x128xf32> to vector<28x128xf32>
    %2150 = vector.shape_cast %11 : vector<128xf32> to vector<1x128xf32>
    %2151 = vector.broadcast %2150 : vector<1x128xf32> to vector<28x128xf32>
    %2152 = arith.mulf %2149, %2151 : vector<28x128xf32>
    %2153 = arith.addf %2148, %2152 : vector<28x128xf32>
    %c0_690 = arith.constant 0 : index
    %c1_691 = arith.constant 1 : index
    %2154 = arith.index_cast %2133 : i32 to index
    %c0_692 = arith.constant 0 : index
    %c0_693 = arith.constant 0 : index
    %2155 = vector.load %arg1[%c0_690, %c1_691, %2154, %c0_692, %c0_693] : memref<2x2x30x30x128xf32, #tpu.memory_space<vmem>>, vector<1x1x1x30x128xf32>
    %2156 = vector.shape_cast %2155 : vector<1x1x1x30x128xf32> to vector<30x128xf32>
    %cst_694 = arith.constant 0.000000e+00 : f32
    %2157 = vector.broadcast %cst_694 : f32 to vector<30x128xf32>
    %2158 = arith.maximumf %2156, %2157 : vector<30x128xf32>
    %2159 = vector.extract_strided_slice %2158 {offsets = [0, 0], sizes = [28, 128], strides = [1, 1]} : vector<30x128xf32> to vector<28x128xf32>
    %2160 = vector.shape_cast %5 : vector<128xf32> to vector<1x128xf32>
    %2161 = vector.broadcast %2160 : vector<1x128xf32> to vector<28x128xf32>
    %2162 = arith.mulf %2159, %2161 : vector<28x128xf32>
    %2163 = arith.addf %2153, %2162 : vector<28x128xf32>
    %2164 = vector.extract_strided_slice %2158 {offsets = [1, 0], sizes = [28, 128], strides = [1, 1]} : vector<30x128xf32> to vector<28x128xf32>
    %2165 = vector.shape_cast %9 : vector<128xf32> to vector<1x128xf32>
    %2166 = vector.broadcast %2165 : vector<1x128xf32> to vector<28x128xf32>
    %2167 = arith.mulf %2164, %2166 : vector<28x128xf32>
    %2168 = arith.addf %2163, %2167 : vector<28x128xf32>
    %c11_i32_695 = arith.constant 11 : i32
    %2169 = arith.addi %0, %c11_i32_695 : i32
    %c0_i32_696 = arith.constant 0 : i32
    %2170 = arith.addi %2169, %c0_i32_696 : i32
    %c1_697 = arith.constant 1 : index
    %c0_698 = arith.constant 0 : index
    %2171 = arith.index_cast %2170 : i32 to index
    %c0_699 = arith.constant 0 : index
    %c0_700 = arith.constant 0 : index
    %2172 = vector.load %arg1[%c1_697, %c0_698, %2171, %c0_699, %c0_700] : memref<2x2x30x30x128xf32, #tpu.memory_space<vmem>>, vector<1x1x1x30x128xf32>
    %2173 = vector.shape_cast %2172 : vector<1x1x1x30x128xf32> to vector<30x128xf32>
    %cst_701 = arith.constant 0.000000e+00 : f32
    %2174 = vector.broadcast %cst_701 : f32 to vector<30x128xf32>
    %2175 = arith.maximumf %2173, %2174 : vector<30x128xf32>
    %2176 = vector.extract_strided_slice %2175 {offsets = [0, 0], sizes = [28, 128], strides = [1, 1]} : vector<30x128xf32> to vector<28x128xf32>
    %2177 = vector.shape_cast %13 : vector<128xf32> to vector<1x128xf32>
    %2178 = vector.broadcast %2177 : vector<1x128xf32> to vector<28x128xf32>
    %2179 = arith.mulf %2176, %2178 : vector<28x128xf32>
    %2180 = arith.addf %2168, %2179 : vector<28x128xf32>
    %2181 = vector.extract_strided_slice %2175 {offsets = [1, 0], sizes = [28, 128], strides = [1, 1]} : vector<30x128xf32> to vector<28x128xf32>
    %2182 = vector.shape_cast %17 : vector<128xf32> to vector<1x128xf32>
    %2183 = vector.broadcast %2182 : vector<1x128xf32> to vector<28x128xf32>
    %2184 = arith.mulf %2181, %2183 : vector<28x128xf32>
    %2185 = arith.addf %2180, %2184 : vector<28x128xf32>
    %2186 = vector.extract_strided_slice %2175 {offsets = [2, 0], sizes = [28, 128], strides = [1, 1]} : vector<30x128xf32> to vector<28x128xf32>
    %2187 = vector.shape_cast %21 : vector<128xf32> to vector<1x128xf32>
    %2188 = vector.broadcast %2187 : vector<1x128xf32> to vector<28x128xf32>
    %2189 = arith.mulf %2186, %2188 : vector<28x128xf32>
    %2190 = arith.addf %2185, %2189 : vector<28x128xf32>
    %c1_702 = arith.constant 1 : index
    %c1_703 = arith.constant 1 : index
    %2191 = arith.index_cast %2170 : i32 to index
    %c0_704 = arith.constant 0 : index
    %c0_705 = arith.constant 0 : index
    %2192 = vector.load %arg1[%c1_702, %c1_703, %2191, %c0_704, %c0_705] : memref<2x2x30x30x128xf32, #tpu.memory_space<vmem>>, vector<1x1x1x30x128xf32>
    %2193 = vector.shape_cast %2192 : vector<1x1x1x30x128xf32> to vector<30x128xf32>
    %cst_706 = arith.constant 0.000000e+00 : f32
    %2194 = vector.broadcast %cst_706 : f32 to vector<30x128xf32>
    %2195 = arith.maximumf %2193, %2194 : vector<30x128xf32>
    %2196 = vector.extract_strided_slice %2195 {offsets = [0, 0], sizes = [28, 128], strides = [1, 1]} : vector<30x128xf32> to vector<28x128xf32>
    %2197 = vector.shape_cast %15 : vector<128xf32> to vector<1x128xf32>
    %2198 = vector.broadcast %2197 : vector<1x128xf32> to vector<28x128xf32>
    %2199 = arith.mulf %2196, %2198 : vector<28x128xf32>
    %2200 = arith.addf %2190, %2199 : vector<28x128xf32>
    %2201 = vector.extract_strided_slice %2195 {offsets = [1, 0], sizes = [28, 128], strides = [1, 1]} : vector<30x128xf32> to vector<28x128xf32>
    %2202 = vector.shape_cast %19 : vector<128xf32> to vector<1x128xf32>
    %2203 = vector.broadcast %2202 : vector<1x128xf32> to vector<28x128xf32>
    %2204 = arith.mulf %2201, %2203 : vector<28x128xf32>
    %2205 = arith.addf %2200, %2204 : vector<28x128xf32>
    %c11_i32_707 = arith.constant 11 : i32
    %2206 = arith.addi %0, %c11_i32_707 : i32
    %c1_i32_708 = arith.constant 1 : i32
    %2207 = arith.addi %2206, %c1_i32_708 : i32
    %c0_709 = arith.constant 0 : index
    %c0_710 = arith.constant 0 : index
    %2208 = arith.index_cast %2207 : i32 to index
    %c0_711 = arith.constant 0 : index
    %c0_712 = arith.constant 0 : index
    %2209 = vector.load %arg1[%c0_709, %c0_710, %2208, %c0_711, %c0_712] : memref<2x2x30x30x128xf32, #tpu.memory_space<vmem>>, vector<1x1x1x30x128xf32>
    %2210 = vector.shape_cast %2209 : vector<1x1x1x30x128xf32> to vector<30x128xf32>
    %cst_713 = arith.constant 0.000000e+00 : f32
    %2211 = vector.broadcast %cst_713 : f32 to vector<30x128xf32>
    %2212 = arith.maximumf %2210, %2211 : vector<30x128xf32>
    %2213 = vector.extract_strided_slice %2212 {offsets = [0, 0], sizes = [28, 128], strides = [1, 1]} : vector<30x128xf32> to vector<28x128xf32>
    %2214 = vector.shape_cast %23 : vector<128xf32> to vector<1x128xf32>
    %2215 = vector.broadcast %2214 : vector<1x128xf32> to vector<28x128xf32>
    %2216 = arith.mulf %2213, %2215 : vector<28x128xf32>
    %2217 = arith.addf %2205, %2216 : vector<28x128xf32>
    %2218 = vector.extract_strided_slice %2212 {offsets = [1, 0], sizes = [28, 128], strides = [1, 1]} : vector<30x128xf32> to vector<28x128xf32>
    %2219 = vector.shape_cast %27 : vector<128xf32> to vector<1x128xf32>
    %2220 = vector.broadcast %2219 : vector<1x128xf32> to vector<28x128xf32>
    %2221 = arith.mulf %2218, %2220 : vector<28x128xf32>
    %2222 = arith.addf %2217, %2221 : vector<28x128xf32>
    %2223 = vector.extract_strided_slice %2212 {offsets = [2, 0], sizes = [28, 128], strides = [1, 1]} : vector<30x128xf32> to vector<28x128xf32>
    %2224 = vector.shape_cast %31 : vector<128xf32> to vector<1x128xf32>
    %2225 = vector.broadcast %2224 : vector<1x128xf32> to vector<28x128xf32>
    %2226 = arith.mulf %2223, %2225 : vector<28x128xf32>
    %2227 = arith.addf %2222, %2226 : vector<28x128xf32>
    %c0_714 = arith.constant 0 : index
    %c1_715 = arith.constant 1 : index
    %2228 = arith.index_cast %2207 : i32 to index
    %c0_716 = arith.constant 0 : index
    %c0_717 = arith.constant 0 : index
    %2229 = vector.load %arg1[%c0_714, %c1_715, %2228, %c0_716, %c0_717] : memref<2x2x30x30x128xf32, #tpu.memory_space<vmem>>, vector<1x1x1x30x128xf32>
    %2230 = vector.shape_cast %2229 : vector<1x1x1x30x128xf32> to vector<30x128xf32>
    %cst_718 = arith.constant 0.000000e+00 : f32
    %2231 = vector.broadcast %cst_718 : f32 to vector<30x128xf32>
    %2232 = arith.maximumf %2230, %2231 : vector<30x128xf32>
    %2233 = vector.extract_strided_slice %2232 {offsets = [0, 0], sizes = [28, 128], strides = [1, 1]} : vector<30x128xf32> to vector<28x128xf32>
    %2234 = vector.shape_cast %25 : vector<128xf32> to vector<1x128xf32>
    %2235 = vector.broadcast %2234 : vector<1x128xf32> to vector<28x128xf32>
    %2236 = arith.mulf %2233, %2235 : vector<28x128xf32>
    %2237 = arith.addf %2227, %2236 : vector<28x128xf32>
    %2238 = vector.extract_strided_slice %2232 {offsets = [1, 0], sizes = [28, 128], strides = [1, 1]} : vector<30x128xf32> to vector<28x128xf32>
    %2239 = vector.shape_cast %29 : vector<128xf32> to vector<1x128xf32>
    %2240 = vector.broadcast %2239 : vector<1x128xf32> to vector<28x128xf32>
    %2241 = arith.mulf %2238, %2240 : vector<28x128xf32>
    %2242 = arith.addf %2237, %2241 : vector<28x128xf32>
    %c11_i32_719 = arith.constant 11 : i32
    %2243 = arith.addi %0, %c11_i32_719 : i32
    %c1_i32_720 = arith.constant 1 : i32
    %2244 = arith.addi %2243, %c1_i32_720 : i32
    %c1_721 = arith.constant 1 : index
    %c0_722 = arith.constant 0 : index
    %2245 = arith.index_cast %2244 : i32 to index
    %c0_723 = arith.constant 0 : index
    %c0_724 = arith.constant 0 : index
    %2246 = vector.load %arg1[%c1_721, %c0_722, %2245, %c0_723, %c0_724] : memref<2x2x30x30x128xf32, #tpu.memory_space<vmem>>, vector<1x1x1x30x128xf32>
    %2247 = vector.shape_cast %2246 : vector<1x1x1x30x128xf32> to vector<30x128xf32>
    %cst_725 = arith.constant 0.000000e+00 : f32
    %2248 = vector.broadcast %cst_725 : f32 to vector<30x128xf32>
    %2249 = arith.maximumf %2247, %2248 : vector<30x128xf32>
    %2250 = vector.extract_strided_slice %2249 {offsets = [0, 0], sizes = [28, 128], strides = [1, 1]} : vector<30x128xf32> to vector<28x128xf32>
    %2251 = vector.shape_cast %33 : vector<128xf32> to vector<1x128xf32>
    %2252 = vector.broadcast %2251 : vector<1x128xf32> to vector<28x128xf32>
    %2253 = arith.mulf %2250, %2252 : vector<28x128xf32>
    %2254 = arith.addf %2242, %2253 : vector<28x128xf32>
    %2255 = vector.extract_strided_slice %2249 {offsets = [1, 0], sizes = [28, 128], strides = [1, 1]} : vector<30x128xf32> to vector<28x128xf32>
    %2256 = vector.shape_cast %37 : vector<128xf32> to vector<1x128xf32>
    %2257 = vector.broadcast %2256 : vector<1x128xf32> to vector<28x128xf32>
    %2258 = arith.mulf %2255, %2257 : vector<28x128xf32>
    %2259 = arith.addf %2254, %2258 : vector<28x128xf32>
    %2260 = vector.extract_strided_slice %2249 {offsets = [2, 0], sizes = [28, 128], strides = [1, 1]} : vector<30x128xf32> to vector<28x128xf32>
    %2261 = vector.shape_cast %41 : vector<128xf32> to vector<1x128xf32>
    %2262 = vector.broadcast %2261 : vector<1x128xf32> to vector<28x128xf32>
    %2263 = arith.mulf %2260, %2262 : vector<28x128xf32>
    %2264 = arith.addf %2259, %2263 : vector<28x128xf32>
    %c1_726 = arith.constant 1 : index
    %c1_727 = arith.constant 1 : index
    %2265 = arith.index_cast %2244 : i32 to index
    %c0_728 = arith.constant 0 : index
    %c0_729 = arith.constant 0 : index
    %2266 = vector.load %arg1[%c1_726, %c1_727, %2265, %c0_728, %c0_729] : memref<2x2x30x30x128xf32, #tpu.memory_space<vmem>>, vector<1x1x1x30x128xf32>
    %2267 = vector.shape_cast %2266 : vector<1x1x1x30x128xf32> to vector<30x128xf32>
    %cst_730 = arith.constant 0.000000e+00 : f32
    %2268 = vector.broadcast %cst_730 : f32 to vector<30x128xf32>
    %2269 = arith.maximumf %2267, %2268 : vector<30x128xf32>
    %2270 = vector.extract_strided_slice %2269 {offsets = [0, 0], sizes = [28, 128], strides = [1, 1]} : vector<30x128xf32> to vector<28x128xf32>
    %2271 = vector.shape_cast %35 : vector<128xf32> to vector<1x128xf32>
    %2272 = vector.broadcast %2271 : vector<1x128xf32> to vector<28x128xf32>
    %2273 = arith.mulf %2270, %2272 : vector<28x128xf32>
    %2274 = arith.addf %2264, %2273 : vector<28x128xf32>
    %2275 = vector.extract_strided_slice %2269 {offsets = [1, 0], sizes = [28, 128], strides = [1, 1]} : vector<30x128xf32> to vector<28x128xf32>
    %2276 = vector.shape_cast %39 : vector<128xf32> to vector<1x128xf32>
    %2277 = vector.broadcast %2276 : vector<1x128xf32> to vector<28x128xf32>
    %2278 = arith.mulf %2275, %2277 : vector<28x128xf32>
    %2279 = arith.addf %2274, %2278 : vector<28x128xf32>
    %c11_i32_731 = arith.constant 11 : i32
    %2280 = arith.addi %0, %c11_i32_731 : i32
    %c2_i32_732 = arith.constant 2 : i32
    %2281 = arith.addi %2280, %c2_i32_732 : i32
    %c0_733 = arith.constant 0 : index
    %c0_734 = arith.constant 0 : index
    %2282 = arith.index_cast %2281 : i32 to index
    %c0_735 = arith.constant 0 : index
    %c0_736 = arith.constant 0 : index
    %2283 = vector.load %arg1[%c0_733, %c0_734, %2282, %c0_735, %c0_736] : memref<2x2x30x30x128xf32, #tpu.memory_space<vmem>>, vector<1x1x1x30x128xf32>
    %2284 = vector.shape_cast %2283 : vector<1x1x1x30x128xf32> to vector<30x128xf32>
    %cst_737 = arith.constant 0.000000e+00 : f32
    %2285 = vector.broadcast %cst_737 : f32 to vector<30x128xf32>
    %2286 = arith.maximumf %2284, %2285 : vector<30x128xf32>
    %2287 = vector.extract_strided_slice %2286 {offsets = [0, 0], sizes = [28, 128], strides = [1, 1]} : vector<30x128xf32> to vector<28x128xf32>
    %2288 = vector.shape_cast %43 : vector<128xf32> to vector<1x128xf32>
    %2289 = vector.broadcast %2288 : vector<1x128xf32> to vector<28x128xf32>
    %2290 = arith.mulf %2287, %2289 : vector<28x128xf32>
    %2291 = arith.addf %2279, %2290 : vector<28x128xf32>
    %2292 = vector.extract_strided_slice %2286 {offsets = [1, 0], sizes = [28, 128], strides = [1, 1]} : vector<30x128xf32> to vector<28x128xf32>
    %2293 = vector.shape_cast %47 : vector<128xf32> to vector<1x128xf32>
    %2294 = vector.broadcast %2293 : vector<1x128xf32> to vector<28x128xf32>
    %2295 = arith.mulf %2292, %2294 : vector<28x128xf32>
    %2296 = arith.addf %2291, %2295 : vector<28x128xf32>
    %2297 = vector.extract_strided_slice %2286 {offsets = [2, 0], sizes = [28, 128], strides = [1, 1]} : vector<30x128xf32> to vector<28x128xf32>
    %2298 = vector.shape_cast %51 : vector<128xf32> to vector<1x128xf32>
    %2299 = vector.broadcast %2298 : vector<1x128xf32> to vector<28x128xf32>
    %2300 = arith.mulf %2297, %2299 : vector<28x128xf32>
    %2301 = arith.addf %2296, %2300 : vector<28x128xf32>
    %c0_738 = arith.constant 0 : index
    %c1_739 = arith.constant 1 : index
    %2302 = arith.index_cast %2281 : i32 to index
    %c0_740 = arith.constant 0 : index
    %c0_741 = arith.constant 0 : index
    %2303 = vector.load %arg1[%c0_738, %c1_739, %2302, %c0_740, %c0_741] : memref<2x2x30x30x128xf32, #tpu.memory_space<vmem>>, vector<1x1x1x30x128xf32>
    %2304 = vector.shape_cast %2303 : vector<1x1x1x30x128xf32> to vector<30x128xf32>
    %cst_742 = arith.constant 0.000000e+00 : f32
    %2305 = vector.broadcast %cst_742 : f32 to vector<30x128xf32>
    %2306 = arith.maximumf %2304, %2305 : vector<30x128xf32>
    %2307 = vector.extract_strided_slice %2306 {offsets = [0, 0], sizes = [28, 128], strides = [1, 1]} : vector<30x128xf32> to vector<28x128xf32>
    %2308 = vector.shape_cast %45 : vector<128xf32> to vector<1x128xf32>
    %2309 = vector.broadcast %2308 : vector<1x128xf32> to vector<28x128xf32>
    %2310 = arith.mulf %2307, %2309 : vector<28x128xf32>
    %2311 = arith.addf %2301, %2310 : vector<28x128xf32>
    %2312 = vector.extract_strided_slice %2306 {offsets = [1, 0], sizes = [28, 128], strides = [1, 1]} : vector<30x128xf32> to vector<28x128xf32>
    %2313 = vector.shape_cast %49 : vector<128xf32> to vector<1x128xf32>
    %2314 = vector.broadcast %2313 : vector<1x128xf32> to vector<28x128xf32>
    %2315 = arith.mulf %2312, %2314 : vector<28x128xf32>
    %2316 = arith.addf %2311, %2315 : vector<28x128xf32>
    %c11 = arith.constant 11 : index
    %c0_743 = arith.constant 0 : index
    %c0_744 = arith.constant 0 : index
    %2317 = vector.load %arg3[%c11, %c0_743, %c0_744] : memref<14x28x128xf32, #tpu.memory_space<vmem>>, vector<1x28x128xf32>
    %2318 = vector.shape_cast %2317 : vector<1x28x128xf32> to vector<28x128xf32>
    %2319 = vector.shape_cast %2316 : vector<28x128xf32> to vector<1x28x128xf32>
    tpu.vector_store %arg3[%c11, %c0_743, %c0_744], %2319 {strides = array<i32>} : memref<14x28x128xf32, #tpu.memory_space<vmem>>, vector<1x28x128xf32>,
    %cst_745 = arith.constant 0.000000e+00 : f32
    %2320 = vector.broadcast %cst_745 : f32 to vector<28x128xf32>
    %c12_i32 = arith.constant 12 : i32
    %2321 = arith.addi %0, %c12_i32 : i32
    %c0_i32_746 = arith.constant 0 : i32
    %2322 = arith.addi %2321, %c0_i32_746 : i32
    %c0_747 = arith.constant 0 : index
    %c0_748 = arith.constant 0 : index
    %2323 = arith.index_cast %2322 : i32 to index
    %c0_749 = arith.constant 0 : index
    %c0_750 = arith.constant 0 : index
    %2324 = vector.load %arg1[%c0_747, %c0_748, %2323, %c0_749, %c0_750] : memref<2x2x30x30x128xf32, #tpu.memory_space<vmem>>, vector<1x1x1x30x128xf32>
    %2325 = vector.shape_cast %2324 : vector<1x1x1x30x128xf32> to vector<30x128xf32>
    %cst_751 = arith.constant 0.000000e+00 : f32
    %2326 = vector.broadcast %cst_751 : f32 to vector<30x128xf32>
    %2327 = arith.maximumf %2325, %2326 : vector<30x128xf32>
    %2328 = vector.extract_strided_slice %2327 {offsets = [0, 0], sizes = [28, 128], strides = [1, 1]} : vector<30x128xf32> to vector<28x128xf32>
    %2329 = vector.shape_cast %3 : vector<128xf32> to vector<1x128xf32>
    %2330 = vector.broadcast %2329 : vector<1x128xf32> to vector<28x128xf32>
    %2331 = arith.mulf %2328, %2330 : vector<28x128xf32>
    %2332 = arith.addf %2320, %2331 : vector<28x128xf32>
    %2333 = vector.extract_strided_slice %2327 {offsets = [1, 0], sizes = [28, 128], strides = [1, 1]} : vector<30x128xf32> to vector<28x128xf32>
    %2334 = vector.shape_cast %7 : vector<128xf32> to vector<1x128xf32>
    %2335 = vector.broadcast %2334 : vector<1x128xf32> to vector<28x128xf32>
    %2336 = arith.mulf %2333, %2335 : vector<28x128xf32>
    %2337 = arith.addf %2332, %2336 : vector<28x128xf32>
    %2338 = vector.extract_strided_slice %2327 {offsets = [2, 0], sizes = [28, 128], strides = [1, 1]} : vector<30x128xf32> to vector<28x128xf32>
    %2339 = vector.shape_cast %11 : vector<128xf32> to vector<1x128xf32>
    %2340 = vector.broadcast %2339 : vector<1x128xf32> to vector<28x128xf32>
    %2341 = arith.mulf %2338, %2340 : vector<28x128xf32>
    %2342 = arith.addf %2337, %2341 : vector<28x128xf32>
    %c0_752 = arith.constant 0 : index
    %c1_753 = arith.constant 1 : index
    %2343 = arith.index_cast %2322 : i32 to index
    %c0_754 = arith.constant 0 : index
    %c0_755 = arith.constant 0 : index
    %2344 = vector.load %arg1[%c0_752, %c1_753, %2343, %c0_754, %c0_755] : memref<2x2x30x30x128xf32, #tpu.memory_space<vmem>>, vector<1x1x1x30x128xf32>
    %2345 = vector.shape_cast %2344 : vector<1x1x1x30x128xf32> to vector<30x128xf32>
    %cst_756 = arith.constant 0.000000e+00 : f32
    %2346 = vector.broadcast %cst_756 : f32 to vector<30x128xf32>
    %2347 = arith.maximumf %2345, %2346 : vector<30x128xf32>
    %2348 = vector.extract_strided_slice %2347 {offsets = [0, 0], sizes = [28, 128], strides = [1, 1]} : vector<30x128xf32> to vector<28x128xf32>
    %2349 = vector.shape_cast %5 : vector<128xf32> to vector<1x128xf32>
    %2350 = vector.broadcast %2349 : vector<1x128xf32> to vector<28x128xf32>
    %2351 = arith.mulf %2348, %2350 : vector<28x128xf32>
    %2352 = arith.addf %2342, %2351 : vector<28x128xf32>
    %2353 = vector.extract_strided_slice %2347 {offsets = [1, 0], sizes = [28, 128], strides = [1, 1]} : vector<30x128xf32> to vector<28x128xf32>
    %2354 = vector.shape_cast %9 : vector<128xf32> to vector<1x128xf32>
    %2355 = vector.broadcast %2354 : vector<1x128xf32> to vector<28x128xf32>
    %2356 = arith.mulf %2353, %2355 : vector<28x128xf32>
    %2357 = arith.addf %2352, %2356 : vector<28x128xf32>
    %c12_i32_757 = arith.constant 12 : i32
    %2358 = arith.addi %0, %c12_i32_757 : i32
    %c0_i32_758 = arith.constant 0 : i32
    %2359 = arith.addi %2358, %c0_i32_758 : i32
    %c1_759 = arith.constant 1 : index
    %c0_760 = arith.constant 0 : index
    %2360 = arith.index_cast %2359 : i32 to index
    %c0_761 = arith.constant 0 : index
    %c0_762 = arith.constant 0 : index
    %2361 = vector.load %arg1[%c1_759, %c0_760, %2360, %c0_761, %c0_762] : memref<2x2x30x30x128xf32, #tpu.memory_space<vmem>>, vector<1x1x1x30x128xf32>
    %2362 = vector.shape_cast %2361 : vector<1x1x1x30x128xf32> to vector<30x128xf32>
    %cst_763 = arith.constant 0.000000e+00 : f32
    %2363 = vector.broadcast %cst_763 : f32 to vector<30x128xf32>
    %2364 = arith.maximumf %2362, %2363 : vector<30x128xf32>
    %2365 = vector.extract_strided_slice %2364 {offsets = [0, 0], sizes = [28, 128], strides = [1, 1]} : vector<30x128xf32> to vector<28x128xf32>
    %2366 = vector.shape_cast %13 : vector<128xf32> to vector<1x128xf32>
    %2367 = vector.broadcast %2366 : vector<1x128xf32> to vector<28x128xf32>
    %2368 = arith.mulf %2365, %2367 : vector<28x128xf32>
    %2369 = arith.addf %2357, %2368 : vector<28x128xf32>
    %2370 = vector.extract_strided_slice %2364 {offsets = [1, 0], sizes = [28, 128], strides = [1, 1]} : vector<30x128xf32> to vector<28x128xf32>
    %2371 = vector.shape_cast %17 : vector<128xf32> to vector<1x128xf32>
    %2372 = vector.broadcast %2371 : vector<1x128xf32> to vector<28x128xf32>
    %2373 = arith.mulf %2370, %2372 : vector<28x128xf32>
    %2374 = arith.addf %2369, %2373 : vector<28x128xf32>
    %2375 = vector.extract_strided_slice %2364 {offsets = [2, 0], sizes = [28, 128], strides = [1, 1]} : vector<30x128xf32> to vector<28x128xf32>
    %2376 = vector.shape_cast %21 : vector<128xf32> to vector<1x128xf32>
    %2377 = vector.broadcast %2376 : vector<1x128xf32> to vector<28x128xf32>
    %2378 = arith.mulf %2375, %2377 : vector<28x128xf32>
    %2379 = arith.addf %2374, %2378 : vector<28x128xf32>
    %c1_764 = arith.constant 1 : index
    %c1_765 = arith.constant 1 : index
    %2380 = arith.index_cast %2359 : i32 to index
    %c0_766 = arith.constant 0 : index
    %c0_767 = arith.constant 0 : index
    %2381 = vector.load %arg1[%c1_764, %c1_765, %2380, %c0_766, %c0_767] : memref<2x2x30x30x128xf32, #tpu.memory_space<vmem>>, vector<1x1x1x30x128xf32>
    %2382 = vector.shape_cast %2381 : vector<1x1x1x30x128xf32> to vector<30x128xf32>
    %cst_768 = arith.constant 0.000000e+00 : f32
    %2383 = vector.broadcast %cst_768 : f32 to vector<30x128xf32>
    %2384 = arith.maximumf %2382, %2383 : vector<30x128xf32>
    %2385 = vector.extract_strided_slice %2384 {offsets = [0, 0], sizes = [28, 128], strides = [1, 1]} : vector<30x128xf32> to vector<28x128xf32>
    %2386 = vector.shape_cast %15 : vector<128xf32> to vector<1x128xf32>
    %2387 = vector.broadcast %2386 : vector<1x128xf32> to vector<28x128xf32>
    %2388 = arith.mulf %2385, %2387 : vector<28x128xf32>
    %2389 = arith.addf %2379, %2388 : vector<28x128xf32>
    %2390 = vector.extract_strided_slice %2384 {offsets = [1, 0], sizes = [28, 128], strides = [1, 1]} : vector<30x128xf32> to vector<28x128xf32>
    %2391 = vector.shape_cast %19 : vector<128xf32> to vector<1x128xf32>
    %2392 = vector.broadcast %2391 : vector<1x128xf32> to vector<28x128xf32>
    %2393 = arith.mulf %2390, %2392 : vector<28x128xf32>
    %2394 = arith.addf %2389, %2393 : vector<28x128xf32>
    %c12_i32_769 = arith.constant 12 : i32
    %2395 = arith.addi %0, %c12_i32_769 : i32
    %c1_i32_770 = arith.constant 1 : i32
    %2396 = arith.addi %2395, %c1_i32_770 : i32
    %c0_771 = arith.constant 0 : index
    %c0_772 = arith.constant 0 : index
    %2397 = arith.index_cast %2396 : i32 to index
    %c0_773 = arith.constant 0 : index
    %c0_774 = arith.constant 0 : index
    %2398 = vector.load %arg1[%c0_771, %c0_772, %2397, %c0_773, %c0_774] : memref<2x2x30x30x128xf32, #tpu.memory_space<vmem>>, vector<1x1x1x30x128xf32>
    %2399 = vector.shape_cast %2398 : vector<1x1x1x30x128xf32> to vector<30x128xf32>
    %cst_775 = arith.constant 0.000000e+00 : f32
    %2400 = vector.broadcast %cst_775 : f32 to vector<30x128xf32>
    %2401 = arith.maximumf %2399, %2400 : vector<30x128xf32>
    %2402 = vector.extract_strided_slice %2401 {offsets = [0, 0], sizes = [28, 128], strides = [1, 1]} : vector<30x128xf32> to vector<28x128xf32>
    %2403 = vector.shape_cast %23 : vector<128xf32> to vector<1x128xf32>
    %2404 = vector.broadcast %2403 : vector<1x128xf32> to vector<28x128xf32>
    %2405 = arith.mulf %2402, %2404 : vector<28x128xf32>
    %2406 = arith.addf %2394, %2405 : vector<28x128xf32>
    %2407 = vector.extract_strided_slice %2401 {offsets = [1, 0], sizes = [28, 128], strides = [1, 1]} : vector<30x128xf32> to vector<28x128xf32>
    %2408 = vector.shape_cast %27 : vector<128xf32> to vector<1x128xf32>
    %2409 = vector.broadcast %2408 : vector<1x128xf32> to vector<28x128xf32>
    %2410 = arith.mulf %2407, %2409 : vector<28x128xf32>
    %2411 = arith.addf %2406, %2410 : vector<28x128xf32>
    %2412 = vector.extract_strided_slice %2401 {offsets = [2, 0], sizes = [28, 128], strides = [1, 1]} : vector<30x128xf32> to vector<28x128xf32>
    %2413 = vector.shape_cast %31 : vector<128xf32> to vector<1x128xf32>
    %2414 = vector.broadcast %2413 : vector<1x128xf32> to vector<28x128xf32>
    %2415 = arith.mulf %2412, %2414 : vector<28x128xf32>
    %2416 = arith.addf %2411, %2415 : vector<28x128xf32>
    %c0_776 = arith.constant 0 : index
    %c1_777 = arith.constant 1 : index
    %2417 = arith.index_cast %2396 : i32 to index
    %c0_778 = arith.constant 0 : index
    %c0_779 = arith.constant 0 : index
    %2418 = vector.load %arg1[%c0_776, %c1_777, %2417, %c0_778, %c0_779] : memref<2x2x30x30x128xf32, #tpu.memory_space<vmem>>, vector<1x1x1x30x128xf32>
    %2419 = vector.shape_cast %2418 : vector<1x1x1x30x128xf32> to vector<30x128xf32>
    %cst_780 = arith.constant 0.000000e+00 : f32
    %2420 = vector.broadcast %cst_780 : f32 to vector<30x128xf32>
    %2421 = arith.maximumf %2419, %2420 : vector<30x128xf32>
    %2422 = vector.extract_strided_slice %2421 {offsets = [0, 0], sizes = [28, 128], strides = [1, 1]} : vector<30x128xf32> to vector<28x128xf32>
    %2423 = vector.shape_cast %25 : vector<128xf32> to vector<1x128xf32>
    %2424 = vector.broadcast %2423 : vector<1x128xf32> to vector<28x128xf32>
    %2425 = arith.mulf %2422, %2424 : vector<28x128xf32>
    %2426 = arith.addf %2416, %2425 : vector<28x128xf32>
    %2427 = vector.extract_strided_slice %2421 {offsets = [1, 0], sizes = [28, 128], strides = [1, 1]} : vector<30x128xf32> to vector<28x128xf32>
    %2428 = vector.shape_cast %29 : vector<128xf32> to vector<1x128xf32>
    %2429 = vector.broadcast %2428 : vector<1x128xf32> to vector<28x128xf32>
    %2430 = arith.mulf %2427, %2429 : vector<28x128xf32>
    %2431 = arith.addf %2426, %2430 : vector<28x128xf32>
    %c12_i32_781 = arith.constant 12 : i32
    %2432 = arith.addi %0, %c12_i32_781 : i32
    %c1_i32_782 = arith.constant 1 : i32
    %2433 = arith.addi %2432, %c1_i32_782 : i32
    %c1_783 = arith.constant 1 : index
    %c0_784 = arith.constant 0 : index
    %2434 = arith.index_cast %2433 : i32 to index
    %c0_785 = arith.constant 0 : index
    %c0_786 = arith.constant 0 : index
    %2435 = vector.load %arg1[%c1_783, %c0_784, %2434, %c0_785, %c0_786] : memref<2x2x30x30x128xf32, #tpu.memory_space<vmem>>, vector<1x1x1x30x128xf32>
    %2436 = vector.shape_cast %2435 : vector<1x1x1x30x128xf32> to vector<30x128xf32>
    %cst_787 = arith.constant 0.000000e+00 : f32
    %2437 = vector.broadcast %cst_787 : f32 to vector<30x128xf32>
    %2438 = arith.maximumf %2436, %2437 : vector<30x128xf32>
    %2439 = vector.extract_strided_slice %2438 {offsets = [0, 0], sizes = [28, 128], strides = [1, 1]} : vector<30x128xf32> to vector<28x128xf32>
    %2440 = vector.shape_cast %33 : vector<128xf32> to vector<1x128xf32>
    %2441 = vector.broadcast %2440 : vector<1x128xf32> to vector<28x128xf32>
    %2442 = arith.mulf %2439, %2441 : vector<28x128xf32>
    %2443 = arith.addf %2431, %2442 : vector<28x128xf32>
    %2444 = vector.extract_strided_slice %2438 {offsets = [1, 0], sizes = [28, 128], strides = [1, 1]} : vector<30x128xf32> to vector<28x128xf32>
    %2445 = vector.shape_cast %37 : vector<128xf32> to vector<1x128xf32>
    %2446 = vector.broadcast %2445 : vector<1x128xf32> to vector<28x128xf32>
    %2447 = arith.mulf %2444, %2446 : vector<28x128xf32>
    %2448 = arith.addf %2443, %2447 : vector<28x128xf32>
    %2449 = vector.extract_strided_slice %2438 {offsets = [2, 0], sizes = [28, 128], strides = [1, 1]} : vector<30x128xf32> to vector<28x128xf32>
    %2450 = vector.shape_cast %41 : vector<128xf32> to vector<1x128xf32>
    %2451 = vector.broadcast %2450 : vector<1x128xf32> to vector<28x128xf32>
    %2452 = arith.mulf %2449, %2451 : vector<28x128xf32>
    %2453 = arith.addf %2448, %2452 : vector<28x128xf32>
    %c1_788 = arith.constant 1 : index
    %c1_789 = arith.constant 1 : index
    %2454 = arith.index_cast %2433 : i32 to index
    %c0_790 = arith.constant 0 : index
    %c0_791 = arith.constant 0 : index
    %2455 = vector.load %arg1[%c1_788, %c1_789, %2454, %c0_790, %c0_791] : memref<2x2x30x30x128xf32, #tpu.memory_space<vmem>>, vector<1x1x1x30x128xf32>
    %2456 = vector.shape_cast %2455 : vector<1x1x1x30x128xf32> to vector<30x128xf32>
    %cst_792 = arith.constant 0.000000e+00 : f32
    %2457 = vector.broadcast %cst_792 : f32 to vector<30x128xf32>
    %2458 = arith.maximumf %2456, %2457 : vector<30x128xf32>
    %2459 = vector.extract_strided_slice %2458 {offsets = [0, 0], sizes = [28, 128], strides = [1, 1]} : vector<30x128xf32> to vector<28x128xf32>
    %2460 = vector.shape_cast %35 : vector<128xf32> to vector<1x128xf32>
    %2461 = vector.broadcast %2460 : vector<1x128xf32> to vector<28x128xf32>
    %2462 = arith.mulf %2459, %2461 : vector<28x128xf32>
    %2463 = arith.addf %2453, %2462 : vector<28x128xf32>
    %2464 = vector.extract_strided_slice %2458 {offsets = [1, 0], sizes = [28, 128], strides = [1, 1]} : vector<30x128xf32> to vector<28x128xf32>
    %2465 = vector.shape_cast %39 : vector<128xf32> to vector<1x128xf32>
    %2466 = vector.broadcast %2465 : vector<1x128xf32> to vector<28x128xf32>
    %2467 = arith.mulf %2464, %2466 : vector<28x128xf32>
    %2468 = arith.addf %2463, %2467 : vector<28x128xf32>
    %c12_i32_793 = arith.constant 12 : i32
    %2469 = arith.addi %0, %c12_i32_793 : i32
    %c2_i32_794 = arith.constant 2 : i32
    %2470 = arith.addi %2469, %c2_i32_794 : i32
    %c0_795 = arith.constant 0 : index
    %c0_796 = arith.constant 0 : index
    %2471 = arith.index_cast %2470 : i32 to index
    %c0_797 = arith.constant 0 : index
    %c0_798 = arith.constant 0 : index
    %2472 = vector.load %arg1[%c0_795, %c0_796, %2471, %c0_797, %c0_798] : memref<2x2x30x30x128xf32, #tpu.memory_space<vmem>>, vector<1x1x1x30x128xf32>
    %2473 = vector.shape_cast %2472 : vector<1x1x1x30x128xf32> to vector<30x128xf32>
    %cst_799 = arith.constant 0.000000e+00 : f32
    %2474 = vector.broadcast %cst_799 : f32 to vector<30x128xf32>
    %2475 = arith.maximumf %2473, %2474 : vector<30x128xf32>
    %2476 = vector.extract_strided_slice %2475 {offsets = [0, 0], sizes = [28, 128], strides = [1, 1]} : vector<30x128xf32> to vector<28x128xf32>
    %2477 = vector.shape_cast %43 : vector<128xf32> to vector<1x128xf32>
    %2478 = vector.broadcast %2477 : vector<1x128xf32> to vector<28x128xf32>
    %2479 = arith.mulf %2476, %2478 : vector<28x128xf32>
    %2480 = arith.addf %2468, %2479 : vector<28x128xf32>
    %2481 = vector.extract_strided_slice %2475 {offsets = [1, 0], sizes = [28, 128], strides = [1, 1]} : vector<30x128xf32> to vector<28x128xf32>
    %2482 = vector.shape_cast %47 : vector<128xf32> to vector<1x128xf32>
    %2483 = vector.broadcast %2482 : vector<1x128xf32> to vector<28x128xf32>
    %2484 = arith.mulf %2481, %2483 : vector<28x128xf32>
    %2485 = arith.addf %2480, %2484 : vector<28x128xf32>
    %2486 = vector.extract_strided_slice %2475 {offsets = [2, 0], sizes = [28, 128], strides = [1, 1]} : vector<30x128xf32> to vector<28x128xf32>
    %2487 = vector.shape_cast %51 : vector<128xf32> to vector<1x128xf32>
    %2488 = vector.broadcast %2487 : vector<1x128xf32> to vector<28x128xf32>
    %2489 = arith.mulf %2486, %2488 : vector<28x128xf32>
    %2490 = arith.addf %2485, %2489 : vector<28x128xf32>
    %c0_800 = arith.constant 0 : index
    %c1_801 = arith.constant 1 : index
    %2491 = arith.index_cast %2470 : i32 to index
    %c0_802 = arith.constant 0 : index
    %c0_803 = arith.constant 0 : index
    %2492 = vector.load %arg1[%c0_800, %c1_801, %2491, %c0_802, %c0_803] : memref<2x2x30x30x128xf32, #tpu.memory_space<vmem>>, vector<1x1x1x30x128xf32>
    %2493 = vector.shape_cast %2492 : vector<1x1x1x30x128xf32> to vector<30x128xf32>
    %cst_804 = arith.constant 0.000000e+00 : f32
    %2494 = vector.broadcast %cst_804 : f32 to vector<30x128xf32>
    %2495 = arith.maximumf %2493, %2494 : vector<30x128xf32>
    %2496 = vector.extract_strided_slice %2495 {offsets = [0, 0], sizes = [28, 128], strides = [1, 1]} : vector<30x128xf32> to vector<28x128xf32>
    %2497 = vector.shape_cast %45 : vector<128xf32> to vector<1x128xf32>
    %2498 = vector.broadcast %2497 : vector<1x128xf32> to vector<28x128xf32>
    %2499 = arith.mulf %2496, %2498 : vector<28x128xf32>
    %2500 = arith.addf %2490, %2499 : vector<28x128xf32>
    %2501 = vector.extract_strided_slice %2495 {offsets = [1, 0], sizes = [28, 128], strides = [1, 1]} : vector<30x128xf32> to vector<28x128xf32>
    %2502 = vector.shape_cast %49 : vector<128xf32> to vector<1x128xf32>
    %2503 = vector.broadcast %2502 : vector<1x128xf32> to vector<28x128xf32>
    %2504 = arith.mulf %2501, %2503 : vector<28x128xf32>
    %2505 = arith.addf %2500, %2504 : vector<28x128xf32>
    %c12 = arith.constant 12 : index
    %c0_805 = arith.constant 0 : index
    %c0_806 = arith.constant 0 : index
    %2506 = vector.load %arg3[%c12, %c0_805, %c0_806] : memref<14x28x128xf32, #tpu.memory_space<vmem>>, vector<1x28x128xf32>
    %2507 = vector.shape_cast %2506 : vector<1x28x128xf32> to vector<28x128xf32>
    %2508 = vector.shape_cast %2505 : vector<28x128xf32> to vector<1x28x128xf32>
    tpu.vector_store %arg3[%c12, %c0_805, %c0_806], %2508 {strides = array<i32>} : memref<14x28x128xf32, #tpu.memory_space<vmem>>, vector<1x28x128xf32>,
    %cst_807 = arith.constant 0.000000e+00 : f32
    %2509 = vector.broadcast %cst_807 : f32 to vector<28x128xf32>
    %c13_i32 = arith.constant 13 : i32
    %2510 = arith.addi %0, %c13_i32 : i32
    %c0_i32_808 = arith.constant 0 : i32
    %2511 = arith.addi %2510, %c0_i32_808 : i32
    %c0_809 = arith.constant 0 : index
    %c0_810 = arith.constant 0 : index
    %2512 = arith.index_cast %2511 : i32 to index
    %c0_811 = arith.constant 0 : index
    %c0_812 = arith.constant 0 : index
    %2513 = vector.load %arg1[%c0_809, %c0_810, %2512, %c0_811, %c0_812] : memref<2x2x30x30x128xf32, #tpu.memory_space<vmem>>, vector<1x1x1x30x128xf32>
    %2514 = vector.shape_cast %2513 : vector<1x1x1x30x128xf32> to vector<30x128xf32>
    %cst_813 = arith.constant 0.000000e+00 : f32
    %2515 = vector.broadcast %cst_813 : f32 to vector<30x128xf32>
    %2516 = arith.maximumf %2514, %2515 : vector<30x128xf32>
    %2517 = vector.extract_strided_slice %2516 {offsets = [0, 0], sizes = [28, 128], strides = [1, 1]} : vector<30x128xf32> to vector<28x128xf32>
    %2518 = vector.shape_cast %3 : vector<128xf32> to vector<1x128xf32>
    %2519 = vector.broadcast %2518 : vector<1x128xf32> to vector<28x128xf32>
    %2520 = arith.mulf %2517, %2519 : vector<28x128xf32>
    %2521 = arith.addf %2509, %2520 : vector<28x128xf32>
    %2522 = vector.extract_strided_slice %2516 {offsets = [1, 0], sizes = [28, 128], strides = [1, 1]} : vector<30x128xf32> to vector<28x128xf32>
    %2523 = vector.shape_cast %7 : vector<128xf32> to vector<1x128xf32>
    %2524 = vector.broadcast %2523 : vector<1x128xf32> to vector<28x128xf32>
    %2525 = arith.mulf %2522, %2524 : vector<28x128xf32>
    %2526 = arith.addf %2521, %2525 : vector<28x128xf32>
    %2527 = vector.extract_strided_slice %2516 {offsets = [2, 0], sizes = [28, 128], strides = [1, 1]} : vector<30x128xf32> to vector<28x128xf32>
    %2528 = vector.shape_cast %11 : vector<128xf32> to vector<1x128xf32>
    %2529 = vector.broadcast %2528 : vector<1x128xf32> to vector<28x128xf32>
    %2530 = arith.mulf %2527, %2529 : vector<28x128xf32>
    %2531 = arith.addf %2526, %2530 : vector<28x128xf32>
    %c0_814 = arith.constant 0 : index
    %c1_815 = arith.constant 1 : index
    %2532 = arith.index_cast %2511 : i32 to index
    %c0_816 = arith.constant 0 : index
    %c0_817 = arith.constant 0 : index
    %2533 = vector.load %arg1[%c0_814, %c1_815, %2532, %c0_816, %c0_817] : memref<2x2x30x30x128xf32, #tpu.memory_space<vmem>>, vector<1x1x1x30x128xf32>
    %2534 = vector.shape_cast %2533 : vector<1x1x1x30x128xf32> to vector<30x128xf32>
    %cst_818 = arith.constant 0.000000e+00 : f32
    %2535 = vector.broadcast %cst_818 : f32 to vector<30x128xf32>
    %2536 = arith.maximumf %2534, %2535 : vector<30x128xf32>
    %2537 = vector.extract_strided_slice %2536 {offsets = [0, 0], sizes = [28, 128], strides = [1, 1]} : vector<30x128xf32> to vector<28x128xf32>
    %2538 = vector.shape_cast %5 : vector<128xf32> to vector<1x128xf32>
    %2539 = vector.broadcast %2538 : vector<1x128xf32> to vector<28x128xf32>
    %2540 = arith.mulf %2537, %2539 : vector<28x128xf32>
    %2541 = arith.addf %2531, %2540 : vector<28x128xf32>
    %2542 = vector.extract_strided_slice %2536 {offsets = [1, 0], sizes = [28, 128], strides = [1, 1]} : vector<30x128xf32> to vector<28x128xf32>
    %2543 = vector.shape_cast %9 : vector<128xf32> to vector<1x128xf32>
    %2544 = vector.broadcast %2543 : vector<1x128xf32> to vector<28x128xf32>
    %2545 = arith.mulf %2542, %2544 : vector<28x128xf32>
    %2546 = arith.addf %2541, %2545 : vector<28x128xf32>
    %c13_i32_819 = arith.constant 13 : i32
    %2547 = arith.addi %0, %c13_i32_819 : i32
    %c0_i32_820 = arith.constant 0 : i32
    %2548 = arith.addi %2547, %c0_i32_820 : i32
    %c1_821 = arith.constant 1 : index
    %c0_822 = arith.constant 0 : index
    %2549 = arith.index_cast %2548 : i32 to index
    %c0_823 = arith.constant 0 : index
    %c0_824 = arith.constant 0 : index
    %2550 = vector.load %arg1[%c1_821, %c0_822, %2549, %c0_823, %c0_824] : memref<2x2x30x30x128xf32, #tpu.memory_space<vmem>>, vector<1x1x1x30x128xf32>
    %2551 = vector.shape_cast %2550 : vector<1x1x1x30x128xf32> to vector<30x128xf32>
    %cst_825 = arith.constant 0.000000e+00 : f32
    %2552 = vector.broadcast %cst_825 : f32 to vector<30x128xf32>
    %2553 = arith.maximumf %2551, %2552 : vector<30x128xf32>
    %2554 = vector.extract_strided_slice %2553 {offsets = [0, 0], sizes = [28, 128], strides = [1, 1]} : vector<30x128xf32> to vector<28x128xf32>
    %2555 = vector.shape_cast %13 : vector<128xf32> to vector<1x128xf32>
    %2556 = vector.broadcast %2555 : vector<1x128xf32> to vector<28x128xf32>
    %2557 = arith.mulf %2554, %2556 : vector<28x128xf32>
    %2558 = arith.addf %2546, %2557 : vector<28x128xf32>
    %2559 = vector.extract_strided_slice %2553 {offsets = [1, 0], sizes = [28, 128], strides = [1, 1]} : vector<30x128xf32> to vector<28x128xf32>
    %2560 = vector.shape_cast %17 : vector<128xf32> to vector<1x128xf32>
    %2561 = vector.broadcast %2560 : vector<1x128xf32> to vector<28x128xf32>
    %2562 = arith.mulf %2559, %2561 : vector<28x128xf32>
    %2563 = arith.addf %2558, %2562 : vector<28x128xf32>
    %2564 = vector.extract_strided_slice %2553 {offsets = [2, 0], sizes = [28, 128], strides = [1, 1]} : vector<30x128xf32> to vector<28x128xf32>
    %2565 = vector.shape_cast %21 : vector<128xf32> to vector<1x128xf32>
    %2566 = vector.broadcast %2565 : vector<1x128xf32> to vector<28x128xf32>
    %2567 = arith.mulf %2564, %2566 : vector<28x128xf32>
    %2568 = arith.addf %2563, %2567 : vector<28x128xf32>
    %c1_826 = arith.constant 1 : index
    %c1_827 = arith.constant 1 : index
    %2569 = arith.index_cast %2548 : i32 to index
    %c0_828 = arith.constant 0 : index
    %c0_829 = arith.constant 0 : index
    %2570 = vector.load %arg1[%c1_826, %c1_827, %2569, %c0_828, %c0_829] : memref<2x2x30x30x128xf32, #tpu.memory_space<vmem>>, vector<1x1x1x30x128xf32>
    %2571 = vector.shape_cast %2570 : vector<1x1x1x30x128xf32> to vector<30x128xf32>
    %cst_830 = arith.constant 0.000000e+00 : f32
    %2572 = vector.broadcast %cst_830 : f32 to vector<30x128xf32>
    %2573 = arith.maximumf %2571, %2572 : vector<30x128xf32>
    %2574 = vector.extract_strided_slice %2573 {offsets = [0, 0], sizes = [28, 128], strides = [1, 1]} : vector<30x128xf32> to vector<28x128xf32>
    %2575 = vector.shape_cast %15 : vector<128xf32> to vector<1x128xf32>
    %2576 = vector.broadcast %2575 : vector<1x128xf32> to vector<28x128xf32>
    %2577 = arith.mulf %2574, %2576 : vector<28x128xf32>
    %2578 = arith.addf %2568, %2577 : vector<28x128xf32>
    %2579 = vector.extract_strided_slice %2573 {offsets = [1, 0], sizes = [28, 128], strides = [1, 1]} : vector<30x128xf32> to vector<28x128xf32>
    %2580 = vector.shape_cast %19 : vector<128xf32> to vector<1x128xf32>
    %2581 = vector.broadcast %2580 : vector<1x128xf32> to vector<28x128xf32>
    %2582 = arith.mulf %2579, %2581 : vector<28x128xf32>
    %2583 = arith.addf %2578, %2582 : vector<28x128xf32>
    %c13_i32_831 = arith.constant 13 : i32
    %2584 = arith.addi %0, %c13_i32_831 : i32
    %c1_i32_832 = arith.constant 1 : i32
    %2585 = arith.addi %2584, %c1_i32_832 : i32
    %c0_833 = arith.constant 0 : index
    %c0_834 = arith.constant 0 : index
    %2586 = arith.index_cast %2585 : i32 to index
    %c0_835 = arith.constant 0 : index
    %c0_836 = arith.constant 0 : index
    %2587 = vector.load %arg1[%c0_833, %c0_834, %2586, %c0_835, %c0_836] : memref<2x2x30x30x128xf32, #tpu.memory_space<vmem>>, vector<1x1x1x30x128xf32>
    %2588 = vector.shape_cast %2587 : vector<1x1x1x30x128xf32> to vector<30x128xf32>
    %cst_837 = arith.constant 0.000000e+00 : f32
    %2589 = vector.broadcast %cst_837 : f32 to vector<30x128xf32>
    %2590 = arith.maximumf %2588, %2589 : vector<30x128xf32>
    %2591 = vector.extract_strided_slice %2590 {offsets = [0, 0], sizes = [28, 128], strides = [1, 1]} : vector<30x128xf32> to vector<28x128xf32>
    %2592 = vector.shape_cast %23 : vector<128xf32> to vector<1x128xf32>
    %2593 = vector.broadcast %2592 : vector<1x128xf32> to vector<28x128xf32>
    %2594 = arith.mulf %2591, %2593 : vector<28x128xf32>
    %2595 = arith.addf %2583, %2594 : vector<28x128xf32>
    %2596 = vector.extract_strided_slice %2590 {offsets = [1, 0], sizes = [28, 128], strides = [1, 1]} : vector<30x128xf32> to vector<28x128xf32>
    %2597 = vector.shape_cast %27 : vector<128xf32> to vector<1x128xf32>
    %2598 = vector.broadcast %2597 : vector<1x128xf32> to vector<28x128xf32>
    %2599 = arith.mulf %2596, %2598 : vector<28x128xf32>
    %2600 = arith.addf %2595, %2599 : vector<28x128xf32>
    %2601 = vector.extract_strided_slice %2590 {offsets = [2, 0], sizes = [28, 128], strides = [1, 1]} : vector<30x128xf32> to vector<28x128xf32>
    %2602 = vector.shape_cast %31 : vector<128xf32> to vector<1x128xf32>
    %2603 = vector.broadcast %2602 : vector<1x128xf32> to vector<28x128xf32>
    %2604 = arith.mulf %2601, %2603 : vector<28x128xf32>
    %2605 = arith.addf %2600, %2604 : vector<28x128xf32>
    %c0_838 = arith.constant 0 : index
    %c1_839 = arith.constant 1 : index
    %2606 = arith.index_cast %2585 : i32 to index
    %c0_840 = arith.constant 0 : index
    %c0_841 = arith.constant 0 : index
    %2607 = vector.load %arg1[%c0_838, %c1_839, %2606, %c0_840, %c0_841] : memref<2x2x30x30x128xf32, #tpu.memory_space<vmem>>, vector<1x1x1x30x128xf32>
    %2608 = vector.shape_cast %2607 : vector<1x1x1x30x128xf32> to vector<30x128xf32>
    %cst_842 = arith.constant 0.000000e+00 : f32
    %2609 = vector.broadcast %cst_842 : f32 to vector<30x128xf32>
    %2610 = arith.maximumf %2608, %2609 : vector<30x128xf32>
    %2611 = vector.extract_strided_slice %2610 {offsets = [0, 0], sizes = [28, 128], strides = [1, 1]} : vector<30x128xf32> to vector<28x128xf32>
    %2612 = vector.shape_cast %25 : vector<128xf32> to vector<1x128xf32>
    %2613 = vector.broadcast %2612 : vector<1x128xf32> to vector<28x128xf32>
    %2614 = arith.mulf %2611, %2613 : vector<28x128xf32>
    %2615 = arith.addf %2605, %2614 : vector<28x128xf32>
    %2616 = vector.extract_strided_slice %2610 {offsets = [1, 0], sizes = [28, 128], strides = [1, 1]} : vector<30x128xf32> to vector<28x128xf32>
    %2617 = vector.shape_cast %29 : vector<128xf32> to vector<1x128xf32>
    %2618 = vector.broadcast %2617 : vector<1x128xf32> to vector<28x128xf32>
    %2619 = arith.mulf %2616, %2618 : vector<28x128xf32>
    %2620 = arith.addf %2615, %2619 : vector<28x128xf32>
    %c13_i32_843 = arith.constant 13 : i32
    %2621 = arith.addi %0, %c13_i32_843 : i32
    %c1_i32_844 = arith.constant 1 : i32
    %2622 = arith.addi %2621, %c1_i32_844 : i32
    %c1_845 = arith.constant 1 : index
    %c0_846 = arith.constant 0 : index
    %2623 = arith.index_cast %2622 : i32 to index
    %c0_847 = arith.constant 0 : index
    %c0_848 = arith.constant 0 : index
    %2624 = vector.load %arg1[%c1_845, %c0_846, %2623, %c0_847, %c0_848] : memref<2x2x30x30x128xf32, #tpu.memory_space<vmem>>, vector<1x1x1x30x128xf32>
    %2625 = vector.shape_cast %2624 : vector<1x1x1x30x128xf32> to vector<30x128xf32>
    %cst_849 = arith.constant 0.000000e+00 : f32
    %2626 = vector.broadcast %cst_849 : f32 to vector<30x128xf32>
    %2627 = arith.maximumf %2625, %2626 : vector<30x128xf32>
    %2628 = vector.extract_strided_slice %2627 {offsets = [0, 0], sizes = [28, 128], strides = [1, 1]} : vector<30x128xf32> to vector<28x128xf32>
    %2629 = vector.shape_cast %33 : vector<128xf32> to vector<1x128xf32>
    %2630 = vector.broadcast %2629 : vector<1x128xf32> to vector<28x128xf32>
    %2631 = arith.mulf %2628, %2630 : vector<28x128xf32>
    %2632 = arith.addf %2620, %2631 : vector<28x128xf32>
    %2633 = vector.extract_strided_slice %2627 {offsets = [1, 0], sizes = [28, 128], strides = [1, 1]} : vector<30x128xf32> to vector<28x128xf32>
    %2634 = vector.shape_cast %37 : vector<128xf32> to vector<1x128xf32>
    %2635 = vector.broadcast %2634 : vector<1x128xf32> to vector<28x128xf32>
    %2636 = arith.mulf %2633, %2635 : vector<28x128xf32>
    %2637 = arith.addf %2632, %2636 : vector<28x128xf32>
    %2638 = vector.extract_strided_slice %2627 {offsets = [2, 0], sizes = [28, 128], strides = [1, 1]} : vector<30x128xf32> to vector<28x128xf32>
    %2639 = vector.shape_cast %41 : vector<128xf32> to vector<1x128xf32>
    %2640 = vector.broadcast %2639 : vector<1x128xf32> to vector<28x128xf32>
    %2641 = arith.mulf %2638, %2640 : vector<28x128xf32>
    %2642 = arith.addf %2637, %2641 : vector<28x128xf32>
    %c1_850 = arith.constant 1 : index
    %c1_851 = arith.constant 1 : index
    %2643 = arith.index_cast %2622 : i32 to index
    %c0_852 = arith.constant 0 : index
    %c0_853 = arith.constant 0 : index
    %2644 = vector.load %arg1[%c1_850, %c1_851, %2643, %c0_852, %c0_853] : memref<2x2x30x30x128xf32, #tpu.memory_space<vmem>>, vector<1x1x1x30x128xf32>
    %2645 = vector.shape_cast %2644 : vector<1x1x1x30x128xf32> to vector<30x128xf32>
    %cst_854 = arith.constant 0.000000e+00 : f32
    %2646 = vector.broadcast %cst_854 : f32 to vector<30x128xf32>
    %2647 = arith.maximumf %2645, %2646 : vector<30x128xf32>
    %2648 = vector.extract_strided_slice %2647 {offsets = [0, 0], sizes = [28, 128], strides = [1, 1]} : vector<30x128xf32> to vector<28x128xf32>
    %2649 = vector.shape_cast %35 : vector<128xf32> to vector<1x128xf32>
    %2650 = vector.broadcast %2649 : vector<1x128xf32> to vector<28x128xf32>
    %2651 = arith.mulf %2648, %2650 : vector<28x128xf32>
    %2652 = arith.addf %2642, %2651 : vector<28x128xf32>
    %2653 = vector.extract_strided_slice %2647 {offsets = [1, 0], sizes = [28, 128], strides = [1, 1]} : vector<30x128xf32> to vector<28x128xf32>
    %2654 = vector.shape_cast %39 : vector<128xf32> to vector<1x128xf32>
    %2655 = vector.broadcast %2654 : vector<1x128xf32> to vector<28x128xf32>
    %2656 = arith.mulf %2653, %2655 : vector<28x128xf32>
    %2657 = arith.addf %2652, %2656 : vector<28x128xf32>
    %c13_i32_855 = arith.constant 13 : i32
    %2658 = arith.addi %0, %c13_i32_855 : i32
    %c2_i32_856 = arith.constant 2 : i32
    %2659 = arith.addi %2658, %c2_i32_856 : i32
    %c0_857 = arith.constant 0 : index
    %c0_858 = arith.constant 0 : index
    %2660 = arith.index_cast %2659 : i32 to index
    %c0_859 = arith.constant 0 : index
    %c0_860 = arith.constant 0 : index
    %2661 = vector.load %arg1[%c0_857, %c0_858, %2660, %c0_859, %c0_860] : memref<2x2x30x30x128xf32, #tpu.memory_space<vmem>>, vector<1x1x1x30x128xf32>
    %2662 = vector.shape_cast %2661 : vector<1x1x1x30x128xf32> to vector<30x128xf32>
    %cst_861 = arith.constant 0.000000e+00 : f32
    %2663 = vector.broadcast %cst_861 : f32 to vector<30x128xf32>
    %2664 = arith.maximumf %2662, %2663 : vector<30x128xf32>
    %2665 = vector.extract_strided_slice %2664 {offsets = [0, 0], sizes = [28, 128], strides = [1, 1]} : vector<30x128xf32> to vector<28x128xf32>
    %2666 = vector.shape_cast %43 : vector<128xf32> to vector<1x128xf32>
    %2667 = vector.broadcast %2666 : vector<1x128xf32> to vector<28x128xf32>
    %2668 = arith.mulf %2665, %2667 : vector<28x128xf32>
    %2669 = arith.addf %2657, %2668 : vector<28x128xf32>
    %2670 = vector.extract_strided_slice %2664 {offsets = [1, 0], sizes = [28, 128], strides = [1, 1]} : vector<30x128xf32> to vector<28x128xf32>
    %2671 = vector.shape_cast %47 : vector<128xf32> to vector<1x128xf32>
    %2672 = vector.broadcast %2671 : vector<1x128xf32> to vector<28x128xf32>
    %2673 = arith.mulf %2670, %2672 : vector<28x128xf32>
    %2674 = arith.addf %2669, %2673 : vector<28x128xf32>
    %2675 = vector.extract_strided_slice %2664 {offsets = [2, 0], sizes = [28, 128], strides = [1, 1]} : vector<30x128xf32> to vector<28x128xf32>
    %2676 = vector.shape_cast %51 : vector<128xf32> to vector<1x128xf32>
    %2677 = vector.broadcast %2676 : vector<1x128xf32> to vector<28x128xf32>
    %2678 = arith.mulf %2675, %2677 : vector<28x128xf32>
    %2679 = arith.addf %2674, %2678 : vector<28x128xf32>
    %c0_862 = arith.constant 0 : index
    %c1_863 = arith.constant 1 : index
    %2680 = arith.index_cast %2659 : i32 to index
    %c0_864 = arith.constant 0 : index
    %c0_865 = arith.constant 0 : index
    %2681 = vector.load %arg1[%c0_862, %c1_863, %2680, %c0_864, %c0_865] : memref<2x2x30x30x128xf32, #tpu.memory_space<vmem>>, vector<1x1x1x30x128xf32>
    %2682 = vector.shape_cast %2681 : vector<1x1x1x30x128xf32> to vector<30x128xf32>
    %cst_866 = arith.constant 0.000000e+00 : f32
    %2683 = vector.broadcast %cst_866 : f32 to vector<30x128xf32>
    %2684 = arith.maximumf %2682, %2683 : vector<30x128xf32>
    %2685 = vector.extract_strided_slice %2684 {offsets = [0, 0], sizes = [28, 128], strides = [1, 1]} : vector<30x128xf32> to vector<28x128xf32>
    %2686 = vector.shape_cast %45 : vector<128xf32> to vector<1x128xf32>
    %2687 = vector.broadcast %2686 : vector<1x128xf32> to vector<28x128xf32>
    %2688 = arith.mulf %2685, %2687 : vector<28x128xf32>
    %2689 = arith.addf %2679, %2688 : vector<28x128xf32>
    %2690 = vector.extract_strided_slice %2684 {offsets = [1, 0], sizes = [28, 128], strides = [1, 1]} : vector<30x128xf32> to vector<28x128xf32>
    %2691 = vector.shape_cast %49 : vector<128xf32> to vector<1x128xf32>
    %2692 = vector.broadcast %2691 : vector<1x128xf32> to vector<28x128xf32>
    %2693 = arith.mulf %2690, %2692 : vector<28x128xf32>
    %2694 = arith.addf %2689, %2693 : vector<28x128xf32>
    %c13 = arith.constant 13 : index
    %c0_867 = arith.constant 0 : index
    %c0_868 = arith.constant 0 : index
    %2695 = vector.load %arg3[%c13, %c0_867, %c0_868] : memref<14x28x128xf32, #tpu.memory_space<vmem>>, vector<1x28x128xf32>
    %2696 = vector.shape_cast %2695 : vector<1x28x128xf32> to vector<28x128xf32>
    %2697 = vector.shape_cast %2694 : vector<28x128xf32> to vector<1x28x128xf32>
    tpu.vector_store %arg3[%c13, %c0_867, %c0_868], %2697 {strides = array<i32>} : memref<14x28x128xf32, #tpu.memory_space<vmem>>, vector<1x28x128xf32>,
    return
  }
  func.func @transform_0(%arg0: i32) -> (i32, i32, i32, i32, i32) {
    %c0_i32 = arith.constant 0 : i32
    %c0_i32_0 = arith.constant 0 : i32
    %c0_i32_1 = arith.constant 0 : i32
    %c0_i32_2 = arith.constant 0 : i32
    %c0_i32_3 = arith.constant 0 : i32
    %c0_i32_4 = arith.constant 0 : i32
    return %c0_i32, %c0_i32_0, %c0_i32_1, %c0_i32_2, %c0_i32_3 : i32, i32, i32, i32, i32
  }
  func.func @transform_1(%arg0: i32) -> (i32, i32) {
    %c0_i32 = arith.constant 0 : i32
    %c0_i32_0 = arith.constant 0 : i32
    %c0_i32_1 = arith.constant 0 : i32
    return %c0_i32, %c0_i32_0 : i32, i32
  }
  func.func @transform_2(%arg0: i32) -> (i32, i32, i32) {
    %c0_i32 = arith.constant 0 : i32
    %c0_i32_0 = arith.constant 0 : i32
    %c0_i32_1 = arith.constant 0 : i32
    return %arg0, %c0_i32, %c0_i32_0 : i32, i32, i32
  }
}

</mosaic_0001>

<llo_original>
// kernel: relu_dwconv.1
$region0: #{relu_dwconv.1}
  #allocation0 [shape = 'u32[]', space=smem, size = 0x4, offset = 0x4, fixed_abs, tag = 'smem constant byte address 0x4 - core index']
  #allocation1 [shape = 'u32[72,128]{1,0:T(1,128)}', space=vmem, size = 0x9000, scoped, tag = 'internal scratch']
  %s0 = inlined_call_operand.vmem [shape: f32[2,2,30,30,128], index: 0, kind: input, shape index: {}]
  %s1 = inlined_call_operand.vmem [shape: f32[32,128], index: 1, kind: input, shape index: {}]
  %s2 = inlined_call_operand.vmem [shape: f32[28,28,128], index: 2, kind: output, shape index: {}]
  %s3 = sld [smem:[#allocation0]]
  $region41: #{relu_dwconv.1} parent=0
    _
  %s5 = ssub.s32 1, %s3
  %s6 = scalar_select 0, %s5, %s3
  loop: start=0, step=1, limit=4
  $region2: #{relu_dwconv.1} parent=0 // loop_pre_header
    _
  $region3: #{relu_dwconv.1} parent=0 // loop_header
    %s8 = sphi 0, %s12
    %p9 = scmp.ge.s32.totalorder %s8, 4
    %s16 = sphi 0, %s16
    %s18 = sphi 0, %s16
    %s19 = sphi 0, %s18
    %s33 = sphi 0, %s19
    %s37 = sphi 0, %s37
    %s39 = sphi 0, %s37
    %s40 = sphi 0, %s39
    %s54 = sphi 0, %s40
    %s60 = sphi 0, %s62
    %s63 = sphi 0, %s60
    %s64 = sphi 0, %s63
    %s80 = sphi 0, %s64
  $region4: #{relu_dwconv.1} parent=0 // loop_header_branch
    %11 = sbr.rel (%p9) target = $region8
  $region5: #{relu_dwconv.1} parent=0 // loop_body
    %s13 = ssub.s32 %s8, 1
    %s14 = ssub.s32 %s8, 2
    %s15 = sadd.s32 %s8, 1
    %s17 = sadd.s32 %s16, 1
    %p20 = scmp.eq.s32.totalorder %s8, 1
    %p21 = scmp.ne.s32.totalorder %s16, %s18
    %p22 = scmp.eq.s32.totalorder %s8, 0
    %p23 = por %p21, %p22
    %p24 = scmp.ne.s32.totalorder %s16, %s18
    %p25 = scmp.eq.s32.totalorder %s13, 1
    %p26 = por %p24, %p25
    %p27 = scmp.ne.s32.totalorder %s18, %s19
    %p28 = scmp.eq.s32.totalorder %s13, 0
    %p29 = por %p27, %p28
    %p30 = scmp.ne.s32.totalorder %s18, %s19
    %p31 = scmp.eq.s32.totalorder %s14, 1
    %p32 = por %p30, %p31
    %p34 = scmp.ne.s32.totalorder %s19, %s33
    %p35 = scmp.eq.s32.totalorder %s14, 0
    %p36 = por %p34, %p35
    %s38 = sadd.s32 %s37, 1
    %p41 = scmp.eq.s32.totalorder %s8, 1
    %p42 = scmp.ne.s32.totalorder %s37, %s39
    %p43 = scmp.eq.s32.totalorder %s8, 0
    %p44 = por %p42, %p43
    %p45 = scmp.ne.s32.totalorder %s37, %s39
    %p46 = scmp.eq.s32.totalorder %s13, 1
    %p47 = por %p45, %p46
    %p48 = scmp.ne.s32.totalorder %s39, %s40
    %p49 = scmp.eq.s32.totalorder %s13, 0
    %p50 = por %p48, %p49
    %p51 = scmp.ne.s32.totalorder %s39, %s40
    %p52 = scmp.eq.s32.totalorder %s14, 1
    %p53 = por %p51, %p52
    %p55 = scmp.ne.s32.totalorder %s40, %s54
    %p56 = scmp.eq.s32.totalorder %s14, 0
    %p57 = por %p55, %p56
    %s58 = ssub.s32 %s8, %s15
    %p59 = scmp.eq.s32.totalorder %s58, 0
    %s61 = sadd.s32 %s60, 1
    %s62 = scalar_select %p59, %s60, %s61
    %p65 = pneg %p59
    %p66 = scmp.eq.s32.totalorder %s8, 1
    %p67 = por %p65, %p66
    %p68 = scmp.ne.s32.totalorder %s60, %s63
    %p69 = scmp.eq.s32.totalorder %s8, 0
    %p70 = por %p68, %p69
    %p71 = scmp.ne.s32.totalorder %s60, %s63
    %p72 = scmp.eq.s32.totalorder %s13, 1
    %p73 = por %p71, %p72
    %p74 = scmp.ne.s32.totalorder %s63, %s64
    %p75 = scmp.eq.s32.totalorder %s13, 0
    %p76 = por %p74, %p75
    %p77 = scmp.ne.s32.totalorder %s63, %s64
    %p78 = scmp.eq.s32.totalorder %s14, 1
    %p79 = por %p77, %p78
    %p81 = scmp.ne.s32.totalorder %s64, %s80
    %p82 = scmp.eq.s32.totalorder %s14, 0
    %p83 = por %p81, %p82
    %p84 = scmp.le.s32.totalorder 1, %s8
    %p85 = scmp.lt.s32.totalorder %s8, 3
    %p86 = pnand %p84, %p85
    %p87 = pneg %p86
    // Predicated region
    $region9: #{relu_dwconv.1} parent=5 // pred_check
      _
    $region10: #{relu_dwconv.1} parent=5 // pred_check_branch
      %89 = sbr.rel (%p86) target = $region12
    $region11: #{relu_dwconv.1} parent=5 // pred_region
      %s90 = ssub.s32 %s8, 1
      // Predicated region
      $region13: #{relu_dwconv.1} parent=11 // pred_check
        %p91 = pneg %p29
      $region14: #{relu_dwconv.1} parent=11 // pred_check_branch
        %93 = sbr.rel (%p91) target = $region16
      $region15: #{relu_dwconv.1} parent=11 // pred_region
        _
      $region16: #{relu_dwconv.1} parent=11 // pred_fallthru
        _
      // Predicated region
      $region17: #{relu_dwconv.1} parent=11 // pred_check
        %p94 = pneg %p50
      $region18: #{relu_dwconv.1} parent=11 // pred_check_branch
        %96 = sbr.rel (%p94) target = $region20
      $region19: #{relu_dwconv.1} parent=11 // pred_region
        _
      $region20: #{relu_dwconv.1} parent=11 // pred_fallthru
        _
    $region12: #{relu_dwconv.1} parent=5 // pred_fallthru
      _
    %p97 = scmp.lt.s32.totalorder %s8, 2
    // Predicated region
    $region21: #{relu_dwconv.1} parent=5 // pred_check
      %p98 = pneg %p97
    $region22: #{relu_dwconv.1} parent=5 // pred_check_branch
      %100 = sbr.rel (%p98) target = $region24
    $region23: #{relu_dwconv.1} parent=5 // pred_region
      _
    $region24: #{relu_dwconv.1} parent=5 // pred_fallthru
      _
    %p101 = scmp.le.s32.totalorder 1, %s8
    %p102 = scmp.lt.s32.totalorder %s8, 3
    %p103 = pnand %p101, %p102
    %p104 = pneg %p103
    // Predicated region
    $region25: #{relu_dwconv.1} parent=5 // pred_check
      _
    $region26: #{relu_dwconv.1} parent=5 // pred_check_branch
      %106 = sbr.rel (%p103) target = $region28
    $region27: #{relu_dwconv.1} parent=5 // pred_region
      %s107 = ssub.s32 %s8, 1
      %p108 = pneg %p29
      %p109 = pneg %p26
      %p110 = pneg %p50
      %p111 = pneg %p47
      %p112 = pneg %p76
      %p113 = pneg %p73
      %s114 = smul.u32 14, %s13
      %p115 = scmp.lt.s32.totalorder %s114, 27
      %s116 = scalar_select %p115, %s114, 27
      %s117 = smul.addr %s116, 4
      %s118 = smul.addr %s117, 8
      %s119 = scalar_lea.vmem %s2, %s118
      %s120 = smul.u32 14, %s13
      %p121 = scmp.lt.s32.totalorder %s120, 27
      %s122 = scalar_select %p121, %s120, 27
      %s123 = smul.addr %s122, 4
      %s124 = smul.addr %s123, 8
      %s125 = scalar_lea.vmem %s2, %s124
      %s126 = smul.u32 14, %s13
      %s127 = smul.u32 %s13, 14
      %v128 = vld [vmem:[%s1] sm:$0xff]
      %v129 = vld [vmem:[%s1 + $0x8] sm:$0xff]
      %v130 = vld [vmem:[%s1 + $0x10] sm:$0xff]
      %v131 = vld [vmem:[%s1 + $0x18] sm:$0xff]
      %s132 = smul.u32 %s127, 32
      %s133 = scalar_lea.vmem %s0, %s132
      %v134 = vld [vmem:[%s133] sm:$0xff]
      %v135 = vld [vmem:[%s133 + $0x8] sm:$0xff]
      %v136 = vld [vmem:[%s133 + $0x10] sm:$0xff]
      %v137 = vld [vmem:[%s133 + $0x18] sm:$0x3f]
      %v138 = vmax.f32 %v134, 0.0
      %v139 = vmax.f32 %v135, 0.0
      %v140 = vmax.f32 %v136, 0.0
      %v141 = vmax.f32 %v137, 0.0
      %v142 = vperm.slane %v128, 0
      %v143 = vmul.f32 %v138, %v142
      %v144 = vmul.f32 %v139, %v142
      %v145 = vmul.f32 %v140, %v142
      %v146 = vmul.f32 %v141, %v142
      %v147 = vadd.f32 %v143, 0.0
      %v148 = vadd.f32 %v144, 0.0
      %v149 = vadd.f32 %v145, 0.0
      %v150 = vadd.f32 %v146, 0.0
      %v151 = vperm.slane %v128, 2
      %v152 = vmul.f32 %v138, %v151
      %v153 = vmul.f32 %v139, %v151
      %v154 = vmul.f32 %v140, %v151
      %v155 = vmul.f32 %v141, %v151
      %vm160 = vcmask 1046528
      %v161 = vrot.slane %v152, 1
      %v162 = vrot.slane %v153, 1
      %v163 = vsel %vm160, %v161, %v162
      %v164 = vrot.slane %v154, 1
      %v165 = vsel %vm160, %v162, %v164
      %v166 = vrot.slane %v155, 1
      %v167 = vsel %vm160, %v164, %v166
      %v172 = vadd.f32 %v147, %v163
      %v173 = vadd.f32 %v148, %v165
      %v174 = vadd.f32 %v149, %v167
      %v175 = vadd.f32 %v150, %v166
      %v176 = vperm.slane %v128, 4
      %v177 = vmul.f32 %v138, %v176
      %v178 = vmul.f32 %v139, %v176
      %v179 = vmul.f32 %v140, %v176
      %v180 = vmul.f32 %v141, %v176
      %vm185 = vcmask 1045504
      %v186 = vrot.slane %v177, 2
      %v187 = vrot.slane %v178, 2
      %v188 = vsel %vm185, %v186, %v187
      %v189 = vrot.slane %v179, 2
      %v190 = vsel %vm185, %v187, %v189
      %v191 = vrot.slane %v180, 2
      %v192 = vsel %vm185, %v189, %v191
      %v197 = vadd.f32 %v172, %v188
      %v198 = vadd.f32 %v173, %v190
      %v199 = vadd.f32 %v174, %v192
      %v200 = vadd.f32 %v175, %v191
      %s201 = sadd.s32 %s132, 960
      %s202 = scalar_lea.vmem %s0, %s201
      %v203 = vld [vmem:[%s202] sm:$0xff]
      %v204 = vld [vmem:[%s202 + $0x8] sm:$0xff]
      %v205 = vld [vmem:[%s202 + $0x10] sm:$0xff]
      %v206 = vld [vmem:[%s202 + $0x18] sm:$0x3f]
      %v207 = vmax.f32 %v203, 0.0
      %v208 = vmax.f32 %v204, 0.0
      %v209 = vmax.f32 %v205, 0.0
      %v210 = vmax.f32 %v206, 0.0
      %v211 = vperm.slane %v128, 1
      %v212 = vmul.f32 %v207, %v211
      %v213 = vmul.f32 %v208, %v211
      %v214 = vmul.f32 %v209, %v211
      %v215 = vmul.f32 %v210, %v211
      %v216 = vadd.f32 %v197, %v212
      %v217 = vadd.f32 %v198, %v213
      %v218 = vadd.f32 %v199, %v214
      %v219 = vadd.f32 %v200, %v215
      %v220 = vperm.slane %v128, 3
      %v221 = vmul.f32 %v207, %v220
      %v222 = vmul.f32 %v208, %v220
      %v223 = vmul.f32 %v209, %v220
      %v224 = vmul.f32 %v210, %v220
      %v229 = vrot.slane %v221, 1
      %v230 = vrot.slane %v222, 1
      %v231 = vsel %vm160, %v229, %v230
      %v232 = vrot.slane %v223, 1
      %v233 = vsel %vm160, %v230, %v232
      %v234 = vrot.slane %v224, 1
      %v235 = vsel %vm160, %v232, %v234
      %v240 = vadd.f32 %v216, %v231
      %v241 = vadd.f32 %v217, %v233
      %v242 = vadd.f32 %v218, %v235
      %v243 = vadd.f32 %v219, %v234
      %s244 = sadd.s32 %s132, 1920
      %s245 = scalar_lea.vmem %s0, %s244
      %v246 = vld [vmem:[%s245] sm:$0xff]
      %v247 = vld [vmem:[%s245 + $0x8] sm:$0xff]
      %v248 = vld [vmem:[%s245 + $0x10] sm:$0xff]
      %v249 = vld [vmem:[%s245 + $0x18] sm:$0x3f]
      %v250 = vmax.f32 %v246, 0.0
      %v251 = vmax.f32 %v247, 0.0
      %v252 = vmax.f32 %v248, 0.0
      %v253 = vmax.f32 %v249, 0.0
      %v254 = vperm.slane %v128, 5
      %v255 = vmul.f32 %v250, %v254
      %v256 = vmul.f32 %v251, %v254
      %v257 = vmul.f32 %v252, %v254
      %v258 = vmul.f32 %v253, %v254
      %v259 = vadd.f32 %v240, %v255
      %v260 = vadd.f32 %v241, %v256
      %v261 = vadd.f32 %v242, %v257
      %v262 = vadd.f32 %v243, %v258
      %v263 = vperm.slane %v128, 7
      %v264 = vmul.f32 %v250, %v263
      %v265 = vmul.f32 %v251, %v263
      %v266 = vmul.f32 %v252, %v263
      %v267 = vmul.f32 %v253, %v263
      %v272 = vrot.slane %v264, 1
      %v273 = vrot.slane %v265, 1
      %v274 = vsel %vm160, %v272, %v273
      %v275 = vrot.slane %v266, 1
      %v276 = vsel %vm160, %v273, %v275
      %v277 = vrot.slane %v267, 1
      %v278 = vsel %vm160, %v275, %v277
      %v283 = vadd.f32 %v259, %v274
      %v284 = vadd.f32 %v260, %v276
      %v285 = vadd.f32 %v261, %v278
      %v286 = vadd.f32 %v262, %v277
      %v287 = vperm.slane %v129, 1
      %v288 = vmul.f32 %v250, %v287
      %v289 = vmul.f32 %v251, %v287
      %v290 = vmul.f32 %v252, %v287
      %v291 = vmul.f32 %v253, %v287
      %v296 = vrot.slane %v288, 2
      %v297 = vrot.slane %v289, 2
      %v298 = vsel %vm185, %v296, %v297
      %v299 = vrot.slane %v290, 2
      %v300 = vsel %vm185, %v297, %v299
      %v301 = vrot.slane %v291, 2
      %v302 = vsel %vm185, %v299, %v301
      %v307 = vadd.f32 %v283, %v298
      %v308 = vadd.f32 %v284, %v300
      %v309 = vadd.f32 %v285, %v302
      %v310 = vadd.f32 %v286, %v301
      %s311 = sadd.s32 %s201, 1920
      %s312 = scalar_lea.vmem %s0, %s311
      %v313 = vld [vmem:[%s312] sm:$0xff]
      %v314 = vld [vmem:[%s312 + $0x8] sm:$0xff]
      %v315 = vld [vmem:[%s312 + $0x10] sm:$0xff]
      %v316 = vld [vmem:[%s312 + $0x18] sm:$0x3f]
      %v317 = vmax.f32 %v313, 0.0
      %v318 = vmax.f32 %v314, 0.0
      %v319 = vmax.f32 %v315, 0.0
      %v320 = vmax.f32 %v316, 0.0
      %v321 = vperm.slane %v128, 6
      %v322 = vmul.f32 %v317, %v321
      %v323 = vmul.f32 %v318, %v321
      %v324 = vmul.f32 %v319, %v321
      %v325 = vmul.f32 %v320, %v321
      %v326 = vadd.f32 %v307, %v322
      %v327 = vadd.f32 %v308, %v323
      %v328 = vadd.f32 %v309, %v324
      %v329 = vadd.f32 %v310, %v325
      %v330 = vperm.slane %v129, 0
      %v331 = vmul.f32 %v317, %v330
      %v332 = vmul.f32 %v318, %v330
      %v333 = vmul.f32 %v319, %v330
      %v334 = vmul.f32 %v320, %v330
      %v339 = vrot.slane %v331, 1
      %v340 = vrot.slane %v332, 1
      %v341 = vsel %vm160, %v339, %v340
      %v342 = vrot.slane %v333, 1
      %v343 = vsel %vm160, %v340, %v342
      %v344 = vrot.slane %v334, 1
      %v345 = vsel %vm160, %v342, %v344
      %v350 = vadd.f32 %v326, %v341
      %v351 = vadd.f32 %v327, %v343
      %v352 = vadd.f32 %v328, %v345
      %v353 = vadd.f32 %v329, %v344
      %s354 = sadd.s32 %s127, 1
      %s355 = smul.u32 %s354, 32
      %s356 = scalar_lea.vmem %s0, %s355
      %v357 = vld [vmem:[%s356] sm:$0xff]
      %v358 = vld [vmem:[%s356 + $0x8] sm:$0xff]
      %v359 = vld [vmem:[%s356 + $0x10] sm:$0xff]
      %v360 = vld [vmem:[%s356 + $0x18] sm:$0x3f]
      %v361 = vmax.f32 %v357, 0.0
      %v362 = vmax.f32 %v358, 0.0
      %v363 = vmax.f32 %v359, 0.0
      %v364 = vmax.f32 %v360, 0.0
      %v365 = vperm.slane %v129, 2
      %v366 = vmul.f32 %v361, %v365
      %v367 = vmul.f32 %v362, %v365
      %v368 = vmul.f32 %v363, %v365
      %v369 = vmul.f32 %v364, %v365
      %v370 = vadd.f32 %v350, %v366
      %v371 = vadd.f32 %v351, %v367
      %v372 = vadd.f32 %v352, %v368
      %v373 = vadd.f32 %v353, %v369
      %v374 = vperm.slane %v129, 4
      %v375 = vmul.f32 %v361, %v374
      %v376 = vmul.f32 %v362, %v374
      %v377 = vmul.f32 %v363, %v374
      %v378 = vmul.f32 %v364, %v374
      %v383 = vrot.slane %v375, 1
      %v384 = vrot.slane %v376, 1
      %v385 = vsel %vm160, %v383, %v384
      %v386 = vrot.slane %v377, 1
      %v387 = vsel %vm160, %v384, %v386
      %v388 = vrot.slane %v378, 1
      %v389 = vsel %vm160, %v386, %v388
      %v394 = vadd.f32 %v370, %v385
      %v395 = vadd.f32 %v371, %v387
      %v396 = vadd.f32 %v372, %v389
      %v397 = vadd.f32 %v373, %v388
      %v398 = vperm.slane %v129, 6
      %v399 = vmul.f32 %v361, %v398
      %v400 = vmul.f32 %v362, %v398
      %v401 = vmul.f32 %v363, %v398
      %v402 = vmul.f32 %v364, %v398
      %v407 = vrot.slane %v399, 2
      %v408 = vrot.slane %v400, 2
      %v409 = vsel %vm185, %v407, %v408
      %v410 = vrot.slane %v401, 2
      %v411 = vsel %vm185, %v408, %v410
      %v412 = vrot.slane %v402, 2
      %v413 = vsel %vm185, %v410, %v412
      %v418 = vadd.f32 %v394, %v409
      %v419 = vadd.f32 %v395, %v411
      %v420 = vadd.f32 %v396, %v413
      %v421 = vadd.f32 %v397, %v412
      %s422 = sadd.s32 %s355, 960
      %s423 = scalar_lea.vmem %s0, %s422
      %v424 = vld [vmem:[%s423] sm:$0xff]
      %v425 = vld [vmem:[%s423 + $0x8] sm:$0xff]
      %v426 = vld [vmem:[%s423 + $0x10] sm:$0xff]
      %v427 = vld [vmem:[%s423 + $0x18] sm:$0x3f]
      %v428 = vmax.f32 %v424, 0.0
      %v429 = vmax.f32 %v425, 0.0
      %v430 = vmax.f32 %v426, 0.0
      %v431 = vmax.f32 %v427, 0.0
      %v432 = vperm.slane %v129, 3
      %v433 = vmul.f32 %v428, %v432
      %v434 = vmul.f32 %v429, %v432
      %v435 = vmul.f32 %v430, %v432
      %v436 = vmul.f32 %v431, %v432
      %v437 = vadd.f32 %v418, %v433
      %v438 = vadd.f32 %v419, %v434
      %v439 = vadd.f32 %v420, %v435
      %v440 = vadd.f32 %v421, %v436
      %v441 = vperm.slane %v129, 5
      %v442 = vmul.f32 %v428, %v441
      %v443 = vmul.f32 %v429, %v441
      %v444 = vmul.f32 %v430, %v441
      %v445 = vmul.f32 %v431, %v441
      %v450 = vrot.slane %v442, 1
      %v451 = vrot.slane %v443, 1
      %v452 = vsel %vm160, %v450, %v451
      %v453 = vrot.slane %v444, 1
      %v454 = vsel %vm160, %v451, %v453
      %v455 = vrot.slane %v445, 1
      %v456 = vsel %vm160, %v453, %v455
      %v461 = vadd.f32 %v437, %v452
      %v462 = vadd.f32 %v438, %v454
      %v463 = vadd.f32 %v439, %v456
      %v464 = vadd.f32 %v440, %v455
      %s465 = sadd.s32 %s355, 1920
      %s466 = scalar_lea.vmem %s0, %s465
      %v467 = vld [vmem:[%s466] sm:$0xff]
      %v468 = vld [vmem:[%s466 + $0x8] sm:$0xff]
      %v469 = vld [vmem:[%s466 + $0x10] sm:$0xff]
      %v470 = vld [vmem:[%s466 + $0x18] sm:$0x3f]
      %v471 = vmax.f32 %v467, 0.0
      %v472 = vmax.f32 %v468, 0.0
      %v473 = vmax.f32 %v469, 0.0
      %v474 = vmax.f32 %v470, 0.0
      %v475 = vperm.slane %v129, 7
      %v476 = vmul.f32 %v471, %v475
      %v477 = vmul.f32 %v472, %v475
      %v478 = vmul.f32 %v473, %v475
      %v479 = vmul.f32 %v474, %v475
      %v480 = vadd.f32 %v461, %v476
      %v481 = vadd.f32 %v462, %v477
      %v482 = vadd.f32 %v463, %v478
      %v483 = vadd.f32 %v464, %v479
      %v484 = vperm.slane %v130, 1
      %v485 = vmul.f32 %v471, %v484
      %v486 = vmul.f32 %v472, %v484
      %v487 = vmul.f32 %v473, %v484
      %v488 = vmul.f32 %v474, %v484
      %v493 = vrot.slane %v485, 1
      %v494 = vrot.slane %v486, 1
      %v495 = vsel %vm160, %v493, %v494
      %v496 = vrot.slane %v487, 1
      %v497 = vsel %vm160, %v494, %v496
      %v498 = vrot.slane %v488, 1
      %v499 = vsel %vm160, %v496, %v498
      %v504 = vadd.f32 %v480, %v495
      %v505 = vadd.f32 %v481, %v497
      %v506 = vadd.f32 %v482, %v499
      %v507 = vadd.f32 %v483, %v498
      %v508 = vperm.slane %v130, 3
      %v509 = vmul.f32 %v471, %v508
      %v510 = vmul.f32 %v472, %v508
      %v511 = vmul.f32 %v473, %v508
      %v512 = vmul.f32 %v474, %v508
      %v517 = vrot.slane %v509, 2
      %v518 = vrot.slane %v510, 2
      %v519 = vsel %vm185, %v517, %v518
      %v520 = vrot.slane %v511, 2
      %v521 = vsel %vm185, %v518, %v520
      %v522 = vrot.slane %v512, 2
      %v523 = vsel %vm185, %v520, %v522
      %v528 = vadd.f32 %v504, %v519
      %v529 = vadd.f32 %v505, %v521
      %v530 = vadd.f32 %v506, %v523
      %v531 = vadd.f32 %v507, %v522
      %s532 = sadd.s32 %s422, 1920
      %s533 = scalar_lea.vmem %s0, %s532
      %v534 = vld [vmem:[%s533] sm:$0xff]
      %v535 = vld [vmem:[%s533 + $0x8] sm:$0xff]
      %v536 = vld [vmem:[%s533 + $0x10] sm:$0xff]
      %v537 = vld [vmem:[%s533 + $0x18] sm:$0x3f]
      %v538 = vmax.f32 %v534, 0.0
      %v539 = vmax.f32 %v535, 0.0
      %v540 = vmax.f32 %v536, 0.0
      %v541 = vmax.f32 %v537, 0.0
      %v542 = vperm.slane %v130, 0
      %v543 = vmul.f32 %v538, %v542
      %v544 = vmul.f32 %v539, %v542
      %v545 = vmul.f32 %v540, %v542
      %v546 = vmul.f32 %v541, %v542
      %v547 = vadd.f32 %v528, %v543
      %v548 = vadd.f32 %v529, %v544
      %v549 = vadd.f32 %v530, %v545
      %v550 = vadd.f32 %v531, %v546
      %v551 = vperm.slane %v130, 2
      %v552 = vmul.f32 %v538, %v551
      %v553 = vmul.f32 %v539, %v551
      %v554 = vmul.f32 %v540, %v551
      %v555 = vmul.f32 %v541, %v551
      %v560 = vrot.slane %v552, 1
      %v561 = vrot.slane %v553, 1
      %v562 = vsel %vm160, %v560, %v561
      %v563 = vrot.slane %v554, 1
      %v564 = vsel %vm160, %v561, %v563
      %v565 = vrot.slane %v555, 1
      %v566 = vsel %vm160, %v563, %v565
      %v571 = vadd.f32 %v547, %v562
      %v572 = vadd.f32 %v548, %v564
      %v573 = vadd.f32 %v549, %v566
      %v574 = vadd.f32 %v550, %v565
      %s575 = sadd.s32 %s127, 2
      %s576 = smul.u32 %s575, 32
      %s577 = scalar_lea.vmem %s0, %s576
      %v578 = vld [vmem:[%s577] sm:$0xff]
      %v579 = vld [vmem:[%s577 + $0x8] sm:$0xff]
      %v580 = vld [vmem:[%s577 + $0x10] sm:$0xff]
      %v581 = vld [vmem:[%s577 + $0x18] sm:$0x3f]
      %v582 = vmax.f32 %v578, 0.0
      %v583 = vmax.f32 %v579, 0.0
      %v584 = vmax.f32 %v580, 0.0
      %v585 = vmax.f32 %v581, 0.0
      %v586 = vperm.slane %v130, 4
      %v587 = vmul.f32 %v582, %v586
      %v588 = vmul.f32 %v583, %v586
      %v589 = vmul.f32 %v584, %v586
      %v590 = vmul.f32 %v585, %v586
      %v591 = vadd.f32 %v571, %v587
      %v592 = vadd.f32 %v572, %v588
      %v593 = vadd.f32 %v573, %v589
      %v594 = vadd.f32 %v574, %v590
      %v595 = vperm.slane %v130, 6
      %v596 = vmul.f32 %v582, %v595
      %v597 = vmul.f32 %v583, %v595
      %v598 = vmul.f32 %v584, %v595
      %v599 = vmul.f32 %v585, %v595
      %v604 = vrot.slane %v596, 1
      %v605 = vrot.slane %v597, 1
      %v606 = vsel %vm160, %v604, %v605
      %v607 = vrot.slane %v598, 1
      %v608 = vsel %vm160, %v605, %v607
      %v609 = vrot.slane %v599, 1
      %v610 = vsel %vm160, %v607, %v609
      %v615 = vadd.f32 %v591, %v606
      %v616 = vadd.f32 %v592, %v608
      %v617 = vadd.f32 %v593, %v610
      %v618 = vadd.f32 %v594, %v609
      %v619 = vperm.slane %v131, 0
      %v620 = vmul.f32 %v582, %v619
      %v621 = vmul.f32 %v583, %v619
      %v622 = vmul.f32 %v584, %v619
      %v623 = vmul.f32 %v585, %v619
      %v628 = vrot.slane %v620, 2
      %v629 = vrot.slane %v621, 2
      %v630 = vsel %vm185, %v628, %v629
      %v631 = vrot.slane %v622, 2
      %v632 = vsel %vm185, %v629, %v631
      %v633 = vrot.slane %v623, 2
      %v634 = vsel %vm185, %v631, %v633
      %v639 = vadd.f32 %v615, %v630
      %v640 = vadd.f32 %v616, %v632
      %v641 = vadd.f32 %v617, %v634
      %v642 = vadd.f32 %v618, %v633
      %s643 = sadd.s32 %s576, 960
      %s644 = scalar_lea.vmem %s0, %s643
      %v645 = vld [vmem:[%s644] sm:$0xff]
      %v646 = vld [vmem:[%s644 + $0x8] sm:$0xff]
      %v647 = vld [vmem:[%s644 + $0x10] sm:$0xff]
      %v648 = vld [vmem:[%s644 + $0x18] sm:$0x3f]
      %v649 = vmax.f32 %v645, 0.0
      %v650 = vmax.f32 %v646, 0.0
      %v651 = vmax.f32 %v647, 0.0
      %v652 = vmax.f32 %v648, 0.0
      %v653 = vperm.slane %v130, 5
      %v654 = vmul.f32 %v649, %v653
      %v655 = vmul.f32 %v650, %v653
      %v656 = vmul.f32 %v651, %v653
      %v657 = vmul.f32 %v652, %v653
      %v658 = vadd.f32 %v639, %v654
      %v659 = vadd.f32 %v640, %v655
      %v660 = vadd.f32 %v641, %v656
      %v661 = vadd.f32 %v642, %v657
      %v662 = vperm.slane %v130, 7
      %v663 = vmul.f32 %v649, %v662
      %v664 = vmul.f32 %v650, %v662
      %v665 = vmul.f32 %v651, %v662
      %v666 = vmul.f32 %v652, %v662
      %v671 = vrot.slane %v663, 1
      %v672 = vrot.slane %v664, 1
      %v673 = vsel %vm160, %v671, %v672
      %v674 = vrot.slane %v665, 1
      %v675 = vsel %vm160, %v672, %v674
      %v676 = vrot.slane %v666, 1
      %v677 = vsel %vm160, %v674, %v676
      %v682 = vadd.f32 %v658, %v673
      %v683 = vadd.f32 %v659, %v675
      %v684 = vadd.f32 %v660, %v677
      %v685 = vadd.f32 %v661, %v676
      %686 = vst [vmem:[%s125] sm:$0xff] %v682
      %687 = vst [vmem:[%s125 + $0x8] sm:$0xff] %v683
      %688 = vst [vmem:[%s125 + $0x10] sm:$0xff] %v684
      %689 = vst [vmem:[%s125 + $0x18] sm:$0xf] %v685
      %v690 = vld [vmem:[%s356] sm:$0xff]
      %v691 = vld [vmem:[%s356 + $0x8] sm:$0xff]
      %v692 = vld [vmem:[%s356 + $0x10] sm:$0xff]
      %v693 = vld [vmem:[%s356 + $0x18] sm:$0x3f]
      %v694 = vmax.f32 %v690, 0.0
      %v695 = vmax.f32 %v691, 0.0
      %v696 = vmax.f32 %v692, 0.0
      %v697 = vmax.f32 %v693, 0.0
      %v698 = vmul.f32 %v694, %v142
      %v699 = vmul.f32 %v695, %v142
      %v700 = vmul.f32 %v696, %v142
      %v701 = vmul.f32 %v697, %v142
      %v702 = vadd.f32 %v698, 0.0
      %v703 = vadd.f32 %v699, 0.0
      %v704 = vadd.f32 %v700, 0.0
      %v705 = vadd.f32 %v701, 0.0
      %v706 = vmul.f32 %v694, %v151
      %v707 = vmul.f32 %v695, %v151
      %v708 = vmul.f32 %v696, %v151
      %v709 = vmul.f32 %v697, %v151
      %v714 = vrot.slane %v706, 1
      %v715 = vrot.slane %v707, 1
      %v716 = vsel %vm160, %v714, %v715
      %v717 = vrot.slane %v708, 1
      %v718 = vsel %vm160, %v715, %v717
      %v719 = vrot.slane %v709, 1
      %v720 = vsel %vm160, %v717, %v719
      %v725 = vadd.f32 %v702, %v716
      %v726 = vadd.f32 %v703, %v718
      %v727 = vadd.f32 %v704, %v720
      %v728 = vadd.f32 %v705, %v719
      %v729 = vmul.f32 %v694, %v176
      %v730 = vmul.f32 %v695, %v176
      %v731 = vmul.f32 %v696, %v176
      %v732 = vmul.f32 %v697, %v176
      %v737 = vrot.slane %v729, 2
      %v738 = vrot.slane %v730, 2
      %v739 = vsel %vm185, %v737, %v738
      %v740 = vrot.slane %v731, 2
      %v741 = vsel %vm185, %v738, %v740
      %v742 = vrot.slane %v732, 2
      %v743 = vsel %vm185, %v740, %v742
      %v748 = vadd.f32 %v725, %v739
      %v749 = vadd.f32 %v726, %v741
      %v750 = vadd.f32 %v727, %v743
      %v751 = vadd.f32 %v728, %v742
      %v752 = vld [vmem:[%s423] sm:$0xff]
      %v753 = vld [vmem:[%s423 + $0x8] sm:$0xff]
      %v754 = vld [vmem:[%s423 + $0x10] sm:$0xff]
      %v755 = vld [vmem:[%s423 + $0x18] sm:$0x3f]
      %v756 = vmax.f32 %v752, 0.0
      %v757 = vmax.f32 %v753, 0.0
      %v758 = vmax.f32 %v754, 0.0
      %v759 = vmax.f32 %v755, 0.0
      %v760 = vmul.f32 %v756, %v211
      %v761 = vmul.f32 %v757, %v211
      %v762 = vmul.f32 %v758, %v211
      %v763 = vmul.f32 %v759, %v211
      %v764 = vadd.f32 %v748, %v760
      %v765 = vadd.f32 %v749, %v761
      %v766 = vadd.f32 %v750, %v762
      %v767 = vadd.f32 %v751, %v763
      %v768 = vmul.f32 %v756, %v220
      %v769 = vmul.f32 %v757, %v220
      %v770 = vmul.f32 %v758, %v220
      %v771 = vmul.f32 %v759, %v220
      %v776 = vrot.slane %v768, 1
      %v777 = vrot.slane %v769, 1
      %v778 = vsel %vm160, %v776, %v777
      %v779 = vrot.slane %v770, 1
      %v780 = vsel %vm160, %v777, %v779
      %v781 = vrot.slane %v771, 1
      %v782 = vsel %vm160, %v779, %v781
      %v787 = vadd.f32 %v764, %v778
      %v788 = vadd.f32 %v765, %v780
      %v789 = vadd.f32 %v766, %v782
      %v790 = vadd.f32 %v767, %v781
      %v791 = vld [vmem:[%s466] sm:$0xff]
      %v792 = vld [vmem:[%s466 + $0x8] sm:$0xff]
      %v793 = vld [vmem:[%s466 + $0x10] sm:$0xff]
      %v794 = vld [vmem:[%s466 + $0x18] sm:$0x3f]
      %v795 = vmax.f32 %v791, 0.0
      %v796 = vmax.f32 %v792, 0.0
      %v797 = vmax.f32 %v793, 0.0
      %v798 = vmax.f32 %v794, 0.0
      %v799 = vmul.f32 %v795, %v254
      %v800 = vmul.f32 %v796, %v254
      %v801 = vmul.f32 %v797, %v254
      %v802 = vmul.f32 %v798, %v254
      %v803 = vadd.f32 %v787, %v799
      %v804 = vadd.f32 %v788, %v800
      %v805 = vadd.f32 %v789, %v801
      %v806 = vadd.f32 %v790, %v802
      %v807 = vmul.f32 %v795, %v263
      %v808 = vmul.f32 %v796, %v263
      %v809 = vmul.f32 %v797, %v263
      %v810 = vmul.f32 %v798, %v263
      %v815 = vrot.slane %v807, 1
      %v816 = vrot.slane %v808, 1
      %v817 = vsel %vm160, %v815, %v816
      %v818 = vrot.slane %v809, 1
      %v819 = vsel %vm160, %v816, %v818
      %v820 = vrot.slane %v810, 1
      %v821 = vsel %vm160, %v818, %v820
      %v826 = vadd.f32 %v803, %v817
      %v827 = vadd.f32 %v804, %v819
      %v828 = vadd.f32 %v805, %v821
      %v829 = vadd.f32 %v806, %v820
      %v830 = vmul.f32 %v795, %v287
      %v831 = vmul.f32 %v796, %v287
      %v832 = vmul.f32 %v797, %v287
      %v833 = vmul.f32 %v798, %v287
      %v838 = vrot.slane %v830, 2
      %v839 = vrot.slane %v831, 2
      %v840 = vsel %vm185, %v838, %v839
      %v841 = vrot.slane %v832, 2
      %v842 = vsel %vm185, %v839, %v841
      %v843 = vrot.slane %v833, 2
      %v844 = vsel %vm185, %v841, %v843
      %v849 = vadd.f32 %v826, %v840
      %v850 = vadd.f32 %v827, %v842
      %v851 = vadd.f32 %v828, %v844
      %v852 = vadd.f32 %v829, %v843
      %v853 = vld [vmem:[%s533] sm:$0xff]
      %v854 = vld [vmem:[%s533 + $0x8] sm:$0xff]
      %v855 = vld [vmem:[%s533 + $0x10] sm:$0xff]
      %v856 = vld [vmem:[%s533 + $0x18] sm:$0x3f]
      %v857 = vmax.f32 %v853, 0.0
      %v858 = vmax.f32 %v854, 0.0
      %v859 = vmax.f32 %v855, 0.0
      %v860 = vmax.f32 %v856, 0.0
      %v861 = vmul.f32 %v857, %v321
      %v862 = vmul.f32 %v858, %v321
      %v863 = vmul.f32 %v859, %v321
      %v864 = vmul.f32 %v860, %v321
      %v865 = vadd.f32 %v849, %v861
      %v866 = vadd.f32 %v850, %v862
      %v867 = vadd.f32 %v851, %v863
      %v868 = vadd.f32 %v852, %v864
      %v869 = vmul.f32 %v857, %v330
      %v870 = vmul.f32 %v858, %v330
      %v871 = vmul.f32 %v859, %v330
      %v872 = vmul.f32 %v860, %v330
      %v877 = vrot.slane %v869, 1
      %v878 = vrot.slane %v870, 1
      %v879 = vsel %vm160, %v877, %v878
      %v880 = vrot.slane %v871, 1
      %v881 = vsel %vm160, %v878, %v880
      %v882 = vrot.slane %v872, 1
      %v883 = vsel %vm160, %v880, %v882
      %v888 = vadd.f32 %v865, %v879
      %v889 = vadd.f32 %v866, %v881
      %v890 = vadd.f32 %v867, %v883
      %v891 = vadd.f32 %v868, %v882
      %v892 = vld [vmem:[%s577] sm:$0xff]
      %v893 = vld [vmem:[%s577 + $0x8] sm:$0xff]
      %v894 = vld [vmem:[%s577 + $0x10] sm:$0xff]
      %v895 = vld [vmem:[%s577 + $0x18] sm:$0x3f]
      %v896 = vmax.f32 %v892, 0.0
      %v897 = vmax.f32 %v893, 0.0
      %v898 = vmax.f32 %v894, 0.0
      %v899 = vmax.f32 %v895, 0.0
      %v900 = vmul.f32 %v896, %v365
      %v901 = vmul.f32 %v897, %v365
      %v902 = vmul.f32 %v898, %v365
      %v903 = vmul.f32 %v899, %v365
      %v904 = vadd.f32 %v888, %v900
      %v905 = vadd.f32 %v889, %v901
      %v906 = vadd.f32 %v890, %v902
      %v907 = vadd.f32 %v891, %v903
      %v908 = vmul.f32 %v896, %v374
      %v909 = vmul.f32 %v897, %v374
      %v910 = vmul.f32 %v898, %v374
      %v911 = vmul.f32 %v899, %v374
      %v916 = vrot.slane %v908, 1
      %v917 = vrot.slane %v909, 1
      %v918 = vsel %vm160, %v916, %v917
      %v919 = vrot.slane %v910, 1
      %v920 = vsel %vm160, %v917, %v919
      %v921 = vrot.slane %v911, 1
      %v922 = vsel %vm160, %v919, %v921
      %v927 = vadd.f32 %v904, %v918
      %v928 = vadd.f32 %v905, %v920
      %v929 = vadd.f32 %v906, %v922
      %v930 = vadd.f32 %v907, %v921
      %v931 = vmul.f32 %v896, %v398
      %v932 = vmul.f32 %v897, %v398
      %v933 = vmul.f32 %v898, %v398
      %v934 = vmul.f32 %v899, %v398
      %v939 = vrot.slane %v931, 2
      %v940 = vrot.slane %v932, 2
      %v941 = vsel %vm185, %v939, %v940
      %v942 = vrot.slane %v933, 2
      %v943 = vsel %vm185, %v940, %v942
      %v944 = vrot.slane %v934, 2
      %v945 = vsel %vm185, %v942, %v944
      %v950 = vadd.f32 %v927, %v941
      %v951 = vadd.f32 %v928, %v943
      %v952 = vadd.f32 %v929, %v945
      %v953 = vadd.f32 %v930, %v944
      %v954 = vld [vmem:[%s644] sm:$0xff]
      %v955 = vld [vmem:[%s644 + $0x8] sm:$0xff]
      %v956 = vld [vmem:[%s644 + $0x10] sm:$0xff]
      %v957 = vld [vmem:[%s644 + $0x18] sm:$0x3f]
      %v958 = vmax.f32 %v954, 0.0
      %v959 = vmax.f32 %v955, 0.0
      %v960 = vmax.f32 %v956, 0.0
      %v961 = vmax.f32 %v957, 0.0
      %v962 = vmul.f32 %v958, %v432
      %v963 = vmul.f32 %v959, %v432
      %v964 = vmul.f32 %v960, %v432
      %v965 = vmul.f32 %v961, %v432
      %v966 = vadd.f32 %v950, %v962
      %v967 = vadd.f32 %v951, %v963
      %v968 = vadd.f32 %v952, %v964
      %v969 = vadd.f32 %v953, %v965
      %v970 = vmul.f32 %v958, %v441
      %v971 = vmul.f32 %v959, %v441
      %v972 = vmul.f32 %v960, %v441
      %v973 = vmul.f32 %v961, %v441
      %v978 = vrot.slane %v970, 1
      %v979 = vrot.slane %v971, 1
      %v980 = vsel %vm160, %v978, %v979
      %v981 = vrot.slane %v972, 1
      %v982 = vsel %vm160, %v979, %v981
      %v983 = vrot.slane %v973, 1
      %v984 = vsel %vm160, %v981, %v983
      %v989 = vadd.f32 %v966, %v980
      %v990 = vadd.f32 %v967, %v982
      %v991 = vadd.f32 %v968, %v984
      %v992 = vadd.f32 %v969, %v983
      %s993 = sadd.s32 %s576, 1920
      %s994 = scalar_lea.vmem %s0, %s993
      %v995 = vld [vmem:[%s994] sm:$0xff]
      %v996 = vld [vmem:[%s994 + $0x8] sm:$0xff]
      %v997 = vld [vmem:[%s994 + $0x10] sm:$0xff]
      %v998 = vld [vmem:[%s994 + $0x18] sm:$0x3f]
      %v999 = vmax.f32 %v995, 0.0
      %v1000 = vmax.f32 %v996, 0.0
      %v1001 = vmax.f32 %v997, 0.0
      %v1002 = vmax.f32 %v998, 0.0
      %v1003 = vmul.f32 %v999, %v475
      %v1004 = vmul.f32 %v1000, %v475
      %v1005 = vmul.f32 %v1001, %v475
      %v1006 = vmul.f32 %v1002, %v475
      %v1007 = vadd.f32 %v989, %v1003
      %v1008 = vadd.f32 %v990, %v1004
      %v1009 = vadd.f32 %v991, %v1005
      %v1010 = vadd.f32 %v992, %v1006
      %v1011 = vmul.f32 %v999, %v484
      %v1012 = vmul.f32 %v1000, %v484
      %v1013 = vmul.f32 %v1001, %v484
      %v1014 = vmul.f32 %v1002, %v484
      %v1019 = vrot.slane %v1011, 1
      %v1020 = vrot.slane %v1012, 1
      %v1021 = vsel %vm160, %v1019, %v1020
      %v1022 = vrot.slane %v1013, 1
      %v1023 = vsel %vm160, %v1020, %v1022
      %v1024 = vrot.slane %v1014, 1
      %v1025 = vsel %vm160, %v1022, %v1024
      %v1030 = vadd.f32 %v1007, %v1021
      %v1031 = vadd.f32 %v1008, %v1023
      %v1032 = vadd.f32 %v1009, %v1025
      %v1033 = vadd.f32 %v1010, %v1024
      %v1034 = vmul.f32 %v999, %v508
      %v1035 = vmul.f32 %v1000, %v508
      %v1036 = vmul.f32 %v1001, %v508
      %v1037 = vmul.f32 %v1002, %v508
      %v1042 = vrot.slane %v1034, 2
      %v1043 = vrot.slane %v1035, 2
      %v1044 = vsel %vm185, %v1042, %v1043
      %v1045 = vrot.slane %v1036, 2
      %v1046 = vsel %vm185, %v1043, %v1045
      %v1047 = vrot.slane %v1037, 2
      %v1048 = vsel %vm185, %v1045, %v1047
      %v1053 = vadd.f32 %v1030, %v1044
      %v1054 = vadd.f32 %v1031, %v1046
      %v1055 = vadd.f32 %v1032, %v1048
      %v1056 = vadd.f32 %v1033, %v1047
      %s1057 = sadd.s32 %s643, 1920
      %s1058 = scalar_lea.vmem %s0, %s1057
      %v1059 = vld [vmem:[%s1058] sm:$0xff]
      %v1060 = vld [vmem:[%s1058 + $0x8] sm:$0xff]
      %v1061 = vld [vmem:[%s1058 + $0x10] sm:$0xff]
      %v1062 = vld [vmem:[%s1058 + $0x18] sm:$0x3f]
      %v1063 = vmax.f32 %v1059, 0.0
      %v1064 = vmax.f32 %v1060, 0.0
      %v1065 = vmax.f32 %v1061, 0.0
      %v1066 = vmax.f32 %v1062, 0.0
      %v1067 = vmul.f32 %v1063, %v542
      %v1068 = vmul.f32 %v1064, %v542
      %v1069 = vmul.f32 %v1065, %v542
      %v1070 = vmul.f32 %v1066, %v542
      %v1071 = vadd.f32 %v1053, %v1067
      %v1072 = vadd.f32 %v1054, %v1068
      %v1073 = vadd.f32 %v1055, %v1069
      %v1074 = vadd.f32 %v1056, %v1070
      %v1075 = vmul.f32 %v1063, %v551
      %v1076 = vmul.f32 %v1064, %v551
      %v1077 = vmul.f32 %v1065, %v551
      %v1078 = vmul.f32 %v1066, %v551
      %v1083 = vrot.slane %v1075, 1
      %v1084 = vrot.slane %v1076, 1
      %v1085 = vsel %vm160, %v1083, %v1084
      %v1086 = vrot.slane %v1077, 1
      %v1087 = vsel %vm160, %v1084, %v1086
      %v1088 = vrot.slane %v1078, 1
      %v1089 = vsel %vm160, %v1086, %v1088
      %v1094 = vadd.f32 %v1071, %v1085
      %v1095 = vadd.f32 %v1072, %v1087
      %v1096 = vadd.f32 %v1073, %v1089
      %v1097 = vadd.f32 %v1074, %v1088
      %s1098 = sadd.s32 %s127, 3
      %s1099 = smul.u32 %s1098, 32
      %s1100 = scalar_lea.vmem %s0, %s1099
      %v1101 = vld [vmem:[%s1100] sm:$0xff]
      %v1102 = vld [vmem:[%s1100 + $0x8] sm:$0xff]
      %v1103 = vld [vmem:[%s1100 + $0x10] sm:$0xff]
      %v1104 = vld [vmem:[%s1100 + $0x18] sm:$0x3f]
      %v1105 = vmax.f32 %v1101, 0.0
      %v1106 = vmax.f32 %v1102, 0.0
      %v1107 = vmax.f32 %v1103, 0.0
      %v1108 = vmax.f32 %v1104, 0.0
      %v1109 = vmul.f32 %v1105, %v586
      %v1110 = vmul.f32 %v1106, %v586
      %v1111 = vmul.f32 %v1107, %v586
      %v1112 = vmul.f32 %v1108, %v586
      %v1113 = vadd.f32 %v1094, %v1109
      %v1114 = vadd.f32 %v1095, %v1110
      %v1115 = vadd.f32 %v1096, %v1111
      %v1116 = vadd.f32 %v1097, %v1112
      %v1117 = vmul.f32 %v1105, %v595
      %v1118 = vmul.f32 %v1106, %v595
      %v1119 = vmul.f32 %v1107, %v595
      %v1120 = vmul.f32 %v1108, %v595
      %v1125 = vrot.slane %v1117, 1
      %v1126 = vrot.slane %v1118, 1
      %v1127 = vsel %vm160, %v1125, %v1126
      %v1128 = vrot.slane %v1119, 1
      %v1129 = vsel %vm160, %v1126, %v1128
      %v1130 = vrot.slane %v1120, 1
      %v1131 = vsel %vm160, %v1128, %v1130
      %v1136 = vadd.f32 %v1113, %v1127
      %v1137 = vadd.f32 %v1114, %v1129
      %v1138 = vadd.f32 %v1115, %v1131
      %v1139 = vadd.f32 %v1116, %v1130
      %v1140 = vmul.f32 %v1105, %v619
      %v1141 = vmul.f32 %v1106, %v619
      %v1142 = vmul.f32 %v1107, %v619
      %v1143 = vmul.f32 %v1108, %v619
      %v1148 = vrot.slane %v1140, 2
      %v1149 = vrot.slane %v1141, 2
      %v1150 = vsel %vm185, %v1148, %v1149
      %v1151 = vrot.slane %v1142, 2
      %v1152 = vsel %vm185, %v1149, %v1151
      %v1153 = vrot.slane %v1143, 2
      %v1154 = vsel %vm185, %v1151, %v1153
      %v1159 = vadd.f32 %v1136, %v1150
      %v1160 = vadd.f32 %v1137, %v1152
      %v1161 = vadd.f32 %v1138, %v1154
      %v1162 = vadd.f32 %v1139, %v1153
      %s1163 = sadd.s32 %s1099, 960
      %s1164 = scalar_lea.vmem %s0, %s1163
      %v1165 = vld [vmem:[%s1164] sm:$0xff]
      %v1166 = vld [vmem:[%s1164 + $0x8] sm:$0xff]
      %v1167 = vld [vmem:[%s1164 + $0x10] sm:$0xff]
      %v1168 = vld [vmem:[%s1164 + $0x18] sm:$0x3f]
      %v1169 = vmax.f32 %v1165, 0.0
      %v1170 = vmax.f32 %v1166, 0.0
      %v1171 = vmax.f32 %v1167, 0.0
      %v1172 = vmax.f32 %v1168, 0.0
      %v1173 = vmul.f32 %v1169, %v653
      %v1174 = vmul.f32 %v1170, %v653
      %v1175 = vmul.f32 %v1171, %v653
      %v1176 = vmul.f32 %v1172, %v653
      %v1177 = vadd.f32 %v1159, %v1173
      %v1178 = vadd.f32 %v1160, %v1174
      %v1179 = vadd.f32 %v1161, %v1175
      %v1180 = vadd.f32 %v1162, %v1176
      %v1181 = vmul.f32 %v1169, %v662
      %v1182 = vmul.f32 %v1170, %v662
      %v1183 = vmul.f32 %v1171, %v662
      %v1184 = vmul.f32 %v1172, %v662
      %v1189 = vrot.slane %v1181, 1
      %v1190 = vrot.slane %v1182, 1
      %v1191 = vsel %vm160, %v1189, %v1190
      %v1192 = vrot.slane %v1183, 1
      %v1193 = vsel %vm160, %v1190, %v1192
      %v1194 = vrot.slane %v1184, 1
      %v1195 = vsel %vm160, %v1192, %v1194
      %v1200 = vadd.f32 %v1177, %v1191
      %v1201 = vadd.f32 %v1178, %v1193
      %v1202 = vadd.f32 %v1179, %v1195
      %v1203 = vadd.f32 %v1180, %v1194
      %s1204 = scalar_lea.vmem %s125, 32
      %1205 = vst [vmem:[%s1204] sm:$0xff] %v1200
      %1206 = vst [vmem:[%s1204 + $0x8] sm:$0xff] %v1201
      %1207 = vst [vmem:[%s1204 + $0x10] sm:$0xff] %v1202
      %1208 = vst [vmem:[%s1204 + $0x18] sm:$0xf] %v1203
      %v1209 = vld [vmem:[%s577] sm:$0xff]
      %v1210 = vld [vmem:[%s577 + $0x8] sm:$0xff]
      %v1211 = vld [vmem:[%s577 + $0x10] sm:$0xff]
      %v1212 = vld [vmem:[%s577 + $0x18] sm:$0x3f]
      %v1213 = vmax.f32 %v1209, 0.0
      %v1214 = vmax.f32 %v1210, 0.0
      %v1215 = vmax.f32 %v1211, 0.0
      %v1216 = vmax.f32 %v1212, 0.0
      %v1217 = vmul.f32 %v1213, %v142
      %v1218 = vmul.f32 %v1214, %v142
      %v1219 = vmul.f32 %v1215, %v142
      %v1220 = vmul.f32 %v1216, %v142
      %v1221 = vadd.f32 %v1217, 0.0
      %v1222 = vadd.f32 %v1218, 0.0
      %v1223 = vadd.f32 %v1219, 0.0
      %v1224 = vadd.f32 %v1220, 0.0
      %v1225 = vmul.f32 %v1213, %v151
      %v1226 = vmul.f32 %v1214, %v151
      %v1227 = vmul.f32 %v1215, %v151
      %v1228 = vmul.f32 %v1216, %v151
      %v1233 = vrot.slane %v1225, 1
      %v1234 = vrot.slane %v1226, 1
      %v1235 = vsel %vm160, %v1233, %v1234
      %v1236 = vrot.slane %v1227, 1
      %v1237 = vsel %vm160, %v1234, %v1236
      %v1238 = vrot.slane %v1228, 1
      %v1239 = vsel %vm160, %v1236, %v1238
      %v1244 = vadd.f32 %v1221, %v1235
      %v1245 = vadd.f32 %v1222, %v1237
      %v1246 = vadd.f32 %v1223, %v1239
      %v1247 = vadd.f32 %v1224, %v1238
      %v1248 = vmul.f32 %v1213, %v176
      %v1249 = vmul.f32 %v1214, %v176
      %v1250 = vmul.f32 %v1215, %v176
      %v1251 = vmul.f32 %v1216, %v176
      %v1256 = vrot.slane %v1248, 2
      %v1257 = vrot.slane %v1249, 2
      %v1258 = vsel %vm185, %v1256, %v1257
      %v1259 = vrot.slane %v1250, 2
      %v1260 = vsel %vm185, %v1257, %v1259
      %v1261 = vrot.slane %v1251, 2
      %v1262 = vsel %vm185, %v1259, %v1261
      %v1267 = vadd.f32 %v1244, %v1258
      %v1268 = vadd.f32 %v1245, %v1260
      %v1269 = vadd.f32 %v1246, %v1262
      %v1270 = vadd.f32 %v1247, %v1261
      %v1271 = vld [vmem:[%s644] sm:$0xff]
      %v1272 = vld [vmem:[%s644 + $0x8] sm:$0xff]
      %v1273 = vld [vmem:[%s644 + $0x10] sm:$0xff]
      %v1274 = vld [vmem:[%s644 + $0x18] sm:$0x3f]
      %v1275 = vmax.f32 %v1271, 0.0
      %v1276 = vmax.f32 %v1272, 0.0
      %v1277 = vmax.f32 %v1273, 0.0
      %v1278 = vmax.f32 %v1274, 0.0
      %v1279 = vmul.f32 %v1275, %v211
      %v1280 = vmul.f32 %v1276, %v211
      %v1281 = vmul.f32 %v1277, %v211
      %v1282 = vmul.f32 %v1278, %v211
      %v1283 = vadd.f32 %v1267, %v1279
      %v1284 = vadd.f32 %v1268, %v1280
      %v1285 = vadd.f32 %v1269, %v1281
      %v1286 = vadd.f32 %v1270, %v1282
      %v1287 = vmul.f32 %v1275, %v220
      %v1288 = vmul.f32 %v1276, %v220
      %v1289 = vmul.f32 %v1277, %v220
      %v1290 = vmul.f32 %v1278, %v220
      %v1295 = vrot.slane %v1287, 1
      %v1296 = vrot.slane %v1288, 1
      %v1297 = vsel %vm160, %v1295, %v1296
      %v1298 = vrot.slane %v1289, 1
      %v1299 = vsel %vm160, %v1296, %v1298
      %v1300 = vrot.slane %v1290, 1
      %v1301 = vsel %vm160, %v1298, %v1300
      %v1306 = vadd.f32 %v1283, %v1297
      %v1307 = vadd.f32 %v1284, %v1299
      %v1308 = vadd.f32 %v1285, %v1301
      %v1309 = vadd.f32 %v1286, %v1300
      %v1310 = vld [vmem:[%s994] sm:$0xff]
      %v1311 = vld [vmem:[%s994 + $0x8] sm:$0xff]
      %v1312 = vld [vmem:[%s994 + $0x10] sm:$0xff]
      %v1313 = vld [vmem:[%s994 + $0x18] sm:$0x3f]
      %v1314 = vmax.f32 %v1310, 0.0
      %v1315 = vmax.f32 %v1311, 0.0
      %v1316 = vmax.f32 %v1312, 0.0
      %v1317 = vmax.f32 %v1313, 0.0
      %v1318 = vmul.f32 %v1314, %v254
      %v1319 = vmul.f32 %v1315, %v254
      %v1320 = vmul.f32 %v1316, %v254
      %v1321 = vmul.f32 %v1317, %v254
      %v1322 = vadd.f32 %v1306, %v1318
      %v1323 = vadd.f32 %v1307, %v1319
      %v1324 = vadd.f32 %v1308, %v1320
      %v1325 = vadd.f32 %v1309, %v1321
      %v1326 = vmul.f32 %v1314, %v263
      %v1327 = vmul.f32 %v1315, %v263
      %v1328 = vmul.f32 %v1316, %v263
      %v1329 = vmul.f32 %v1317, %v263
      %v1334 = vrot.slane %v1326, 1
      %v1335 = vrot.slane %v1327, 1
      %v1336 = vsel %vm160, %v1334, %v1335
      %v1337 = vrot.slane %v1328, 1
      %v1338 = vsel %vm160, %v1335, %v1337
      %v1339 = vrot.slane %v1329, 1
      %v1340 = vsel %vm160, %v1337, %v1339
      %v1345 = vadd.f32 %v1322, %v1336
      %v1346 = vadd.f32 %v1323, %v1338
      %v1347 = vadd.f32 %v1324, %v1340
      %v1348 = vadd.f32 %v1325, %v1339
      %v1349 = vmul.f32 %v1314, %v287
      %v1350 = vmul.f32 %v1315, %v287
      %v1351 = vmul.f32 %v1316, %v287
      %v1352 = vmul.f32 %v1317, %v287
      %v1357 = vrot.slane %v1349, 2
      %v1358 = vrot.slane %v1350, 2
      %v1359 = vsel %vm185, %v1357, %v1358
      %v1360 = vrot.slane %v1351, 2
      %v1361 = vsel %vm185, %v1358, %v1360
      %v1362 = vrot.slane %v1352, 2
      %v1363 = vsel %vm185, %v1360, %v1362
      %v1368 = vadd.f32 %v1345, %v1359
      %v1369 = vadd.f32 %v1346, %v1361
      %v1370 = vadd.f32 %v1347, %v1363
      %v1371 = vadd.f32 %v1348, %v1362
      %v1372 = vld [vmem:[%s1058] sm:$0xff]
      %v1373 = vld [vmem:[%s1058 + $0x8] sm:$0xff]
      %v1374 = vld [vmem:[%s1058 + $0x10] sm:$0xff]
      %v1375 = vld [vmem:[%s1058 + $0x18] sm:$0x3f]
      %v1376 = vmax.f32 %v1372, 0.0
      %v1377 = vmax.f32 %v1373, 0.0
      %v1378 = vmax.f32 %v1374, 0.0
      %v1379 = vmax.f32 %v1375, 0.0
      %v1380 = vmul.f32 %v1376, %v321
      %v1381 = vmul.f32 %v1377, %v321
      %v1382 = vmul.f32 %v1378, %v321
      %v1383 = vmul.f32 %v1379, %v321
      %v1384 = vadd.f32 %v1368, %v1380
      %v1385 = vadd.f32 %v1369, %v1381
      %v1386 = vadd.f32 %v1370, %v1382
      %v1387 = vadd.f32 %v1371, %v1383
      %v1388 = vmul.f32 %v1376, %v330
      %v1389 = vmul.f32 %v1377, %v330
      %v1390 = vmul.f32 %v1378, %v330
      %v1391 = vmul.f32 %v1379, %v330
      %v1396 = vrot.slane %v1388, 1
      %v1397 = vrot.slane %v1389, 1
      %v1398 = vsel %vm160, %v1396, %v1397
      %v1399 = vrot.slane %v1390, 1
      %v1400 = vsel %vm160, %v1397, %v1399
      %v1401 = vrot.slane %v1391, 1
      %v1402 = vsel %vm160, %v1399, %v1401
      %v1407 = vadd.f32 %v1384, %v1398
      %v1408 = vadd.f32 %v1385, %v1400
      %v1409 = vadd.f32 %v1386, %v1402
      %v1410 = vadd.f32 %v1387, %v1401
      %v1411 = vld [vmem:[%s1100] sm:$0xff]
      %v1412 = vld [vmem:[%s1100 + $0x8] sm:$0xff]
      %v1413 = vld [vmem:[%s1100 + $0x10] sm:$0xff]
      %v1414 = vld [vmem:[%s1100 + $0x18] sm:$0x3f]
      %v1415 = vmax.f32 %v1411, 0.0
      %v1416 = vmax.f32 %v1412, 0.0
      %v1417 = vmax.f32 %v1413, 0.0
      %v1418 = vmax.f32 %v1414, 0.0
      %v1419 = vmul.f32 %v1415, %v365
      %v1420 = vmul.f32 %v1416, %v365
      %v1421 = vmul.f32 %v1417, %v365
      %v1422 = vmul.f32 %v1418, %v365
      %v1423 = vadd.f32 %v1407, %v1419
      %v1424 = vadd.f32 %v1408, %v1420
      %v1425 = vadd.f32 %v1409, %v1421
      %v1426 = vadd.f32 %v1410, %v1422
      %v1427 = vmul.f32 %v1415, %v374
      %v1428 = vmul.f32 %v1416, %v374
      %v1429 = vmul.f32 %v1417, %v374
      %v1430 = vmul.f32 %v1418, %v374
      %v1435 = vrot.slane %v1427, 1
      %v1436 = vrot.slane %v1428, 1
      %v1437 = vsel %vm160, %v1435, %v1436
      %v1438 = vrot.slane %v1429, 1
      %v1439 = vsel %vm160, %v1436, %v1438
      %v1440 = vrot.slane %v1430, 1
      %v1441 = vsel %vm160, %v1438, %v1440
      %v1446 = vadd.f32 %v1423, %v1437
      %v1447 = vadd.f32 %v1424, %v1439
      %v1448 = vadd.f32 %v1425, %v1441
      %v1449 = vadd.f32 %v1426, %v1440
      %v1450 = vmul.f32 %v1415, %v398
      %v1451 = vmul.f32 %v1416, %v398
      %v1452 = vmul.f32 %v1417, %v398
      %v1453 = vmul.f32 %v1418, %v398
      %v1458 = vrot.slane %v1450, 2
      %v1459 = vrot.slane %v1451, 2
      %v1460 = vsel %vm185, %v1458, %v1459
      %v1461 = vrot.slane %v1452, 2
      %v1462 = vsel %vm185, %v1459, %v1461
      %v1463 = vrot.slane %v1453, 2
      %v1464 = vsel %vm185, %v1461, %v1463
      %v1469 = vadd.f32 %v1446, %v1460
      %v1470 = vadd.f32 %v1447, %v1462
      %v1471 = vadd.f32 %v1448, %v1464
      %v1472 = vadd.f32 %v1449, %v1463
      %v1473 = vld [vmem:[%s1164] sm:$0xff]
      %v1474 = vld [vmem:[%s1164 + $0x8] sm:$0xff]
      %v1475 = vld [vmem:[%s1164 + $0x10] sm:$0xff]
      %v1476 = vld [vmem:[%s1164 + $0x18] sm:$0x3f]
      %v1477 = vmax.f32 %v1473, 0.0
      %v1478 = vmax.f32 %v1474, 0.0
      %v1479 = vmax.f32 %v1475, 0.0
      %v1480 = vmax.f32 %v1476, 0.0
      %v1481 = vmul.f32 %v1477, %v432
      %v1482 = vmul.f32 %v1478, %v432
      %v1483 = vmul.f32 %v1479, %v432
      %v1484 = vmul.f32 %v1480, %v432
      %v1485 = vadd.f32 %v1469, %v1481
      %v1486 = vadd.f32 %v1470, %v1482
      %v1487 = vadd.f32 %v1471, %v1483
      %v1488 = vadd.f32 %v1472, %v1484
      %v1489 = vmul.f32 %v1477, %v441
      %v1490 = vmul.f32 %v1478, %v441
      %v1491 = vmul.f32 %v1479, %v441
      %v1492 = vmul.f32 %v1480, %v441
      %v1497 = vrot.slane %v1489, 1
      %v1498 = vrot.slane %v1490, 1
      %v1499 = vsel %vm160, %v1497, %v1498
      %v1500 = vrot.slane %v1491, 1
      %v1501 = vsel %vm160, %v1498, %v1500
      %v1502 = vrot.slane %v1492, 1
      %v1503 = vsel %vm160, %v1500, %v1502
      %v1508 = vadd.f32 %v1485, %v1499
      %v1509 = vadd.f32 %v1486, %v1501
      %v1510 = vadd.f32 %v1487, %v1503
      %v1511 = vadd.f32 %v1488, %v1502
      %s1512 = sadd.s32 %s1099, 1920
      %s1513 = scalar_lea.vmem %s0, %s1512
      %v1514 = vld [vmem:[%s1513] sm:$0xff]
      %v1515 = vld [vmem:[%s1513 + $0x8] sm:$0xff]
      %v1516 = vld [vmem:[%s1513 + $0x10] sm:$0xff]
      %v1517 = vld [vmem:[%s1513 + $0x18] sm:$0x3f]
      %v1518 = vmax.f32 %v1514, 0.0
      %v1519 = vmax.f32 %v1515, 0.0
      %v1520 = vmax.f32 %v1516, 0.0
      %v1521 = vmax.f32 %v1517, 0.0
      %v1522 = vmul.f32 %v1518, %v475
      %v1523 = vmul.f32 %v1519, %v475
      %v1524 = vmul.f32 %v1520, %v475
      %v1525 = vmul.f32 %v1521, %v475
      %v1526 = vadd.f32 %v1508, %v1522
      %v1527 = vadd.f32 %v1509, %v1523
      %v1528 = vadd.f32 %v1510, %v1524
      %v1529 = vadd.f32 %v1511, %v1525
      %v1530 = vmul.f32 %v1518, %v484
      %v1531 = vmul.f32 %v1519, %v484
      %v1532 = vmul.f32 %v1520, %v484
      %v1533 = vmul.f32 %v1521, %v484
      %v1538 = vrot.slane %v1530, 1
      %v1539 = vrot.slane %v1531, 1
      %v1540 = vsel %vm160, %v1538, %v1539
      %v1541 = vrot.slane %v1532, 1
      %v1542 = vsel %vm160, %v1539, %v1541
      %v1543 = vrot.slane %v1533, 1
      %v1544 = vsel %vm160, %v1541, %v1543
      %v1549 = vadd.f32 %v1526, %v1540
      %v1550 = vadd.f32 %v1527, %v1542
      %v1551 = vadd.f32 %v1528, %v1544
      %v1552 = vadd.f32 %v1529, %v1543
      %v1553 = vmul.f32 %v1518, %v508
      %v1554 = vmul.f32 %v1519, %v508
      %v1555 = vmul.f32 %v1520, %v508
      %v1556 = vmul.f32 %v1521, %v508
      %v1561 = vrot.slane %v1553, 2
      %v1562 = vrot.slane %v1554, 2
      %v1563 = vsel %vm185, %v1561, %v1562
      %v1564 = vrot.slane %v1555, 2
      %v1565 = vsel %vm185, %v1562, %v1564
      %v1566 = vrot.slane %v1556, 2
      %v1567 = vsel %vm185, %v1564, %v1566
      %v1572 = vadd.f32 %v1549, %v1563
      %v1573 = vadd.f32 %v1550, %v1565
      %v1574 = vadd.f32 %v1551, %v1567
      %v1575 = vadd.f32 %v1552, %v1566
      %s1576 = sadd.s32 %s1163, 1920
      %s1577 = scalar_lea.vmem %s0, %s1576
      %v1578 = vld [vmem:[%s1577] sm:$0xff]
      %v1579 = vld [vmem:[%s1577 + $0x8] sm:$0xff]
      %v1580 = vld [vmem:[%s1577 + $0x10] sm:$0xff]
      %v1581 = vld [vmem:[%s1577 + $0x18] sm:$0x3f]
      %v1582 = vmax.f32 %v1578, 0.0
      %v1583 = vmax.f32 %v1579, 0.0
      %v1584 = vmax.f32 %v1580, 0.0
      %v1585 = vmax.f32 %v1581, 0.0
      %v1586 = vmul.f32 %v1582, %v542
      %v1587 = vmul.f32 %v1583, %v542
      %v1588 = vmul.f32 %v1584, %v542
      %v1589 = vmul.f32 %v1585, %v542
      %v1590 = vadd.f32 %v1572, %v1586
      %v1591 = vadd.f32 %v1573, %v1587
      %v1592 = vadd.f32 %v1574, %v1588
      %v1593 = vadd.f32 %v1575, %v1589
      %v1594 = vmul.f32 %v1582, %v551
      %v1595 = vmul.f32 %v1583, %v551
      %v1596 = vmul.f32 %v1584, %v551
      %v1597 = vmul.f32 %v1585, %v551
      %v1602 = vrot.slane %v1594, 1
      %v1603 = vrot.slane %v1595, 1
      %v1604 = vsel %vm160, %v1602, %v1603
      %v1605 = vrot.slane %v1596, 1
      %v1606 = vsel %vm160, %v1603, %v1605
      %v1607 = vrot.slane %v1597, 1
      %v1608 = vsel %vm160, %v1605, %v1607
      %v1613 = vadd.f32 %v1590, %v1604
      %v1614 = vadd.f32 %v1591, %v1606
      %v1615 = vadd.f32 %v1592, %v1608
      %v1616 = vadd.f32 %v1593, %v1607
      %s1617 = sadd.s32 %s127, 4
      %s1618 = smul.u32 %s1617, 32
      %s1619 = scalar_lea.vmem %s0, %s1618
      %v1620 = vld [vmem:[%s1619] sm:$0xff]
      %v1621 = vld [vmem:[%s1619 + $0x8] sm:$0xff]
      %v1622 = vld [vmem:[%s1619 + $0x10] sm:$0xff]
      %v1623 = vld [vmem:[%s1619 + $0x18] sm:$0x3f]
      %v1624 = vmax.f32 %v1620, 0.0
      %v1625 = vmax.f32 %v1621, 0.0
      %v1626 = vmax.f32 %v1622, 0.0
      %v1627 = vmax.f32 %v1623, 0.0
      %v1628 = vmul.f32 %v1624, %v586
      %v1629 = vmul.f32 %v1625, %v586
      %v1630 = vmul.f32 %v1626, %v586
      %v1631 = vmul.f32 %v1627, %v586
      %v1632 = vadd.f32 %v1613, %v1628
      %v1633 = vadd.f32 %v1614, %v1629
      %v1634 = vadd.f32 %v1615, %v1630
      %v1635 = vadd.f32 %v1616, %v1631
      %v1636 = vmul.f32 %v1624, %v595
      %v1637 = vmul.f32 %v1625, %v595
      %v1638 = vmul.f32 %v1626, %v595
      %v1639 = vmul.f32 %v1627, %v595
      %v1644 = vrot.slane %v1636, 1
      %v1645 = vrot.slane %v1637, 1
      %v1646 = vsel %vm160, %v1644, %v1645
      %v1647 = vrot.slane %v1638, 1
      %v1648 = vsel %vm160, %v1645, %v1647
      %v1649 = vrot.slane %v1639, 1
      %v1650 = vsel %vm160, %v1647, %v1649
      %v1655 = vadd.f32 %v1632, %v1646
      %v1656 = vadd.f32 %v1633, %v1648
      %v1657 = vadd.f32 %v1634, %v1650
      %v1658 = vadd.f32 %v1635, %v1649
      %v1659 = vmul.f32 %v1624, %v619
      %v1660 = vmul.f32 %v1625, %v619
      %v1661 = vmul.f32 %v1626, %v619
      %v1662 = vmul.f32 %v1627, %v619
      %v1667 = vrot.slane %v1659, 2
      %v1668 = vrot.slane %v1660, 2
      %v1669 = vsel %vm185, %v1667, %v1668
      %v1670 = vrot.slane %v1661, 2
      %v1671 = vsel %vm185, %v1668, %v1670
      %v1672 = vrot.slane %v1662, 2
      %v1673 = vsel %vm185, %v1670, %v1672
      %v1678 = vadd.f32 %v1655, %v1669
      %v1679 = vadd.f32 %v1656, %v1671
      %v1680 = vadd.f32 %v1657, %v1673
      %v1681 = vadd.f32 %v1658, %v1672
      %s1682 = sadd.s32 %s1618, 960
      %s1683 = scalar_lea.vmem %s0, %s1682
      %v1684 = vld [vmem:[%s1683] sm:$0xff]
      %v1685 = vld [vmem:[%s1683 + $0x8] sm:$0xff]
      %v1686 = vld [vmem:[%s1683 + $0x10] sm:$0xff]
      %v1687 = vld [vmem:[%s1683 + $0x18] sm:$0x3f]
      %v1688 = vmax.f32 %v1684, 0.0
      %v1689 = vmax.f32 %v1685, 0.0
      %v1690 = vmax.f32 %v1686, 0.0
      %v1691 = vmax.f32 %v1687, 0.0
      %v1692 = vmul.f32 %v1688, %v653
      %v1693 = vmul.f32 %v1689, %v653
      %v1694 = vmul.f32 %v1690, %v653
      %v1695 = vmul.f32 %v1691, %v653
      %v1696 = vadd.f32 %v1678, %v1692
      %v1697 = vadd.f32 %v1679, %v1693
      %v1698 = vadd.f32 %v1680, %v1694
      %v1699 = vadd.f32 %v1681, %v1695
      %v1700 = vmul.f32 %v1688, %v662
      %v1701 = vmul.f32 %v1689, %v662
      %v1702 = vmul.f32 %v1690, %v662
      %v1703 = vmul.f32 %v1691, %v662
      %v1708 = vrot.slane %v1700, 1
      %v1709 = vrot.slane %v1701, 1
      %v1710 = vsel %vm160, %v1708, %v1709
      %v1711 = vrot.slane %v1702, 1
      %v1712 = vsel %vm160, %v1709, %v1711
      %v1713 = vrot.slane %v1703, 1
      %v1714 = vsel %vm160, %v1711, %v1713
      %v1719 = vadd.f32 %v1696, %v1710
      %v1720 = vadd.f32 %v1697, %v1712
      %v1721 = vadd.f32 %v1698, %v1714
      %v1722 = vadd.f32 %v1699, %v1713
      %s1723 = scalar_lea.vmem %s125, 64
      %1724 = vst [vmem:[%s1723] sm:$0xff] %v1719
      %1725 = vst [vmem:[%s1723 + $0x8] sm:$0xff] %v1720
      %1726 = vst [vmem:[%s1723 + $0x10] sm:$0xff] %v1721
      %1727 = vst [vmem:[%s1723 + $0x18] sm:$0xf] %v1722
      %v1728 = vld [vmem:[%s1100] sm:$0xff]
      %v1729 = vld [vmem:[%s1100 + $0x8] sm:$0xff]
      %v1730 = vld [vmem:[%s1100 + $0x10] sm:$0xff]
      %v1731 = vld [vmem:[%s1100 + $0x18] sm:$0x3f]
      %v1732 = vmax.f32 %v1728, 0.0
      %v1733 = vmax.f32 %v1729, 0.0
      %v1734 = vmax.f32 %v1730, 0.0
      %v1735 = vmax.f32 %v1731, 0.0
      %v1736 = vmul.f32 %v1732, %v142
      %v1737 = vmul.f32 %v1733, %v142
      %v1738 = vmul.f32 %v1734, %v142
      %v1739 = vmul.f32 %v1735, %v142
      %v1740 = vadd.f32 %v1736, 0.0
      %v1741 = vadd.f32 %v1737, 0.0
      %v1742 = vadd.f32 %v1738, 0.0
      %v1743 = vadd.f32 %v1739, 0.0
      %v1744 = vmul.f32 %v1732, %v151
      %v1745 = vmul.f32 %v1733, %v151
      %v1746 = vmul.f32 %v1734, %v151
      %v1747 = vmul.f32 %v1735, %v151
      %v1752 = vrot.slane %v1744, 1
      %v1753 = vrot.slane %v1745, 1
      %v1754 = vsel %vm160, %v1752, %v1753
      %v1755 = vrot.slane %v1746, 1
      %v1756 = vsel %vm160, %v1753, %v1755
      %v1757 = vrot.slane %v1747, 1
      %v1758 = vsel %vm160, %v1755, %v1757
      %v1763 = vadd.f32 %v1740, %v1754
      %v1764 = vadd.f32 %v1741, %v1756
      %v1765 = vadd.f32 %v1742, %v1758
      %v1766 = vadd.f32 %v1743, %v1757
      %v1767 = vmul.f32 %v1732, %v176
      %v1768 = vmul.f32 %v1733, %v176
      %v1769 = vmul.f32 %v1734, %v176
      %v1770 = vmul.f32 %v1735, %v176
      %v1775 = vrot.slane %v1767, 2
      %v1776 = vrot.slane %v1768, 2
      %v1777 = vsel %vm185, %v1775, %v1776
      %v1778 = vrot.slane %v1769, 2
      %v1779 = vsel %vm185, %v1776, %v1778
      %v1780 = vrot.slane %v1770, 2
      %v1781 = vsel %vm185, %v1778, %v1780
      %v1786 = vadd.f32 %v1763, %v1777
      %v1787 = vadd.f32 %v1764, %v1779
      %v1788 = vadd.f32 %v1765, %v1781
      %v1789 = vadd.f32 %v1766, %v1780
      %v1790 = vld [vmem:[%s1164] sm:$0xff]
      %v1791 = vld [vmem:[%s1164 + $0x8] sm:$0xff]
      %v1792 = vld [vmem:[%s1164 + $0x10] sm:$0xff]
      %v1793 = vld [vmem:[%s1164 + $0x18] sm:$0x3f]
      %v1794 = vmax.f32 %v1790, 0.0
      %v1795 = vmax.f32 %v1791, 0.0
      %v1796 = vmax.f32 %v1792, 0.0
      %v1797 = vmax.f32 %v1793, 0.0
      %v1798 = vmul.f32 %v1794, %v211
      %v1799 = vmul.f32 %v1795, %v211
      %v1800 = vmul.f32 %v1796, %v211
      %v1801 = vmul.f32 %v1797, %v211
      %v1802 = vadd.f32 %v1786, %v1798
      %v1803 = vadd.f32 %v1787, %v1799
      %v1804 = vadd.f32 %v1788, %v1800
      %v1805 = vadd.f32 %v1789, %v1801
      %v1806 = vmul.f32 %v1794, %v220
      %v1807 = vmul.f32 %v1795, %v220
      %v1808 = vmul.f32 %v1796, %v220
      %v1809 = vmul.f32 %v1797, %v220
      %v1814 = vrot.slane %v1806, 1
      %v1815 = vrot.slane %v1807, 1
      %v1816 = vsel %vm160, %v1814, %v1815
      %v1817 = vrot.slane %v1808, 1
      %v1818 = vsel %vm160, %v1815, %v1817
      %v1819 = vrot.slane %v1809, 1
      %v1820 = vsel %vm160, %v1817, %v1819
      %v1825 = vadd.f32 %v1802, %v1816
      %v1826 = vadd.f32 %v1803, %v1818
      %v1827 = vadd.f32 %v1804, %v1820
      %v1828 = vadd.f32 %v1805, %v1819
      %v1829 = vld [vmem:[%s1513] sm:$0xff]
      %v1830 = vld [vmem:[%s1513 + $0x8] sm:$0xff]
      %v1831 = vld [vmem:[%s1513 + $0x10] sm:$0xff]
      %v1832 = vld [vmem:[%s1513 + $0x18] sm:$0x3f]
      %v1833 = vmax.f32 %v1829, 0.0
      %v1834 = vmax.f32 %v1830, 0.0
      %v1835 = vmax.f32 %v1831, 0.0
      %v1836 = vmax.f32 %v1832, 0.0
      %v1837 = vmul.f32 %v1833, %v254
      %v1838 = vmul.f32 %v1834, %v254
      %v1839 = vmul.f32 %v1835, %v254
      %v1840 = vmul.f32 %v1836, %v254
      %v1841 = vadd.f32 %v1825, %v1837
      %v1842 = vadd.f32 %v1826, %v1838
      %v1843 = vadd.f32 %v1827, %v1839
      %v1844 = vadd.f32 %v1828, %v1840
      %v1845 = vmul.f32 %v1833, %v263
      %v1846 = vmul.f32 %v1834, %v263
      %v1847 = vmul.f32 %v1835, %v263
      %v1848 = vmul.f32 %v1836, %v263
      %v1853 = vrot.slane %v1845, 1
      %v1854 = vrot.slane %v1846, 1
      %v1855 = vsel %vm160, %v1853, %v1854
      %v1856 = vrot.slane %v1847, 1
      %v1857 = vsel %vm160, %v1854, %v1856
      %v1858 = vrot.slane %v1848, 1
      %v1859 = vsel %vm160, %v1856, %v1858
      %v1864 = vadd.f32 %v1841, %v1855
      %v1865 = vadd.f32 %v1842, %v1857
      %v1866 = vadd.f32 %v1843, %v1859
      %v1867 = vadd.f32 %v1844, %v1858
      %v1868 = vmul.f32 %v1833, %v287
      %v1869 = vmul.f32 %v1834, %v287
      %v1870 = vmul.f32 %v1835, %v287
      %v1871 = vmul.f32 %v1836, %v287
      %v1876 = vrot.slane %v1868, 2
      %v1877 = vrot.slane %v1869, 2
      %v1878 = vsel %vm185, %v1876, %v1877
      %v1879 = vrot.slane %v1870, 2
      %v1880 = vsel %vm185, %v1877, %v1879
      %v1881 = vrot.slane %v1871, 2
      %v1882 = vsel %vm185, %v1879, %v1881
      %v1887 = vadd.f32 %v1864, %v1878
      %v1888 = vadd.f32 %v1865, %v1880
      %v1889 = vadd.f32 %v1866, %v1882
      %v1890 = vadd.f32 %v1867, %v1881
      %v1891 = vld [vmem:[%s1577] sm:$0xff]
      %v1892 = vld [vmem:[%s1577 + $0x8] sm:$0xff]
      %v1893 = vld [vmem:[%s1577 + $0x10] sm:$0xff]
      %v1894 = vld [vmem:[%s1577 + $0x18] sm:$0x3f]
      %v1895 = vmax.f32 %v1891, 0.0
      %v1896 = vmax.f32 %v1892, 0.0
      %v1897 = vmax.f32 %v1893, 0.0
      %v1898 = vmax.f32 %v1894, 0.0
      %v1899 = vmul.f32 %v1895, %v321
      %v1900 = vmul.f32 %v1896, %v321
      %v1901 = vmul.f32 %v1897, %v321
      %v1902 = vmul.f32 %v1898, %v321
      %v1903 = vadd.f32 %v1887, %v1899
      %v1904 = vadd.f32 %v1888, %v1900
      %v1905 = vadd.f32 %v1889, %v1901
      %v1906 = vadd.f32 %v1890, %v1902
      %v1907 = vmul.f32 %v1895, %v330
      %v1908 = vmul.f32 %v1896, %v330
      %v1909 = vmul.f32 %v1897, %v330
      %v1910 = vmul.f32 %v1898, %v330
      %v1915 = vrot.slane %v1907, 1
      %v1916 = vrot.slane %v1908, 1
      %v1917 = vsel %vm160, %v1915, %v1916
      %v1918 = vrot.slane %v1909, 1
      %v1919 = vsel %vm160, %v1916, %v1918
      %v1920 = vrot.slane %v1910, 1
      %v1921 = vsel %vm160, %v1918, %v1920
      %v1926 = vadd.f32 %v1903, %v1917
      %v1927 = vadd.f32 %v1904, %v1919
      %v1928 = vadd.f32 %v1905, %v1921
      %v1929 = vadd.f32 %v1906, %v1920
      %v1930 = vld [vmem:[%s1619] sm:$0xff]
      %v1931 = vld [vmem:[%s1619 + $0x8] sm:$0xff]
      %v1932 = vld [vmem:[%s1619 + $0x10] sm:$0xff]
      %v1933 = vld [vmem:[%s1619 + $0x18] sm:$0x3f]
      %v1934 = vmax.f32 %v1930, 0.0
      %v1935 = vmax.f32 %v1931, 0.0
      %v1936 = vmax.f32 %v1932, 0.0
      %v1937 = vmax.f32 %v1933, 0.0
      %v1938 = vmul.f32 %v1934, %v365
      %v1939 = vmul.f32 %v1935, %v365
      %v1940 = vmul.f32 %v1936, %v365
      %v1941 = vmul.f32 %v1937, %v365
      %v1942 = vadd.f32 %v1926, %v1938
      %v1943 = vadd.f32 %v1927, %v1939
      %v1944 = vadd.f32 %v1928, %v1940
      %v1945 = vadd.f32 %v1929, %v1941
      %v1946 = vmul.f32 %v1934, %v374
      %v1947 = vmul.f32 %v1935, %v374
      %v1948 = vmul.f32 %v1936, %v374
      %v1949 = vmul.f32 %v1937, %v374
      %v1954 = vrot.slane %v1946, 1
      %v1955 = vrot.slane %v1947, 1
      %v1956 = vsel %vm160, %v1954, %v1955
      %v1957 = vrot.slane %v1948, 1
      %v1958 = vsel %vm160, %v1955, %v1957
      %v1959 = vrot.slane %v1949, 1
      %v1960 = vsel %vm160, %v1957, %v1959
      %v1965 = vadd.f32 %v1942, %v1956
      %v1966 = vadd.f32 %v1943, %v1958
      %v1967 = vadd.f32 %v1944, %v1960
      %v1968 = vadd.f32 %v1945, %v1959
      %v1969 = vmul.f32 %v1934, %v398
      %v1970 = vmul.f32 %v1935, %v398
      %v1971 = vmul.f32 %v1936, %v398
      %v1972 = vmul.f32 %v1937, %v398
      %v1977 = vrot.slane %v1969, 2
      %v1978 = vrot.slane %v1970, 2
      %v1979 = vsel %vm185, %v1977, %v1978
      %v1980 = vrot.slane %v1971, 2
      %v1981 = vsel %vm185, %v1978, %v1980
      %v1982 = vrot.slane %v1972, 2
      %v1983 = vsel %vm185, %v1980, %v1982
      %v1988 = vadd.f32 %v1965, %v1979
      %v1989 = vadd.f32 %v1966, %v1981
      %v1990 = vadd.f32 %v1967, %v1983
      %v1991 = vadd.f32 %v1968, %v1982
      %v1992 = vld [vmem:[%s1683] sm:$0xff]
      %v1993 = vld [vmem:[%s1683 + $0x8] sm:$0xff]
      %v1994 = vld [vmem:[%s1683 + $0x10] sm:$0xff]
      %v1995 = vld [vmem:[%s1683 + $0x18] sm:$0x3f]
      %v1996 = vmax.f32 %v1992, 0.0
      %v1997 = vmax.f32 %v1993, 0.0
      %v1998 = vmax.f32 %v1994, 0.0
      %v1999 = vmax.f32 %v1995, 0.0
      %v2000 = vmul.f32 %v1996, %v432
      %v2001 = vmul.f32 %v1997, %v432
      %v2002 = vmul.f32 %v1998, %v432
      %v2003 = vmul.f32 %v1999, %v432
      %v2004 = vadd.f32 %v1988, %v2000
      %v2005 = vadd.f32 %v1989, %v2001
      %v2006 = vadd.f32 %v1990, %v2002
      %v2007 = vadd.f32 %v1991, %v2003
      %v2008 = vmul.f32 %v1996, %v441
      %v2009 = vmul.f32 %v1997, %v441
      %v2010 = vmul.f32 %v1998, %v441
      %v2011 = vmul.f32 %v1999, %v441
      %v2016 = vrot.slane %v2008, 1
      %v2017 = vrot.slane %v2009, 1
      %v2018 = vsel %vm160, %v2016, %v2017
      %v2019 = vrot.slane %v2010, 1
      %v2020 = vsel %vm160, %v2017, %v2019
      %v2021 = vrot.slane %v2011, 1
      %v2022 = vsel %vm160, %v2019, %v2021
      %v2027 = vadd.f32 %v2004, %v2018
      %v2028 = vadd.f32 %v2005, %v2020
      %v2029 = vadd.f32 %v2006, %v2022
      %v2030 = vadd.f32 %v2007, %v2021
      %s2031 = sadd.s32 %s1618, 1920
      %s2032 = scalar_lea.vmem %s0, %s2031
      %v2033 = vld [vmem:[%s2032] sm:$0xff]
      %v2034 = vld [vmem:[%s2032 + $0x8] sm:$0xff]
      %v2035 = vld [vmem:[%s2032 + $0x10] sm:$0xff]
      %v2036 = vld [vmem:[%s2032 + $0x18] sm:$0x3f]
      %v2037 = vmax.f32 %v2033, 0.0
      %v2038 = vmax.f32 %v2034, 0.0
      %v2039 = vmax.f32 %v2035, 0.0
      %v2040 = vmax.f32 %v2036, 0.0
      %v2041 = vmul.f32 %v2037, %v475
      %v2042 = vmul.f32 %v2038, %v475
      %v2043 = vmul.f32 %v2039, %v475
      %v2044 = vmul.f32 %v2040, %v475
      %v2045 = vadd.f32 %v2027, %v2041
      %v2046 = vadd.f32 %v2028, %v2042
      %v2047 = vadd.f32 %v2029, %v2043
      %v2048 = vadd.f32 %v2030, %v2044
      %v2049 = vmul.f32 %v2037, %v484
      %v2050 = vmul.f32 %v2038, %v484
      %v2051 = vmul.f32 %v2039, %v484
      %v2052 = vmul.f32 %v2040, %v484
      %v2057 = vrot.slane %v2049, 1
      %v2058 = vrot.slane %v2050, 1
      %v2059 = vsel %vm160, %v2057, %v2058
      %v2060 = vrot.slane %v2051, 1
      %v2061 = vsel %vm160, %v2058, %v2060
      %v2062 = vrot.slane %v2052, 1
      %v2063 = vsel %vm160, %v2060, %v2062
      %v2068 = vadd.f32 %v2045, %v2059
      %v2069 = vadd.f32 %v2046, %v2061
      %v2070 = vadd.f32 %v2047, %v2063
      %v2071 = vadd.f32 %v2048, %v2062
      %v2072 = vmul.f32 %v2037, %v508
      %v2073 = vmul.f32 %v2038, %v508
      %v2074 = vmul.f32 %v2039, %v508
      %v2075 = vmul.f32 %v2040, %v508
      %v2080 = vrot.slane %v2072, 2
      %v2081 = vrot.slane %v2073, 2
      %v2082 = vsel %vm185, %v2080, %v2081
      %v2083 = vrot.slane %v2074, 2
      %v2084 = vsel %vm185, %v2081, %v2083
      %v2085 = vrot.slane %v2075, 2
      %v2086 = vsel %vm185, %v2083, %v2085
      %v2091 = vadd.f32 %v2068, %v2082
      %v2092 = vadd.f32 %v2069, %v2084
      %v2093 = vadd.f32 %v2070, %v2086
      %v2094 = vadd.f32 %v2071, %v2085
      %s2095 = sadd.s32 %s1682, 1920
      %s2096 = scalar_lea.vmem %s0, %s2095
      %v2097 = vld [vmem:[%s2096] sm:$0xff]
      %v2098 = vld [vmem:[%s2096 + $0x8] sm:$0xff]
      %v2099 = vld [vmem:[%s2096 + $0x10] sm:$0xff]
      %v2100 = vld [vmem:[%s2096 + $0x18] sm:$0x3f]
      %v2101 = vmax.f32 %v2097, 0.0
      %v2102 = vmax.f32 %v2098, 0.0
      %v2103 = vmax.f32 %v2099, 0.0
      %v2104 = vmax.f32 %v2100, 0.0
      %v2105 = vmul.f32 %v2101, %v542
      %v2106 = vmul.f32 %v2102, %v542
      %v2107 = vmul.f32 %v2103, %v542
      %v2108 = vmul.f32 %v2104, %v542
      %v2109 = vadd.f32 %v2091, %v2105
      %v2110 = vadd.f32 %v2092, %v2106
      %v2111 = vadd.f32 %v2093, %v2107
      %v2112 = vadd.f32 %v2094, %v2108
      %v2113 = vmul.f32 %v2101, %v551
      %v2114 = vmul.f32 %v2102, %v551
      %v2115 = vmul.f32 %v2103, %v551
      %v2116 = vmul.f32 %v2104, %v551
      %v2121 = vrot.slane %v2113, 1
      %v2122 = vrot.slane %v2114, 1
      %v2123 = vsel %vm160, %v2121, %v2122
      %v2124 = vrot.slane %v2115, 1
      %v2125 = vsel %vm160, %v2122, %v2124
      %v2126 = vrot.slane %v2116, 1
      %v2127 = vsel %vm160, %v2124, %v2126
      %v2132 = vadd.f32 %v2109, %v2123
      %v2133 = vadd.f32 %v2110, %v2125
      %v2134 = vadd.f32 %v2111, %v2127
      %v2135 = vadd.f32 %v2112, %v2126
      %s2136 = sadd.s32 %s127, 5
      %s2137 = smul.u32 %s2136, 32
      %s2138 = scalar_lea.vmem %s0, %s2137
      %v2139 = vld [vmem:[%s2138] sm:$0xff]
      %v2140 = vld [vmem:[%s2138 + $0x8] sm:$0xff]
      %v2141 = vld [vmem:[%s2138 + $0x10] sm:$0xff]
      %v2142 = vld [vmem:[%s2138 + $0x18] sm:$0x3f]
      %v2143 = vmax.f32 %v2139, 0.0
      %v2144 = vmax.f32 %v2140, 0.0
      %v2145 = vmax.f32 %v2141, 0.0
      %v2146 = vmax.f32 %v2142, 0.0
      %v2147 = vmul.f32 %v2143, %v586
      %v2148 = vmul.f32 %v2144, %v586
      %v2149 = vmul.f32 %v2145, %v586
      %v2150 = vmul.f32 %v2146, %v586
      %v2151 = vadd.f32 %v2132, %v2147
      %v2152 = vadd.f32 %v2133, %v2148
      %v2153 = vadd.f32 %v2134, %v2149
      %v2154 = vadd.f32 %v2135, %v2150
      %v2155 = vmul.f32 %v2143, %v595
      %v2156 = vmul.f32 %v2144, %v595
      %v2157 = vmul.f32 %v2145, %v595
      %v2158 = vmul.f32 %v2146, %v595
      %v2163 = vrot.slane %v2155, 1
      %v2164 = vrot.slane %v2156, 1
      %v2165 = vsel %vm160, %v2163, %v2164
      %v2166 = vrot.slane %v2157, 1
      %v2167 = vsel %vm160, %v2164, %v2166
      %v2168 = vrot.slane %v2158, 1
      %v2169 = vsel %vm160, %v2166, %v2168
      %v2174 = vadd.f32 %v2151, %v2165
      %v2175 = vadd.f32 %v2152, %v2167
      %v2176 = vadd.f32 %v2153, %v2169
      %v2177 = vadd.f32 %v2154, %v2168
      %v2178 = vmul.f32 %v2143, %v619
      %v2179 = vmul.f32 %v2144, %v619
      %v2180 = vmul.f32 %v2145, %v619
      %v2181 = vmul.f32 %v2146, %v619
      %v2186 = vrot.slane %v2178, 2
      %v2187 = vrot.slane %v2179, 2
      %v2188 = vsel %vm185, %v2186, %v2187
      %v2189 = vrot.slane %v2180, 2
      %v2190 = vsel %vm185, %v2187, %v2189
      %v2191 = vrot.slane %v2181, 2
      %v2192 = vsel %vm185, %v2189, %v2191
      %v2197 = vadd.f32 %v2174, %v2188
      %v2198 = vadd.f32 %v2175, %v2190
      %v2199 = vadd.f32 %v2176, %v2192
      %v2200 = vadd.f32 %v2177, %v2191
      %s2201 = sadd.s32 %s2137, 960
      %s2202 = scalar_lea.vmem %s0, %s2201
      %v2203 = vld [vmem:[%s2202] sm:$0xff]
      %v2204 = vld [vmem:[%s2202 + $0x8] sm:$0xff]
      %v2205 = vld [vmem:[%s2202 + $0x10] sm:$0xff]
      %v2206 = vld [vmem:[%s2202 + $0x18] sm:$0x3f]
      %v2207 = vmax.f32 %v2203, 0.0
      %v2208 = vmax.f32 %v2204, 0.0
      %v2209 = vmax.f32 %v2205, 0.0
      %v2210 = vmax.f32 %v2206, 0.0
      %v2211 = vmul.f32 %v2207, %v653
      %v2212 = vmul.f32 %v2208, %v653
      %v2213 = vmul.f32 %v2209, %v653
      %v2214 = vmul.f32 %v2210, %v653
      %v2215 = vadd.f32 %v2197, %v2211
      %v2216 = vadd.f32 %v2198, %v2212
      %v2217 = vadd.f32 %v2199, %v2213
      %v2218 = vadd.f32 %v2200, %v2214
      %v2219 = vmul.f32 %v2207, %v662
      %v2220 = vmul.f32 %v2208, %v662
      %v2221 = vmul.f32 %v2209, %v662
      %v2222 = vmul.f32 %v2210, %v662
      %v2227 = vrot.slane %v2219, 1
      %v2228 = vrot.slane %v2220, 1
      %v2229 = vsel %vm160, %v2227, %v2228
      %v2230 = vrot.slane %v2221, 1
      %v2231 = vsel %vm160, %v2228, %v2230
      %v2232 = vrot.slane %v2222, 1
      %v2233 = vsel %vm160, %v2230, %v2232
      %v2238 = vadd.f32 %v2215, %v2229
      %v2239 = vadd.f32 %v2216, %v2231
      %v2240 = vadd.f32 %v2217, %v2233
      %v2241 = vadd.f32 %v2218, %v2232
      %s2242 = scalar_lea.vmem %s125, 96
      %2243 = vst [vmem:[%s2242] sm:$0xff] %v2238
      %2244 = vst [vmem:[%s2242 + $0x8] sm:$0xff] %v2239
      %2245 = vst [vmem:[%s2242 + $0x10] sm:$0xff] %v2240
      %2246 = vst [vmem:[%s2242 + $0x18] sm:$0xf] %v2241
      %v2247 = vld [vmem:[%s1619] sm:$0xff]
      %v2248 = vld [vmem:[%s1619 + $0x8] sm:$0xff]
      %v2249 = vld [vmem:[%s1619 + $0x10] sm:$0xff]
      %v2250 = vld [vmem:[%s1619 + $0x18] sm:$0x3f]
      %v2251 = vmax.f32 %v2247, 0.0
      %v2252 = vmax.f32 %v2248, 0.0
      %v2253 = vmax.f32 %v2249, 0.0
      %v2254 = vmax.f32 %v2250, 0.0
      %v2255 = vmul.f32 %v2251, %v142
      %v2256 = vmul.f32 %v2252, %v142
      %v2257 = vmul.f32 %v2253, %v142
      %v2258 = vmul.f32 %v2254, %v142
      %v2259 = vadd.f32 %v2255, 0.0
      %v2260 = vadd.f32 %v2256, 0.0
      %v2261 = vadd.f32 %v2257, 0.0
      %v2262 = vadd.f32 %v2258, 0.0
      %v2263 = vmul.f32 %v2251, %v151
      %v2264 = vmul.f32 %v2252, %v151
      %v2265 = vmul.f32 %v2253, %v151
      %v2266 = vmul.f32 %v2254, %v151
      %v2271 = vrot.slane %v2263, 1
      %v2272 = vrot.slane %v2264, 1
      %v2273 = vsel %vm160, %v2271, %v2272
      %v2274 = vrot.slane %v2265, 1
      %v2275 = vsel %vm160, %v2272, %v2274
      %v2276 = vrot.slane %v2266, 1
      %v2277 = vsel %vm160, %v2274, %v2276
      %v2282 = vadd.f32 %v2259, %v2273
      %v2283 = vadd.f32 %v2260, %v2275
      %v2284 = vadd.f32 %v2261, %v2277
      %v2285 = vadd.f32 %v2262, %v2276
      %v2286 = vmul.f32 %v2251, %v176
      %v2287 = vmul.f32 %v2252, %v176
      %v2288 = vmul.f32 %v2253, %v176
      %v2289 = vmul.f32 %v2254, %v176
      %v2294 = vrot.slane %v2286, 2
      %v2295 = vrot.slane %v2287, 2
      %v2296 = vsel %vm185, %v2294, %v2295
      %v2297 = vrot.slane %v2288, 2
      %v2298 = vsel %vm185, %v2295, %v2297
      %v2299 = vrot.slane %v2289, 2
      %v2300 = vsel %vm185, %v2297, %v2299
      %v2305 = vadd.f32 %v2282, %v2296
      %v2306 = vadd.f32 %v2283, %v2298
      %v2307 = vadd.f32 %v2284, %v2300
      %v2308 = vadd.f32 %v2285, %v2299
      %v2309 = vld [vmem:[%s1683] sm:$0xff]
      %v2310 = vld [vmem:[%s1683 + $0x8] sm:$0xff]
      %v2311 = vld [vmem:[%s1683 + $0x10] sm:$0xff]
      %v2312 = vld [vmem:[%s1683 + $0x18] sm:$0x3f]
      %v2313 = vmax.f32 %v2309, 0.0
      %v2314 = vmax.f32 %v2310, 0.0
      %v2315 = vmax.f32 %v2311, 0.0
      %v2316 = vmax.f32 %v2312, 0.0
      %v2317 = vmul.f32 %v2313, %v211
      %v2318 = vmul.f32 %v2314, %v211
      %v2319 = vmul.f32 %v2315, %v211
      %v2320 = vmul.f32 %v2316, %v211
      %v2321 = vadd.f32 %v2305, %v2317
      %v2322 = vadd.f32 %v2306, %v2318
      %v2323 = vadd.f32 %v2307, %v2319
      %v2324 = vadd.f32 %v2308, %v2320
      %v2325 = vmul.f32 %v2313, %v220
      %v2326 = vmul.f32 %v2314, %v220
      %v2327 = vmul.f32 %v2315, %v220
      %v2328 = vmul.f32 %v2316, %v220
      %v2333 = vrot.slane %v2325, 1
      %v2334 = vrot.slane %v2326, 1
      %v2335 = vsel %vm160, %v2333, %v2334
      %v2336 = vrot.slane %v2327, 1
      %v2337 = vsel %vm160, %v2334, %v2336
      %v2338 = vrot.slane %v2328, 1
      %v2339 = vsel %vm160, %v2336, %v2338
      %v2344 = vadd.f32 %v2321, %v2335
      %v2345 = vadd.f32 %v2322, %v2337
      %v2346 = vadd.f32 %v2323, %v2339
      %v2347 = vadd.f32 %v2324, %v2338
      %v2348 = vld [vmem:[%s2032] sm:$0xff]
      %v2349 = vld [vmem:[%s2032 + $0x8] sm:$0xff]
      %v2350 = vld [vmem:[%s2032 + $0x10] sm:$0xff]
      %v2351 = vld [vmem:[%s2032 + $0x18] sm:$0x3f]
      %v2352 = vmax.f32 %v2348, 0.0
      %v2353 = vmax.f32 %v2349, 0.0
      %v2354 = vmax.f32 %v2350, 0.0
      %v2355 = vmax.f32 %v2351, 0.0
      %v2356 = vmul.f32 %v2352, %v254
      %v2357 = vmul.f32 %v2353, %v254
      %v2358 = vmul.f32 %v2354, %v254
      %v2359 = vmul.f32 %v2355, %v254
      %v2360 = vadd.f32 %v2344, %v2356
      %v2361 = vadd.f32 %v2345, %v2357
      %v2362 = vadd.f32 %v2346, %v2358
      %v2363 = vadd.f32 %v2347, %v2359
      %v2364 = vmul.f32 %v2352, %v263
      %v2365 = vmul.f32 %v2353, %v263
      %v2366 = vmul.f32 %v2354, %v263
      %v2367 = vmul.f32 %v2355, %v263
      %v2372 = vrot.slane %v2364, 1
      %v2373 = vrot.slane %v2365, 1
      %v2374 = vsel %vm160, %v2372, %v2373
      %v2375 = vrot.slane %v2366, 1
      %v2376 = vsel %vm160, %v2373, %v2375
      %v2377 = vrot.slane %v2367, 1
      %v2378 = vsel %vm160, %v2375, %v2377
      %v2383 = vadd.f32 %v2360, %v2374
      %v2384 = vadd.f32 %v2361, %v2376
      %v2385 = vadd.f32 %v2362, %v2378
      %v2386 = vadd.f32 %v2363, %v2377
      %v2387 = vmul.f32 %v2352, %v287
      %v2388 = vmul.f32 %v2353, %v287
      %v2389 = vmul.f32 %v2354, %v287
      %v2390 = vmul.f32 %v2355, %v287
      %v2395 = vrot.slane %v2387, 2
      %v2396 = vrot.slane %v2388, 2
      %v2397 = vsel %vm185, %v2395, %v2396
      %v2398 = vrot.slane %v2389, 2
      %v2399 = vsel %vm185, %v2396, %v2398
      %v2400 = vrot.slane %v2390, 2
      %v2401 = vsel %vm185, %v2398, %v2400
      %v2406 = vadd.f32 %v2383, %v2397
      %v2407 = vadd.f32 %v2384, %v2399
      %v2408 = vadd.f32 %v2385, %v2401
      %v2409 = vadd.f32 %v2386, %v2400
      %v2410 = vld [vmem:[%s2096] sm:$0xff]
      %v2411 = vld [vmem:[%s2096 + $0x8] sm:$0xff]
      %v2412 = vld [vmem:[%s2096 + $0x10] sm:$0xff]
      %v2413 = vld [vmem:[%s2096 + $0x18] sm:$0x3f]
      %v2414 = vmax.f32 %v2410, 0.0
      %v2415 = vmax.f32 %v2411, 0.0
      %v2416 = vmax.f32 %v2412, 0.0
      %v2417 = vmax.f32 %v2413, 0.0
      %v2418 = vmul.f32 %v2414, %v321
      %v2419 = vmul.f32 %v2415, %v321
      %v2420 = vmul.f32 %v2416, %v321
      %v2421 = vmul.f32 %v2417, %v321
      %v2422 = vadd.f32 %v2406, %v2418
      %v2423 = vadd.f32 %v2407, %v2419
      %v2424 = vadd.f32 %v2408, %v2420
      %v2425 = vadd.f32 %v2409, %v2421
      %v2426 = vmul.f32 %v2414, %v330
      %v2427 = vmul.f32 %v2415, %v330
      %v2428 = vmul.f32 %v2416, %v330
      %v2429 = vmul.f32 %v2417, %v330
      %v2434 = vrot.slane %v2426, 1
      %v2435 = vrot.slane %v2427, 1
      %v2436 = vsel %vm160, %v2434, %v2435
      %v2437 = vrot.slane %v2428, 1
      %v2438 = vsel %vm160, %v2435, %v2437
      %v2439 = vrot.slane %v2429, 1
      %v2440 = vsel %vm160, %v2437, %v2439
      %v2445 = vadd.f32 %v2422, %v2436
      %v2446 = vadd.f32 %v2423, %v2438
      %v2447 = vadd.f32 %v2424, %v2440
      %v2448 = vadd.f32 %v2425, %v2439
      %v2449 = vld [vmem:[%s2138] sm:$0xff]
      %v2450 = vld [vmem:[%s2138 + $0x8] sm:$0xff]
      %v2451 = vld [vmem:[%s2138 + $0x10] sm:$0xff]
      %v2452 = vld [vmem:[%s2138 + $0x18] sm:$0x3f]
      %v2453 = vmax.f32 %v2449, 0.0
      %v2454 = vmax.f32 %v2450, 0.0
      %v2455 = vmax.f32 %v2451, 0.0
      %v2456 = vmax.f32 %v2452, 0.0
      %v2457 = vmul.f32 %v2453, %v365
      %v2458 = vmul.f32 %v2454, %v365
      %v2459 = vmul.f32 %v2455, %v365
      %v2460 = vmul.f32 %v2456, %v365
      %v2461 = vadd.f32 %v2445, %v2457
      %v2462 = vadd.f32 %v2446, %v2458
      %v2463 = vadd.f32 %v2447, %v2459
      %v2464 = vadd.f32 %v2448, %v2460
      %v2465 = vmul.f32 %v2453, %v374
      %v2466 = vmul.f32 %v2454, %v374
      %v2467 = vmul.f32 %v2455, %v374
      %v2468 = vmul.f32 %v2456, %v374
      %v2473 = vrot.slane %v2465, 1
      %v2474 = vrot.slane %v2466, 1
      %v2475 = vsel %vm160, %v2473, %v2474
      %v2476 = vrot.slane %v2467, 1
      %v2477 = vsel %vm160, %v2474, %v2476
      %v2478 = vrot.slane %v2468, 1
      %v2479 = vsel %vm160, %v2476, %v2478
      %v2484 = vadd.f32 %v2461, %v2475
      %v2485 = vadd.f32 %v2462, %v2477
      %v2486 = vadd.f32 %v2463, %v2479
      %v2487 = vadd.f32 %v2464, %v2478
      %v2488 = vmul.f32 %v2453, %v398
      %v2489 = vmul.f32 %v2454, %v398
      %v2490 = vmul.f32 %v2455, %v398
      %v2491 = vmul.f32 %v2456, %v398
      %v2496 = vrot.slane %v2488, 2
      %v2497 = vrot.slane %v2489, 2
      %v2498 = vsel %vm185, %v2496, %v2497
      %v2499 = vrot.slane %v2490, 2
      %v2500 = vsel %vm185, %v2497, %v2499
      %v2501 = vrot.slane %v2491, 2
      %v2502 = vsel %vm185, %v2499, %v2501
      %v2507 = vadd.f32 %v2484, %v2498
      %v2508 = vadd.f32 %v2485, %v2500
      %v2509 = vadd.f32 %v2486, %v2502
      %v2510 = vadd.f32 %v2487, %v2501
      %v2511 = vld [vmem:[%s2202] sm:$0xff]
      %v2512 = vld [vmem:[%s2202 + $0x8] sm:$0xff]
      %v2513 = vld [vmem:[%s2202 + $0x10] sm:$0xff]
      %v2514 = vld [vmem:[%s2202 + $0x18] sm:$0x3f]
      %v2515 = vmax.f32 %v2511, 0.0
      %v2516 = vmax.f32 %v2512, 0.0
      %v2517 = vmax.f32 %v2513, 0.0
      %v2518 = vmax.f32 %v2514, 0.0
      %v2519 = vmul.f32 %v2515, %v432
      %v2520 = vmul.f32 %v2516, %v432
      %v2521 = vmul.f32 %v2517, %v432
      %v2522 = vmul.f32 %v2518, %v432
      %v2523 = vadd.f32 %v2507, %v2519
      %v2524 = vadd.f32 %v2508, %v2520
      %v2525 = vadd.f32 %v2509, %v2521
      %v2526 = vadd.f32 %v2510, %v2522
      %v2527 = vmul.f32 %v2515, %v441
      %v2528 = vmul.f32 %v2516, %v441
      %v2529 = vmul.f32 %v2517, %v441
      %v2530 = vmul.f32 %v2518, %v441
      %v2535 = vrot.slane %v2527, 1
      %v2536 = vrot.slane %v2528, 1
      %v2537 = vsel %vm160, %v2535, %v2536
      %v2538 = vrot.slane %v2529, 1
      %v2539 = vsel %vm160, %v2536, %v2538
      %v2540 = vrot.slane %v2530, 1
      %v2541 = vsel %vm160, %v2538, %v2540
      %v2546 = vadd.f32 %v2523, %v2537
      %v2547 = vadd.f32 %v2524, %v2539
      %v2548 = vadd.f32 %v2525, %v2541
      %v2549 = vadd.f32 %v2526, %v2540
      %s2550 = sadd.s32 %s2137, 1920
      %s2551 = scalar_lea.vmem %s0, %s2550
      %v2552 = vld [vmem:[%s2551] sm:$0xff]
      %v2553 = vld [vmem:[%s2551 + $0x8] sm:$0xff]
      %v2554 = vld [vmem:[%s2551 + $0x10] sm:$0xff]
      %v2555 = vld [vmem:[%s2551 + $0x18] sm:$0x3f]
      %v2556 = vmax.f32 %v2552, 0.0
      %v2557 = vmax.f32 %v2553, 0.0
      %v2558 = vmax.f32 %v2554, 0.0
      %v2559 = vmax.f32 %v2555, 0.0
      %v2560 = vmul.f32 %v2556, %v475
      %v2561 = vmul.f32 %v2557, %v475
      %v2562 = vmul.f32 %v2558, %v475
      %v2563 = vmul.f32 %v2559, %v475
      %v2564 = vadd.f32 %v2546, %v2560
      %v2565 = vadd.f32 %v2547, %v2561
      %v2566 = vadd.f32 %v2548, %v2562
      %v2567 = vadd.f32 %v2549, %v2563
      %v2568 = vmul.f32 %v2556, %v484
      %v2569 = vmul.f32 %v2557, %v484
      %v2570 = vmul.f32 %v2558, %v484
      %v2571 = vmul.f32 %v2559, %v484
      %v2576 = vrot.slane %v2568, 1
      %v2577 = vrot.slane %v2569, 1
      %v2578 = vsel %vm160, %v2576, %v2577
      %v2579 = vrot.slane %v2570, 1
      %v2580 = vsel %vm160, %v2577, %v2579
      %v2581 = vrot.slane %v2571, 1
      %v2582 = vsel %vm160, %v2579, %v2581
      %v2587 = vadd.f32 %v2564, %v2578
      %v2588 = vadd.f32 %v2565, %v2580
      %v2589 = vadd.f32 %v2566, %v2582
      %v2590 = vadd.f32 %v2567, %v2581
      %v2591 = vmul.f32 %v2556, %v508
      %v2592 = vmul.f32 %v2557, %v508
      %v2593 = vmul.f32 %v2558, %v508
      %v2594 = vmul.f32 %v2559, %v508
      %v2599 = vrot.slane %v2591, 2
      %v2600 = vrot.slane %v2592, 2
      %v2601 = vsel %vm185, %v2599, %v2600
      %v2602 = vrot.slane %v2593, 2
      %v2603 = vsel %vm185, %v2600, %v2602
      %v2604 = vrot.slane %v2594, 2
      %v2605 = vsel %vm185, %v2602, %v2604
      %v2610 = vadd.f32 %v2587, %v2601
      %v2611 = vadd.f32 %v2588, %v2603
      %v2612 = vadd.f32 %v2589, %v2605
      %v2613 = vadd.f32 %v2590, %v2604
      %s2614 = sadd.s32 %s2201, 1920
      %s2615 = scalar_lea.vmem %s0, %s2614
      %v2616 = vld [vmem:[%s2615] sm:$0xff]
      %v2617 = vld [vmem:[%s2615 + $0x8] sm:$0xff]
      %v2618 = vld [vmem:[%s2615 + $0x10] sm:$0xff]
      %v2619 = vld [vmem:[%s2615 + $0x18] sm:$0x3f]
      %v2620 = vmax.f32 %v2616, 0.0
      %v2621 = vmax.f32 %v2617, 0.0
      %v2622 = vmax.f32 %v2618, 0.0
      %v2623 = vmax.f32 %v2619, 0.0
      %v2624 = vmul.f32 %v2620, %v542
      %v2625 = vmul.f32 %v2621, %v542
      %v2626 = vmul.f32 %v2622, %v542
      %v2627 = vmul.f32 %v2623, %v542
      %v2628 = vadd.f32 %v2610, %v2624
      %v2629 = vadd.f32 %v2611, %v2625
      %v2630 = vadd.f32 %v2612, %v2626
      %v2631 = vadd.f32 %v2613, %v2627
      %v2632 = vmul.f32 %v2620, %v551
      %v2633 = vmul.f32 %v2621, %v551
      %v2634 = vmul.f32 %v2622, %v551
      %v2635 = vmul.f32 %v2623, %v551
      %v2640 = vrot.slane %v2632, 1
      %v2641 = vrot.slane %v2633, 1
      %v2642 = vsel %vm160, %v2640, %v2641
      %v2643 = vrot.slane %v2634, 1
      %v2644 = vsel %vm160, %v2641, %v2643
      %v2645 = vrot.slane %v2635, 1
      %v2646 = vsel %vm160, %v2643, %v2645
      %v2651 = vadd.f32 %v2628, %v2642
      %v2652 = vadd.f32 %v2629, %v2644
      %v2653 = vadd.f32 %v2630, %v2646
      %v2654 = vadd.f32 %v2631, %v2645
      %s2655 = sadd.s32 %s127, 6
      %s2656 = smul.u32 %s2655, 32
      %s2657 = scalar_lea.vmem %s0, %s2656
      %v2658 = vld [vmem:[%s2657] sm:$0xff]
      %v2659 = vld [vmem:[%s2657 + $0x8] sm:$0xff]
      %v2660 = vld [vmem:[%s2657 + $0x10] sm:$0xff]
      %v2661 = vld [vmem:[%s2657 + $0x18] sm:$0x3f]
      %v2662 = vmax.f32 %v2658, 0.0
      %v2663 = vmax.f32 %v2659, 0.0
      %v2664 = vmax.f32 %v2660, 0.0
      %v2665 = vmax.f32 %v2661, 0.0
      %v2666 = vmul.f32 %v2662, %v586
      %v2667 = vmul.f32 %v2663, %v586
      %v2668 = vmul.f32 %v2664, %v586
      %v2669 = vmul.f32 %v2665, %v586
      %v2670 = vadd.f32 %v2651, %v2666
      %v2671 = vadd.f32 %v2652, %v2667
      %v2672 = vadd.f32 %v2653, %v2668
      %v2673 = vadd.f32 %v2654, %v2669
      %v2674 = vmul.f32 %v2662, %v595
      %v2675 = vmul.f32 %v2663, %v595
      %v2676 = vmul.f32 %v2664, %v595
      %v2677 = vmul.f32 %v2665, %v595
      %v2682 = vrot.slane %v2674, 1
      %v2683 = vrot.slane %v2675, 1
      %v2684 = vsel %vm160, %v2682, %v2683
      %v2685 = vrot.slane %v2676, 1
      %v2686 = vsel %vm160, %v2683, %v2685
      %v2687 = vrot.slane %v2677, 1
      %v2688 = vsel %vm160, %v2685, %v2687
      %v2693 = vadd.f32 %v2670, %v2684
      %v2694 = vadd.f32 %v2671, %v2686
      %v2695 = vadd.f32 %v2672, %v2688
      %v2696 = vadd.f32 %v2673, %v2687
      %v2697 = vmul.f32 %v2662, %v619
      %v2698 = vmul.f32 %v2663, %v619
      %v2699 = vmul.f32 %v2664, %v619
      %v2700 = vmul.f32 %v2665, %v619
      %v2705 = vrot.slane %v2697, 2
      %v2706 = vrot.slane %v2698, 2
      %v2707 = vsel %vm185, %v2705, %v2706
      %v2708 = vrot.slane %v2699, 2
      %v2709 = vsel %vm185, %v2706, %v2708
      %v2710 = vrot.slane %v2700, 2
      %v2711 = vsel %vm185, %v2708, %v2710
      %v2716 = vadd.f32 %v2693, %v2707
      %v2717 = vadd.f32 %v2694, %v2709
      %v2718 = vadd.f32 %v2695, %v2711
      %v2719 = vadd.f32 %v2696, %v2710
      %s2720 = sadd.s32 %s2656, 960
      %s2721 = scalar_lea.vmem %s0, %s2720
      %v2722 = vld [vmem:[%s2721] sm:$0xff]
      %v2723 = vld [vmem:[%s2721 + $0x8] sm:$0xff]
      %v2724 = vld [vmem:[%s2721 + $0x10] sm:$0xff]
      %v2725 = vld [vmem:[%s2721 + $0x18] sm:$0x3f]
      %v2726 = vmax.f32 %v2722, 0.0
      %v2727 = vmax.f32 %v2723, 0.0
      %v2728 = vmax.f32 %v2724, 0.0
      %v2729 = vmax.f32 %v2725, 0.0
      %v2730 = vmul.f32 %v2726, %v653
      %v2731 = vmul.f32 %v2727, %v653
      %v2732 = vmul.f32 %v2728, %v653
      %v2733 = vmul.f32 %v2729, %v653
      %v2734 = vadd.f32 %v2716, %v2730
      %v2735 = vadd.f32 %v2717, %v2731
      %v2736 = vadd.f32 %v2718, %v2732
      %v2737 = vadd.f32 %v2719, %v2733
      %v2738 = vmul.f32 %v2726, %v662
      %v2739 = vmul.f32 %v2727, %v662
      %v2740 = vmul.f32 %v2728, %v662
      %v2741 = vmul.f32 %v2729, %v662
      %v2746 = vrot.slane %v2738, 1
      %v2747 = vrot.slane %v2739, 1
      %v2748 = vsel %vm160, %v2746, %v2747
      %v2749 = vrot.slane %v2740, 1
      %v2750 = vsel %vm160, %v2747, %v2749
      %v2751 = vrot.slane %v2741, 1
      %v2752 = vsel %vm160, %v2749, %v2751
      %v2757 = vadd.f32 %v2734, %v2748
      %v2758 = vadd.f32 %v2735, %v2750
      %v2759 = vadd.f32 %v2736, %v2752
      %v2760 = vadd.f32 %v2737, %v2751
      %s2761 = scalar_lea.vmem %s125, 128
      %2762 = vst [vmem:[%s2761] sm:$0xff] %v2757
      %2763 = vst [vmem:[%s2761 + $0x8] sm:$0xff] %v2758
      %2764 = vst [vmem:[%s2761 + $0x10] sm:$0xff] %v2759
      %2765 = vst [vmem:[%s2761 + $0x18] sm:$0xf] %v2760
      %v2766 = vld [vmem:[%s2138] sm:$0xff]
      %v2767 = vld [vmem:[%s2138 + $0x8] sm:$0xff]
      %v2768 = vld [vmem:[%s2138 + $0x10] sm:$0xff]
      %v2769 = vld [vmem:[%s2138 + $0x18] sm:$0x3f]
      %v2770 = vmax.f32 %v2766, 0.0
      %v2771 = vmax.f32 %v2767, 0.0
      %v2772 = vmax.f32 %v2768, 0.0
      %v2773 = vmax.f32 %v2769, 0.0
      %v2774 = vmul.f32 %v2770, %v142
      %v2775 = vmul.f32 %v2771, %v142
      %v2776 = vmul.f32 %v2772, %v142
      %v2777 = vmul.f32 %v2773, %v142
      %v2778 = vadd.f32 %v2774, 0.0
      %v2779 = vadd.f32 %v2775, 0.0
      %v2780 = vadd.f32 %v2776, 0.0
      %v2781 = vadd.f32 %v2777, 0.0
      %v2782 = vmul.f32 %v2770, %v151
      %v2783 = vmul.f32 %v2771, %v151
      %v2784 = vmul.f32 %v2772, %v151
      %v2785 = vmul.f32 %v2773, %v151
      %v2790 = vrot.slane %v2782, 1
      %v2791 = vrot.slane %v2783, 1
      %v2792 = vsel %vm160, %v2790, %v2791
      %v2793 = vrot.slane %v2784, 1
      %v2794 = vsel %vm160, %v2791, %v2793
      %v2795 = vrot.slane %v2785, 1
      %v2796 = vsel %vm160, %v2793, %v2795
      %v2801 = vadd.f32 %v2778, %v2792
      %v2802 = vadd.f32 %v2779, %v2794
      %v2803 = vadd.f32 %v2780, %v2796
      %v2804 = vadd.f32 %v2781, %v2795
      %v2805 = vmul.f32 %v2770, %v176
      %v2806 = vmul.f32 %v2771, %v176
      %v2807 = vmul.f32 %v2772, %v176
      %v2808 = vmul.f32 %v2773, %v176
      %v2813 = vrot.slane %v2805, 2
      %v2814 = vrot.slane %v2806, 2
      %v2815 = vsel %vm185, %v2813, %v2814
      %v2816 = vrot.slane %v2807, 2
      %v2817 = vsel %vm185, %v2814, %v2816
      %v2818 = vrot.slane %v2808, 2
      %v2819 = vsel %vm185, %v2816, %v2818
      %v2824 = vadd.f32 %v2801, %v2815
      %v2825 = vadd.f32 %v2802, %v2817
      %v2826 = vadd.f32 %v2803, %v2819
      %v2827 = vadd.f32 %v2804, %v2818
      %v2828 = vld [vmem:[%s2202] sm:$0xff]
      %v2829 = vld [vmem:[%s2202 + $0x8] sm:$0xff]
      %v2830 = vld [vmem:[%s2202 + $0x10] sm:$0xff]
      %v2831 = vld [vmem:[%s2202 + $0x18] sm:$0x3f]
      %v2832 = vmax.f32 %v2828, 0.0
      %v2833 = vmax.f32 %v2829, 0.0
      %v2834 = vmax.f32 %v2830, 0.0
      %v2835 = vmax.f32 %v2831, 0.0
      %v2836 = vmul.f32 %v2832, %v211
      %v2837 = vmul.f32 %v2833, %v211
      %v2838 = vmul.f32 %v2834, %v211
      %v2839 = vmul.f32 %v2835, %v211
      %v2840 = vadd.f32 %v2824, %v2836
      %v2841 = vadd.f32 %v2825, %v2837
      %v2842 = vadd.f32 %v2826, %v2838
      %v2843 = vadd.f32 %v2827, %v2839
      %v2844 = vmul.f32 %v2832, %v220
      %v2845 = vmul.f32 %v2833, %v220
      %v2846 = vmul.f32 %v2834, %v220
      %v2847 = vmul.f32 %v2835, %v220
      %v2852 = vrot.slane %v2844, 1
      %v2853 = vrot.slane %v2845, 1
      %v2854 = vsel %vm160, %v2852, %v2853
      %v2855 = vrot.slane %v2846, 1
      %v2856 = vsel %vm160, %v2853, %v2855
      %v2857 = vrot.slane %v2847, 1
      %v2858 = vsel %vm160, %v2855, %v2857
      %v2863 = vadd.f32 %v2840, %v2854
      %v2864 = vadd.f32 %v2841, %v2856
      %v2865 = vadd.f32 %v2842, %v2858
      %v2866 = vadd.f32 %v2843, %v2857
      %v2867 = vld [vmem:[%s2551] sm:$0xff]
      %v2868 = vld [vmem:[%s2551 + $0x8] sm:$0xff]
      %v2869 = vld [vmem:[%s2551 + $0x10] sm:$0xff]
      %v2870 = vld [vmem:[%s2551 + $0x18] sm:$0x3f]
      %v2871 = vmax.f32 %v2867, 0.0
      %v2872 = vmax.f32 %v2868, 0.0
      %v2873 = vmax.f32 %v2869, 0.0
      %v2874 = vmax.f32 %v2870, 0.0
      %v2875 = vmul.f32 %v2871, %v254
      %v2876 = vmul.f32 %v2872, %v254
      %v2877 = vmul.f32 %v2873, %v254
      %v2878 = vmul.f32 %v2874, %v254
      %v2879 = vadd.f32 %v2863, %v2875
      %v2880 = vadd.f32 %v2864, %v2876
      %v2881 = vadd.f32 %v2865, %v2877
      %v2882 = vadd.f32 %v2866, %v2878
      %v2883 = vmul.f32 %v2871, %v263
      %v2884 = vmul.f32 %v2872, %v263
      %v2885 = vmul.f32 %v2873, %v263
      %v2886 = vmul.f32 %v2874, %v263
      %v2891 = vrot.slane %v2883, 1
      %v2892 = vrot.slane %v2884, 1
      %v2893 = vsel %vm160, %v2891, %v2892
      %v2894 = vrot.slane %v2885, 1
      %v2895 = vsel %vm160, %v2892, %v2894
      %v2896 = vrot.slane %v2886, 1
      %v2897 = vsel %vm160, %v2894, %v2896
      %v2902 = vadd.f32 %v2879, %v2893
      %v2903 = vadd.f32 %v2880, %v2895
      %v2904 = vadd.f32 %v2881, %v2897
      %v2905 = vadd.f32 %v2882, %v2896
      %v2906 = vmul.f32 %v2871, %v287
      %v2907 = vmul.f32 %v2872, %v287
      %v2908 = vmul.f32 %v2873, %v287
      %v2909 = vmul.f32 %v2874, %v287
      %v2914 = vrot.slane %v2906, 2
      %v2915 = vrot.slane %v2907, 2
      %v2916 = vsel %vm185, %v2914, %v2915
      %v2917 = vrot.slane %v2908, 2
      %v2918 = vsel %vm185, %v2915, %v2917
      %v2919 = vrot.slane %v2909, 2
      %v2920 = vsel %vm185, %v2917, %v2919
      %v2925 = vadd.f32 %v2902, %v2916
      %v2926 = vadd.f32 %v2903, %v2918
      %v2927 = vadd.f32 %v2904, %v2920
      %v2928 = vadd.f32 %v2905, %v2919
      %v2929 = vld [vmem:[%s2615] sm:$0xff]
      %v2930 = vld [vmem:[%s2615 + $0x8] sm:$0xff]
      %v2931 = vld [vmem:[%s2615 + $0x10] sm:$0xff]
      %v2932 = vld [vmem:[%s2615 + $0x18] sm:$0x3f]
      %v2933 = vmax.f32 %v2929, 0.0
      %v2934 = vmax.f32 %v2930, 0.0
      %v2935 = vmax.f32 %v2931, 0.0
      %v2936 = vmax.f32 %v2932, 0.0
      %v2937 = vmul.f32 %v2933, %v321
      %v2938 = vmul.f32 %v2934, %v321
      %v2939 = vmul.f32 %v2935, %v321
      %v2940 = vmul.f32 %v2936, %v321
      %v2941 = vadd.f32 %v2925, %v2937
      %v2942 = vadd.f32 %v2926, %v2938
      %v2943 = vadd.f32 %v2927, %v2939
      %v2944 = vadd.f32 %v2928, %v2940
      %v2945 = vmul.f32 %v2933, %v330
      %v2946 = vmul.f32 %v2934, %v330
      %v2947 = vmul.f32 %v2935, %v330
      %v2948 = vmul.f32 %v2936, %v330
      %v2953 = vrot.slane %v2945, 1
      %v2954 = vrot.slane %v2946, 1
      %v2955 = vsel %vm160, %v2953, %v2954
      %v2956 = vrot.slane %v2947, 1
      %v2957 = vsel %vm160, %v2954, %v2956
      %v2958 = vrot.slane %v2948, 1
      %v2959 = vsel %vm160, %v2956, %v2958
      %v2964 = vadd.f32 %v2941, %v2955
      %v2965 = vadd.f32 %v2942, %v2957
      %v2966 = vadd.f32 %v2943, %v2959
      %v2967 = vadd.f32 %v2944, %v2958
      %v2968 = vld [vmem:[%s2657] sm:$0xff]
      %v2969 = vld [vmem:[%s2657 + $0x8] sm:$0xff]
      %v2970 = vld [vmem:[%s2657 + $0x10] sm:$0xff]
      %v2971 = vld [vmem:[%s2657 + $0x18] sm:$0x3f]
      %v2972 = vmax.f32 %v2968, 0.0
      %v2973 = vmax.f32 %v2969, 0.0
      %v2974 = vmax.f32 %v2970, 0.0
      %v2975 = vmax.f32 %v2971, 0.0
      %v2976 = vmul.f32 %v2972, %v365
      %v2977 = vmul.f32 %v2973, %v365
      %v2978 = vmul.f32 %v2974, %v365
      %v2979 = vmul.f32 %v2975, %v365
      %v2980 = vadd.f32 %v2964, %v2976
      %v2981 = vadd.f32 %v2965, %v2977
      %v2982 = vadd.f32 %v2966, %v2978
      %v2983 = vadd.f32 %v2967, %v2979
      %v2984 = vmul.f32 %v2972, %v374
      %v2985 = vmul.f32 %v2973, %v374
      %v2986 = vmul.f32 %v2974, %v374
      %v2987 = vmul.f32 %v2975, %v374
      %v2992 = vrot.slane %v2984, 1
      %v2993 = vrot.slane %v2985, 1
      %v2994 = vsel %vm160, %v2992, %v2993
      %v2995 = vrot.slane %v2986, 1
      %v2996 = vsel %vm160, %v2993, %v2995
      %v2997 = vrot.slane %v2987, 1
      %v2998 = vsel %vm160, %v2995, %v2997
      %v3003 = vadd.f32 %v2980, %v2994
      %v3004 = vadd.f32 %v2981, %v2996
      %v3005 = vadd.f32 %v2982, %v2998
      %v3006 = vadd.f32 %v2983, %v2997
      %v3007 = vmul.f32 %v2972, %v398
      %v3008 = vmul.f32 %v2973, %v398
      %v3009 = vmul.f32 %v2974, %v398
      %v3010 = vmul.f32 %v2975, %v398
      %v3015 = vrot.slane %v3007, 2
      %v3016 = vrot.slane %v3008, 2
      %v3017 = vsel %vm185, %v3015, %v3016
      %v3018 = vrot.slane %v3009, 2
      %v3019 = vsel %vm185, %v3016, %v3018
      %v3020 = vrot.slane %v3010, 2
      %v3021 = vsel %vm185, %v3018, %v3020
      %v3026 = vadd.f32 %v3003, %v3017
      %v3027 = vadd.f32 %v3004, %v3019
      %v3028 = vadd.f32 %v3005, %v3021
      %v3029 = vadd.f32 %v3006, %v3020
      %v3030 = vld [vmem:[%s2721] sm:$0xff]
      %v3031 = vld [vmem:[%s2721 + $0x8] sm:$0xff]
      %v3032 = vld [vmem:[%s2721 + $0x10] sm:$0xff]
      %v3033 = vld [vmem:[%s2721 + $0x18] sm:$0x3f]
      %v3034 = vmax.f32 %v3030, 0.0
      %v3035 = vmax.f32 %v3031, 0.0
      %v3036 = vmax.f32 %v3032, 0.0
      %v3037 = vmax.f32 %v3033, 0.0
      %v3038 = vmul.f32 %v3034, %v432
      %v3039 = vmul.f32 %v3035, %v432
      %v3040 = vmul.f32 %v3036, %v432
      %v3041 = vmul.f32 %v3037, %v432
      %v3042 = vadd.f32 %v3026, %v3038
      %v3043 = vadd.f32 %v3027, %v3039
      %v3044 = vadd.f32 %v3028, %v3040
      %v3045 = vadd.f32 %v3029, %v3041
      %v3046 = vmul.f32 %v3034, %v441
      %v3047 = vmul.f32 %v3035, %v441
      %v3048 = vmul.f32 %v3036, %v441
      %v3049 = vmul.f32 %v3037, %v441
      %v3054 = vrot.slane %v3046, 1
      %v3055 = vrot.slane %v3047, 1
      %v3056 = vsel %vm160, %v3054, %v3055
      %v3057 = vrot.slane %v3048, 1
      %v3058 = vsel %vm160, %v3055, %v3057
      %v3059 = vrot.slane %v3049, 1
      %v3060 = vsel %vm160, %v3057, %v3059
      %v3065 = vadd.f32 %v3042, %v3056
      %v3066 = vadd.f32 %v3043, %v3058
      %v3067 = vadd.f32 %v3044, %v3060
      %v3068 = vadd.f32 %v3045, %v3059
      %s3069 = sadd.s32 %s2656, 1920
      %s3070 = scalar_lea.vmem %s0, %s3069
      %v3071 = vld [vmem:[%s3070] sm:$0xff]
      %v3072 = vld [vmem:[%s3070 + $0x8] sm:$0xff]
      %v3073 = vld [vmem:[%s3070 + $0x10] sm:$0xff]
      %v3074 = vld [vmem:[%s3070 + $0x18] sm:$0x3f]
      %v3075 = vmax.f32 %v3071, 0.0
      %v3076 = vmax.f32 %v3072, 0.0
      %v3077 = vmax.f32 %v3073, 0.0
      %v3078 = vmax.f32 %v3074, 0.0
      %v3079 = vmul.f32 %v3075, %v475
      %v3080 = vmul.f32 %v3076, %v475
      %v3081 = vmul.f32 %v3077, %v475
      %v3082 = vmul.f32 %v3078, %v475
      %v3083 = vadd.f32 %v3065, %v3079
      %v3084 = vadd.f32 %v3066, %v3080
      %v3085 = vadd.f32 %v3067, %v3081
      %v3086 = vadd.f32 %v3068, %v3082
      %v3087 = vmul.f32 %v3075, %v484
      %v3088 = vmul.f32 %v3076, %v484
      %v3089 = vmul.f32 %v3077, %v484
      %v3090 = vmul.f32 %v3078, %v484
      %v3095 = vrot.slane %v3087, 1
      %v3096 = vrot.slane %v3088, 1
      %v3097 = vsel %vm160, %v3095, %v3096
      %v3098 = vrot.slane %v3089, 1
      %v3099 = vsel %vm160, %v3096, %v3098
      %v3100 = vrot.slane %v3090, 1
      %v3101 = vsel %vm160, %v3098, %v3100
      %v3106 = vadd.f32 %v3083, %v3097
      %v3107 = vadd.f32 %v3084, %v3099
      %v3108 = vadd.f32 %v3085, %v3101
      %v3109 = vadd.f32 %v3086, %v3100
      %v3110 = vmul.f32 %v3075, %v508
      %v3111 = vmul.f32 %v3076, %v508
      %v3112 = vmul.f32 %v3077, %v508
      %v3113 = vmul.f32 %v3078, %v508
      %v3118 = vrot.slane %v3110, 2
      %v3119 = vrot.slane %v3111, 2
      %v3120 = vsel %vm185, %v3118, %v3119
      %v3121 = vrot.slane %v3112, 2
      %v3122 = vsel %vm185, %v3119, %v3121
      %v3123 = vrot.slane %v3113, 2
      %v3124 = vsel %vm185, %v3121, %v3123
      %v3129 = vadd.f32 %v3106, %v3120
      %v3130 = vadd.f32 %v3107, %v3122
      %v3131 = vadd.f32 %v3108, %v3124
      %v3132 = vadd.f32 %v3109, %v3123
      %s3133 = sadd.s32 %s2720, 1920
      %s3134 = scalar_lea.vmem %s0, %s3133
      %v3135 = vld [vmem:[%s3134] sm:$0xff]
      %v3136 = vld [vmem:[%s3134 + $0x8] sm:$0xff]
      %v3137 = vld [vmem:[%s3134 + $0x10] sm:$0xff]
      %v3138 = vld [vmem:[%s3134 + $0x18] sm:$0x3f]
      %v3139 = vmax.f32 %v3135, 0.0
      %v3140 = vmax.f32 %v3136, 0.0
      %v3141 = vmax.f32 %v3137, 0.0
      %v3142 = vmax.f32 %v3138, 0.0
      %v3143 = vmul.f32 %v3139, %v542
      %v3144 = vmul.f32 %v3140, %v542
      %v3145 = vmul.f32 %v3141, %v542
      %v3146 = vmul.f32 %v3142, %v542
      %v3147 = vadd.f32 %v3129, %v3143
      %v3148 = vadd.f32 %v3130, %v3144
      %v3149 = vadd.f32 %v3131, %v3145
      %v3150 = vadd.f32 %v3132, %v3146
      %v3151 = vmul.f32 %v3139, %v551
      %v3152 = vmul.f32 %v3140, %v551
      %v3153 = vmul.f32 %v3141, %v551
      %v3154 = vmul.f32 %v3142, %v551
      %v3159 = vrot.slane %v3151, 1
      %v3160 = vrot.slane %v3152, 1
      %v3161 = vsel %vm160, %v3159, %v3160
      %v3162 = vrot.slane %v3153, 1
      %v3163 = vsel %vm160, %v3160, %v3162
      %v3164 = vrot.slane %v3154, 1
      %v3165 = vsel %vm160, %v3162, %v3164
      %v3170 = vadd.f32 %v3147, %v3161
      %v3171 = vadd.f32 %v3148, %v3163
      %v3172 = vadd.f32 %v3149, %v3165
      %v3173 = vadd.f32 %v3150, %v3164
      %s3174 = sadd.s32 %s127, 7
      %s3175 = smul.u32 %s3174, 32
      %s3176 = scalar_lea.vmem %s0, %s3175
      %v3177 = vld [vmem:[%s3176] sm:$0xff]
      %v3178 = vld [vmem:[%s3176 + $0x8] sm:$0xff]
      %v3179 = vld [vmem:[%s3176 + $0x10] sm:$0xff]
      %v3180 = vld [vmem:[%s3176 + $0x18] sm:$0x3f]
      %v3181 = vmax.f32 %v3177, 0.0
      %v3182 = vmax.f32 %v3178, 0.0
      %v3183 = vmax.f32 %v3179, 0.0
      %v3184 = vmax.f32 %v3180, 0.0
      %v3185 = vmul.f32 %v3181, %v586
      %v3186 = vmul.f32 %v3182, %v586
      %v3187 = vmul.f32 %v3183, %v586
      %v3188 = vmul.f32 %v3184, %v586
      %v3189 = vadd.f32 %v3170, %v3185
      %v3190 = vadd.f32 %v3171, %v3186
      %v3191 = vadd.f32 %v3172, %v3187
      %v3192 = vadd.f32 %v3173, %v3188
      %v3193 = vmul.f32 %v3181, %v595
      %v3194 = vmul.f32 %v3182, %v595
      %v3195 = vmul.f32 %v3183, %v595
      %v3196 = vmul.f32 %v3184, %v595
      %v3201 = vrot.slane %v3193, 1
      %v3202 = vrot.slane %v3194, 1
      %v3203 = vsel %vm160, %v3201, %v3202
      %v3204 = vrot.slane %v3195, 1
      %v3205 = vsel %vm160, %v3202, %v3204
      %v3206 = vrot.slane %v3196, 1
      %v3207 = vsel %vm160, %v3204, %v3206
      %v3212 = vadd.f32 %v3189, %v3203
      %v3213 = vadd.f32 %v3190, %v3205
      %v3214 = vadd.f32 %v3191, %v3207
      %v3215 = vadd.f32 %v3192, %v3206
      %v3216 = vmul.f32 %v3181, %v619
      %v3217 = vmul.f32 %v3182, %v619
      %v3218 = vmul.f32 %v3183, %v619
      %v3219 = vmul.f32 %v3184, %v619
      %v3224 = vrot.slane %v3216, 2
      %v3225 = vrot.slane %v3217, 2
      %v3226 = vsel %vm185, %v3224, %v3225
      %v3227 = vrot.slane %v3218, 2
      %v3228 = vsel %vm185, %v3225, %v3227
      %v3229 = vrot.slane %v3219, 2
      %v3230 = vsel %vm185, %v3227, %v3229
      %v3235 = vadd.f32 %v3212, %v3226
      %v3236 = vadd.f32 %v3213, %v3228
      %v3237 = vadd.f32 %v3214, %v3230
      %v3238 = vadd.f32 %v3215, %v3229
      %s3239 = sadd.s32 %s3175, 960
      %s3240 = scalar_lea.vmem %s0, %s3239
      %v3241 = vld [vmem:[%s3240] sm:$0xff]
      %v3242 = vld [vmem:[%s3240 + $0x8] sm:$0xff]
      %v3243 = vld [vmem:[%s3240 + $0x10] sm:$0xff]
      %v3244 = vld [vmem:[%s3240 + $0x18] sm:$0x3f]
      %v3245 = vmax.f32 %v3241, 0.0
      %v3246 = vmax.f32 %v3242, 0.0
      %v3247 = vmax.f32 %v3243, 0.0
      %v3248 = vmax.f32 %v3244, 0.0
      %v3249 = vmul.f32 %v3245, %v653
      %v3250 = vmul.f32 %v3246, %v653
      %v3251 = vmul.f32 %v3247, %v653
      %v3252 = vmul.f32 %v3248, %v653
      %v3253 = vadd.f32 %v3235, %v3249
      %v3254 = vadd.f32 %v3236, %v3250
      %v3255 = vadd.f32 %v3237, %v3251
      %v3256 = vadd.f32 %v3238, %v3252
      %v3257 = vmul.f32 %v3245, %v662
      %v3258 = vmul.f32 %v3246, %v662
      %v3259 = vmul.f32 %v3247, %v662
      %v3260 = vmul.f32 %v3248, %v662
      %v3265 = vrot.slane %v3257, 1
      %v3266 = vrot.slane %v3258, 1
      %v3267 = vsel %vm160, %v3265, %v3266
      %v3268 = vrot.slane %v3259, 1
      %v3269 = vsel %vm160, %v3266, %v3268
      %v3270 = vrot.slane %v3260, 1
      %v3271 = vsel %vm160, %v3268, %v3270
      %v3276 = vadd.f32 %v3253, %v3267
      %v3277 = vadd.f32 %v3254, %v3269
      %v3278 = vadd.f32 %v3255, %v3271
      %v3279 = vadd.f32 %v3256, %v3270
      %s3280 = scalar_lea.vmem %s125, 160
      %3281 = vst [vmem:[%s3280] sm:$0xff] %v3276
      %3282 = vst [vmem:[%s3280 + $0x8] sm:$0xff] %v3277
      %3283 = vst [vmem:[%s3280 + $0x10] sm:$0xff] %v3278
      %3284 = vst [vmem:[%s3280 + $0x18] sm:$0xf] %v3279
      %v3285 = vld [vmem:[%s2657] sm:$0xff]
      %v3286 = vld [vmem:[%s2657 + $0x8] sm:$0xff]
      %v3287 = vld [vmem:[%s2657 + $0x10] sm:$0xff]
      %v3288 = vld [vmem:[%s2657 + $0x18] sm:$0x3f]
      %v3289 = vmax.f32 %v3285, 0.0
      %v3290 = vmax.f32 %v3286, 0.0
      %v3291 = vmax.f32 %v3287, 0.0
      %v3292 = vmax.f32 %v3288, 0.0
      %v3293 = vmul.f32 %v3289, %v142
      %v3294 = vmul.f32 %v3290, %v142
      %v3295 = vmul.f32 %v3291, %v142
      %v3296 = vmul.f32 %v3292, %v142
      %v3297 = vadd.f32 %v3293, 0.0
      %v3298 = vadd.f32 %v3294, 0.0
      %v3299 = vadd.f32 %v3295, 0.0
      %v3300 = vadd.f32 %v3296, 0.0
      %v3301 = vmul.f32 %v3289, %v151
      %v3302 = vmul.f32 %v3290, %v151
      %v3303 = vmul.f32 %v3291, %v151
      %v3304 = vmul.f32 %v3292, %v151
      %v3309 = vrot.slane %v3301, 1
      %v3310 = vrot.slane %v3302, 1
      %v3311 = vsel %vm160, %v3309, %v3310
      %v3312 = vrot.slane %v3303, 1
      %v3313 = vsel %vm160, %v3310, %v3312
      %v3314 = vrot.slane %v3304, 1
      %v3315 = vsel %vm160, %v3312, %v3314
      %v3320 = vadd.f32 %v3297, %v3311
      %v3321 = vadd.f32 %v3298, %v3313
      %v3322 = vadd.f32 %v3299, %v3315
      %v3323 = vadd.f32 %v3300, %v3314
      %v3324 = vmul.f32 %v3289, %v176
      %v3325 = vmul.f32 %v3290, %v176
      %v3326 = vmul.f32 %v3291, %v176
      %v3327 = vmul.f32 %v3292, %v176
      %v3332 = vrot.slane %v3324, 2
      %v3333 = vrot.slane %v3325, 2
      %v3334 = vsel %vm185, %v3332, %v3333
      %v3335 = vrot.slane %v3326, 2
      %v3336 = vsel %vm185, %v3333, %v3335
      %v3337 = vrot.slane %v3327, 2
      %v3338 = vsel %vm185, %v3335, %v3337
      %v3343 = vadd.f32 %v3320, %v3334
      %v3344 = vadd.f32 %v3321, %v3336
      %v3345 = vadd.f32 %v3322, %v3338
      %v3346 = vadd.f32 %v3323, %v3337
      %v3347 = vld [vmem:[%s2721] sm:$0xff]
      %v3348 = vld [vmem:[%s2721 + $0x8] sm:$0xff]
      %v3349 = vld [vmem:[%s2721 + $0x10] sm:$0xff]
      %v3350 = vld [vmem:[%s2721 + $0x18] sm:$0x3f]
      %v3351 = vmax.f32 %v3347, 0.0
      %v3352 = vmax.f32 %v3348, 0.0
      %v3353 = vmax.f32 %v3349, 0.0
      %v3354 = vmax.f32 %v3350, 0.0
      %v3355 = vmul.f32 %v3351, %v211
      %v3356 = vmul.f32 %v3352, %v211
      %v3357 = vmul.f32 %v3353, %v211
      %v3358 = vmul.f32 %v3354, %v211
      %v3359 = vadd.f32 %v3343, %v3355
      %v3360 = vadd.f32 %v3344, %v3356
      %v3361 = vadd.f32 %v3345, %v3357
      %v3362 = vadd.f32 %v3346, %v3358
      %v3363 = vmul.f32 %v3351, %v220
      %v3364 = vmul.f32 %v3352, %v220
      %v3365 = vmul.f32 %v3353, %v220
      %v3366 = vmul.f32 %v3354, %v220
      %v3371 = vrot.slane %v3363, 1
      %v3372 = vrot.slane %v3364, 1
      %v3373 = vsel %vm160, %v3371, %v3372
      %v3374 = vrot.slane %v3365, 1
      %v3375 = vsel %vm160, %v3372, %v3374
      %v3376 = vrot.slane %v3366, 1
      %v3377 = vsel %vm160, %v3374, %v3376
      %v3382 = vadd.f32 %v3359, %v3373
      %v3383 = vadd.f32 %v3360, %v3375
      %v3384 = vadd.f32 %v3361, %v3377
      %v3385 = vadd.f32 %v3362, %v3376
      %v3386 = vld [vmem:[%s3070] sm:$0xff]
      %v3387 = vld [vmem:[%s3070 + $0x8] sm:$0xff]
      %v3388 = vld [vmem:[%s3070 + $0x10] sm:$0xff]
      %v3389 = vld [vmem:[%s3070 + $0x18] sm:$0x3f]
      %v3390 = vmax.f32 %v3386, 0.0
      %v3391 = vmax.f32 %v3387, 0.0
      %v3392 = vmax.f32 %v3388, 0.0
      %v3393 = vmax.f32 %v3389, 0.0
      %v3394 = vmul.f32 %v3390, %v254
      %v3395 = vmul.f32 %v3391, %v254
      %v3396 = vmul.f32 %v3392, %v254
      %v3397 = vmul.f32 %v3393, %v254
      %v3398 = vadd.f32 %v3382, %v3394
      %v3399 = vadd.f32 %v3383, %v3395
      %v3400 = vadd.f32 %v3384, %v3396
      %v3401 = vadd.f32 %v3385, %v3397
      %v3402 = vmul.f32 %v3390, %v263
      %v3403 = vmul.f32 %v3391, %v263
      %v3404 = vmul.f32 %v3392, %v263
      %v3405 = vmul.f32 %v3393, %v263
      %v3410 = vrot.slane %v3402, 1
      %v3411 = vrot.slane %v3403, 1
      %v3412 = vsel %vm160, %v3410, %v3411
      %v3413 = vrot.slane %v3404, 1
      %v3414 = vsel %vm160, %v3411, %v3413
      %v3415 = vrot.slane %v3405, 1
      %v3416 = vsel %vm160, %v3413, %v3415
      %v3421 = vadd.f32 %v3398, %v3412
      %v3422 = vadd.f32 %v3399, %v3414
      %v3423 = vadd.f32 %v3400, %v3416
      %v3424 = vadd.f32 %v3401, %v3415
      %v3425 = vmul.f32 %v3390, %v287
      %v3426 = vmul.f32 %v3391, %v287
      %v3427 = vmul.f32 %v3392, %v287
      %v3428 = vmul.f32 %v3393, %v287
      %v3433 = vrot.slane %v3425, 2
      %v3434 = vrot.slane %v3426, 2
      %v3435 = vsel %vm185, %v3433, %v3434
      %v3436 = vrot.slane %v3427, 2
      %v3437 = vsel %vm185, %v3434, %v3436
      %v3438 = vrot.slane %v3428, 2
      %v3439 = vsel %vm185, %v3436, %v3438
      %v3444 = vadd.f32 %v3421, %v3435
      %v3445 = vadd.f32 %v3422, %v3437
      %v3446 = vadd.f32 %v3423, %v3439
      %v3447 = vadd.f32 %v3424, %v3438
      %v3448 = vld [vmem:[%s3134] sm:$0xff]
      %v3449 = vld [vmem:[%s3134 + $0x8] sm:$0xff]
      %v3450 = vld [vmem:[%s3134 + $0x10] sm:$0xff]
      %v3451 = vld [vmem:[%s3134 + $0x18] sm:$0x3f]
      %v3452 = vmax.f32 %v3448, 0.0
      %v3453 = vmax.f32 %v3449, 0.0
      %v3454 = vmax.f32 %v3450, 0.0
      %v3455 = vmax.f32 %v3451, 0.0
      %v3456 = vmul.f32 %v3452, %v321
      %v3457 = vmul.f32 %v3453, %v321
      %v3458 = vmul.f32 %v3454, %v321
      %v3459 = vmul.f32 %v3455, %v321
      %v3460 = vadd.f32 %v3444, %v3456
      %v3461 = vadd.f32 %v3445, %v3457
      %v3462 = vadd.f32 %v3446, %v3458
      %v3463 = vadd.f32 %v3447, %v3459
      %v3464 = vmul.f32 %v3452, %v330
      %v3465 = vmul.f32 %v3453, %v330
      %v3466 = vmul.f32 %v3454, %v330
      %v3467 = vmul.f32 %v3455, %v330
      %v3472 = vrot.slane %v3464, 1
      %v3473 = vrot.slane %v3465, 1
      %v3474 = vsel %vm160, %v3472, %v3473
      %v3475 = vrot.slane %v3466, 1
      %v3476 = vsel %vm160, %v3473, %v3475
      %v3477 = vrot.slane %v3467, 1
      %v3478 = vsel %vm160, %v3475, %v3477
      %v3483 = vadd.f32 %v3460, %v3474
      %v3484 = vadd.f32 %v3461, %v3476
      %v3485 = vadd.f32 %v3462, %v3478
      %v3486 = vadd.f32 %v3463, %v3477
      %v3487 = vld [vmem:[%s3176] sm:$0xff]
      %v3488 = vld [vmem:[%s3176 + $0x8] sm:$0xff]
      %v3489 = vld [vmem:[%s3176 + $0x10] sm:$0xff]
      %v3490 = vld [vmem:[%s3176 + $0x18] sm:$0x3f]
      %v3491 = vmax.f32 %v3487, 0.0
      %v3492 = vmax.f32 %v3488, 0.0
      %v3493 = vmax.f32 %v3489, 0.0
      %v3494 = vmax.f32 %v3490, 0.0
      %v3495 = vmul.f32 %v3491, %v365
      %v3496 = vmul.f32 %v3492, %v365
      %v3497 = vmul.f32 %v3493, %v365
      %v3498 = vmul.f32 %v3494, %v365
      %v3499 = vadd.f32 %v3483, %v3495
      %v3500 = vadd.f32 %v3484, %v3496
      %v3501 = vadd.f32 %v3485, %v3497
      %v3502 = vadd.f32 %v3486, %v3498
      %v3503 = vmul.f32 %v3491, %v374
      %v3504 = vmul.f32 %v3492, %v374
      %v3505 = vmul.f32 %v3493, %v374
      %v3506 = vmul.f32 %v3494, %v374
      %v3511 = vrot.slane %v3503, 1
      %v3512 = vrot.slane %v3504, 1
      %v3513 = vsel %vm160, %v3511, %v3512
      %v3514 = vrot.slane %v3505, 1
      %v3515 = vsel %vm160, %v3512, %v3514
      %v3516 = vrot.slane %v3506, 1
      %v3517 = vsel %vm160, %v3514, %v3516
      %v3522 = vadd.f32 %v3499, %v3513
      %v3523 = vadd.f32 %v3500, %v3515
      %v3524 = vadd.f32 %v3501, %v3517
      %v3525 = vadd.f32 %v3502, %v3516
      %v3526 = vmul.f32 %v3491, %v398
      %v3527 = vmul.f32 %v3492, %v398
      %v3528 = vmul.f32 %v3493, %v398
      %v3529 = vmul.f32 %v3494, %v398
      %v3534 = vrot.slane %v3526, 2
      %v3535 = vrot.slane %v3527, 2
      %v3536 = vsel %vm185, %v3534, %v3535
      %v3537 = vrot.slane %v3528, 2
      %v3538 = vsel %vm185, %v3535, %v3537
      %v3539 = vrot.slane %v3529, 2
      %v3540 = vsel %vm185, %v3537, %v3539
      %v3545 = vadd.f32 %v3522, %v3536
      %v3546 = vadd.f32 %v3523, %v3538
      %v3547 = vadd.f32 %v3524, %v3540
      %v3548 = vadd.f32 %v3525, %v3539
      %v3549 = vld [vmem:[%s3240] sm:$0xff]
      %v3550 = vld [vmem:[%s3240 + $0x8] sm:$0xff]
      %v3551 = vld [vmem:[%s3240 + $0x10] sm:$0xff]
      %v3552 = vld [vmem:[%s3240 + $0x18] sm:$0x3f]
      %v3553 = vmax.f32 %v3549, 0.0
      %v3554 = vmax.f32 %v3550, 0.0
      %v3555 = vmax.f32 %v3551, 0.0
      %v3556 = vmax.f32 %v3552, 0.0
      %v3557 = vmul.f32 %v3553, %v432
      %v3558 = vmul.f32 %v3554, %v432
      %v3559 = vmul.f32 %v3555, %v432
      %v3560 = vmul.f32 %v3556, %v432
      %v3561 = vadd.f32 %v3545, %v3557
      %v3562 = vadd.f32 %v3546, %v3558
      %v3563 = vadd.f32 %v3547, %v3559
      %v3564 = vadd.f32 %v3548, %v3560
      %v3565 = vmul.f32 %v3553, %v441
      %v3566 = vmul.f32 %v3554, %v441
      %v3567 = vmul.f32 %v3555, %v441
      %v3568 = vmul.f32 %v3556, %v441
      %v3573 = vrot.slane %v3565, 1
      %v3574 = vrot.slane %v3566, 1
      %v3575 = vsel %vm160, %v3573, %v3574
      %v3576 = vrot.slane %v3567, 1
      %v3577 = vsel %vm160, %v3574, %v3576
      %v3578 = vrot.slane %v3568, 1
      %v3579 = vsel %vm160, %v3576, %v3578
      %v3584 = vadd.f32 %v3561, %v3575
      %v3585 = vadd.f32 %v3562, %v3577
      %v3586 = vadd.f32 %v3563, %v3579
      %v3587 = vadd.f32 %v3564, %v3578
      %s3588 = sadd.s32 %s3175, 1920
      %s3589 = scalar_lea.vmem %s0, %s3588
      %v3590 = vld [vmem:[%s3589] sm:$0xff]
      %v3591 = vld [vmem:[%s3589 + $0x8] sm:$0xff]
      %v3592 = vld [vmem:[%s3589 + $0x10] sm:$0xff]
      %v3593 = vld [vmem:[%s3589 + $0x18] sm:$0x3f]
      %v3594 = vmax.f32 %v3590, 0.0
      %v3595 = vmax.f32 %v3591, 0.0
      %v3596 = vmax.f32 %v3592, 0.0
      %v3597 = vmax.f32 %v3593, 0.0
      %v3598 = vmul.f32 %v3594, %v475
      %v3599 = vmul.f32 %v3595, %v475
      %v3600 = vmul.f32 %v3596, %v475
      %v3601 = vmul.f32 %v3597, %v475
      %v3602 = vadd.f32 %v3584, %v3598
      %v3603 = vadd.f32 %v3585, %v3599
      %v3604 = vadd.f32 %v3586, %v3600
      %v3605 = vadd.f32 %v3587, %v3601
      %v3606 = vmul.f32 %v3594, %v484
      %v3607 = vmul.f32 %v3595, %v484
      %v3608 = vmul.f32 %v3596, %v484
      %v3609 = vmul.f32 %v3597, %v484
      %v3614 = vrot.slane %v3606, 1
      %v3615 = vrot.slane %v3607, 1
      %v3616 = vsel %vm160, %v3614, %v3615
      %v3617 = vrot.slane %v3608, 1
      %v3618 = vsel %vm160, %v3615, %v3617
      %v3619 = vrot.slane %v3609, 1
      %v3620 = vsel %vm160, %v3617, %v3619
      %v3625 = vadd.f32 %v3602, %v3616
      %v3626 = vadd.f32 %v3603, %v3618
      %v3627 = vadd.f32 %v3604, %v3620
      %v3628 = vadd.f32 %v3605, %v3619
      %v3629 = vmul.f32 %v3594, %v508
      %v3630 = vmul.f32 %v3595, %v508
      %v3631 = vmul.f32 %v3596, %v508
      %v3632 = vmul.f32 %v3597, %v508
      %v3637 = vrot.slane %v3629, 2
      %v3638 = vrot.slane %v3630, 2
      %v3639 = vsel %vm185, %v3637, %v3638
      %v3640 = vrot.slane %v3631, 2
      %v3641 = vsel %vm185, %v3638, %v3640
      %v3642 = vrot.slane %v3632, 2
      %v3643 = vsel %vm185, %v3640, %v3642
      %v3648 = vadd.f32 %v3625, %v3639
      %v3649 = vadd.f32 %v3626, %v3641
      %v3650 = vadd.f32 %v3627, %v3643
      %v3651 = vadd.f32 %v3628, %v3642
      %s3652 = sadd.s32 %s3239, 1920
      %s3653 = scalar_lea.vmem %s0, %s3652
      %v3654 = vld [vmem:[%s3653] sm:$0xff]
      %v3655 = vld [vmem:[%s3653 + $0x8] sm:$0xff]
      %v3656 = vld [vmem:[%s3653 + $0x10] sm:$0xff]
      %v3657 = vld [vmem:[%s3653 + $0x18] sm:$0x3f]
      %v3658 = vmax.f32 %v3654, 0.0
      %v3659 = vmax.f32 %v3655, 0.0
      %v3660 = vmax.f32 %v3656, 0.0
      %v3661 = vmax.f32 %v3657, 0.0
      %v3662 = vmul.f32 %v3658, %v542
      %v3663 = vmul.f32 %v3659, %v542
      %v3664 = vmul.f32 %v3660, %v542
      %v3665 = vmul.f32 %v3661, %v542
      %v3666 = vadd.f32 %v3648, %v3662
      %v3667 = vadd.f32 %v3649, %v3663
      %v3668 = vadd.f32 %v3650, %v3664
      %v3669 = vadd.f32 %v3651, %v3665
      %v3670 = vmul.f32 %v3658, %v551
      %v3671 = vmul.f32 %v3659, %v551
      %v3672 = vmul.f32 %v3660, %v551
      %v3673 = vmul.f32 %v3661, %v551
      %v3678 = vrot.slane %v3670, 1
      %v3679 = vrot.slane %v3671, 1
      %v3680 = vsel %vm160, %v3678, %v3679
      %v3681 = vrot.slane %v3672, 1
      %v3682 = vsel %vm160, %v3679, %v3681
      %v3683 = vrot.slane %v3673, 1
      %v3684 = vsel %vm160, %v3681, %v3683
      %v3689 = vadd.f32 %v3666, %v3680
      %v3690 = vadd.f32 %v3667, %v3682
      %v3691 = vadd.f32 %v3668, %v3684
      %v3692 = vadd.f32 %v3669, %v3683
      %s3693 = sadd.s32 %s127, 8
      %s3694 = smul.u32 %s3693, 32
      %s3695 = scalar_lea.vmem %s0, %s3694
      %v3696 = vld [vmem:[%s3695] sm:$0xff]
      %v3697 = vld [vmem:[%s3695 + $0x8] sm:$0xff]
      %v3698 = vld [vmem:[%s3695 + $0x10] sm:$0xff]
      %v3699 = vld [vmem:[%s3695 + $0x18] sm:$0x3f]
      %v3700 = vmax.f32 %v3696, 0.0
      %v3701 = vmax.f32 %v3697, 0.0
      %v3702 = vmax.f32 %v3698, 0.0
      %v3703 = vmax.f32 %v3699, 0.0
      %v3704 = vmul.f32 %v3700, %v586
      %v3705 = vmul.f32 %v3701, %v586
      %v3706 = vmul.f32 %v3702, %v586
      %v3707 = vmul.f32 %v3703, %v586
      %v3708 = vadd.f32 %v3689, %v3704
      %v3709 = vadd.f32 %v3690, %v3705
      %v3710 = vadd.f32 %v3691, %v3706
      %v3711 = vadd.f32 %v3692, %v3707
      %v3712 = vmul.f32 %v3700, %v595
      %v3713 = vmul.f32 %v3701, %v595
      %v3714 = vmul.f32 %v3702, %v595
      %v3715 = vmul.f32 %v3703, %v595
      %v3720 = vrot.slane %v3712, 1
      %v3721 = vrot.slane %v3713, 1
      %v3722 = vsel %vm160, %v3720, %v3721
      %v3723 = vrot.slane %v3714, 1
      %v3724 = vsel %vm160, %v3721, %v3723
      %v3725 = vrot.slane %v3715, 1
      %v3726 = vsel %vm160, %v3723, %v3725
      %v3731 = vadd.f32 %v3708, %v3722
      %v3732 = vadd.f32 %v3709, %v3724
      %v3733 = vadd.f32 %v3710, %v3726
      %v3734 = vadd.f32 %v3711, %v3725
      %v3735 = vmul.f32 %v3700, %v619
      %v3736 = vmul.f32 %v3701, %v619
      %v3737 = vmul.f32 %v3702, %v619
      %v3738 = vmul.f32 %v3703, %v619
      %v3743 = vrot.slane %v3735, 2
      %v3744 = vrot.slane %v3736, 2
      %v3745 = vsel %vm185, %v3743, %v3744
      %v3746 = vrot.slane %v3737, 2
      %v3747 = vsel %vm185, %v3744, %v3746
      %v3748 = vrot.slane %v3738, 2
      %v3749 = vsel %vm185, %v3746, %v3748
      %v3754 = vadd.f32 %v3731, %v3745
      %v3755 = vadd.f32 %v3732, %v3747
      %v3756 = vadd.f32 %v3733, %v3749
      %v3757 = vadd.f32 %v3734, %v3748
      %s3758 = sadd.s32 %s3694, 960
      %s3759 = scalar_lea.vmem %s0, %s3758
      %v3760 = vld [vmem:[%s3759] sm:$0xff]
      %v3761 = vld [vmem:[%s3759 + $0x8] sm:$0xff]
      %v3762 = vld [vmem:[%s3759 + $0x10] sm:$0xff]
      %v3763 = vld [vmem:[%s3759 + $0x18] sm:$0x3f]
      %v3764 = vmax.f32 %v3760, 0.0
      %v3765 = vmax.f32 %v3761, 0.0
      %v3766 = vmax.f32 %v3762, 0.0
      %v3767 = vmax.f32 %v3763, 0.0
      %v3768 = vmul.f32 %v3764, %v653
      %v3769 = vmul.f32 %v3765, %v653
      %v3770 = vmul.f32 %v3766, %v653
      %v3771 = vmul.f32 %v3767, %v653
      %v3772 = vadd.f32 %v3754, %v3768
      %v3773 = vadd.f32 %v3755, %v3769
      %v3774 = vadd.f32 %v3756, %v3770
      %v3775 = vadd.f32 %v3757, %v3771
      %v3776 = vmul.f32 %v3764, %v662
      %v3777 = vmul.f32 %v3765, %v662
      %v3778 = vmul.f32 %v3766, %v662
      %v3779 = vmul.f32 %v3767, %v662
      %v3784 = vrot.slane %v3776, 1
      %v3785 = vrot.slane %v3777, 1
      %v3786 = vsel %vm160, %v3784, %v3785
      %v3787 = vrot.slane %v3778, 1
      %v3788 = vsel %vm160, %v3785, %v3787
      %v3789 = vrot.slane %v3779, 1
      %v3790 = vsel %vm160, %v3787, %v3789
      %v3795 = vadd.f32 %v3772, %v3786
      %v3796 = vadd.f32 %v3773, %v3788
      %v3797 = vadd.f32 %v3774, %v3790
      %v3798 = vadd.f32 %v3775, %v3789
      %s3799 = scalar_lea.vmem %s125, 192
      %3800 = vst [vmem:[%s3799] sm:$0xff] %v3795
      %3801 = vst [vmem:[%s3799 + $0x8] sm:$0xff] %v3796
      %3802 = vst [vmem:[%s3799 + $0x10] sm:$0xff] %v3797
      %3803 = vst [vmem:[%s3799 + $0x18] sm:$0xf] %v3798
      %v3804 = vld [vmem:[%s3176] sm:$0xff]
      %v3805 = vld [vmem:[%s3176 + $0x8] sm:$0xff]
      %v3806 = vld [vmem:[%s3176 + $0x10] sm:$0xff]
      %v3807 = vld [vmem:[%s3176 + $0x18] sm:$0x3f]
      %v3808 = vmax.f32 %v3804, 0.0
      %v3809 = vmax.f32 %v3805, 0.0
      %v3810 = vmax.f32 %v3806, 0.0
      %v3811 = vmax.f32 %v3807, 0.0
      %v3812 = vmul.f32 %v3808, %v142
      %v3813 = vmul.f32 %v3809, %v142
      %v3814 = vmul.f32 %v3810, %v142
      %v3815 = vmul.f32 %v3811, %v142
      %v3816 = vadd.f32 %v3812, 0.0
      %v3817 = vadd.f32 %v3813, 0.0
      %v3818 = vadd.f32 %v3814, 0.0
      %v3819 = vadd.f32 %v3815, 0.0
      %v3820 = vmul.f32 %v3808, %v151
      %v3821 = vmul.f32 %v3809, %v151
      %v3822 = vmul.f32 %v3810, %v151
      %v3823 = vmul.f32 %v3811, %v151
      %v3828 = vrot.slane %v3820, 1
      %v3829 = vrot.slane %v3821, 1
      %v3830 = vsel %vm160, %v3828, %v3829
      %v3831 = vrot.slane %v3822, 1
      %v3832 = vsel %vm160, %v3829, %v3831
      %v3833 = vrot.slane %v3823, 1
      %v3834 = vsel %vm160, %v3831, %v3833
      %v3839 = vadd.f32 %v3816, %v3830
      %v3840 = vadd.f32 %v3817, %v3832
      %v3841 = vadd.f32 %v3818, %v3834
      %v3842 = vadd.f32 %v3819, %v3833
      %v3843 = vmul.f32 %v3808, %v176
      %v3844 = vmul.f32 %v3809, %v176
      %v3845 = vmul.f32 %v3810, %v176
      %v3846 = vmul.f32 %v3811, %v176
      %v3851 = vrot.slane %v3843, 2
      %v3852 = vrot.slane %v3844, 2
      %v3853 = vsel %vm185, %v3851, %v3852
      %v3854 = vrot.slane %v3845, 2
      %v3855 = vsel %vm185, %v3852, %v3854
      %v3856 = vrot.slane %v3846, 2
      %v3857 = vsel %vm185, %v3854, %v3856
      %v3862 = vadd.f32 %v3839, %v3853
      %v3863 = vadd.f32 %v3840, %v3855
      %v3864 = vadd.f32 %v3841, %v3857
      %v3865 = vadd.f32 %v3842, %v3856
      %v3866 = vld [vmem:[%s3240] sm:$0xff]
      %v3867 = vld [vmem:[%s3240 + $0x8] sm:$0xff]
      %v3868 = vld [vmem:[%s3240 + $0x10] sm:$0xff]
      %v3869 = vld [vmem:[%s3240 + $0x18] sm:$0x3f]
      %v3870 = vmax.f32 %v3866, 0.0
      %v3871 = vmax.f32 %v3867, 0.0
      %v3872 = vmax.f32 %v3868, 0.0
      %v3873 = vmax.f32 %v3869, 0.0
      %v3874 = vmul.f32 %v3870, %v211
      %v3875 = vmul.f32 %v3871, %v211
      %v3876 = vmul.f32 %v3872, %v211
      %v3877 = vmul.f32 %v3873, %v211
      %v3878 = vadd.f32 %v3862, %v3874
      %v3879 = vadd.f32 %v3863, %v3875
      %v3880 = vadd.f32 %v3864, %v3876
      %v3881 = vadd.f32 %v3865, %v3877
      %v3882 = vmul.f32 %v3870, %v220
      %v3883 = vmul.f32 %v3871, %v220
      %v3884 = vmul.f32 %v3872, %v220
      %v3885 = vmul.f32 %v3873, %v220
      %v3890 = vrot.slane %v3882, 1
      %v3891 = vrot.slane %v3883, 1
      %v3892 = vsel %vm160, %v3890, %v3891
      %v3893 = vrot.slane %v3884, 1
      %v3894 = vsel %vm160, %v3891, %v3893
      %v3895 = vrot.slane %v3885, 1
      %v3896 = vsel %vm160, %v3893, %v3895
      %v3901 = vadd.f32 %v3878, %v3892
      %v3902 = vadd.f32 %v3879, %v3894
      %v3903 = vadd.f32 %v3880, %v3896
      %v3904 = vadd.f32 %v3881, %v3895
      %v3905 = vld [vmem:[%s3589] sm:$0xff]
      %v3906 = vld [vmem:[%s3589 + $0x8] sm:$0xff]
      %v3907 = vld [vmem:[%s3589 + $0x10] sm:$0xff]
      %v3908 = vld [vmem:[%s3589 + $0x18] sm:$0x3f]
      %v3909 = vmax.f32 %v3905, 0.0
      %v3910 = vmax.f32 %v3906, 0.0
      %v3911 = vmax.f32 %v3907, 0.0
      %v3912 = vmax.f32 %v3908, 0.0
      %v3913 = vmul.f32 %v3909, %v254
      %v3914 = vmul.f32 %v3910, %v254
      %v3915 = vmul.f32 %v3911, %v254
      %v3916 = vmul.f32 %v3912, %v254
      %v3917 = vadd.f32 %v3901, %v3913
      %v3918 = vadd.f32 %v3902, %v3914
      %v3919 = vadd.f32 %v3903, %v3915
      %v3920 = vadd.f32 %v3904, %v3916
      %v3921 = vmul.f32 %v3909, %v263
      %v3922 = vmul.f32 %v3910, %v263
      %v3923 = vmul.f32 %v3911, %v263
      %v3924 = vmul.f32 %v3912, %v263
      %v3929 = vrot.slane %v3921, 1
      %v3930 = vrot.slane %v3922, 1
      %v3931 = vsel %vm160, %v3929, %v3930
      %v3932 = vrot.slane %v3923, 1
      %v3933 = vsel %vm160, %v3930, %v3932
      %v3934 = vrot.slane %v3924, 1
      %v3935 = vsel %vm160, %v3932, %v3934
      %v3940 = vadd.f32 %v3917, %v3931
      %v3941 = vadd.f32 %v3918, %v3933
      %v3942 = vadd.f32 %v3919, %v3935
      %v3943 = vadd.f32 %v3920, %v3934
      %v3944 = vmul.f32 %v3909, %v287
      %v3945 = vmul.f32 %v3910, %v287
      %v3946 = vmul.f32 %v3911, %v287
      %v3947 = vmul.f32 %v3912, %v287
      %v3952 = vrot.slane %v3944, 2
      %v3953 = vrot.slane %v3945, 2
      %v3954 = vsel %vm185, %v3952, %v3953
      %v3955 = vrot.slane %v3946, 2
      %v3956 = vsel %vm185, %v3953, %v3955
      %v3957 = vrot.slane %v3947, 2
      %v3958 = vsel %vm185, %v3955, %v3957
      %v3963 = vadd.f32 %v3940, %v3954
      %v3964 = vadd.f32 %v3941, %v3956
      %v3965 = vadd.f32 %v3942, %v3958
      %v3966 = vadd.f32 %v3943, %v3957
      %v3967 = vld [vmem:[%s3653] sm:$0xff]
      %v3968 = vld [vmem:[%s3653 + $0x8] sm:$0xff]
      %v3969 = vld [vmem:[%s3653 + $0x10] sm:$0xff]
      %v3970 = vld [vmem:[%s3653 + $0x18] sm:$0x3f]
      %v3971 = vmax.f32 %v3967, 0.0
      %v3972 = vmax.f32 %v3968, 0.0
      %v3973 = vmax.f32 %v3969, 0.0
      %v3974 = vmax.f32 %v3970, 0.0
      %v3975 = vmul.f32 %v3971, %v321
      %v3976 = vmul.f32 %v3972, %v321
      %v3977 = vmul.f32 %v3973, %v321
      %v3978 = vmul.f32 %v3974, %v321
      %v3979 = vadd.f32 %v3963, %v3975
      %v3980 = vadd.f32 %v3964, %v3976
      %v3981 = vadd.f32 %v3965, %v3977
      %v3982 = vadd.f32 %v3966, %v3978
      %v3983 = vmul.f32 %v3971, %v330
      %v3984 = vmul.f32 %v3972, %v330
      %v3985 = vmul.f32 %v3973, %v330
      %v3986 = vmul.f32 %v3974, %v330
      %v3991 = vrot.slane %v3983, 1
      %v3992 = vrot.slane %v3984, 1
      %v3993 = vsel %vm160, %v3991, %v3992
      %v3994 = vrot.slane %v3985, 1
      %v3995 = vsel %vm160, %v3992, %v3994
      %v3996 = vrot.slane %v3986, 1
      %v3997 = vsel %vm160, %v3994, %v3996
      %v4002 = vadd.f32 %v3979, %v3993
      %v4003 = vadd.f32 %v3980, %v3995
      %v4004 = vadd.f32 %v3981, %v3997
      %v4005 = vadd.f32 %v3982, %v3996
      %v4006 = vld [vmem:[%s3695] sm:$0xff]
      %v4007 = vld [vmem:[%s3695 + $0x8] sm:$0xff]
      %v4008 = vld [vmem:[%s3695 + $0x10] sm:$0xff]
      %v4009 = vld [vmem:[%s3695 + $0x18] sm:$0x3f]
      %v4010 = vmax.f32 %v4006, 0.0
      %v4011 = vmax.f32 %v4007, 0.0
      %v4012 = vmax.f32 %v4008, 0.0
      %v4013 = vmax.f32 %v4009, 0.0
      %v4014 = vmul.f32 %v4010, %v365
      %v4015 = vmul.f32 %v4011, %v365
      %v4016 = vmul.f32 %v4012, %v365
      %v4017 = vmul.f32 %v4013, %v365
      %v4018 = vadd.f32 %v4002, %v4014
      %v4019 = vadd.f32 %v4003, %v4015
      %v4020 = vadd.f32 %v4004, %v4016
      %v4021 = vadd.f32 %v4005, %v4017
      %v4022 = vmul.f32 %v4010, %v374
      %v4023 = vmul.f32 %v4011, %v374
      %v4024 = vmul.f32 %v4012, %v374
      %v4025 = vmul.f32 %v4013, %v374
      %v4030 = vrot.slane %v4022, 1
      %v4031 = vrot.slane %v4023, 1
      %v4032 = vsel %vm160, %v4030, %v4031
      %v4033 = vrot.slane %v4024, 1
      %v4034 = vsel %vm160, %v4031, %v4033
      %v4035 = vrot.slane %v4025, 1
      %v4036 = vsel %vm160, %v4033, %v4035
      %v4041 = vadd.f32 %v4018, %v4032
      %v4042 = vadd.f32 %v4019, %v4034
      %v4043 = vadd.f32 %v4020, %v4036
      %v4044 = vadd.f32 %v4021, %v4035
      %v4045 = vmul.f32 %v4010, %v398
      %v4046 = vmul.f32 %v4011, %v398
      %v4047 = vmul.f32 %v4012, %v398
      %v4048 = vmul.f32 %v4013, %v398
      %v4053 = vrot.slane %v4045, 2
      %v4054 = vrot.slane %v4046, 2
      %v4055 = vsel %vm185, %v4053, %v4054
      %v4056 = vrot.slane %v4047, 2
      %v4057 = vsel %vm185, %v4054, %v4056
      %v4058 = vrot.slane %v4048, 2
      %v4059 = vsel %vm185, %v4056, %v4058
      %v4064 = vadd.f32 %v4041, %v4055
      %v4065 = vadd.f32 %v4042, %v4057
      %v4066 = vadd.f32 %v4043, %v4059
      %v4067 = vadd.f32 %v4044, %v4058
      %v4068 = vld [vmem:[%s3759] sm:$0xff]
      %v4069 = vld [vmem:[%s3759 + $0x8] sm:$0xff]
      %v4070 = vld [vmem:[%s3759 + $0x10] sm:$0xff]
      %v4071 = vld [vmem:[%s3759 + $0x18] sm:$0x3f]
      %v4072 = vmax.f32 %v4068, 0.0
      %v4073 = vmax.f32 %v4069, 0.0
      %v4074 = vmax.f32 %v4070, 0.0
      %v4075 = vmax.f32 %v4071, 0.0
      %v4076 = vmul.f32 %v4072, %v432
      %v4077 = vmul.f32 %v4073, %v432
      %v4078 = vmul.f32 %v4074, %v432
      %v4079 = vmul.f32 %v4075, %v432
      %v4080 = vadd.f32 %v4064, %v4076
      %v4081 = vadd.f32 %v4065, %v4077
      %v4082 = vadd.f32 %v4066, %v4078
      %v4083 = vadd.f32 %v4067, %v4079
      %v4084 = vmul.f32 %v4072, %v441
      %v4085 = vmul.f32 %v4073, %v441
      %v4086 = vmul.f32 %v4074, %v441
      %v4087 = vmul.f32 %v4075, %v441
      %v4092 = vrot.slane %v4084, 1
      %v4093 = vrot.slane %v4085, 1
      %v4094 = vsel %vm160, %v4092, %v4093
      %v4095 = vrot.slane %v4086, 1
      %v4096 = vsel %vm160, %v4093, %v4095
      %v4097 = vrot.slane %v4087, 1
      %v4098 = vsel %vm160, %v4095, %v4097
      %v4103 = vadd.f32 %v4080, %v4094
      %v4104 = vadd.f32 %v4081, %v4096
      %v4105 = vadd.f32 %v4082, %v4098
      %v4106 = vadd.f32 %v4083, %v4097
      %s4107 = sadd.s32 %s3694, 1920
      %s4108 = scalar_lea.vmem %s0, %s4107
      %v4109 = vld [vmem:[%s4108] sm:$0xff]
      %v4110 = vld [vmem:[%s4108 + $0x8] sm:$0xff]
      %v4111 = vld [vmem:[%s4108 + $0x10] sm:$0xff]
      %v4112 = vld [vmem:[%s4108 + $0x18] sm:$0x3f]
      %v4113 = vmax.f32 %v4109, 0.0
      %v4114 = vmax.f32 %v4110, 0.0
      %v4115 = vmax.f32 %v4111, 0.0
      %v4116 = vmax.f32 %v4112, 0.0
      %v4117 = vmul.f32 %v4113, %v475
      %v4118 = vmul.f32 %v4114, %v475
      %v4119 = vmul.f32 %v4115, %v475
      %v4120 = vmul.f32 %v4116, %v475
      %v4121 = vadd.f32 %v4103, %v4117
      %v4122 = vadd.f32 %v4104, %v4118
      %v4123 = vadd.f32 %v4105, %v4119
      %v4124 = vadd.f32 %v4106, %v4120
      %v4125 = vmul.f32 %v4113, %v484
      %v4126 = vmul.f32 %v4114, %v484
      %v4127 = vmul.f32 %v4115, %v484
      %v4128 = vmul.f32 %v4116, %v484
      %v4133 = vrot.slane %v4125, 1
      %v4134 = vrot.slane %v4126, 1
      %v4135 = vsel %vm160, %v4133, %v4134
      %v4136 = vrot.slane %v4127, 1
      %v4137 = vsel %vm160, %v4134, %v4136
      %v4138 = vrot.slane %v4128, 1
      %v4139 = vsel %vm160, %v4136, %v4138
      %v4144 = vadd.f32 %v4121, %v4135
      %v4145 = vadd.f32 %v4122, %v4137
      %v4146 = vadd.f32 %v4123, %v4139
      %v4147 = vadd.f32 %v4124, %v4138
      %v4148 = vmul.f32 %v4113, %v508
      %v4149 = vmul.f32 %v4114, %v508
      %v4150 = vmul.f32 %v4115, %v508
      %v4151 = vmul.f32 %v4116, %v508
      %v4156 = vrot.slane %v4148, 2
      %v4157 = vrot.slane %v4149, 2
      %v4158 = vsel %vm185, %v4156, %v4157
      %v4159 = vrot.slane %v4150, 2
      %v4160 = vsel %vm185, %v4157, %v4159
      %v4161 = vrot.slane %v4151, 2
      %v4162 = vsel %vm185, %v4159, %v4161
      %v4167 = vadd.f32 %v4144, %v4158
      %v4168 = vadd.f32 %v4145, %v4160
      %v4169 = vadd.f32 %v4146, %v4162
      %v4170 = vadd.f32 %v4147, %v4161
      %s4171 = sadd.s32 %s3758, 1920
      %s4172 = scalar_lea.vmem %s0, %s4171
      %v4173 = vld [vmem:[%s4172] sm:$0xff]
      %v4174 = vld [vmem:[%s4172 + $0x8] sm:$0xff]
      %v4175 = vld [vmem:[%s4172 + $0x10] sm:$0xff]
      %v4176 = vld [vmem:[%s4172 + $0x18] sm:$0x3f]
      %v4177 = vmax.f32 %v4173, 0.0
      %v4178 = vmax.f32 %v4174, 0.0
      %v4179 = vmax.f32 %v4175, 0.0
      %v4180 = vmax.f32 %v4176, 0.0
      %v4181 = vmul.f32 %v4177, %v542
      %v4182 = vmul.f32 %v4178, %v542
      %v4183 = vmul.f32 %v4179, %v542
      %v4184 = vmul.f32 %v4180, %v542
      %v4185 = vadd.f32 %v4167, %v4181
      %v4186 = vadd.f32 %v4168, %v4182
      %v4187 = vadd.f32 %v4169, %v4183
      %v4188 = vadd.f32 %v4170, %v4184
      %v4189 = vmul.f32 %v4177, %v551
      %v4190 = vmul.f32 %v4178, %v551
      %v4191 = vmul.f32 %v4179, %v551
      %v4192 = vmul.f32 %v4180, %v551
      %v4197 = vrot.slane %v4189, 1
      %v4198 = vrot.slane %v4190, 1
      %v4199 = vsel %vm160, %v4197, %v4198
      %v4200 = vrot.slane %v4191, 1
      %v4201 = vsel %vm160, %v4198, %v4200
      %v4202 = vrot.slane %v4192, 1
      %v4203 = vsel %vm160, %v4200, %v4202
      %v4208 = vadd.f32 %v4185, %v4199
      %v4209 = vadd.f32 %v4186, %v4201
      %v4210 = vadd.f32 %v4187, %v4203
      %v4211 = vadd.f32 %v4188, %v4202
      %s4212 = sadd.s32 %s127, 9
      %s4213 = smul.u32 %s4212, 32
      %s4214 = scalar_lea.vmem %s0, %s4213
      %v4215 = vld [vmem:[%s4214] sm:$0xff]
      %v4216 = vld [vmem:[%s4214 + $0x8] sm:$0xff]
      %v4217 = vld [vmem:[%s4214 + $0x10] sm:$0xff]
      %v4218 = vld [vmem:[%s4214 + $0x18] sm:$0x3f]
      %v4219 = vmax.f32 %v4215, 0.0
      %v4220 = vmax.f32 %v4216, 0.0
      %v4221 = vmax.f32 %v4217, 0.0
      %v4222 = vmax.f32 %v4218, 0.0
      %v4223 = vmul.f32 %v4219, %v586
      %v4224 = vmul.f32 %v4220, %v586
      %v4225 = vmul.f32 %v4221, %v586
      %v4226 = vmul.f32 %v4222, %v586
      %v4227 = vadd.f32 %v4208, %v4223
      %v4228 = vadd.f32 %v4209, %v4224
      %v4229 = vadd.f32 %v4210, %v4225
      %v4230 = vadd.f32 %v4211, %v4226
      %v4231 = vmul.f32 %v4219, %v595
      %v4232 = vmul.f32 %v4220, %v595
      %v4233 = vmul.f32 %v4221, %v595
      %v4234 = vmul.f32 %v4222, %v595
      %v4239 = vrot.slane %v4231, 1
      %v4240 = vrot.slane %v4232, 1
      %v4241 = vsel %vm160, %v4239, %v4240
      %v4242 = vrot.slane %v4233, 1
      %v4243 = vsel %vm160, %v4240, %v4242
      %v4244 = vrot.slane %v4234, 1
      %v4245 = vsel %vm160, %v4242, %v4244
      %v4250 = vadd.f32 %v4227, %v4241
      %v4251 = vadd.f32 %v4228, %v4243
      %v4252 = vadd.f32 %v4229, %v4245
      %v4253 = vadd.f32 %v4230, %v4244
      %v4254 = vmul.f32 %v4219, %v619
      %v4255 = vmul.f32 %v4220, %v619
      %v4256 = vmul.f32 %v4221, %v619
      %v4257 = vmul.f32 %v4222, %v619
      %v4262 = vrot.slane %v4254, 2
      %v4263 = vrot.slane %v4255, 2
      %v4264 = vsel %vm185, %v4262, %v4263
      %v4265 = vrot.slane %v4256, 2
      %v4266 = vsel %vm185, %v4263, %v4265
      %v4267 = vrot.slane %v4257, 2
      %v4268 = vsel %vm185, %v4265, %v4267
      %v4273 = vadd.f32 %v4250, %v4264
      %v4274 = vadd.f32 %v4251, %v4266
      %v4275 = vadd.f32 %v4252, %v4268
      %v4276 = vadd.f32 %v4253, %v4267
      %s4277 = sadd.s32 %s4213, 960
      %s4278 = scalar_lea.vmem %s0, %s4277
      %v4279 = vld [vmem:[%s4278] sm:$0xff]
      %v4280 = vld [vmem:[%s4278 + $0x8] sm:$0xff]
      %v4281 = vld [vmem:[%s4278 + $0x10] sm:$0xff]
      %v4282 = vld [vmem:[%s4278 + $0x18] sm:$0x3f]
      %v4283 = vmax.f32 %v4279, 0.0
      %v4284 = vmax.f32 %v4280, 0.0
      %v4285 = vmax.f32 %v4281, 0.0
      %v4286 = vmax.f32 %v4282, 0.0
      %v4287 = vmul.f32 %v4283, %v653
      %v4288 = vmul.f32 %v4284, %v653
      %v4289 = vmul.f32 %v4285, %v653
      %v4290 = vmul.f32 %v4286, %v653
      %v4291 = vadd.f32 %v4273, %v4287
      %v4292 = vadd.f32 %v4274, %v4288
      %v4293 = vadd.f32 %v4275, %v4289
      %v4294 = vadd.f32 %v4276, %v4290
      %v4295 = vmul.f32 %v4283, %v662
      %v4296 = vmul.f32 %v4284, %v662
      %v4297 = vmul.f32 %v4285, %v662
      %v4298 = vmul.f32 %v4286, %v662
      %v4303 = vrot.slane %v4295, 1
      %v4304 = vrot.slane %v4296, 1
      %v4305 = vsel %vm160, %v4303, %v4304
      %v4306 = vrot.slane %v4297, 1
      %v4307 = vsel %vm160, %v4304, %v4306
      %v4308 = vrot.slane %v4298, 1
      %v4309 = vsel %vm160, %v4306, %v4308
      %v4314 = vadd.f32 %v4291, %v4305
      %v4315 = vadd.f32 %v4292, %v4307
      %v4316 = vadd.f32 %v4293, %v4309
      %v4317 = vadd.f32 %v4294, %v4308
      %s4318 = scalar_lea.vmem %s125, 224
      %4319 = vst [vmem:[%s4318] sm:$0xff] %v4314
      %4320 = vst [vmem:[%s4318 + $0x8] sm:$0xff] %v4315
      %4321 = vst [vmem:[%s4318 + $0x10] sm:$0xff] %v4316
      %4322 = vst [vmem:[%s4318 + $0x18] sm:$0xf] %v4317
      %v4323 = vld [vmem:[%s3695] sm:$0xff]
      %v4324 = vld [vmem:[%s3695 + $0x8] sm:$0xff]
      %v4325 = vld [vmem:[%s3695 + $0x10] sm:$0xff]
      %v4326 = vld [vmem:[%s3695 + $0x18] sm:$0x3f]
      %v4327 = vmax.f32 %v4323, 0.0
      %v4328 = vmax.f32 %v4324, 0.0
      %v4329 = vmax.f32 %v4325, 0.0
      %v4330 = vmax.f32 %v4326, 0.0
      %v4331 = vmul.f32 %v4327, %v142
      %v4332 = vmul.f32 %v4328, %v142
      %v4333 = vmul.f32 %v4329, %v142
      %v4334 = vmul.f32 %v4330, %v142
      %v4335 = vadd.f32 %v4331, 0.0
      %v4336 = vadd.f32 %v4332, 0.0
      %v4337 = vadd.f32 %v4333, 0.0
      %v4338 = vadd.f32 %v4334, 0.0
      %v4339 = vmul.f32 %v4327, %v151
      %v4340 = vmul.f32 %v4328, %v151
      %v4341 = vmul.f32 %v4329, %v151
      %v4342 = vmul.f32 %v4330, %v151
      %v4347 = vrot.slane %v4339, 1
      %v4348 = vrot.slane %v4340, 1
      %v4349 = vsel %vm160, %v4347, %v4348
      %v4350 = vrot.slane %v4341, 1
      %v4351 = vsel %vm160, %v4348, %v4350
      %v4352 = vrot.slane %v4342, 1
      %v4353 = vsel %vm160, %v4350, %v4352
      %v4358 = vadd.f32 %v4335, %v4349
      %v4359 = vadd.f32 %v4336, %v4351
      %v4360 = vadd.f32 %v4337, %v4353
      %v4361 = vadd.f32 %v4338, %v4352
      %v4362 = vmul.f32 %v4327, %v176
      %v4363 = vmul.f32 %v4328, %v176
      %v4364 = vmul.f32 %v4329, %v176
      %v4365 = vmul.f32 %v4330, %v176
      %v4370 = vrot.slane %v4362, 2
      %v4371 = vrot.slane %v4363, 2
      %v4372 = vsel %vm185, %v4370, %v4371
      %v4373 = vrot.slane %v4364, 2
      %v4374 = vsel %vm185, %v4371, %v4373
      %v4375 = vrot.slane %v4365, 2
      %v4376 = vsel %vm185, %v4373, %v4375
      %v4381 = vadd.f32 %v4358, %v4372
      %v4382 = vadd.f32 %v4359, %v4374
      %v4383 = vadd.f32 %v4360, %v4376
      %v4384 = vadd.f32 %v4361, %v4375
      %v4385 = vld [vmem:[%s3759] sm:$0xff]
      %v4386 = vld [vmem:[%s3759 + $0x8] sm:$0xff]
      %v4387 = vld [vmem:[%s3759 + $0x10] sm:$0xff]
      %v4388 = vld [vmem:[%s3759 + $0x18] sm:$0x3f]
      %v4389 = vmax.f32 %v4385, 0.0
      %v4390 = vmax.f32 %v4386, 0.0
      %v4391 = vmax.f32 %v4387, 0.0
      %v4392 = vmax.f32 %v4388, 0.0
      %v4393 = vmul.f32 %v4389, %v211
      %v4394 = vmul.f32 %v4390, %v211
      %v4395 = vmul.f32 %v4391, %v211
      %v4396 = vmul.f32 %v4392, %v211
      %v4397 = vadd.f32 %v4381, %v4393
      %v4398 = vadd.f32 %v4382, %v4394
      %v4399 = vadd.f32 %v4383, %v4395
      %v4400 = vadd.f32 %v4384, %v4396
      %v4401 = vmul.f32 %v4389, %v220
      %v4402 = vmul.f32 %v4390, %v220
      %v4403 = vmul.f32 %v4391, %v220
      %v4404 = vmul.f32 %v4392, %v220
      %v4409 = vrot.slane %v4401, 1
      %v4410 = vrot.slane %v4402, 1
      %v4411 = vsel %vm160, %v4409, %v4410
      %v4412 = vrot.slane %v4403, 1
      %v4413 = vsel %vm160, %v4410, %v4412
      %v4414 = vrot.slane %v4404, 1
      %v4415 = vsel %vm160, %v4412, %v4414
      %v4420 = vadd.f32 %v4397, %v4411
      %v4421 = vadd.f32 %v4398, %v4413
      %v4422 = vadd.f32 %v4399, %v4415
      %v4423 = vadd.f32 %v4400, %v4414
      %v4424 = vld [vmem:[%s4108] sm:$0xff]
      %v4425 = vld [vmem:[%s4108 + $0x8] sm:$0xff]
      %v4426 = vld [vmem:[%s4108 + $0x10] sm:$0xff]
      %v4427 = vld [vmem:[%s4108 + $0x18] sm:$0x3f]
      %v4428 = vmax.f32 %v4424, 0.0
      %v4429 = vmax.f32 %v4425, 0.0
      %v4430 = vmax.f32 %v4426, 0.0
      %v4431 = vmax.f32 %v4427, 0.0
      %v4432 = vmul.f32 %v4428, %v254
      %v4433 = vmul.f32 %v4429, %v254
      %v4434 = vmul.f32 %v4430, %v254
      %v4435 = vmul.f32 %v4431, %v254
      %v4436 = vadd.f32 %v4420, %v4432
      %v4437 = vadd.f32 %v4421, %v4433
      %v4438 = vadd.f32 %v4422, %v4434
      %v4439 = vadd.f32 %v4423, %v4435
      %v4440 = vmul.f32 %v4428, %v263
      %v4441 = vmul.f32 %v4429, %v263
      %v4442 = vmul.f32 %v4430, %v263
      %v4443 = vmul.f32 %v4431, %v263
      %v4448 = vrot.slane %v4440, 1
      %v4449 = vrot.slane %v4441, 1
      %v4450 = vsel %vm160, %v4448, %v4449
      %v4451 = vrot.slane %v4442, 1
      %v4452 = vsel %vm160, %v4449, %v4451
      %v4453 = vrot.slane %v4443, 1
      %v4454 = vsel %vm160, %v4451, %v4453
      %v4459 = vadd.f32 %v4436, %v4450
      %v4460 = vadd.f32 %v4437, %v4452
      %v4461 = vadd.f32 %v4438, %v4454
      %v4462 = vadd.f32 %v4439, %v4453
      %v4463 = vmul.f32 %v4428, %v287
      %v4464 = vmul.f32 %v4429, %v287
      %v4465 = vmul.f32 %v4430, %v287
      %v4466 = vmul.f32 %v4431, %v287
      %v4471 = vrot.slane %v4463, 2
      %v4472 = vrot.slane %v4464, 2
      %v4473 = vsel %vm185, %v4471, %v4472
      %v4474 = vrot.slane %v4465, 2
      %v4475 = vsel %vm185, %v4472, %v4474
      %v4476 = vrot.slane %v4466, 2
      %v4477 = vsel %vm185, %v4474, %v4476
      %v4482 = vadd.f32 %v4459, %v4473
      %v4483 = vadd.f32 %v4460, %v4475
      %v4484 = vadd.f32 %v4461, %v4477
      %v4485 = vadd.f32 %v4462, %v4476
      %v4486 = vld [vmem:[%s4172] sm:$0xff]
      %v4487 = vld [vmem:[%s4172 + $0x8] sm:$0xff]
      %v4488 = vld [vmem:[%s4172 + $0x10] sm:$0xff]
      %v4489 = vld [vmem:[%s4172 + $0x18] sm:$0x3f]
      %v4490 = vmax.f32 %v4486, 0.0
      %v4491 = vmax.f32 %v4487, 0.0
      %v4492 = vmax.f32 %v4488, 0.0
      %v4493 = vmax.f32 %v4489, 0.0
      %v4494 = vmul.f32 %v4490, %v321
      %v4495 = vmul.f32 %v4491, %v321
      %v4496 = vmul.f32 %v4492, %v321
      %v4497 = vmul.f32 %v4493, %v321
      %v4498 = vadd.f32 %v4482, %v4494
      %v4499 = vadd.f32 %v4483, %v4495
      %v4500 = vadd.f32 %v4484, %v4496
      %v4501 = vadd.f32 %v4485, %v4497
      %v4502 = vmul.f32 %v4490, %v330
      %v4503 = vmul.f32 %v4491, %v330
      %v4504 = vmul.f32 %v4492, %v330
      %v4505 = vmul.f32 %v4493, %v330
      %v4510 = vrot.slane %v4502, 1
      %v4511 = vrot.slane %v4503, 1
      %v4512 = vsel %vm160, %v4510, %v4511
      %v4513 = vrot.slane %v4504, 1
      %v4514 = vsel %vm160, %v4511, %v4513
      %v4515 = vrot.slane %v4505, 1
      %v4516 = vsel %vm160, %v4513, %v4515
      %v4521 = vadd.f32 %v4498, %v4512
      %v4522 = vadd.f32 %v4499, %v4514
      %v4523 = vadd.f32 %v4500, %v4516
      %v4524 = vadd.f32 %v4501, %v4515
      %v4525 = vld [vmem:[%s4214] sm:$0xff]
      %v4526 = vld [vmem:[%s4214 + $0x8] sm:$0xff]
      %v4527 = vld [vmem:[%s4214 + $0x10] sm:$0xff]
      %v4528 = vld [vmem:[%s4214 + $0x18] sm:$0x3f]
      %v4529 = vmax.f32 %v4525, 0.0
      %v4530 = vmax.f32 %v4526, 0.0
      %v4531 = vmax.f32 %v4527, 0.0
      %v4532 = vmax.f32 %v4528, 0.0
      %v4533 = vmul.f32 %v4529, %v365
      %v4534 = vmul.f32 %v4530, %v365
      %v4535 = vmul.f32 %v4531, %v365
      %v4536 = vmul.f32 %v4532, %v365
      %v4537 = vadd.f32 %v4521, %v4533
      %v4538 = vadd.f32 %v4522, %v4534
      %v4539 = vadd.f32 %v4523, %v4535
      %v4540 = vadd.f32 %v4524, %v4536
      %v4541 = vmul.f32 %v4529, %v374
      %v4542 = vmul.f32 %v4530, %v374
      %v4543 = vmul.f32 %v4531, %v374
      %v4544 = vmul.f32 %v4532, %v374
      %v4549 = vrot.slane %v4541, 1
      %v4550 = vrot.slane %v4542, 1
      %v4551 = vsel %vm160, %v4549, %v4550
      %v4552 = vrot.slane %v4543, 1
      %v4553 = vsel %vm160, %v4550, %v4552
      %v4554 = vrot.slane %v4544, 1
      %v4555 = vsel %vm160, %v4552, %v4554
      %v4560 = vadd.f32 %v4537, %v4551
      %v4561 = vadd.f32 %v4538, %v4553
      %v4562 = vadd.f32 %v4539, %v4555
      %v4563 = vadd.f32 %v4540, %v4554
      %v4564 = vmul.f32 %v4529, %v398
      %v4565 = vmul.f32 %v4530, %v398
      %v4566 = vmul.f32 %v4531, %v398
      %v4567 = vmul.f32 %v4532, %v398
      %v4572 = vrot.slane %v4564, 2
      %v4573 = vrot.slane %v4565, 2
      %v4574 = vsel %vm185, %v4572, %v4573
      %v4575 = vrot.slane %v4566, 2
      %v4576 = vsel %vm185, %v4573, %v4575
      %v4577 = vrot.slane %v4567, 2
      %v4578 = vsel %vm185, %v4575, %v4577
      %v4583 = vadd.f32 %v4560, %v4574
      %v4584 = vadd.f32 %v4561, %v4576
      %v4585 = vadd.f32 %v4562, %v4578
      %v4586 = vadd.f32 %v4563, %v4577
      %v4587 = vld [vmem:[%s4278] sm:$0xff]
      %v4588 = vld [vmem:[%s4278 + $0x8] sm:$0xff]
      %v4589 = vld [vmem:[%s4278 + $0x10] sm:$0xff]
      %v4590 = vld [vmem:[%s4278 + $0x18] sm:$0x3f]
      %v4591 = vmax.f32 %v4587, 0.0
      %v4592 = vmax.f32 %v4588, 0.0
      %v4593 = vmax.f32 %v4589, 0.0
      %v4594 = vmax.f32 %v4590, 0.0
      %v4595 = vmul.f32 %v4591, %v432
      %v4596 = vmul.f32 %v4592, %v432
      %v4597 = vmul.f32 %v4593, %v432
      %v4598 = vmul.f32 %v4594, %v432
      %v4599 = vadd.f32 %v4583, %v4595
      %v4600 = vadd.f32 %v4584, %v4596
      %v4601 = vadd.f32 %v4585, %v4597
      %v4602 = vadd.f32 %v4586, %v4598
      %v4603 = vmul.f32 %v4591, %v441
      %v4604 = vmul.f32 %v4592, %v441
      %v4605 = vmul.f32 %v4593, %v441
      %v4606 = vmul.f32 %v4594, %v441
      %v4611 = vrot.slane %v4603, 1
      %v4612 = vrot.slane %v4604, 1
      %v4613 = vsel %vm160, %v4611, %v4612
      %v4614 = vrot.slane %v4605, 1
      %v4615 = vsel %vm160, %v4612, %v4614
      %v4616 = vrot.slane %v4606, 1
      %v4617 = vsel %vm160, %v4614, %v4616
      %v4622 = vadd.f32 %v4599, %v4613
      %v4623 = vadd.f32 %v4600, %v4615
      %v4624 = vadd.f32 %v4601, %v4617
      %v4625 = vadd.f32 %v4602, %v4616
      %s4626 = sadd.s32 %s4213, 1920
      %s4627 = scalar_lea.vmem %s0, %s4626
      %v4628 = vld [vmem:[%s4627] sm:$0xff]
      %v4629 = vld [vmem:[%s4627 + $0x8] sm:$0xff]
      %v4630 = vld [vmem:[%s4627 + $0x10] sm:$0xff]
      %v4631 = vld [vmem:[%s4627 + $0x18] sm:$0x3f]
      %v4632 = vmax.f32 %v4628, 0.0
      %v4633 = vmax.f32 %v4629, 0.0
      %v4634 = vmax.f32 %v4630, 0.0
      %v4635 = vmax.f32 %v4631, 0.0
      %v4636 = vmul.f32 %v4632, %v475
      %v4637 = vmul.f32 %v4633, %v475
      %v4638 = vmul.f32 %v4634, %v475
      %v4639 = vmul.f32 %v4635, %v475
      %v4640 = vadd.f32 %v4622, %v4636
      %v4641 = vadd.f32 %v4623, %v4637
      %v4642 = vadd.f32 %v4624, %v4638
      %v4643 = vadd.f32 %v4625, %v4639
      %v4644 = vmul.f32 %v4632, %v484
      %v4645 = vmul.f32 %v4633, %v484
      %v4646 = vmul.f32 %v4634, %v484
      %v4647 = vmul.f32 %v4635, %v484
      %v4652 = vrot.slane %v4644, 1
      %v4653 = vrot.slane %v4645, 1
      %v4654 = vsel %vm160, %v4652, %v4653
      %v4655 = vrot.slane %v4646, 1
      %v4656 = vsel %vm160, %v4653, %v4655
      %v4657 = vrot.slane %v4647, 1
      %v4658 = vsel %vm160, %v4655, %v4657
      %v4663 = vadd.f32 %v4640, %v4654
      %v4664 = vadd.f32 %v4641, %v4656
      %v4665 = vadd.f32 %v4642, %v4658
      %v4666 = vadd.f32 %v4643, %v4657
      %v4667 = vmul.f32 %v4632, %v508
      %v4668 = vmul.f32 %v4633, %v508
      %v4669 = vmul.f32 %v4634, %v508
      %v4670 = vmul.f32 %v4635, %v508
      %v4675 = vrot.slane %v4667, 2
      %v4676 = vrot.slane %v4668, 2
      %v4677 = vsel %vm185, %v4675, %v4676
      %v4678 = vrot.slane %v4669, 2
      %v4679 = vsel %vm185, %v4676, %v4678
      %v4680 = vrot.slane %v4670, 2
      %v4681 = vsel %vm185, %v4678, %v4680
      %v4686 = vadd.f32 %v4663, %v4677
      %v4687 = vadd.f32 %v4664, %v4679
      %v4688 = vadd.f32 %v4665, %v4681
      %v4689 = vadd.f32 %v4666, %v4680
      %s4690 = sadd.s32 %s4277, 1920
      %s4691 = scalar_lea.vmem %s0, %s4690
      %v4692 = vld [vmem:[%s4691] sm:$0xff]
      %v4693 = vld [vmem:[%s4691 + $0x8] sm:$0xff]
      %v4694 = vld [vmem:[%s4691 + $0x10] sm:$0xff]
      %v4695 = vld [vmem:[%s4691 + $0x18] sm:$0x3f]
      %v4696 = vmax.f32 %v4692, 0.0
      %v4697 = vmax.f32 %v4693, 0.0
      %v4698 = vmax.f32 %v4694, 0.0
      %v4699 = vmax.f32 %v4695, 0.0
      %v4700 = vmul.f32 %v4696, %v542
      %v4701 = vmul.f32 %v4697, %v542
      %v4702 = vmul.f32 %v4698, %v542
      %v4703 = vmul.f32 %v4699, %v542
      %v4704 = vadd.f32 %v4686, %v4700
      %v4705 = vadd.f32 %v4687, %v4701
      %v4706 = vadd.f32 %v4688, %v4702
      %v4707 = vadd.f32 %v4689, %v4703
      %v4708 = vmul.f32 %v4696, %v551
      %v4709 = vmul.f32 %v4697, %v551
      %v4710 = vmul.f32 %v4698, %v551
      %v4711 = vmul.f32 %v4699, %v551
      %v4716 = vrot.slane %v4708, 1
      %v4717 = vrot.slane %v4709, 1
      %v4718 = vsel %vm160, %v4716, %v4717
      %v4719 = vrot.slane %v4710, 1
      %v4720 = vsel %vm160, %v4717, %v4719
      %v4721 = vrot.slane %v4711, 1
      %v4722 = vsel %vm160, %v4719, %v4721
      %v4727 = vadd.f32 %v4704, %v4718
      %v4728 = vadd.f32 %v4705, %v4720
      %v4729 = vadd.f32 %v4706, %v4722
      %v4730 = vadd.f32 %v4707, %v4721
      %s4731 = sadd.s32 %s127, 10
      %s4732 = smul.u32 %s4731, 32
      %s4733 = scalar_lea.vmem %s0, %s4732
      %v4734 = vld [vmem:[%s4733] sm:$0xff]
      %v4735 = vld [vmem:[%s4733 + $0x8] sm:$0xff]
      %v4736 = vld [vmem:[%s4733 + $0x10] sm:$0xff]
      %v4737 = vld [vmem:[%s4733 + $0x18] sm:$0x3f]
      %v4738 = vmax.f32 %v4734, 0.0
      %v4739 = vmax.f32 %v4735, 0.0
      %v4740 = vmax.f32 %v4736, 0.0
      %v4741 = vmax.f32 %v4737, 0.0
      %v4742 = vmul.f32 %v4738, %v586
      %v4743 = vmul.f32 %v4739, %v586
      %v4744 = vmul.f32 %v4740, %v586
      %v4745 = vmul.f32 %v4741, %v586
      %v4746 = vadd.f32 %v4727, %v4742
      %v4747 = vadd.f32 %v4728, %v4743
      %v4748 = vadd.f32 %v4729, %v4744
      %v4749 = vadd.f32 %v4730, %v4745
      %v4750 = vmul.f32 %v4738, %v595
      %v4751 = vmul.f32 %v4739, %v595
      %v4752 = vmul.f32 %v4740, %v595
      %v4753 = vmul.f32 %v4741, %v595
      %v4758 = vrot.slane %v4750, 1
      %v4759 = vrot.slane %v4751, 1
      %v4760 = vsel %vm160, %v4758, %v4759
      %v4761 = vrot.slane %v4752, 1
      %v4762 = vsel %vm160, %v4759, %v4761
      %v4763 = vrot.slane %v4753, 1
      %v4764 = vsel %vm160, %v4761, %v4763
      %v4769 = vadd.f32 %v4746, %v4760
      %v4770 = vadd.f32 %v4747, %v4762
      %v4771 = vadd.f32 %v4748, %v4764
      %v4772 = vadd.f32 %v4749, %v4763
      %v4773 = vmul.f32 %v4738, %v619
      %v4774 = vmul.f32 %v4739, %v619
      %v4775 = vmul.f32 %v4740, %v619
      %v4776 = vmul.f32 %v4741, %v619
      %v4781 = vrot.slane %v4773, 2
      %v4782 = vrot.slane %v4774, 2
      %v4783 = vsel %vm185, %v4781, %v4782
      %v4784 = vrot.slane %v4775, 2
      %v4785 = vsel %vm185, %v4782, %v4784
      %v4786 = vrot.slane %v4776, 2
      %v4787 = vsel %vm185, %v4784, %v4786
      %v4792 = vadd.f32 %v4769, %v4783
      %v4793 = vadd.f32 %v4770, %v4785
      %v4794 = vadd.f32 %v4771, %v4787
      %v4795 = vadd.f32 %v4772, %v4786
      %s4796 = sadd.s32 %s4732, 960
      %s4797 = scalar_lea.vmem %s0, %s4796
      %v4798 = vld [vmem:[%s4797] sm:$0xff]
      %v4799 = vld [vmem:[%s4797 + $0x8] sm:$0xff]
      %v4800 = vld [vmem:[%s4797 + $0x10] sm:$0xff]
      %v4801 = vld [vmem:[%s4797 + $0x18] sm:$0x3f]
      %v4802 = vmax.f32 %v4798, 0.0
      %v4803 = vmax.f32 %v4799, 0.0
      %v4804 = vmax.f32 %v4800, 0.0
      %v4805 = vmax.f32 %v4801, 0.0
      %v4806 = vmul.f32 %v4802, %v653
      %v4807 = vmul.f32 %v4803, %v653
      %v4808 = vmul.f32 %v4804, %v653
      %v4809 = vmul.f32 %v4805, %v653
      %v4810 = vadd.f32 %v4792, %v4806
      %v4811 = vadd.f32 %v4793, %v4807
      %v4812 = vadd.f32 %v4794, %v4808
      %v4813 = vadd.f32 %v4795, %v4809
      %v4814 = vmul.f32 %v4802, %v662
      %v4815 = vmul.f32 %v4803, %v662
      %v4816 = vmul.f32 %v4804, %v662
      %v4817 = vmul.f32 %v4805, %v662
      %v4822 = vrot.slane %v4814, 1
      %v4823 = vrot.slane %v4815, 1
      %v4824 = vsel %vm160, %v4822, %v4823
      %v4825 = vrot.slane %v4816, 1
      %v4826 = vsel %vm160, %v4823, %v4825
      %v4827 = vrot.slane %v4817, 1
      %v4828 = vsel %vm160, %v4825, %v4827
      %v4833 = vadd.f32 %v4810, %v4824
      %v4834 = vadd.f32 %v4811, %v4826
      %v4835 = vadd.f32 %v4812, %v4828
      %v4836 = vadd.f32 %v4813, %v4827
      %s4837 = scalar_lea.vmem %s125, 256
      %4838 = vst [vmem:[%s4837] sm:$0xff] %v4833
      %4839 = vst [vmem:[%s4837 + $0x8] sm:$0xff] %v4834
      %4840 = vst [vmem:[%s4837 + $0x10] sm:$0xff] %v4835
      %4841 = vst [vmem:[%s4837 + $0x18] sm:$0xf] %v4836
      %v4842 = vld [vmem:[%s4214] sm:$0xff]
      %v4843 = vld [vmem:[%s4214 + $0x8] sm:$0xff]
      %v4844 = vld [vmem:[%s4214 + $0x10] sm:$0xff]
      %v4845 = vld [vmem:[%s4214 + $0x18] sm:$0x3f]
      %v4846 = vmax.f32 %v4842, 0.0
      %v4847 = vmax.f32 %v4843, 0.0
      %v4848 = vmax.f32 %v4844, 0.0
      %v4849 = vmax.f32 %v4845, 0.0
      %v4850 = vmul.f32 %v4846, %v142
      %v4851 = vmul.f32 %v4847, %v142
      %v4852 = vmul.f32 %v4848, %v142
      %v4853 = vmul.f32 %v4849, %v142
      %v4854 = vadd.f32 %v4850, 0.0
      %v4855 = vadd.f32 %v4851, 0.0
      %v4856 = vadd.f32 %v4852, 0.0
      %v4857 = vadd.f32 %v4853, 0.0
      %v4858 = vmul.f32 %v4846, %v151
      %v4859 = vmul.f32 %v4847, %v151
      %v4860 = vmul.f32 %v4848, %v151
      %v4861 = vmul.f32 %v4849, %v151
      %v4866 = vrot.slane %v4858, 1
      %v4867 = vrot.slane %v4859, 1
      %v4868 = vsel %vm160, %v4866, %v4867
      %v4869 = vrot.slane %v4860, 1
      %v4870 = vsel %vm160, %v4867, %v4869
      %v4871 = vrot.slane %v4861, 1
      %v4872 = vsel %vm160, %v4869, %v4871
      %v4877 = vadd.f32 %v4854, %v4868
      %v4878 = vadd.f32 %v4855, %v4870
      %v4879 = vadd.f32 %v4856, %v4872
      %v4880 = vadd.f32 %v4857, %v4871
      %v4881 = vmul.f32 %v4846, %v176
      %v4882 = vmul.f32 %v4847, %v176
      %v4883 = vmul.f32 %v4848, %v176
      %v4884 = vmul.f32 %v4849, %v176
      %v4889 = vrot.slane %v4881, 2
      %v4890 = vrot.slane %v4882, 2
      %v4891 = vsel %vm185, %v4889, %v4890
      %v4892 = vrot.slane %v4883, 2
      %v4893 = vsel %vm185, %v4890, %v4892
      %v4894 = vrot.slane %v4884, 2
      %v4895 = vsel %vm185, %v4892, %v4894
      %v4900 = vadd.f32 %v4877, %v4891
      %v4901 = vadd.f32 %v4878, %v4893
      %v4902 = vadd.f32 %v4879, %v4895
      %v4903 = vadd.f32 %v4880, %v4894
      %v4904 = vld [vmem:[%s4278] sm:$0xff]
      %v4905 = vld [vmem:[%s4278 + $0x8] sm:$0xff]
      %v4906 = vld [vmem:[%s4278 + $0x10] sm:$0xff]
      %v4907 = vld [vmem:[%s4278 + $0x18] sm:$0x3f]
      %v4908 = vmax.f32 %v4904, 0.0
      %v4909 = vmax.f32 %v4905, 0.0
      %v4910 = vmax.f32 %v4906, 0.0
      %v4911 = vmax.f32 %v4907, 0.0
      %v4912 = vmul.f32 %v4908, %v211
      %v4913 = vmul.f32 %v4909, %v211
      %v4914 = vmul.f32 %v4910, %v211
      %v4915 = vmul.f32 %v4911, %v211
      %v4916 = vadd.f32 %v4900, %v4912
      %v4917 = vadd.f32 %v4901, %v4913
      %v4918 = vadd.f32 %v4902, %v4914
      %v4919 = vadd.f32 %v4903, %v4915
      %v4920 = vmul.f32 %v4908, %v220
      %v4921 = vmul.f32 %v4909, %v220
      %v4922 = vmul.f32 %v4910, %v220
      %v4923 = vmul.f32 %v4911, %v220
      %v4928 = vrot.slane %v4920, 1
      %v4929 = vrot.slane %v4921, 1
      %v4930 = vsel %vm160, %v4928, %v4929
      %v4931 = vrot.slane %v4922, 1
      %v4932 = vsel %vm160, %v4929, %v4931
      %v4933 = vrot.slane %v4923, 1
      %v4934 = vsel %vm160, %v4931, %v4933
      %v4939 = vadd.f32 %v4916, %v4930
      %v4940 = vadd.f32 %v4917, %v4932
      %v4941 = vadd.f32 %v4918, %v4934
      %v4942 = vadd.f32 %v4919, %v4933
      %v4943 = vld [vmem:[%s4627] sm:$0xff]
      %v4944 = vld [vmem:[%s4627 + $0x8] sm:$0xff]
      %v4945 = vld [vmem:[%s4627 + $0x10] sm:$0xff]
      %v4946 = vld [vmem:[%s4627 + $0x18] sm:$0x3f]
      %v4947 = vmax.f32 %v4943, 0.0
      %v4948 = vmax.f32 %v4944, 0.0
      %v4949 = vmax.f32 %v4945, 0.0
      %v4950 = vmax.f32 %v4946, 0.0
      %v4951 = vmul.f32 %v4947, %v254
      %v4952 = vmul.f32 %v4948, %v254
      %v4953 = vmul.f32 %v4949, %v254
      %v4954 = vmul.f32 %v4950, %v254
      %v4955 = vadd.f32 %v4939, %v4951
      %v4956 = vadd.f32 %v4940, %v4952
      %v4957 = vadd.f32 %v4941, %v4953
      %v4958 = vadd.f32 %v4942, %v4954
      %v4959 = vmul.f32 %v4947, %v263
      %v4960 = vmul.f32 %v4948, %v263
      %v4961 = vmul.f32 %v4949, %v263
      %v4962 = vmul.f32 %v4950, %v263
      %v4967 = vrot.slane %v4959, 1
      %v4968 = vrot.slane %v4960, 1
      %v4969 = vsel %vm160, %v4967, %v4968
      %v4970 = vrot.slane %v4961, 1
      %v4971 = vsel %vm160, %v4968, %v4970
      %v4972 = vrot.slane %v4962, 1
      %v4973 = vsel %vm160, %v4970, %v4972
      %v4978 = vadd.f32 %v4955, %v4969
      %v4979 = vadd.f32 %v4956, %v4971
      %v4980 = vadd.f32 %v4957, %v4973
      %v4981 = vadd.f32 %v4958, %v4972
      %v4982 = vmul.f32 %v4947, %v287
      %v4983 = vmul.f32 %v4948, %v287
      %v4984 = vmul.f32 %v4949, %v287
      %v4985 = vmul.f32 %v4950, %v287
      %v4990 = vrot.slane %v4982, 2
      %v4991 = vrot.slane %v4983, 2
      %v4992 = vsel %vm185, %v4990, %v4991
      %v4993 = vrot.slane %v4984, 2
      %v4994 = vsel %vm185, %v4991, %v4993
      %v4995 = vrot.slane %v4985, 2
      %v4996 = vsel %vm185, %v4993, %v4995
      %v5001 = vadd.f32 %v4978, %v4992
      %v5002 = vadd.f32 %v4979, %v4994
      %v5003 = vadd.f32 %v4980, %v4996
      %v5004 = vadd.f32 %v4981, %v4995
      %v5005 = vld [vmem:[%s4691] sm:$0xff]
      %v5006 = vld [vmem:[%s4691 + $0x8] sm:$0xff]
      %v5007 = vld [vmem:[%s4691 + $0x10] sm:$0xff]
      %v5008 = vld [vmem:[%s4691 + $0x18] sm:$0x3f]
      %v5009 = vmax.f32 %v5005, 0.0
      %v5010 = vmax.f32 %v5006, 0.0
      %v5011 = vmax.f32 %v5007, 0.0
      %v5012 = vmax.f32 %v5008, 0.0
      %v5013 = vmul.f32 %v5009, %v321
      %v5014 = vmul.f32 %v5010, %v321
      %v5015 = vmul.f32 %v5011, %v321
      %v5016 = vmul.f32 %v5012, %v321
      %v5017 = vadd.f32 %v5001, %v5013
      %v5018 = vadd.f32 %v5002, %v5014
      %v5019 = vadd.f32 %v5003, %v5015
      %v5020 = vadd.f32 %v5004, %v5016
      %v5021 = vmul.f32 %v5009, %v330
      %v5022 = vmul.f32 %v5010, %v330
      %v5023 = vmul.f32 %v5011, %v330
      %v5024 = vmul.f32 %v5012, %v330
      %v5029 = vrot.slane %v5021, 1
      %v5030 = vrot.slane %v5022, 1
      %v5031 = vsel %vm160, %v5029, %v5030
      %v5032 = vrot.slane %v5023, 1
      %v5033 = vsel %vm160, %v5030, %v5032
      %v5034 = vrot.slane %v5024, 1
      %v5035 = vsel %vm160, %v5032, %v5034
      %v5040 = vadd.f32 %v5017, %v5031
      %v5041 = vadd.f32 %v5018, %v5033
      %v5042 = vadd.f32 %v5019, %v5035
      %v5043 = vadd.f32 %v5020, %v5034
      %v5044 = vld [vmem:[%s4733] sm:$0xff]
      %v5045 = vld [vmem:[%s4733 + $0x8] sm:$0xff]
      %v5046 = vld [vmem:[%s4733 + $0x10] sm:$0xff]
      %v5047 = vld [vmem:[%s4733 + $0x18] sm:$0x3f]
      %v5048 = vmax.f32 %v5044, 0.0
      %v5049 = vmax.f32 %v5045, 0.0
      %v5050 = vmax.f32 %v5046, 0.0
      %v5051 = vmax.f32 %v5047, 0.0
      %v5052 = vmul.f32 %v5048, %v365
      %v5053 = vmul.f32 %v5049, %v365
      %v5054 = vmul.f32 %v5050, %v365
      %v5055 = vmul.f32 %v5051, %v365
      %v5056 = vadd.f32 %v5040, %v5052
      %v5057 = vadd.f32 %v5041, %v5053
      %v5058 = vadd.f32 %v5042, %v5054
      %v5059 = vadd.f32 %v5043, %v5055
      %v5060 = vmul.f32 %v5048, %v374
      %v5061 = vmul.f32 %v5049, %v374
      %v5062 = vmul.f32 %v5050, %v374
      %v5063 = vmul.f32 %v5051, %v374
      %v5068 = vrot.slane %v5060, 1
      %v5069 = vrot.slane %v5061, 1
      %v5070 = vsel %vm160, %v5068, %v5069
      %v5071 = vrot.slane %v5062, 1
      %v5072 = vsel %vm160, %v5069, %v5071
      %v5073 = vrot.slane %v5063, 1
      %v5074 = vsel %vm160, %v5071, %v5073
      %v5079 = vadd.f32 %v5056, %v5070
      %v5080 = vadd.f32 %v5057, %v5072
      %v5081 = vadd.f32 %v5058, %v5074
      %v5082 = vadd.f32 %v5059, %v5073
      %v5083 = vmul.f32 %v5048, %v398
      %v5084 = vmul.f32 %v5049, %v398
      %v5085 = vmul.f32 %v5050, %v398
      %v5086 = vmul.f32 %v5051, %v398
      %v5091 = vrot.slane %v5083, 2
      %v5092 = vrot.slane %v5084, 2
      %v5093 = vsel %vm185, %v5091, %v5092
      %v5094 = vrot.slane %v5085, 2
      %v5095 = vsel %vm185, %v5092, %v5094
      %v5096 = vrot.slane %v5086, 2
      %v5097 = vsel %vm185, %v5094, %v5096
      %v5102 = vadd.f32 %v5079, %v5093
      %v5103 = vadd.f32 %v5080, %v5095
      %v5104 = vadd.f32 %v5081, %v5097
      %v5105 = vadd.f32 %v5082, %v5096
      %v5106 = vld [vmem:[%s4797] sm:$0xff]
      %v5107 = vld [vmem:[%s4797 + $0x8] sm:$0xff]
      %v5108 = vld [vmem:[%s4797 + $0x10] sm:$0xff]
      %v5109 = vld [vmem:[%s4797 + $0x18] sm:$0x3f]
      %v5110 = vmax.f32 %v5106, 0.0
      %v5111 = vmax.f32 %v5107, 0.0
      %v5112 = vmax.f32 %v5108, 0.0
      %v5113 = vmax.f32 %v5109, 0.0
      %v5114 = vmul.f32 %v5110, %v432
      %v5115 = vmul.f32 %v5111, %v432
      %v5116 = vmul.f32 %v5112, %v432
      %v5117 = vmul.f32 %v5113, %v432
      %v5118 = vadd.f32 %v5102, %v5114
      %v5119 = vadd.f32 %v5103, %v5115
      %v5120 = vadd.f32 %v5104, %v5116
      %v5121 = vadd.f32 %v5105, %v5117
      %v5122 = vmul.f32 %v5110, %v441
      %v5123 = vmul.f32 %v5111, %v441
      %v5124 = vmul.f32 %v5112, %v441
      %v5125 = vmul.f32 %v5113, %v441
      %v5130 = vrot.slane %v5122, 1
      %v5131 = vrot.slane %v5123, 1
      %v5132 = vsel %vm160, %v5130, %v5131
      %v5133 = vrot.slane %v5124, 1
      %v5134 = vsel %vm160, %v5131, %v5133
      %v5135 = vrot.slane %v5125, 1
      %v5136 = vsel %vm160, %v5133, %v5135
      %v5141 = vadd.f32 %v5118, %v5132
      %v5142 = vadd.f32 %v5119, %v5134
      %v5143 = vadd.f32 %v5120, %v5136
      %v5144 = vadd.f32 %v5121, %v5135
      %s5145 = sadd.s32 %s4732, 1920
      %s5146 = scalar_lea.vmem %s0, %s5145
      %v5147 = vld [vmem:[%s5146] sm:$0xff]
      %v5148 = vld [vmem:[%s5146 + $0x8] sm:$0xff]
      %v5149 = vld [vmem:[%s5146 + $0x10] sm:$0xff]
      %v5150 = vld [vmem:[%s5146 + $0x18] sm:$0x3f]
      %v5151 = vmax.f32 %v5147, 0.0
      %v5152 = vmax.f32 %v5148, 0.0
      %v5153 = vmax.f32 %v5149, 0.0
      %v5154 = vmax.f32 %v5150, 0.0
      %v5155 = vmul.f32 %v5151, %v475
      %v5156 = vmul.f32 %v5152, %v475
      %v5157 = vmul.f32 %v5153, %v475
      %v5158 = vmul.f32 %v5154, %v475
      %v5159 = vadd.f32 %v5141, %v5155
      %v5160 = vadd.f32 %v5142, %v5156
      %v5161 = vadd.f32 %v5143, %v5157
      %v5162 = vadd.f32 %v5144, %v5158
      %v5163 = vmul.f32 %v5151, %v484
      %v5164 = vmul.f32 %v5152, %v484
      %v5165 = vmul.f32 %v5153, %v484
      %v5166 = vmul.f32 %v5154, %v484
      %v5171 = vrot.slane %v5163, 1
      %v5172 = vrot.slane %v5164, 1
      %v5173 = vsel %vm160, %v5171, %v5172
      %v5174 = vrot.slane %v5165, 1
      %v5175 = vsel %vm160, %v5172, %v5174
      %v5176 = vrot.slane %v5166, 1
      %v5177 = vsel %vm160, %v5174, %v5176
      %v5182 = vadd.f32 %v5159, %v5173
      %v5183 = vadd.f32 %v5160, %v5175
      %v5184 = vadd.f32 %v5161, %v5177
      %v5185 = vadd.f32 %v5162, %v5176
      %v5186 = vmul.f32 %v5151, %v508
      %v5187 = vmul.f32 %v5152, %v508
      %v5188 = vmul.f32 %v5153, %v508
      %v5189 = vmul.f32 %v5154, %v508
      %v5194 = vrot.slane %v5186, 2
      %v5195 = vrot.slane %v5187, 2
      %v5196 = vsel %vm185, %v5194, %v5195
      %v5197 = vrot.slane %v5188, 2
      %v5198 = vsel %vm185, %v5195, %v5197
      %v5199 = vrot.slane %v5189, 2
      %v5200 = vsel %vm185, %v5197, %v5199
      %v5205 = vadd.f32 %v5182, %v5196
      %v5206 = vadd.f32 %v5183, %v5198
      %v5207 = vadd.f32 %v5184, %v5200
      %v5208 = vadd.f32 %v5185, %v5199
      %s5209 = sadd.s32 %s4796, 1920
      %s5210 = scalar_lea.vmem %s0, %s5209
      %v5211 = vld [vmem:[%s5210] sm:$0xff]
      %v5212 = vld [vmem:[%s5210 + $0x8] sm:$0xff]
      %v5213 = vld [vmem:[%s5210 + $0x10] sm:$0xff]
      %v5214 = vld [vmem:[%s5210 + $0x18] sm:$0x3f]
      %v5215 = vmax.f32 %v5211, 0.0
      %v5216 = vmax.f32 %v5212, 0.0
      %v5217 = vmax.f32 %v5213, 0.0
      %v5218 = vmax.f32 %v5214, 0.0
      %v5219 = vmul.f32 %v5215, %v542
      %v5220 = vmul.f32 %v5216, %v542
      %v5221 = vmul.f32 %v5217, %v542
      %v5222 = vmul.f32 %v5218, %v542
      %v5223 = vadd.f32 %v5205, %v5219
      %v5224 = vadd.f32 %v5206, %v5220
      %v5225 = vadd.f32 %v5207, %v5221
      %v5226 = vadd.f32 %v5208, %v5222
      %v5227 = vmul.f32 %v5215, %v551
      %v5228 = vmul.f32 %v5216, %v551
      %v5229 = vmul.f32 %v5217, %v551
      %v5230 = vmul.f32 %v5218, %v551
      %v5235 = vrot.slane %v5227, 1
      %v5236 = vrot.slane %v5228, 1
      %v5237 = vsel %vm160, %v5235, %v5236
      %v5238 = vrot.slane %v5229, 1
      %v5239 = vsel %vm160, %v5236, %v5238
      %v5240 = vrot.slane %v5230, 1
      %v5241 = vsel %vm160, %v5238, %v5240
      %v5246 = vadd.f32 %v5223, %v5237
      %v5247 = vadd.f32 %v5224, %v5239
      %v5248 = vadd.f32 %v5225, %v5241
      %v5249 = vadd.f32 %v5226, %v5240
      %s5250 = sadd.s32 %s127, 11
      %s5251 = smul.u32 %s5250, 32
      %s5252 = scalar_lea.vmem %s0, %s5251
      %v5253 = vld [vmem:[%s5252] sm:$0xff]
      %v5254 = vld [vmem:[%s5252 + $0x8] sm:$0xff]
      %v5255 = vld [vmem:[%s5252 + $0x10] sm:$0xff]
      %v5256 = vld [vmem:[%s5252 + $0x18] sm:$0x3f]
      %v5257 = vmax.f32 %v5253, 0.0
      %v5258 = vmax.f32 %v5254, 0.0
      %v5259 = vmax.f32 %v5255, 0.0
      %v5260 = vmax.f32 %v5256, 0.0
      %v5261 = vmul.f32 %v5257, %v586
      %v5262 = vmul.f32 %v5258, %v586
      %v5263 = vmul.f32 %v5259, %v586
      %v5264 = vmul.f32 %v5260, %v586
      %v5265 = vadd.f32 %v5246, %v5261
      %v5266 = vadd.f32 %v5247, %v5262
      %v5267 = vadd.f32 %v5248, %v5263
      %v5268 = vadd.f32 %v5249, %v5264
      %v5269 = vmul.f32 %v5257, %v595
      %v5270 = vmul.f32 %v5258, %v595
      %v5271 = vmul.f32 %v5259, %v595
      %v5272 = vmul.f32 %v5260, %v595
      %v5277 = vrot.slane %v5269, 1
      %v5278 = vrot.slane %v5270, 1
      %v5279 = vsel %vm160, %v5277, %v5278
      %v5280 = vrot.slane %v5271, 1
      %v5281 = vsel %vm160, %v5278, %v5280
      %v5282 = vrot.slane %v5272, 1
      %v5283 = vsel %vm160, %v5280, %v5282
      %v5288 = vadd.f32 %v5265, %v5279
      %v5289 = vadd.f32 %v5266, %v5281
      %v5290 = vadd.f32 %v5267, %v5283
      %v5291 = vadd.f32 %v5268, %v5282
      %v5292 = vmul.f32 %v5257, %v619
      %v5293 = vmul.f32 %v5258, %v619
      %v5294 = vmul.f32 %v5259, %v619
      %v5295 = vmul.f32 %v5260, %v619
      %v5300 = vrot.slane %v5292, 2
      %v5301 = vrot.slane %v5293, 2
      %v5302 = vsel %vm185, %v5300, %v5301
      %v5303 = vrot.slane %v5294, 2
      %v5304 = vsel %vm185, %v5301, %v5303
      %v5305 = vrot.slane %v5295, 2
      %v5306 = vsel %vm185, %v5303, %v5305
      %v5311 = vadd.f32 %v5288, %v5302
      %v5312 = vadd.f32 %v5289, %v5304
      %v5313 = vadd.f32 %v5290, %v5306
      %v5314 = vadd.f32 %v5291, %v5305
      %s5315 = sadd.s32 %s5251, 960
      %s5316 = scalar_lea.vmem %s0, %s5315
      %v5317 = vld [vmem:[%s5316] sm:$0xff]
      %v5318 = vld [vmem:[%s5316 + $0x8] sm:$0xff]
      %v5319 = vld [vmem:[%s5316 + $0x10] sm:$0xff]
      %v5320 = vld [vmem:[%s5316 + $0x18] sm:$0x3f]
      %v5321 = vmax.f32 %v5317, 0.0
      %v5322 = vmax.f32 %v5318, 0.0
      %v5323 = vmax.f32 %v5319, 0.0
      %v5324 = vmax.f32 %v5320, 0.0
      %v5325 = vmul.f32 %v5321, %v653
      %v5326 = vmul.f32 %v5322, %v653
      %v5327 = vmul.f32 %v5323, %v653
      %v5328 = vmul.f32 %v5324, %v653
      %v5329 = vadd.f32 %v5311, %v5325
      %v5330 = vadd.f32 %v5312, %v5326
      %v5331 = vadd.f32 %v5313, %v5327
      %v5332 = vadd.f32 %v5314, %v5328
      %v5333 = vmul.f32 %v5321, %v662
      %v5334 = vmul.f32 %v5322, %v662
      %v5335 = vmul.f32 %v5323, %v662
      %v5336 = vmul.f32 %v5324, %v662
      %v5341 = vrot.slane %v5333, 1
      %v5342 = vrot.slane %v5334, 1
      %v5343 = vsel %vm160, %v5341, %v5342
      %v5344 = vrot.slane %v5335, 1
      %v5345 = vsel %vm160, %v5342, %v5344
      %v5346 = vrot.slane %v5336, 1
      %v5347 = vsel %vm160, %v5344, %v5346
      %v5352 = vadd.f32 %v5329, %v5343
      %v5353 = vadd.f32 %v5330, %v5345
      %v5354 = vadd.f32 %v5331, %v5347
      %v5355 = vadd.f32 %v5332, %v5346
      %s5356 = scalar_lea.vmem %s125, 288
      %5357 = vst [vmem:[%s5356] sm:$0xff] %v5352
      %5358 = vst [vmem:[%s5356 + $0x8] sm:$0xff] %v5353
      %5359 = vst [vmem:[%s5356 + $0x10] sm:$0xff] %v5354
      %5360 = vst [vmem:[%s5356 + $0x18] sm:$0xf] %v5355
      %v5361 = vld [vmem:[%s4733] sm:$0xff]
      %v5362 = vld [vmem:[%s4733 + $0x8] sm:$0xff]
      %v5363 = vld [vmem:[%s4733 + $0x10] sm:$0xff]
      %v5364 = vld [vmem:[%s4733 + $0x18] sm:$0x3f]
      %v5365 = vmax.f32 %v5361, 0.0
      %v5366 = vmax.f32 %v5362, 0.0
      %v5367 = vmax.f32 %v5363, 0.0
      %v5368 = vmax.f32 %v5364, 0.0
      %v5369 = vmul.f32 %v5365, %v142
      %v5370 = vmul.f32 %v5366, %v142
      %v5371 = vmul.f32 %v5367, %v142
      %v5372 = vmul.f32 %v5368, %v142
      %v5373 = vadd.f32 %v5369, 0.0
      %v5374 = vadd.f32 %v5370, 0.0
      %v5375 = vadd.f32 %v5371, 0.0
      %v5376 = vadd.f32 %v5372, 0.0
      %v5377 = vmul.f32 %v5365, %v151
      %v5378 = vmul.f32 %v5366, %v151
      %v5379 = vmul.f32 %v5367, %v151
      %v5380 = vmul.f32 %v5368, %v151
      %v5385 = vrot.slane %v5377, 1
      %v5386 = vrot.slane %v5378, 1
      %v5387 = vsel %vm160, %v5385, %v5386
      %v5388 = vrot.slane %v5379, 1
      %v5389 = vsel %vm160, %v5386, %v5388
      %v5390 = vrot.slane %v5380, 1
      %v5391 = vsel %vm160, %v5388, %v5390
      %v5396 = vadd.f32 %v5373, %v5387
      %v5397 = vadd.f32 %v5374, %v5389
      %v5398 = vadd.f32 %v5375, %v5391
      %v5399 = vadd.f32 %v5376, %v5390
      %v5400 = vmul.f32 %v5365, %v176
      %v5401 = vmul.f32 %v5366, %v176
      %v5402 = vmul.f32 %v5367, %v176
      %v5403 = vmul.f32 %v5368, %v176
      %v5408 = vrot.slane %v5400, 2
      %v5409 = vrot.slane %v5401, 2
      %v5410 = vsel %vm185, %v5408, %v5409
      %v5411 = vrot.slane %v5402, 2
      %v5412 = vsel %vm185, %v5409, %v5411
      %v5413 = vrot.slane %v5403, 2
      %v5414 = vsel %vm185, %v5411, %v5413
      %v5419 = vadd.f32 %v5396, %v5410
      %v5420 = vadd.f32 %v5397, %v5412
      %v5421 = vadd.f32 %v5398, %v5414
      %v5422 = vadd.f32 %v5399, %v5413
      %v5423 = vld [vmem:[%s4797] sm:$0xff]
      %v5424 = vld [vmem:[%s4797 + $0x8] sm:$0xff]
      %v5425 = vld [vmem:[%s4797 + $0x10] sm:$0xff]
      %v5426 = vld [vmem:[%s4797 + $0x18] sm:$0x3f]
      %v5427 = vmax.f32 %v5423, 0.0
      %v5428 = vmax.f32 %v5424, 0.0
      %v5429 = vmax.f32 %v5425, 0.0
      %v5430 = vmax.f32 %v5426, 0.0
      %v5431 = vmul.f32 %v5427, %v211
      %v5432 = vmul.f32 %v5428, %v211
      %v5433 = vmul.f32 %v5429, %v211
      %v5434 = vmul.f32 %v5430, %v211
      %v5435 = vadd.f32 %v5419, %v5431
      %v5436 = vadd.f32 %v5420, %v5432
      %v5437 = vadd.f32 %v5421, %v5433
      %v5438 = vadd.f32 %v5422, %v5434
      %v5439 = vmul.f32 %v5427, %v220
      %v5440 = vmul.f32 %v5428, %v220
      %v5441 = vmul.f32 %v5429, %v220
      %v5442 = vmul.f32 %v5430, %v220
      %v5447 = vrot.slane %v5439, 1
      %v5448 = vrot.slane %v5440, 1
      %v5449 = vsel %vm160, %v5447, %v5448
      %v5450 = vrot.slane %v5441, 1
      %v5451 = vsel %vm160, %v5448, %v5450
      %v5452 = vrot.slane %v5442, 1
      %v5453 = vsel %vm160, %v5450, %v5452
      %v5458 = vadd.f32 %v5435, %v5449
      %v5459 = vadd.f32 %v5436, %v5451
      %v5460 = vadd.f32 %v5437, %v5453
      %v5461 = vadd.f32 %v5438, %v5452
      %v5462 = vld [vmem:[%s5146] sm:$0xff]
      %v5463 = vld [vmem:[%s5146 + $0x8] sm:$0xff]
      %v5464 = vld [vmem:[%s5146 + $0x10] sm:$0xff]
      %v5465 = vld [vmem:[%s5146 + $0x18] sm:$0x3f]
      %v5466 = vmax.f32 %v5462, 0.0
      %v5467 = vmax.f32 %v5463, 0.0
      %v5468 = vmax.f32 %v5464, 0.0
      %v5469 = vmax.f32 %v5465, 0.0
      %v5470 = vmul.f32 %v5466, %v254
      %v5471 = vmul.f32 %v5467, %v254
      %v5472 = vmul.f32 %v5468, %v254
      %v5473 = vmul.f32 %v5469, %v254
      %v5474 = vadd.f32 %v5458, %v5470
      %v5475 = vadd.f32 %v5459, %v5471
      %v5476 = vadd.f32 %v5460, %v5472
      %v5477 = vadd.f32 %v5461, %v5473
      %v5478 = vmul.f32 %v5466, %v263
      %v5479 = vmul.f32 %v5467, %v263
      %v5480 = vmul.f32 %v5468, %v263
      %v5481 = vmul.f32 %v5469, %v263
      %v5486 = vrot.slane %v5478, 1
      %v5487 = vrot.slane %v5479, 1
      %v5488 = vsel %vm160, %v5486, %v5487
      %v5489 = vrot.slane %v5480, 1
      %v5490 = vsel %vm160, %v5487, %v5489
      %v5491 = vrot.slane %v5481, 1
      %v5492 = vsel %vm160, %v5489, %v5491
      %v5497 = vadd.f32 %v5474, %v5488
      %v5498 = vadd.f32 %v5475, %v5490
      %v5499 = vadd.f32 %v5476, %v5492
      %v5500 = vadd.f32 %v5477, %v5491
      %v5501 = vmul.f32 %v5466, %v287
      %v5502 = vmul.f32 %v5467, %v287
      %v5503 = vmul.f32 %v5468, %v287
      %v5504 = vmul.f32 %v5469, %v287
      %v5509 = vrot.slane %v5501, 2
      %v5510 = vrot.slane %v5502, 2
      %v5511 = vsel %vm185, %v5509, %v5510
      %v5512 = vrot.slane %v5503, 2
      %v5513 = vsel %vm185, %v5510, %v5512
      %v5514 = vrot.slane %v5504, 2
      %v5515 = vsel %vm185, %v5512, %v5514
      %v5520 = vadd.f32 %v5497, %v5511
      %v5521 = vadd.f32 %v5498, %v5513
      %v5522 = vadd.f32 %v5499, %v5515
      %v5523 = vadd.f32 %v5500, %v5514
      %v5524 = vld [vmem:[%s5210] sm:$0xff]
      %v5525 = vld [vmem:[%s5210 + $0x8] sm:$0xff]
      %v5526 = vld [vmem:[%s5210 + $0x10] sm:$0xff]
      %v5527 = vld [vmem:[%s5210 + $0x18] sm:$0x3f]
      %v5528 = vmax.f32 %v5524, 0.0
      %v5529 = vmax.f32 %v5525, 0.0
      %v5530 = vmax.f32 %v5526, 0.0
      %v5531 = vmax.f32 %v5527, 0.0
      %v5532 = vmul.f32 %v5528, %v321
      %v5533 = vmul.f32 %v5529, %v321
      %v5534 = vmul.f32 %v5530, %v321
      %v5535 = vmul.f32 %v5531, %v321
      %v5536 = vadd.f32 %v5520, %v5532
      %v5537 = vadd.f32 %v5521, %v5533
      %v5538 = vadd.f32 %v5522, %v5534
      %v5539 = vadd.f32 %v5523, %v5535
      %v5540 = vmul.f32 %v5528, %v330
      %v5541 = vmul.f32 %v5529, %v330
      %v5542 = vmul.f32 %v5530, %v330
      %v5543 = vmul.f32 %v5531, %v330
      %v5548 = vrot.slane %v5540, 1
      %v5549 = vrot.slane %v5541, 1
      %v5550 = vsel %vm160, %v5548, %v5549
      %v5551 = vrot.slane %v5542, 1
      %v5552 = vsel %vm160, %v5549, %v5551
      %v5553 = vrot.slane %v5543, 1
      %v5554 = vsel %vm160, %v5551, %v5553
      %v5559 = vadd.f32 %v5536, %v5550
      %v5560 = vadd.f32 %v5537, %v5552
      %v5561 = vadd.f32 %v5538, %v5554
      %v5562 = vadd.f32 %v5539, %v5553
      %v5563 = vld [vmem:[%s5252] sm:$0xff]
      %v5564 = vld [vmem:[%s5252 + $0x8] sm:$0xff]
      %v5565 = vld [vmem:[%s5252 + $0x10] sm:$0xff]
      %v5566 = vld [vmem:[%s5252 + $0x18] sm:$0x3f]
      %v5567 = vmax.f32 %v5563, 0.0
      %v5568 = vmax.f32 %v5564, 0.0
      %v5569 = vmax.f32 %v5565, 0.0
      %v5570 = vmax.f32 %v5566, 0.0
      %v5571 = vmul.f32 %v5567, %v365
      %v5572 = vmul.f32 %v5568, %v365
      %v5573 = vmul.f32 %v5569, %v365
      %v5574 = vmul.f32 %v5570, %v365
      %v5575 = vadd.f32 %v5559, %v5571
      %v5576 = vadd.f32 %v5560, %v5572
      %v5577 = vadd.f32 %v5561, %v5573
      %v5578 = vadd.f32 %v5562, %v5574
      %v5579 = vmul.f32 %v5567, %v374
      %v5580 = vmul.f32 %v5568, %v374
      %v5581 = vmul.f32 %v5569, %v374
      %v5582 = vmul.f32 %v5570, %v374
      %v5587 = vrot.slane %v5579, 1
      %v5588 = vrot.slane %v5580, 1
      %v5589 = vsel %vm160, %v5587, %v5588
      %v5590 = vrot.slane %v5581, 1
      %v5591 = vsel %vm160, %v5588, %v5590
      %v5592 = vrot.slane %v5582, 1
      %v5593 = vsel %vm160, %v5590, %v5592
      %v5598 = vadd.f32 %v5575, %v5589
      %v5599 = vadd.f32 %v5576, %v5591
      %v5600 = vadd.f32 %v5577, %v5593
      %v5601 = vadd.f32 %v5578, %v5592
      %v5602 = vmul.f32 %v5567, %v398
      %v5603 = vmul.f32 %v5568, %v398
      %v5604 = vmul.f32 %v5569, %v398
      %v5605 = vmul.f32 %v5570, %v398
      %v5610 = vrot.slane %v5602, 2
      %v5611 = vrot.slane %v5603, 2
      %v5612 = vsel %vm185, %v5610, %v5611
      %v5613 = vrot.slane %v5604, 2
      %v5614 = vsel %vm185, %v5611, %v5613
      %v5615 = vrot.slane %v5605, 2
      %v5616 = vsel %vm185, %v5613, %v5615
      %v5621 = vadd.f32 %v5598, %v5612
      %v5622 = vadd.f32 %v5599, %v5614
      %v5623 = vadd.f32 %v5600, %v5616
      %v5624 = vadd.f32 %v5601, %v5615
      %v5625 = vld [vmem:[%s5316] sm:$0xff]
      %v5626 = vld [vmem:[%s5316 + $0x8] sm:$0xff]
      %v5627 = vld [vmem:[%s5316 + $0x10] sm:$0xff]
      %v5628 = vld [vmem:[%s5316 + $0x18] sm:$0x3f]
      %v5629 = vmax.f32 %v5625, 0.0
      %v5630 = vmax.f32 %v5626, 0.0
      %v5631 = vmax.f32 %v5627, 0.0
      %v5632 = vmax.f32 %v5628, 0.0
      %v5633 = vmul.f32 %v5629, %v432
      %v5634 = vmul.f32 %v5630, %v432
      %v5635 = vmul.f32 %v5631, %v432
      %v5636 = vmul.f32 %v5632, %v432
      %v5637 = vadd.f32 %v5621, %v5633
      %v5638 = vadd.f32 %v5622, %v5634
      %v5639 = vadd.f32 %v5623, %v5635
      %v5640 = vadd.f32 %v5624, %v5636
      %v5641 = vmul.f32 %v5629, %v441
      %v5642 = vmul.f32 %v5630, %v441
      %v5643 = vmul.f32 %v5631, %v441
      %v5644 = vmul.f32 %v5632, %v441
      %v5649 = vrot.slane %v5641, 1
      %v5650 = vrot.slane %v5642, 1
      %v5651 = vsel %vm160, %v5649, %v5650
      %v5652 = vrot.slane %v5643, 1
      %v5653 = vsel %vm160, %v5650, %v5652
      %v5654 = vrot.slane %v5644, 1
      %v5655 = vsel %vm160, %v5652, %v5654
      %v5660 = vadd.f32 %v5637, %v5651
      %v5661 = vadd.f32 %v5638, %v5653
      %v5662 = vadd.f32 %v5639, %v5655
      %v5663 = vadd.f32 %v5640, %v5654
      %s5664 = sadd.s32 %s5251, 1920
      %s5665 = scalar_lea.vmem %s0, %s5664
      %v5666 = vld [vmem:[%s5665] sm:$0xff]
      %v5667 = vld [vmem:[%s5665 + $0x8] sm:$0xff]
      %v5668 = vld [vmem:[%s5665 + $0x10] sm:$0xff]
      %v5669 = vld [vmem:[%s5665 + $0x18] sm:$0x3f]
      %v5670 = vmax.f32 %v5666, 0.0
      %v5671 = vmax.f32 %v5667, 0.0
      %v5672 = vmax.f32 %v5668, 0.0
      %v5673 = vmax.f32 %v5669, 0.0
      %v5674 = vmul.f32 %v5670, %v475
      %v5675 = vmul.f32 %v5671, %v475
      %v5676 = vmul.f32 %v5672, %v475
      %v5677 = vmul.f32 %v5673, %v475
      %v5678 = vadd.f32 %v5660, %v5674
      %v5679 = vadd.f32 %v5661, %v5675
      %v5680 = vadd.f32 %v5662, %v5676
      %v5681 = vadd.f32 %v5663, %v5677
      %v5682 = vmul.f32 %v5670, %v484
      %v5683 = vmul.f32 %v5671, %v484
      %v5684 = vmul.f32 %v5672, %v484
      %v5685 = vmul.f32 %v5673, %v484
      %v5690 = vrot.slane %v5682, 1
      %v5691 = vrot.slane %v5683, 1
      %v5692 = vsel %vm160, %v5690, %v5691
      %v5693 = vrot.slane %v5684, 1
      %v5694 = vsel %vm160, %v5691, %v5693
      %v5695 = vrot.slane %v5685, 1
      %v5696 = vsel %vm160, %v5693, %v5695
      %v5701 = vadd.f32 %v5678, %v5692
      %v5702 = vadd.f32 %v5679, %v5694
      %v5703 = vadd.f32 %v5680, %v5696
      %v5704 = vadd.f32 %v5681, %v5695
      %v5705 = vmul.f32 %v5670, %v508
      %v5706 = vmul.f32 %v5671, %v508
      %v5707 = vmul.f32 %v5672, %v508
      %v5708 = vmul.f32 %v5673, %v508
      %v5713 = vrot.slane %v5705, 2
      %v5714 = vrot.slane %v5706, 2
      %v5715 = vsel %vm185, %v5713, %v5714
      %v5716 = vrot.slane %v5707, 2
      %v5717 = vsel %vm185, %v5714, %v5716
      %v5718 = vrot.slane %v5708, 2
      %v5719 = vsel %vm185, %v5716, %v5718
      %v5724 = vadd.f32 %v5701, %v5715
      %v5725 = vadd.f32 %v5702, %v5717
      %v5726 = vadd.f32 %v5703, %v5719
      %v5727 = vadd.f32 %v5704, %v5718
      %s5728 = sadd.s32 %s5315, 1920
      %s5729 = scalar_lea.vmem %s0, %s5728
      %v5730 = vld [vmem:[%s5729] sm:$0xff]
      %v5731 = vld [vmem:[%s5729 + $0x8] sm:$0xff]
      %v5732 = vld [vmem:[%s5729 + $0x10] sm:$0xff]
      %v5733 = vld [vmem:[%s5729 + $0x18] sm:$0x3f]
      %v5734 = vmax.f32 %v5730, 0.0
      %v5735 = vmax.f32 %v5731, 0.0
      %v5736 = vmax.f32 %v5732, 0.0
      %v5737 = vmax.f32 %v5733, 0.0
      %v5738 = vmul.f32 %v5734, %v542
      %v5739 = vmul.f32 %v5735, %v542
      %v5740 = vmul.f32 %v5736, %v542
      %v5741 = vmul.f32 %v5737, %v542
      %v5742 = vadd.f32 %v5724, %v5738
      %v5743 = vadd.f32 %v5725, %v5739
      %v5744 = vadd.f32 %v5726, %v5740
      %v5745 = vadd.f32 %v5727, %v5741
      %v5746 = vmul.f32 %v5734, %v551
      %v5747 = vmul.f32 %v5735, %v551
      %v5748 = vmul.f32 %v5736, %v551
      %v5749 = vmul.f32 %v5737, %v551
      %v5754 = vrot.slane %v5746, 1
      %v5755 = vrot.slane %v5747, 1
      %v5756 = vsel %vm160, %v5754, %v5755
      %v5757 = vrot.slane %v5748, 1
      %v5758 = vsel %vm160, %v5755, %v5757
      %v5759 = vrot.slane %v5749, 1
      %v5760 = vsel %vm160, %v5757, %v5759
      %v5765 = vadd.f32 %v5742, %v5756
      %v5766 = vadd.f32 %v5743, %v5758
      %v5767 = vadd.f32 %v5744, %v5760
      %v5768 = vadd.f32 %v5745, %v5759
      %s5769 = sadd.s32 %s127, 12
      %s5770 = smul.u32 %s5769, 32
      %s5771 = scalar_lea.vmem %s0, %s5770
      %v5772 = vld [vmem:[%s5771] sm:$0xff]
      %v5773 = vld [vmem:[%s5771 + $0x8] sm:$0xff]
      %v5774 = vld [vmem:[%s5771 + $0x10] sm:$0xff]
      %v5775 = vld [vmem:[%s5771 + $0x18] sm:$0x3f]
      %v5776 = vmax.f32 %v5772, 0.0
      %v5777 = vmax.f32 %v5773, 0.0
      %v5778 = vmax.f32 %v5774, 0.0
      %v5779 = vmax.f32 %v5775, 0.0
      %v5780 = vmul.f32 %v5776, %v586
      %v5781 = vmul.f32 %v5777, %v586
      %v5782 = vmul.f32 %v5778, %v586
      %v5783 = vmul.f32 %v5779, %v586
      %v5784 = vadd.f32 %v5765, %v5780
      %v5785 = vadd.f32 %v5766, %v5781
      %v5786 = vadd.f32 %v5767, %v5782
      %v5787 = vadd.f32 %v5768, %v5783
      %v5788 = vmul.f32 %v5776, %v595
      %v5789 = vmul.f32 %v5777, %v595
      %v5790 = vmul.f32 %v5778, %v595
      %v5791 = vmul.f32 %v5779, %v595
      %v5796 = vrot.slane %v5788, 1
      %v5797 = vrot.slane %v5789, 1
      %v5798 = vsel %vm160, %v5796, %v5797
      %v5799 = vrot.slane %v5790, 1
      %v5800 = vsel %vm160, %v5797, %v5799
      %v5801 = vrot.slane %v5791, 1
      %v5802 = vsel %vm160, %v5799, %v5801
      %v5807 = vadd.f32 %v5784, %v5798
      %v5808 = vadd.f32 %v5785, %v5800
      %v5809 = vadd.f32 %v5786, %v5802
      %v5810 = vadd.f32 %v5787, %v5801
      %v5811 = vmul.f32 %v5776, %v619
      %v5812 = vmul.f32 %v5777, %v619
      %v5813 = vmul.f32 %v5778, %v619
      %v5814 = vmul.f32 %v5779, %v619
      %v5819 = vrot.slane %v5811, 2
      %v5820 = vrot.slane %v5812, 2
      %v5821 = vsel %vm185, %v5819, %v5820
      %v5822 = vrot.slane %v5813, 2
      %v5823 = vsel %vm185, %v5820, %v5822
      %v5824 = vrot.slane %v5814, 2
      %v5825 = vsel %vm185, %v5822, %v5824
      %v5830 = vadd.f32 %v5807, %v5821
      %v5831 = vadd.f32 %v5808, %v5823
      %v5832 = vadd.f32 %v5809, %v5825
      %v5833 = vadd.f32 %v5810, %v5824
      %s5834 = sadd.s32 %s5770, 960
      %s5835 = scalar_lea.vmem %s0, %s5834
      %v5836 = vld [vmem:[%s5835] sm:$0xff]
      %v5837 = vld [vmem:[%s5835 + $0x8] sm:$0xff]
      %v5838 = vld [vmem:[%s5835 + $0x10] sm:$0xff]
      %v5839 = vld [vmem:[%s5835 + $0x18] sm:$0x3f]
      %v5840 = vmax.f32 %v5836, 0.0
      %v5841 = vmax.f32 %v5837, 0.0
      %v5842 = vmax.f32 %v5838, 0.0
      %v5843 = vmax.f32 %v5839, 0.0
      %v5844 = vmul.f32 %v5840, %v653
      %v5845 = vmul.f32 %v5841, %v653
      %v5846 = vmul.f32 %v5842, %v653
      %v5847 = vmul.f32 %v5843, %v653
      %v5848 = vadd.f32 %v5830, %v5844
      %v5849 = vadd.f32 %v5831, %v5845
      %v5850 = vadd.f32 %v5832, %v5846
      %v5851 = vadd.f32 %v5833, %v5847
      %v5852 = vmul.f32 %v5840, %v662
      %v5853 = vmul.f32 %v5841, %v662
      %v5854 = vmul.f32 %v5842, %v662
      %v5855 = vmul.f32 %v5843, %v662
      %v5860 = vrot.slane %v5852, 1
      %v5861 = vrot.slane %v5853, 1
      %v5862 = vsel %vm160, %v5860, %v5861
      %v5863 = vrot.slane %v5854, 1
      %v5864 = vsel %vm160, %v5861, %v5863
      %v5865 = vrot.slane %v5855, 1
      %v5866 = vsel %vm160, %v5863, %v5865
      %v5871 = vadd.f32 %v5848, %v5862
      %v5872 = vadd.f32 %v5849, %v5864
      %v5873 = vadd.f32 %v5850, %v5866
      %v5874 = vadd.f32 %v5851, %v5865
      %s5875 = scalar_lea.vmem %s125, 320
      %5876 = vst [vmem:[%s5875] sm:$0xff] %v5871
      %5877 = vst [vmem:[%s5875 + $0x8] sm:$0xff] %v5872
      %5878 = vst [vmem:[%s5875 + $0x10] sm:$0xff] %v5873
      %5879 = vst [vmem:[%s5875 + $0x18] sm:$0xf] %v5874
      %v5880 = vld [vmem:[%s5252] sm:$0xff]
      %v5881 = vld [vmem:[%s5252 + $0x8] sm:$0xff]
      %v5882 = vld [vmem:[%s5252 + $0x10] sm:$0xff]
      %v5883 = vld [vmem:[%s5252 + $0x18] sm:$0x3f]
      %v5884 = vmax.f32 %v5880, 0.0
      %v5885 = vmax.f32 %v5881, 0.0
      %v5886 = vmax.f32 %v5882, 0.0
      %v5887 = vmax.f32 %v5883, 0.0
      %v5888 = vmul.f32 %v5884, %v142
      %v5889 = vmul.f32 %v5885, %v142
      %v5890 = vmul.f32 %v5886, %v142
      %v5891 = vmul.f32 %v5887, %v142
      %v5892 = vadd.f32 %v5888, 0.0
      %v5893 = vadd.f32 %v5889, 0.0
      %v5894 = vadd.f32 %v5890, 0.0
      %v5895 = vadd.f32 %v5891, 0.0
      %v5896 = vmul.f32 %v5884, %v151
      %v5897 = vmul.f32 %v5885, %v151
      %v5898 = vmul.f32 %v5886, %v151
      %v5899 = vmul.f32 %v5887, %v151
      %v5904 = vrot.slane %v5896, 1
      %v5905 = vrot.slane %v5897, 1
      %v5906 = vsel %vm160, %v5904, %v5905
      %v5907 = vrot.slane %v5898, 1
      %v5908 = vsel %vm160, %v5905, %v5907
      %v5909 = vrot.slane %v5899, 1
      %v5910 = vsel %vm160, %v5907, %v5909
      %v5915 = vadd.f32 %v5892, %v5906
      %v5916 = vadd.f32 %v5893, %v5908
      %v5917 = vadd.f32 %v5894, %v5910
      %v5918 = vadd.f32 %v5895, %v5909
      %v5919 = vmul.f32 %v5884, %v176
      %v5920 = vmul.f32 %v5885, %v176
      %v5921 = vmul.f32 %v5886, %v176
      %v5922 = vmul.f32 %v5887, %v176
      %v5927 = vrot.slane %v5919, 2
      %v5928 = vrot.slane %v5920, 2
      %v5929 = vsel %vm185, %v5927, %v5928
      %v5930 = vrot.slane %v5921, 2
      %v5931 = vsel %vm185, %v5928, %v5930
      %v5932 = vrot.slane %v5922, 2
      %v5933 = vsel %vm185, %v5930, %v5932
      %v5938 = vadd.f32 %v5915, %v5929
      %v5939 = vadd.f32 %v5916, %v5931
      %v5940 = vadd.f32 %v5917, %v5933
      %v5941 = vadd.f32 %v5918, %v5932
      %v5942 = vld [vmem:[%s5316] sm:$0xff]
      %v5943 = vld [vmem:[%s5316 + $0x8] sm:$0xff]
      %v5944 = vld [vmem:[%s5316 + $0x10] sm:$0xff]
      %v5945 = vld [vmem:[%s5316 + $0x18] sm:$0x3f]
      %v5946 = vmax.f32 %v5942, 0.0
      %v5947 = vmax.f32 %v5943, 0.0
      %v5948 = vmax.f32 %v5944, 0.0
      %v5949 = vmax.f32 %v5945, 0.0
      %v5950 = vmul.f32 %v5946, %v211
      %v5951 = vmul.f32 %v5947, %v211
      %v5952 = vmul.f32 %v5948, %v211
      %v5953 = vmul.f32 %v5949, %v211
      %v5954 = vadd.f32 %v5938, %v5950
      %v5955 = vadd.f32 %v5939, %v5951
      %v5956 = vadd.f32 %v5940, %v5952
      %v5957 = vadd.f32 %v5941, %v5953
      %v5958 = vmul.f32 %v5946, %v220
      %v5959 = vmul.f32 %v5947, %v220
      %v5960 = vmul.f32 %v5948, %v220
      %v5961 = vmul.f32 %v5949, %v220
      %v5966 = vrot.slane %v5958, 1
      %v5967 = vrot.slane %v5959, 1
      %v5968 = vsel %vm160, %v5966, %v5967
      %v5969 = vrot.slane %v5960, 1
      %v5970 = vsel %vm160, %v5967, %v5969
      %v5971 = vrot.slane %v5961, 1
      %v5972 = vsel %vm160, %v5969, %v5971
      %v5977 = vadd.f32 %v5954, %v5968
      %v5978 = vadd.f32 %v5955, %v5970
      %v5979 = vadd.f32 %v5956, %v5972
      %v5980 = vadd.f32 %v5957, %v5971
      %v5981 = vld [vmem:[%s5665] sm:$0xff]
      %v5982 = vld [vmem:[%s5665 + $0x8] sm:$0xff]
      %v5983 = vld [vmem:[%s5665 + $0x10] sm:$0xff]
      %v5984 = vld [vmem:[%s5665 + $0x18] sm:$0x3f]
      %v5985 = vmax.f32 %v5981, 0.0
      %v5986 = vmax.f32 %v5982, 0.0
      %v5987 = vmax.f32 %v5983, 0.0
      %v5988 = vmax.f32 %v5984, 0.0
      %v5989 = vmul.f32 %v5985, %v254
      %v5990 = vmul.f32 %v5986, %v254
      %v5991 = vmul.f32 %v5987, %v254
      %v5992 = vmul.f32 %v5988, %v254
      %v5993 = vadd.f32 %v5977, %v5989
      %v5994 = vadd.f32 %v5978, %v5990
      %v5995 = vadd.f32 %v5979, %v5991
      %v5996 = vadd.f32 %v5980, %v5992
      %v5997 = vmul.f32 %v5985, %v263
      %v5998 = vmul.f32 %v5986, %v263
      %v5999 = vmul.f32 %v5987, %v263
      %v6000 = vmul.f32 %v5988, %v263
      %v6005 = vrot.slane %v5997, 1
      %v6006 = vrot.slane %v5998, 1
      %v6007 = vsel %vm160, %v6005, %v6006
      %v6008 = vrot.slane %v5999, 1
      %v6009 = vsel %vm160, %v6006, %v6008
      %v6010 = vrot.slane %v6000, 1
      %v6011 = vsel %vm160, %v6008, %v6010
      %v6016 = vadd.f32 %v5993, %v6007
      %v6017 = vadd.f32 %v5994, %v6009
      %v6018 = vadd.f32 %v5995, %v6011
      %v6019 = vadd.f32 %v5996, %v6010
      %v6020 = vmul.f32 %v5985, %v287
      %v6021 = vmul.f32 %v5986, %v287
      %v6022 = vmul.f32 %v5987, %v287
      %v6023 = vmul.f32 %v5988, %v287
      %v6028 = vrot.slane %v6020, 2
      %v6029 = vrot.slane %v6021, 2
      %v6030 = vsel %vm185, %v6028, %v6029
      %v6031 = vrot.slane %v6022, 2
      %v6032 = vsel %vm185, %v6029, %v6031
      %v6033 = vrot.slane %v6023, 2
      %v6034 = vsel %vm185, %v6031, %v6033
      %v6039 = vadd.f32 %v6016, %v6030
      %v6040 = vadd.f32 %v6017, %v6032
      %v6041 = vadd.f32 %v6018, %v6034
      %v6042 = vadd.f32 %v6019, %v6033
      %v6043 = vld [vmem:[%s5729] sm:$0xff]
      %v6044 = vld [vmem:[%s5729 + $0x8] sm:$0xff]
      %v6045 = vld [vmem:[%s5729 + $0x10] sm:$0xff]
      %v6046 = vld [vmem:[%s5729 + $0x18] sm:$0x3f]
      %v6047 = vmax.f32 %v6043, 0.0
      %v6048 = vmax.f32 %v6044, 0.0
      %v6049 = vmax.f32 %v6045, 0.0
      %v6050 = vmax.f32 %v6046, 0.0
      %v6051 = vmul.f32 %v6047, %v321
      %v6052 = vmul.f32 %v6048, %v321
      %v6053 = vmul.f32 %v6049, %v321
      %v6054 = vmul.f32 %v6050, %v321
      %v6055 = vadd.f32 %v6039, %v6051
      %v6056 = vadd.f32 %v6040, %v6052
      %v6057 = vadd.f32 %v6041, %v6053
      %v6058 = vadd.f32 %v6042, %v6054
      %v6059 = vmul.f32 %v6047, %v330
      %v6060 = vmul.f32 %v6048, %v330
      %v6061 = vmul.f32 %v6049, %v330
      %v6062 = vmul.f32 %v6050, %v330
      %v6067 = vrot.slane %v6059, 1
      %v6068 = vrot.slane %v6060, 1
      %v6069 = vsel %vm160, %v6067, %v6068
      %v6070 = vrot.slane %v6061, 1
      %v6071 = vsel %vm160, %v6068, %v6070
      %v6072 = vrot.slane %v6062, 1
      %v6073 = vsel %vm160, %v6070, %v6072
      %v6078 = vadd.f32 %v6055, %v6069
      %v6079 = vadd.f32 %v6056, %v6071
      %v6080 = vadd.f32 %v6057, %v6073
      %v6081 = vadd.f32 %v6058, %v6072
      %v6082 = vld [vmem:[%s5771] sm:$0xff]
      %v6083 = vld [vmem:[%s5771 + $0x8] sm:$0xff]
      %v6084 = vld [vmem:[%s5771 + $0x10] sm:$0xff]
      %v6085 = vld [vmem:[%s5771 + $0x18] sm:$0x3f]
      %v6086 = vmax.f32 %v6082, 0.0
      %v6087 = vmax.f32 %v6083, 0.0
      %v6088 = vmax.f32 %v6084, 0.0
      %v6089 = vmax.f32 %v6085, 0.0
      %v6090 = vmul.f32 %v6086, %v365
      %v6091 = vmul.f32 %v6087, %v365
      %v6092 = vmul.f32 %v6088, %v365
      %v6093 = vmul.f32 %v6089, %v365
      %v6094 = vadd.f32 %v6078, %v6090
      %v6095 = vadd.f32 %v6079, %v6091
      %v6096 = vadd.f32 %v6080, %v6092
      %v6097 = vadd.f32 %v6081, %v6093
      %v6098 = vmul.f32 %v6086, %v374
      %v6099 = vmul.f32 %v6087, %v374
      %v6100 = vmul.f32 %v6088, %v374
      %v6101 = vmul.f32 %v6089, %v374
      %v6106 = vrot.slane %v6098, 1
      %v6107 = vrot.slane %v6099, 1
      %v6108 = vsel %vm160, %v6106, %v6107
      %v6109 = vrot.slane %v6100, 1
      %v6110 = vsel %vm160, %v6107, %v6109
      %v6111 = vrot.slane %v6101, 1
      %v6112 = vsel %vm160, %v6109, %v6111
      %v6117 = vadd.f32 %v6094, %v6108
      %v6118 = vadd.f32 %v6095, %v6110
      %v6119 = vadd.f32 %v6096, %v6112
      %v6120 = vadd.f32 %v6097, %v6111
      %v6121 = vmul.f32 %v6086, %v398
      %v6122 = vmul.f32 %v6087, %v398
      %v6123 = vmul.f32 %v6088, %v398
      %v6124 = vmul.f32 %v6089, %v398
      %v6129 = vrot.slane %v6121, 2
      %v6130 = vrot.slane %v6122, 2
      %v6131 = vsel %vm185, %v6129, %v6130
      %v6132 = vrot.slane %v6123, 2
      %v6133 = vsel %vm185, %v6130, %v6132
      %v6134 = vrot.slane %v6124, 2
      %v6135 = vsel %vm185, %v6132, %v6134
      %v6140 = vadd.f32 %v6117, %v6131
      %v6141 = vadd.f32 %v6118, %v6133
      %v6142 = vadd.f32 %v6119, %v6135
      %v6143 = vadd.f32 %v6120, %v6134
      %v6144 = vld [vmem:[%s5835] sm:$0xff]
      %v6145 = vld [vmem:[%s5835 + $0x8] sm:$0xff]
      %v6146 = vld [vmem:[%s5835 + $0x10] sm:$0xff]
      %v6147 = vld [vmem:[%s5835 + $0x18] sm:$0x3f]
      %v6148 = vmax.f32 %v6144, 0.0
      %v6149 = vmax.f32 %v6145, 0.0
      %v6150 = vmax.f32 %v6146, 0.0
      %v6151 = vmax.f32 %v6147, 0.0
      %v6152 = vmul.f32 %v6148, %v432
      %v6153 = vmul.f32 %v6149, %v432
      %v6154 = vmul.f32 %v6150, %v432
      %v6155 = vmul.f32 %v6151, %v432
      %v6156 = vadd.f32 %v6140, %v6152
      %v6157 = vadd.f32 %v6141, %v6153
      %v6158 = vadd.f32 %v6142, %v6154
      %v6159 = vadd.f32 %v6143, %v6155
      %v6160 = vmul.f32 %v6148, %v441
      %v6161 = vmul.f32 %v6149, %v441
      %v6162 = vmul.f32 %v6150, %v441
      %v6163 = vmul.f32 %v6151, %v441
      %v6168 = vrot.slane %v6160, 1
      %v6169 = vrot.slane %v6161, 1
      %v6170 = vsel %vm160, %v6168, %v6169
      %v6171 = vrot.slane %v6162, 1
      %v6172 = vsel %vm160, %v6169, %v6171
      %v6173 = vrot.slane %v6163, 1
      %v6174 = vsel %vm160, %v6171, %v6173
      %v6179 = vadd.f32 %v6156, %v6170
      %v6180 = vadd.f32 %v6157, %v6172
      %v6181 = vadd.f32 %v6158, %v6174
      %v6182 = vadd.f32 %v6159, %v6173
      %s6183 = sadd.s32 %s5770, 1920
      %s6184 = scalar_lea.vmem %s0, %s6183
      %v6185 = vld [vmem:[%s6184] sm:$0xff]
      %v6186 = vld [vmem:[%s6184 + $0x8] sm:$0xff]
      %v6187 = vld [vmem:[%s6184 + $0x10] sm:$0xff]
      %v6188 = vld [vmem:[%s6184 + $0x18] sm:$0x3f]
      %v6189 = vmax.f32 %v6185, 0.0
      %v6190 = vmax.f32 %v6186, 0.0
      %v6191 = vmax.f32 %v6187, 0.0
      %v6192 = vmax.f32 %v6188, 0.0
      %v6193 = vmul.f32 %v6189, %v475
      %v6194 = vmul.f32 %v6190, %v475
      %v6195 = vmul.f32 %v6191, %v475
      %v6196 = vmul.f32 %v6192, %v475
      %v6197 = vadd.f32 %v6179, %v6193
      %v6198 = vadd.f32 %v6180, %v6194
      %v6199 = vadd.f32 %v6181, %v6195
      %v6200 = vadd.f32 %v6182, %v6196
      %v6201 = vmul.f32 %v6189, %v484
      %v6202 = vmul.f32 %v6190, %v484
      %v6203 = vmul.f32 %v6191, %v484
      %v6204 = vmul.f32 %v6192, %v484
      %v6209 = vrot.slane %v6201, 1
      %v6210 = vrot.slane %v6202, 1
      %v6211 = vsel %vm160, %v6209, %v6210
      %v6212 = vrot.slane %v6203, 1
      %v6213 = vsel %vm160, %v6210, %v6212
      %v6214 = vrot.slane %v6204, 1
      %v6215 = vsel %vm160, %v6212, %v6214
      %v6220 = vadd.f32 %v6197, %v6211
      %v6221 = vadd.f32 %v6198, %v6213
      %v6222 = vadd.f32 %v6199, %v6215
      %v6223 = vadd.f32 %v6200, %v6214
      %v6224 = vmul.f32 %v6189, %v508
      %v6225 = vmul.f32 %v6190, %v508
      %v6226 = vmul.f32 %v6191, %v508
      %v6227 = vmul.f32 %v6192, %v508
      %v6232 = vrot.slane %v6224, 2
      %v6233 = vrot.slane %v6225, 2
      %v6234 = vsel %vm185, %v6232, %v6233
      %v6235 = vrot.slane %v6226, 2
      %v6236 = vsel %vm185, %v6233, %v6235
      %v6237 = vrot.slane %v6227, 2
      %v6238 = vsel %vm185, %v6235, %v6237
      %v6243 = vadd.f32 %v6220, %v6234
      %v6244 = vadd.f32 %v6221, %v6236
      %v6245 = vadd.f32 %v6222, %v6238
      %v6246 = vadd.f32 %v6223, %v6237
      %s6247 = sadd.s32 %s5834, 1920
      %s6248 = scalar_lea.vmem %s0, %s6247
      %v6249 = vld [vmem:[%s6248] sm:$0xff]
      %v6250 = vld [vmem:[%s6248 + $0x8] sm:$0xff]
      %v6251 = vld [vmem:[%s6248 + $0x10] sm:$0xff]
      %v6252 = vld [vmem:[%s6248 + $0x18] sm:$0x3f]
      %v6253 = vmax.f32 %v6249, 0.0
      %v6254 = vmax.f32 %v6250, 0.0
      %v6255 = vmax.f32 %v6251, 0.0
      %v6256 = vmax.f32 %v6252, 0.0
      %v6257 = vmul.f32 %v6253, %v542
      %v6258 = vmul.f32 %v6254, %v542
      %v6259 = vmul.f32 %v6255, %v542
      %v6260 = vmul.f32 %v6256, %v542
      %v6261 = vadd.f32 %v6243, %v6257
      %v6262 = vadd.f32 %v6244, %v6258
      %v6263 = vadd.f32 %v6245, %v6259
      %v6264 = vadd.f32 %v6246, %v6260
      %v6265 = vmul.f32 %v6253, %v551
      %v6266 = vmul.f32 %v6254, %v551
      %v6267 = vmul.f32 %v6255, %v551
      %v6268 = vmul.f32 %v6256, %v551
      %v6273 = vrot.slane %v6265, 1
      %v6274 = vrot.slane %v6266, 1
      %v6275 = vsel %vm160, %v6273, %v6274
      %v6276 = vrot.slane %v6267, 1
      %v6277 = vsel %vm160, %v6274, %v6276
      %v6278 = vrot.slane %v6268, 1
      %v6279 = vsel %vm160, %v6276, %v6278
      %v6284 = vadd.f32 %v6261, %v6275
      %v6285 = vadd.f32 %v6262, %v6277
      %v6286 = vadd.f32 %v6263, %v6279
      %v6287 = vadd.f32 %v6264, %v6278
      %s6288 = sadd.s32 %s127, 13
      %s6289 = smul.u32 %s6288, 32
      %s6290 = scalar_lea.vmem %s0, %s6289
      %v6291 = vld [vmem:[%s6290] sm:$0xff]
      %v6292 = vld [vmem:[%s6290 + $0x8] sm:$0xff]
      %v6293 = vld [vmem:[%s6290 + $0x10] sm:$0xff]
      %v6294 = vld [vmem:[%s6290 + $0x18] sm:$0x3f]
      %v6295 = vmax.f32 %v6291, 0.0
      %v6296 = vmax.f32 %v6292, 0.0
      %v6297 = vmax.f32 %v6293, 0.0
      %v6298 = vmax.f32 %v6294, 0.0
      %v6299 = vmul.f32 %v6295, %v586
      %v6300 = vmul.f32 %v6296, %v586
      %v6301 = vmul.f32 %v6297, %v586
      %v6302 = vmul.f32 %v6298, %v586
      %v6303 = vadd.f32 %v6284, %v6299
      %v6304 = vadd.f32 %v6285, %v6300
      %v6305 = vadd.f32 %v6286, %v6301
      %v6306 = vadd.f32 %v6287, %v6302
      %v6307 = vmul.f32 %v6295, %v595
      %v6308 = vmul.f32 %v6296, %v595
      %v6309 = vmul.f32 %v6297, %v595
      %v6310 = vmul.f32 %v6298, %v595
      %v6315 = vrot.slane %v6307, 1
      %v6316 = vrot.slane %v6308, 1
      %v6317 = vsel %vm160, %v6315, %v6316
      %v6318 = vrot.slane %v6309, 1
      %v6319 = vsel %vm160, %v6316, %v6318
      %v6320 = vrot.slane %v6310, 1
      %v6321 = vsel %vm160, %v6318, %v6320
      %v6326 = vadd.f32 %v6303, %v6317
      %v6327 = vadd.f32 %v6304, %v6319
      %v6328 = vadd.f32 %v6305, %v6321
      %v6329 = vadd.f32 %v6306, %v6320
      %v6330 = vmul.f32 %v6295, %v619
      %v6331 = vmul.f32 %v6296, %v619
      %v6332 = vmul.f32 %v6297, %v619
      %v6333 = vmul.f32 %v6298, %v619
      %v6338 = vrot.slane %v6330, 2
      %v6339 = vrot.slane %v6331, 2
      %v6340 = vsel %vm185, %v6338, %v6339
      %v6341 = vrot.slane %v6332, 2
      %v6342 = vsel %vm185, %v6339, %v6341
      %v6343 = vrot.slane %v6333, 2
      %v6344 = vsel %vm185, %v6341, %v6343
      %v6349 = vadd.f32 %v6326, %v6340
      %v6350 = vadd.f32 %v6327, %v6342
      %v6351 = vadd.f32 %v6328, %v6344
      %v6352 = vadd.f32 %v6329, %v6343
      %s6353 = sadd.s32 %s6289, 960
      %s6354 = scalar_lea.vmem %s0, %s6353
      %v6355 = vld [vmem:[%s6354] sm:$0xff]
      %v6356 = vld [vmem:[%s6354 + $0x8] sm:$0xff]
      %v6357 = vld [vmem:[%s6354 + $0x10] sm:$0xff]
      %v6358 = vld [vmem:[%s6354 + $0x18] sm:$0x3f]
      %v6359 = vmax.f32 %v6355, 0.0
      %v6360 = vmax.f32 %v6356, 0.0
      %v6361 = vmax.f32 %v6357, 0.0
      %v6362 = vmax.f32 %v6358, 0.0
      %v6363 = vmul.f32 %v6359, %v653
      %v6364 = vmul.f32 %v6360, %v653
      %v6365 = vmul.f32 %v6361, %v653
      %v6366 = vmul.f32 %v6362, %v653
      %v6367 = vadd.f32 %v6349, %v6363
      %v6368 = vadd.f32 %v6350, %v6364
      %v6369 = vadd.f32 %v6351, %v6365
      %v6370 = vadd.f32 %v6352, %v6366
      %v6371 = vmul.f32 %v6359, %v662
      %v6372 = vmul.f32 %v6360, %v662
      %v6373 = vmul.f32 %v6361, %v662
      %v6374 = vmul.f32 %v6362, %v662
      %v6379 = vrot.slane %v6371, 1
      %v6380 = vrot.slane %v6372, 1
      %v6381 = vsel %vm160, %v6379, %v6380
      %v6382 = vrot.slane %v6373, 1
      %v6383 = vsel %vm160, %v6380, %v6382
      %v6384 = vrot.slane %v6374, 1
      %v6385 = vsel %vm160, %v6382, %v6384
      %v6390 = vadd.f32 %v6367, %v6381
      %v6391 = vadd.f32 %v6368, %v6383
      %v6392 = vadd.f32 %v6369, %v6385
      %v6393 = vadd.f32 %v6370, %v6384
      %s6394 = scalar_lea.vmem %s125, 352
      %6395 = vst [vmem:[%s6394] sm:$0xff] %v6390
      %6396 = vst [vmem:[%s6394 + $0x8] sm:$0xff] %v6391
      %6397 = vst [vmem:[%s6394 + $0x10] sm:$0xff] %v6392
      %6398 = vst [vmem:[%s6394 + $0x18] sm:$0xf] %v6393
      %v6399 = vld [vmem:[%s5771] sm:$0xff]
      %v6400 = vld [vmem:[%s5771 + $0x8] sm:$0xff]
      %v6401 = vld [vmem:[%s5771 + $0x10] sm:$0xff]
      %v6402 = vld [vmem:[%s5771 + $0x18] sm:$0x3f]
      %v6403 = vmax.f32 %v6399, 0.0
      %v6404 = vmax.f32 %v6400, 0.0
      %v6405 = vmax.f32 %v6401, 0.0
      %v6406 = vmax.f32 %v6402, 0.0
      %v6407 = vmul.f32 %v6403, %v142
      %v6408 = vmul.f32 %v6404, %v142
      %v6409 = vmul.f32 %v6405, %v142
      %v6410 = vmul.f32 %v6406, %v142
      %v6411 = vadd.f32 %v6407, 0.0
      %v6412 = vadd.f32 %v6408, 0.0
      %v6413 = vadd.f32 %v6409, 0.0
      %v6414 = vadd.f32 %v6410, 0.0
      %v6415 = vmul.f32 %v6403, %v151
      %v6416 = vmul.f32 %v6404, %v151
      %v6417 = vmul.f32 %v6405, %v151
      %v6418 = vmul.f32 %v6406, %v151
      %v6423 = vrot.slane %v6415, 1
      %v6424 = vrot.slane %v6416, 1
      %v6425 = vsel %vm160, %v6423, %v6424
      %v6426 = vrot.slane %v6417, 1
      %v6427 = vsel %vm160, %v6424, %v6426
      %v6428 = vrot.slane %v6418, 1
      %v6429 = vsel %vm160, %v6426, %v6428
      %v6434 = vadd.f32 %v6411, %v6425
      %v6435 = vadd.f32 %v6412, %v6427
      %v6436 = vadd.f32 %v6413, %v6429
      %v6437 = vadd.f32 %v6414, %v6428
      %v6438 = vmul.f32 %v6403, %v176
      %v6439 = vmul.f32 %v6404, %v176
      %v6440 = vmul.f32 %v6405, %v176
      %v6441 = vmul.f32 %v6406, %v176
      %v6446 = vrot.slane %v6438, 2
      %v6447 = vrot.slane %v6439, 2
      %v6448 = vsel %vm185, %v6446, %v6447
      %v6449 = vrot.slane %v6440, 2
      %v6450 = vsel %vm185, %v6447, %v6449
      %v6451 = vrot.slane %v6441, 2
      %v6452 = vsel %vm185, %v6449, %v6451
      %v6457 = vadd.f32 %v6434, %v6448
      %v6458 = vadd.f32 %v6435, %v6450
      %v6459 = vadd.f32 %v6436, %v6452
      %v6460 = vadd.f32 %v6437, %v6451
      %v6461 = vld [vmem:[%s5835] sm:$0xff]
      %v6462 = vld [vmem:[%s5835 + $0x8] sm:$0xff]
      %v6463 = vld [vmem:[%s5835 + $0x10] sm:$0xff]
      %v6464 = vld [vmem:[%s5835 + $0x18] sm:$0x3f]
      %v6465 = vmax.f32 %v6461, 0.0
      %v6466 = vmax.f32 %v6462, 0.0
      %v6467 = vmax.f32 %v6463, 0.0
      %v6468 = vmax.f32 %v6464, 0.0
      %v6469 = vmul.f32 %v6465, %v211
      %v6470 = vmul.f32 %v6466, %v211
      %v6471 = vmul.f32 %v6467, %v211
      %v6472 = vmul.f32 %v6468, %v211
      %v6473 = vadd.f32 %v6457, %v6469
      %v6474 = vadd.f32 %v6458, %v6470
      %v6475 = vadd.f32 %v6459, %v6471
      %v6476 = vadd.f32 %v6460, %v6472
      %v6477 = vmul.f32 %v6465, %v220
      %v6478 = vmul.f32 %v6466, %v220
      %v6479 = vmul.f32 %v6467, %v220
      %v6480 = vmul.f32 %v6468, %v220
      %v6485 = vrot.slane %v6477, 1
      %v6486 = vrot.slane %v6478, 1
      %v6487 = vsel %vm160, %v6485, %v6486
      %v6488 = vrot.slane %v6479, 1
      %v6489 = vsel %vm160, %v6486, %v6488
      %v6490 = vrot.slane %v6480, 1
      %v6491 = vsel %vm160, %v6488, %v6490
      %v6496 = vadd.f32 %v6473, %v6487
      %v6497 = vadd.f32 %v6474, %v6489
      %v6498 = vadd.f32 %v6475, %v6491
      %v6499 = vadd.f32 %v6476, %v6490
      %v6500 = vld [vmem:[%s6184] sm:$0xff]
      %v6501 = vld [vmem:[%s6184 + $0x8] sm:$0xff]
      %v6502 = vld [vmem:[%s6184 + $0x10] sm:$0xff]
      %v6503 = vld [vmem:[%s6184 + $0x18] sm:$0x3f]
      %v6504 = vmax.f32 %v6500, 0.0
      %v6505 = vmax.f32 %v6501, 0.0
      %v6506 = vmax.f32 %v6502, 0.0
      %v6507 = vmax.f32 %v6503, 0.0
      %v6508 = vmul.f32 %v6504, %v254
      %v6509 = vmul.f32 %v6505, %v254
      %v6510 = vmul.f32 %v6506, %v254
      %v6511 = vmul.f32 %v6507, %v254
      %v6512 = vadd.f32 %v6496, %v6508
      %v6513 = vadd.f32 %v6497, %v6509
      %v6514 = vadd.f32 %v6498, %v6510
      %v6515 = vadd.f32 %v6499, %v6511
      %v6516 = vmul.f32 %v6504, %v263
      %v6517 = vmul.f32 %v6505, %v263
      %v6518 = vmul.f32 %v6506, %v263
      %v6519 = vmul.f32 %v6507, %v263
      %v6524 = vrot.slane %v6516, 1
      %v6525 = vrot.slane %v6517, 1
      %v6526 = vsel %vm160, %v6524, %v6525
      %v6527 = vrot.slane %v6518, 1
      %v6528 = vsel %vm160, %v6525, %v6527
      %v6529 = vrot.slane %v6519, 1
      %v6530 = vsel %vm160, %v6527, %v6529
      %v6535 = vadd.f32 %v6512, %v6526
      %v6536 = vadd.f32 %v6513, %v6528
      %v6537 = vadd.f32 %v6514, %v6530
      %v6538 = vadd.f32 %v6515, %v6529
      %v6539 = vmul.f32 %v6504, %v287
      %v6540 = vmul.f32 %v6505, %v287
      %v6541 = vmul.f32 %v6506, %v287
      %v6542 = vmul.f32 %v6507, %v287
      %v6547 = vrot.slane %v6539, 2
      %v6548 = vrot.slane %v6540, 2
      %v6549 = vsel %vm185, %v6547, %v6548
      %v6550 = vrot.slane %v6541, 2
      %v6551 = vsel %vm185, %v6548, %v6550
      %v6552 = vrot.slane %v6542, 2
      %v6553 = vsel %vm185, %v6550, %v6552
      %v6558 = vadd.f32 %v6535, %v6549
      %v6559 = vadd.f32 %v6536, %v6551
      %v6560 = vadd.f32 %v6537, %v6553
      %v6561 = vadd.f32 %v6538, %v6552
      %v6562 = vld [vmem:[%s6248] sm:$0xff]
      %v6563 = vld [vmem:[%s6248 + $0x8] sm:$0xff]
      %v6564 = vld [vmem:[%s6248 + $0x10] sm:$0xff]
      %v6565 = vld [vmem:[%s6248 + $0x18] sm:$0x3f]
      %v6566 = vmax.f32 %v6562, 0.0
      %v6567 = vmax.f32 %v6563, 0.0
      %v6568 = vmax.f32 %v6564, 0.0
      %v6569 = vmax.f32 %v6565, 0.0
      %v6570 = vmul.f32 %v6566, %v321
      %v6571 = vmul.f32 %v6567, %v321
      %v6572 = vmul.f32 %v6568, %v321
      %v6573 = vmul.f32 %v6569, %v321
      %v6574 = vadd.f32 %v6558, %v6570
      %v6575 = vadd.f32 %v6559, %v6571
      %v6576 = vadd.f32 %v6560, %v6572
      %v6577 = vadd.f32 %v6561, %v6573
      %v6578 = vmul.f32 %v6566, %v330
      %v6579 = vmul.f32 %v6567, %v330
      %v6580 = vmul.f32 %v6568, %v330
      %v6581 = vmul.f32 %v6569, %v330
      %v6586 = vrot.slane %v6578, 1
      %v6587 = vrot.slane %v6579, 1
      %v6588 = vsel %vm160, %v6586, %v6587
      %v6589 = vrot.slane %v6580, 1
      %v6590 = vsel %vm160, %v6587, %v6589
      %v6591 = vrot.slane %v6581, 1
      %v6592 = vsel %vm160, %v6589, %v6591
      %v6597 = vadd.f32 %v6574, %v6588
      %v6598 = vadd.f32 %v6575, %v6590
      %v6599 = vadd.f32 %v6576, %v6592
      %v6600 = vadd.f32 %v6577, %v6591
      %v6601 = vld [vmem:[%s6290] sm:$0xff]
      %v6602 = vld [vmem:[%s6290 + $0x8] sm:$0xff]
      %v6603 = vld [vmem:[%s6290 + $0x10] sm:$0xff]
      %v6604 = vld [vmem:[%s6290 + $0x18] sm:$0x3f]
      %v6605 = vmax.f32 %v6601, 0.0
      %v6606 = vmax.f32 %v6602, 0.0
      %v6607 = vmax.f32 %v6603, 0.0
      %v6608 = vmax.f32 %v6604, 0.0
      %v6609 = vmul.f32 %v6605, %v365
      %v6610 = vmul.f32 %v6606, %v365
      %v6611 = vmul.f32 %v6607, %v365
      %v6612 = vmul.f32 %v6608, %v365
      %v6613 = vadd.f32 %v6597, %v6609
      %v6614 = vadd.f32 %v6598, %v6610
      %v6615 = vadd.f32 %v6599, %v6611
      %v6616 = vadd.f32 %v6600, %v6612
      %v6617 = vmul.f32 %v6605, %v374
      %v6618 = vmul.f32 %v6606, %v374
      %v6619 = vmul.f32 %v6607, %v374
      %v6620 = vmul.f32 %v6608, %v374
      %v6625 = vrot.slane %v6617, 1
      %v6626 = vrot.slane %v6618, 1
      %v6627 = vsel %vm160, %v6625, %v6626
      %v6628 = vrot.slane %v6619, 1
      %v6629 = vsel %vm160, %v6626, %v6628
      %v6630 = vrot.slane %v6620, 1
      %v6631 = vsel %vm160, %v6628, %v6630
      %v6636 = vadd.f32 %v6613, %v6627
      %v6637 = vadd.f32 %v6614, %v6629
      %v6638 = vadd.f32 %v6615, %v6631
      %v6639 = vadd.f32 %v6616, %v6630
      %v6640 = vmul.f32 %v6605, %v398
      %v6641 = vmul.f32 %v6606, %v398
      %v6642 = vmul.f32 %v6607, %v398
      %v6643 = vmul.f32 %v6608, %v398
      %v6648 = vrot.slane %v6640, 2
      %v6649 = vrot.slane %v6641, 2
      %v6650 = vsel %vm185, %v6648, %v6649
      %v6651 = vrot.slane %v6642, 2
      %v6652 = vsel %vm185, %v6649, %v6651
      %v6653 = vrot.slane %v6643, 2
      %v6654 = vsel %vm185, %v6651, %v6653
      %v6659 = vadd.f32 %v6636, %v6650
      %v6660 = vadd.f32 %v6637, %v6652
      %v6661 = vadd.f32 %v6638, %v6654
      %v6662 = vadd.f32 %v6639, %v6653
      %v6663 = vld [vmem:[%s6354] sm:$0xff]
      %v6664 = vld [vmem:[%s6354 + $0x8] sm:$0xff]
      %v6665 = vld [vmem:[%s6354 + $0x10] sm:$0xff]
      %v6666 = vld [vmem:[%s6354 + $0x18] sm:$0x3f]
      %v6667 = vmax.f32 %v6663, 0.0
      %v6668 = vmax.f32 %v6664, 0.0
      %v6669 = vmax.f32 %v6665, 0.0
      %v6670 = vmax.f32 %v6666, 0.0
      %v6671 = vmul.f32 %v6667, %v432
      %v6672 = vmul.f32 %v6668, %v432
      %v6673 = vmul.f32 %v6669, %v432
      %v6674 = vmul.f32 %v6670, %v432
      %v6675 = vadd.f32 %v6659, %v6671
      %v6676 = vadd.f32 %v6660, %v6672
      %v6677 = vadd.f32 %v6661, %v6673
      %v6678 = vadd.f32 %v6662, %v6674
      %v6679 = vmul.f32 %v6667, %v441
      %v6680 = vmul.f32 %v6668, %v441
      %v6681 = vmul.f32 %v6669, %v441
      %v6682 = vmul.f32 %v6670, %v441
      %v6687 = vrot.slane %v6679, 1
      %v6688 = vrot.slane %v6680, 1
      %v6689 = vsel %vm160, %v6687, %v6688
      %v6690 = vrot.slane %v6681, 1
      %v6691 = vsel %vm160, %v6688, %v6690
      %v6692 = vrot.slane %v6682, 1
      %v6693 = vsel %vm160, %v6690, %v6692
      %v6698 = vadd.f32 %v6675, %v6689
      %v6699 = vadd.f32 %v6676, %v6691
      %v6700 = vadd.f32 %v6677, %v6693
      %v6701 = vadd.f32 %v6678, %v6692
      %s6702 = sadd.s32 %s6289, 1920
      %s6703 = scalar_lea.vmem %s0, %s6702
      %v6704 = vld [vmem:[%s6703] sm:$0xff]
      %v6705 = vld [vmem:[%s6703 + $0x8] sm:$0xff]
      %v6706 = vld [vmem:[%s6703 + $0x10] sm:$0xff]
      %v6707 = vld [vmem:[%s6703 + $0x18] sm:$0x3f]
      %v6708 = vmax.f32 %v6704, 0.0
      %v6709 = vmax.f32 %v6705, 0.0
      %v6710 = vmax.f32 %v6706, 0.0
      %v6711 = vmax.f32 %v6707, 0.0
      %v6712 = vmul.f32 %v6708, %v475
      %v6713 = vmul.f32 %v6709, %v475
      %v6714 = vmul.f32 %v6710, %v475
      %v6715 = vmul.f32 %v6711, %v475
      %v6716 = vadd.f32 %v6698, %v6712
      %v6717 = vadd.f32 %v6699, %v6713
      %v6718 = vadd.f32 %v6700, %v6714
      %v6719 = vadd.f32 %v6701, %v6715
      %v6720 = vmul.f32 %v6708, %v484
      %v6721 = vmul.f32 %v6709, %v484
      %v6722 = vmul.f32 %v6710, %v484
      %v6723 = vmul.f32 %v6711, %v484
      %v6728 = vrot.slane %v6720, 1
      %v6729 = vrot.slane %v6721, 1
      %v6730 = vsel %vm160, %v6728, %v6729
      %v6731 = vrot.slane %v6722, 1
      %v6732 = vsel %vm160, %v6729, %v6731
      %v6733 = vrot.slane %v6723, 1
      %v6734 = vsel %vm160, %v6731, %v6733
      %v6739 = vadd.f32 %v6716, %v6730
      %v6740 = vadd.f32 %v6717, %v6732
      %v6741 = vadd.f32 %v6718, %v6734
      %v6742 = vadd.f32 %v6719, %v6733
      %v6743 = vmul.f32 %v6708, %v508
      %v6744 = vmul.f32 %v6709, %v508
      %v6745 = vmul.f32 %v6710, %v508
      %v6746 = vmul.f32 %v6711, %v508
      %v6751 = vrot.slane %v6743, 2
      %v6752 = vrot.slane %v6744, 2
      %v6753 = vsel %vm185, %v6751, %v6752
      %v6754 = vrot.slane %v6745, 2
      %v6755 = vsel %vm185, %v6752, %v6754
      %v6756 = vrot.slane %v6746, 2
      %v6757 = vsel %vm185, %v6754, %v6756
      %v6762 = vadd.f32 %v6739, %v6753
      %v6763 = vadd.f32 %v6740, %v6755
      %v6764 = vadd.f32 %v6741, %v6757
      %v6765 = vadd.f32 %v6742, %v6756
      %s6766 = sadd.s32 %s6353, 1920
      %s6767 = scalar_lea.vmem %s0, %s6766
      %v6768 = vld [vmem:[%s6767] sm:$0xff]
      %v6769 = vld [vmem:[%s6767 + $0x8] sm:$0xff]
      %v6770 = vld [vmem:[%s6767 + $0x10] sm:$0xff]
      %v6771 = vld [vmem:[%s6767 + $0x18] sm:$0x3f]
      %v6772 = vmax.f32 %v6768, 0.0
      %v6773 = vmax.f32 %v6769, 0.0
      %v6774 = vmax.f32 %v6770, 0.0
      %v6775 = vmax.f32 %v6771, 0.0
      %v6776 = vmul.f32 %v6772, %v542
      %v6777 = vmul.f32 %v6773, %v542
      %v6778 = vmul.f32 %v6774, %v542
      %v6779 = vmul.f32 %v6775, %v542
      %v6780 = vadd.f32 %v6762, %v6776
      %v6781 = vadd.f32 %v6763, %v6777
      %v6782 = vadd.f32 %v6764, %v6778
      %v6783 = vadd.f32 %v6765, %v6779
      %v6784 = vmul.f32 %v6772, %v551
      %v6785 = vmul.f32 %v6773, %v551
      %v6786 = vmul.f32 %v6774, %v551
      %v6787 = vmul.f32 %v6775, %v551
      %v6792 = vrot.slane %v6784, 1
      %v6793 = vrot.slane %v6785, 1
      %v6794 = vsel %vm160, %v6792, %v6793
      %v6795 = vrot.slane %v6786, 1
      %v6796 = vsel %vm160, %v6793, %v6795
      %v6797 = vrot.slane %v6787, 1
      %v6798 = vsel %vm160, %v6795, %v6797
      %v6803 = vadd.f32 %v6780, %v6794
      %v6804 = vadd.f32 %v6781, %v6796
      %v6805 = vadd.f32 %v6782, %v6798
      %v6806 = vadd.f32 %v6783, %v6797
      %s6807 = sadd.s32 %s127, 14
      %s6808 = smul.u32 %s6807, 32
      %s6809 = scalar_lea.vmem %s0, %s6808
      %v6810 = vld [vmem:[%s6809] sm:$0xff]
      %v6811 = vld [vmem:[%s6809 + $0x8] sm:$0xff]
      %v6812 = vld [vmem:[%s6809 + $0x10] sm:$0xff]
      %v6813 = vld [vmem:[%s6809 + $0x18] sm:$0x3f]
      %v6814 = vmax.f32 %v6810, 0.0
      %v6815 = vmax.f32 %v6811, 0.0
      %v6816 = vmax.f32 %v6812, 0.0
      %v6817 = vmax.f32 %v6813, 0.0
      %v6818 = vmul.f32 %v6814, %v586
      %v6819 = vmul.f32 %v6815, %v586
      %v6820 = vmul.f32 %v6816, %v586
      %v6821 = vmul.f32 %v6817, %v586
      %v6822 = vadd.f32 %v6803, %v6818
      %v6823 = vadd.f32 %v6804, %v6819
      %v6824 = vadd.f32 %v6805, %v6820
      %v6825 = vadd.f32 %v6806, %v6821
      %v6826 = vmul.f32 %v6814, %v595
      %v6827 = vmul.f32 %v6815, %v595
      %v6828 = vmul.f32 %v6816, %v595
      %v6829 = vmul.f32 %v6817, %v595
      %v6834 = vrot.slane %v6826, 1
      %v6835 = vrot.slane %v6827, 1
      %v6836 = vsel %vm160, %v6834, %v6835
      %v6837 = vrot.slane %v6828, 1
      %v6838 = vsel %vm160, %v6835, %v6837
      %v6839 = vrot.slane %v6829, 1
      %v6840 = vsel %vm160, %v6837, %v6839
      %v6845 = vadd.f32 %v6822, %v6836
      %v6846 = vadd.f32 %v6823, %v6838
      %v6847 = vadd.f32 %v6824, %v6840
      %v6848 = vadd.f32 %v6825, %v6839
      %v6849 = vmul.f32 %v6814, %v619
      %v6850 = vmul.f32 %v6815, %v619
      %v6851 = vmul.f32 %v6816, %v619
      %v6852 = vmul.f32 %v6817, %v619
      %v6857 = vrot.slane %v6849, 2
      %v6858 = vrot.slane %v6850, 2
      %v6859 = vsel %vm185, %v6857, %v6858
      %v6860 = vrot.slane %v6851, 2
      %v6861 = vsel %vm185, %v6858, %v6860
      %v6862 = vrot.slane %v6852, 2
      %v6863 = vsel %vm185, %v6860, %v6862
      %v6868 = vadd.f32 %v6845, %v6859
      %v6869 = vadd.f32 %v6846, %v6861
      %v6870 = vadd.f32 %v6847, %v6863
      %v6871 = vadd.f32 %v6848, %v6862
      %s6872 = sadd.s32 %s6808, 960
      %s6873 = scalar_lea.vmem %s0, %s6872
      %v6874 = vld [vmem:[%s6873] sm:$0xff]
      %v6875 = vld [vmem:[%s6873 + $0x8] sm:$0xff]
      %v6876 = vld [vmem:[%s6873 + $0x10] sm:$0xff]
      %v6877 = vld [vmem:[%s6873 + $0x18] sm:$0x3f]
      %v6878 = vmax.f32 %v6874, 0.0
      %v6879 = vmax.f32 %v6875, 0.0
      %v6880 = vmax.f32 %v6876, 0.0
      %v6881 = vmax.f32 %v6877, 0.0
      %v6882 = vmul.f32 %v6878, %v653
      %v6883 = vmul.f32 %v6879, %v653
      %v6884 = vmul.f32 %v6880, %v653
      %v6885 = vmul.f32 %v6881, %v653
      %v6886 = vadd.f32 %v6868, %v6882
      %v6887 = vadd.f32 %v6869, %v6883
      %v6888 = vadd.f32 %v6870, %v6884
      %v6889 = vadd.f32 %v6871, %v6885
      %v6890 = vmul.f32 %v6878, %v662
      %v6891 = vmul.f32 %v6879, %v662
      %v6892 = vmul.f32 %v6880, %v662
      %v6893 = vmul.f32 %v6881, %v662
      %v6898 = vrot.slane %v6890, 1
      %v6899 = vrot.slane %v6891, 1
      %v6900 = vsel %vm160, %v6898, %v6899
      %v6901 = vrot.slane %v6892, 1
      %v6902 = vsel %vm160, %v6899, %v6901
      %v6903 = vrot.slane %v6893, 1
      %v6904 = vsel %vm160, %v6901, %v6903
      %v6909 = vadd.f32 %v6886, %v6900
      %v6910 = vadd.f32 %v6887, %v6902
      %v6911 = vadd.f32 %v6888, %v6904
      %v6912 = vadd.f32 %v6889, %v6903
      %s6913 = scalar_lea.vmem %s125, 384
      %6914 = vst [vmem:[%s6913] sm:$0xff] %v6909
      %6915 = vst [vmem:[%s6913 + $0x8] sm:$0xff] %v6910
      %6916 = vst [vmem:[%s6913 + $0x10] sm:$0xff] %v6911
      %6917 = vst [vmem:[%s6913 + $0x18] sm:$0xf] %v6912
      %v6918 = vld [vmem:[%s6290] sm:$0xff]
      %v6919 = vld [vmem:[%s6290 + $0x8] sm:$0xff]
      %v6920 = vld [vmem:[%s6290 + $0x10] sm:$0xff]
      %v6921 = vld [vmem:[%s6290 + $0x18] sm:$0x3f]
      %v6922 = vmax.f32 %v6918, 0.0
      %v6923 = vmax.f32 %v6919, 0.0
      %v6924 = vmax.f32 %v6920, 0.0
      %v6925 = vmax.f32 %v6921, 0.0
      %v6926 = vmul.f32 %v6922, %v142
      %v6927 = vmul.f32 %v6923, %v142
      %v6928 = vmul.f32 %v6924, %v142
      %v6929 = vmul.f32 %v6925, %v142
      %v6930 = vadd.f32 %v6926, 0.0
      %v6931 = vadd.f32 %v6927, 0.0
      %v6932 = vadd.f32 %v6928, 0.0
      %v6933 = vadd.f32 %v6929, 0.0
      %v6934 = vmul.f32 %v6922, %v151
      %v6935 = vmul.f32 %v6923, %v151
      %v6936 = vmul.f32 %v6924, %v151
      %v6937 = vmul.f32 %v6925, %v151
      %v6942 = vrot.slane %v6934, 1
      %v6943 = vrot.slane %v6935, 1
      %v6944 = vsel %vm160, %v6942, %v6943
      %v6945 = vrot.slane %v6936, 1
      %v6946 = vsel %vm160, %v6943, %v6945
      %v6947 = vrot.slane %v6937, 1
      %v6948 = vsel %vm160, %v6945, %v6947
      %v6953 = vadd.f32 %v6930, %v6944
      %v6954 = vadd.f32 %v6931, %v6946
      %v6955 = vadd.f32 %v6932, %v6948
      %v6956 = vadd.f32 %v6933, %v6947
      %v6957 = vmul.f32 %v6922, %v176
      %v6958 = vmul.f32 %v6923, %v176
      %v6959 = vmul.f32 %v6924, %v176
      %v6960 = vmul.f32 %v6925, %v176
      %v6965 = vrot.slane %v6957, 2
      %v6966 = vrot.slane %v6958, 2
      %v6967 = vsel %vm185, %v6965, %v6966
      %v6968 = vrot.slane %v6959, 2
      %v6969 = vsel %vm185, %v6966, %v6968
      %v6970 = vrot.slane %v6960, 2
      %v6971 = vsel %vm185, %v6968, %v6970
      %v6976 = vadd.f32 %v6953, %v6967
      %v6977 = vadd.f32 %v6954, %v6969
      %v6978 = vadd.f32 %v6955, %v6971
      %v6979 = vadd.f32 %v6956, %v6970
      %v6980 = vld [vmem:[%s6354] sm:$0xff]
      %v6981 = vld [vmem:[%s6354 + $0x8] sm:$0xff]
      %v6982 = vld [vmem:[%s6354 + $0x10] sm:$0xff]
      %v6983 = vld [vmem:[%s6354 + $0x18] sm:$0x3f]
      %v6984 = vmax.f32 %v6980, 0.0
      %v6985 = vmax.f32 %v6981, 0.0
      %v6986 = vmax.f32 %v6982, 0.0
      %v6987 = vmax.f32 %v6983, 0.0
      %v6988 = vmul.f32 %v6984, %v211
      %v6989 = vmul.f32 %v6985, %v211
      %v6990 = vmul.f32 %v6986, %v211
      %v6991 = vmul.f32 %v6987, %v211
      %v6992 = vadd.f32 %v6976, %v6988
      %v6993 = vadd.f32 %v6977, %v6989
      %v6994 = vadd.f32 %v6978, %v6990
      %v6995 = vadd.f32 %v6979, %v6991
      %v6996 = vmul.f32 %v6984, %v220
      %v6997 = vmul.f32 %v6985, %v220
      %v6998 = vmul.f32 %v6986, %v220
      %v6999 = vmul.f32 %v6987, %v220
      %v7004 = vrot.slane %v6996, 1
      %v7005 = vrot.slane %v6997, 1
      %v7006 = vsel %vm160, %v7004, %v7005
      %v7007 = vrot.slane %v6998, 1
      %v7008 = vsel %vm160, %v7005, %v7007
      %v7009 = vrot.slane %v6999, 1
      %v7010 = vsel %vm160, %v7007, %v7009
      %v7015 = vadd.f32 %v6992, %v7006
      %v7016 = vadd.f32 %v6993, %v7008
      %v7017 = vadd.f32 %v6994, %v7010
      %v7018 = vadd.f32 %v6995, %v7009
      %v7019 = vld [vmem:[%s6703] sm:$0xff]
      %v7020 = vld [vmem:[%s6703 + $0x8] sm:$0xff]
      %v7021 = vld [vmem:[%s6703 + $0x10] sm:$0xff]
      %v7022 = vld [vmem:[%s6703 + $0x18] sm:$0x3f]
      %v7023 = vmax.f32 %v7019, 0.0
      %v7024 = vmax.f32 %v7020, 0.0
      %v7025 = vmax.f32 %v7021, 0.0
      %v7026 = vmax.f32 %v7022, 0.0
      %v7027 = vmul.f32 %v7023, %v254
      %v7028 = vmul.f32 %v7024, %v254
      %v7029 = vmul.f32 %v7025, %v254
      %v7030 = vmul.f32 %v7026, %v254
      %v7031 = vadd.f32 %v7015, %v7027
      %v7032 = vadd.f32 %v7016, %v7028
      %v7033 = vadd.f32 %v7017, %v7029
      %v7034 = vadd.f32 %v7018, %v7030
      %v7035 = vmul.f32 %v7023, %v263
      %v7036 = vmul.f32 %v7024, %v263
      %v7037 = vmul.f32 %v7025, %v263
      %v7038 = vmul.f32 %v7026, %v263
      %v7043 = vrot.slane %v7035, 1
      %v7044 = vrot.slane %v7036, 1
      %v7045 = vsel %vm160, %v7043, %v7044
      %v7046 = vrot.slane %v7037, 1
      %v7047 = vsel %vm160, %v7044, %v7046
      %v7048 = vrot.slane %v7038, 1
      %v7049 = vsel %vm160, %v7046, %v7048
      %v7054 = vadd.f32 %v7031, %v7045
      %v7055 = vadd.f32 %v7032, %v7047
      %v7056 = vadd.f32 %v7033, %v7049
      %v7057 = vadd.f32 %v7034, %v7048
      %v7058 = vmul.f32 %v7023, %v287
      %v7059 = vmul.f32 %v7024, %v287
      %v7060 = vmul.f32 %v7025, %v287
      %v7061 = vmul.f32 %v7026, %v287
      %v7066 = vrot.slane %v7058, 2
      %v7067 = vrot.slane %v7059, 2
      %v7068 = vsel %vm185, %v7066, %v7067
      %v7069 = vrot.slane %v7060, 2
      %v7070 = vsel %vm185, %v7067, %v7069
      %v7071 = vrot.slane %v7061, 2
      %v7072 = vsel %vm185, %v7069, %v7071
      %v7077 = vadd.f32 %v7054, %v7068
      %v7078 = vadd.f32 %v7055, %v7070
      %v7079 = vadd.f32 %v7056, %v7072
      %v7080 = vadd.f32 %v7057, %v7071
      %v7081 = vld [vmem:[%s6767] sm:$0xff]
      %v7082 = vld [vmem:[%s6767 + $0x8] sm:$0xff]
      %v7083 = vld [vmem:[%s6767 + $0x10] sm:$0xff]
      %v7084 = vld [vmem:[%s6767 + $0x18] sm:$0x3f]
      %v7085 = vmax.f32 %v7081, 0.0
      %v7086 = vmax.f32 %v7082, 0.0
      %v7087 = vmax.f32 %v7083, 0.0
      %v7088 = vmax.f32 %v7084, 0.0
      %v7089 = vmul.f32 %v7085, %v321
      %v7090 = vmul.f32 %v7086, %v321
      %v7091 = vmul.f32 %v7087, %v321
      %v7092 = vmul.f32 %v7088, %v321
      %v7093 = vadd.f32 %v7077, %v7089
      %v7094 = vadd.f32 %v7078, %v7090
      %v7095 = vadd.f32 %v7079, %v7091
      %v7096 = vadd.f32 %v7080, %v7092
      %v7097 = vmul.f32 %v7085, %v330
      %v7098 = vmul.f32 %v7086, %v330
      %v7099 = vmul.f32 %v7087, %v330
      %v7100 = vmul.f32 %v7088, %v330
      %v7105 = vrot.slane %v7097, 1
      %v7106 = vrot.slane %v7098, 1
      %v7107 = vsel %vm160, %v7105, %v7106
      %v7108 = vrot.slane %v7099, 1
      %v7109 = vsel %vm160, %v7106, %v7108
      %v7110 = vrot.slane %v7100, 1
      %v7111 = vsel %vm160, %v7108, %v7110
      %v7116 = vadd.f32 %v7093, %v7107
      %v7117 = vadd.f32 %v7094, %v7109
      %v7118 = vadd.f32 %v7095, %v7111
      %v7119 = vadd.f32 %v7096, %v7110
      %v7120 = vld [vmem:[%s6809] sm:$0xff]
      %v7121 = vld [vmem:[%s6809 + $0x8] sm:$0xff]
      %v7122 = vld [vmem:[%s6809 + $0x10] sm:$0xff]
      %v7123 = vld [vmem:[%s6809 + $0x18] sm:$0x3f]
      %v7124 = vmax.f32 %v7120, 0.0
      %v7125 = vmax.f32 %v7121, 0.0
      %v7126 = vmax.f32 %v7122, 0.0
      %v7127 = vmax.f32 %v7123, 0.0
      %v7128 = vmul.f32 %v7124, %v365
      %v7129 = vmul.f32 %v7125, %v365
      %v7130 = vmul.f32 %v7126, %v365
      %v7131 = vmul.f32 %v7127, %v365
      %v7132 = vadd.f32 %v7116, %v7128
      %v7133 = vadd.f32 %v7117, %v7129
      %v7134 = vadd.f32 %v7118, %v7130
      %v7135 = vadd.f32 %v7119, %v7131
      %v7136 = vmul.f32 %v7124, %v374
      %v7137 = vmul.f32 %v7125, %v374
      %v7138 = vmul.f32 %v7126, %v374
      %v7139 = vmul.f32 %v7127, %v374
      %v7144 = vrot.slane %v7136, 1
      %v7145 = vrot.slane %v7137, 1
      %v7146 = vsel %vm160, %v7144, %v7145
      %v7147 = vrot.slane %v7138, 1
      %v7148 = vsel %vm160, %v7145, %v7147
      %v7149 = vrot.slane %v7139, 1
      %v7150 = vsel %vm160, %v7147, %v7149
      %v7155 = vadd.f32 %v7132, %v7146
      %v7156 = vadd.f32 %v7133, %v7148
      %v7157 = vadd.f32 %v7134, %v7150
      %v7158 = vadd.f32 %v7135, %v7149
      %v7159 = vmul.f32 %v7124, %v398
      %v7160 = vmul.f32 %v7125, %v398
      %v7161 = vmul.f32 %v7126, %v398
      %v7162 = vmul.f32 %v7127, %v398
      %v7167 = vrot.slane %v7159, 2
      %v7168 = vrot.slane %v7160, 2
      %v7169 = vsel %vm185, %v7167, %v7168
      %v7170 = vrot.slane %v7161, 2
      %v7171 = vsel %vm185, %v7168, %v7170
      %v7172 = vrot.slane %v7162, 2
      %v7173 = vsel %vm185, %v7170, %v7172
      %v7178 = vadd.f32 %v7155, %v7169
      %v7179 = vadd.f32 %v7156, %v7171
      %v7180 = vadd.f32 %v7157, %v7173
      %v7181 = vadd.f32 %v7158, %v7172
      %v7182 = vld [vmem:[%s6873] sm:$0xff]
      %v7183 = vld [vmem:[%s6873 + $0x8] sm:$0xff]
      %v7184 = vld [vmem:[%s6873 + $0x10] sm:$0xff]
      %v7185 = vld [vmem:[%s6873 + $0x18] sm:$0x3f]
      %v7186 = vmax.f32 %v7182, 0.0
      %v7187 = vmax.f32 %v7183, 0.0
      %v7188 = vmax.f32 %v7184, 0.0
      %v7189 = vmax.f32 %v7185, 0.0
      %v7190 = vmul.f32 %v7186, %v432
      %v7191 = vmul.f32 %v7187, %v432
      %v7192 = vmul.f32 %v7188, %v432
      %v7193 = vmul.f32 %v7189, %v432
      %v7194 = vadd.f32 %v7178, %v7190
      %v7195 = vadd.f32 %v7179, %v7191
      %v7196 = vadd.f32 %v7180, %v7192
      %v7197 = vadd.f32 %v7181, %v7193
      %v7198 = vmul.f32 %v7186, %v441
      %v7199 = vmul.f32 %v7187, %v441
      %v7200 = vmul.f32 %v7188, %v441
      %v7201 = vmul.f32 %v7189, %v441
      %v7206 = vrot.slane %v7198, 1
      %v7207 = vrot.slane %v7199, 1
      %v7208 = vsel %vm160, %v7206, %v7207
      %v7209 = vrot.slane %v7200, 1
      %v7210 = vsel %vm160, %v7207, %v7209
      %v7211 = vrot.slane %v7201, 1
      %v7212 = vsel %vm160, %v7209, %v7211
      %v7217 = vadd.f32 %v7194, %v7208
      %v7218 = vadd.f32 %v7195, %v7210
      %v7219 = vadd.f32 %v7196, %v7212
      %v7220 = vadd.f32 %v7197, %v7211
      %s7221 = sadd.s32 %s6808, 1920
      %s7222 = scalar_lea.vmem %s0, %s7221
      %v7223 = vld [vmem:[%s7222] sm:$0xff]
      %v7224 = vld [vmem:[%s7222 + $0x8] sm:$0xff]
      %v7225 = vld [vmem:[%s7222 + $0x10] sm:$0xff]
      %v7226 = vld [vmem:[%s7222 + $0x18] sm:$0x3f]
      %v7227 = vmax.f32 %v7223, 0.0
      %v7228 = vmax.f32 %v7224, 0.0
      %v7229 = vmax.f32 %v7225, 0.0
      %v7230 = vmax.f32 %v7226, 0.0
      %v7231 = vmul.f32 %v7227, %v475
      %v7232 = vmul.f32 %v7228, %v475
      %v7233 = vmul.f32 %v7229, %v475
      %v7234 = vmul.f32 %v7230, %v475
      %v7235 = vadd.f32 %v7217, %v7231
      %v7236 = vadd.f32 %v7218, %v7232
      %v7237 = vadd.f32 %v7219, %v7233
      %v7238 = vadd.f32 %v7220, %v7234
      %v7239 = vmul.f32 %v7227, %v484
      %v7240 = vmul.f32 %v7228, %v484
      %v7241 = vmul.f32 %v7229, %v484
      %v7242 = vmul.f32 %v7230, %v484
      %v7247 = vrot.slane %v7239, 1
      %v7248 = vrot.slane %v7240, 1
      %v7249 = vsel %vm160, %v7247, %v7248
      %v7250 = vrot.slane %v7241, 1
      %v7251 = vsel %vm160, %v7248, %v7250
      %v7252 = vrot.slane %v7242, 1
      %v7253 = vsel %vm160, %v7250, %v7252
      %v7258 = vadd.f32 %v7235, %v7249
      %v7259 = vadd.f32 %v7236, %v7251
      %v7260 = vadd.f32 %v7237, %v7253
      %v7261 = vadd.f32 %v7238, %v7252
      %v7262 = vmul.f32 %v7227, %v508
      %v7263 = vmul.f32 %v7228, %v508
      %v7264 = vmul.f32 %v7229, %v508
      %v7265 = vmul.f32 %v7230, %v508
      %v7270 = vrot.slane %v7262, 2
      %v7271 = vrot.slane %v7263, 2
      %v7272 = vsel %vm185, %v7270, %v7271
      %v7273 = vrot.slane %v7264, 2
      %v7274 = vsel %vm185, %v7271, %v7273
      %v7275 = vrot.slane %v7265, 2
      %v7276 = vsel %vm185, %v7273, %v7275
      %v7281 = vadd.f32 %v7258, %v7272
      %v7282 = vadd.f32 %v7259, %v7274
      %v7283 = vadd.f32 %v7260, %v7276
      %v7284 = vadd.f32 %v7261, %v7275
      %s7285 = sadd.s32 %s6872, 1920
      %s7286 = scalar_lea.vmem %s0, %s7285
      %v7287 = vld [vmem:[%s7286] sm:$0xff]
      %v7288 = vld [vmem:[%s7286 + $0x8] sm:$0xff]
      %v7289 = vld [vmem:[%s7286 + $0x10] sm:$0xff]
      %v7290 = vld [vmem:[%s7286 + $0x18] sm:$0x3f]
      %v7291 = vmax.f32 %v7287, 0.0
      %v7292 = vmax.f32 %v7288, 0.0
      %v7293 = vmax.f32 %v7289, 0.0
      %v7294 = vmax.f32 %v7290, 0.0
      %v7295 = vmul.f32 %v7291, %v542
      %v7296 = vmul.f32 %v7292, %v542
      %v7297 = vmul.f32 %v7293, %v542
      %v7298 = vmul.f32 %v7294, %v542
      %v7299 = vadd.f32 %v7281, %v7295
      %v7300 = vadd.f32 %v7282, %v7296
      %v7301 = vadd.f32 %v7283, %v7297
      %v7302 = vadd.f32 %v7284, %v7298
      %v7303 = vmul.f32 %v7291, %v551
      %v7304 = vmul.f32 %v7292, %v551
      %v7305 = vmul.f32 %v7293, %v551
      %v7306 = vmul.f32 %v7294, %v551
      %v7311 = vrot.slane %v7303, 1
      %v7312 = vrot.slane %v7304, 1
      %v7313 = vsel %vm160, %v7311, %v7312
      %v7314 = vrot.slane %v7305, 1
      %v7315 = vsel %vm160, %v7312, %v7314
      %v7316 = vrot.slane %v7306, 1
      %v7317 = vsel %vm160, %v7314, %v7316
      %v7322 = vadd.f32 %v7299, %v7313
      %v7323 = vadd.f32 %v7300, %v7315
      %v7324 = vadd.f32 %v7301, %v7317
      %v7325 = vadd.f32 %v7302, %v7316
      %s7326 = sadd.s32 %s127, 15
      %s7327 = smul.u32 %s7326, 32
      %s7328 = scalar_lea.vmem %s0, %s7327
      %v7329 = vld [vmem:[%s7328] sm:$0xff]
      %v7330 = vld [vmem:[%s7328 + $0x8] sm:$0xff]
      %v7331 = vld [vmem:[%s7328 + $0x10] sm:$0xff]
      %v7332 = vld [vmem:[%s7328 + $0x18] sm:$0x3f]
      %v7333 = vmax.f32 %v7329, 0.0
      %v7334 = vmax.f32 %v7330, 0.0
      %v7335 = vmax.f32 %v7331, 0.0
      %v7336 = vmax.f32 %v7332, 0.0
      %v7337 = vmul.f32 %v7333, %v586
      %v7338 = vmul.f32 %v7334, %v586
      %v7339 = vmul.f32 %v7335, %v586
      %v7340 = vmul.f32 %v7336, %v586
      %v7341 = vadd.f32 %v7322, %v7337
      %v7342 = vadd.f32 %v7323, %v7338
      %v7343 = vadd.f32 %v7324, %v7339
      %v7344 = vadd.f32 %v7325, %v7340
      %v7345 = vmul.f32 %v7333, %v595
      %v7346 = vmul.f32 %v7334, %v595
      %v7347 = vmul.f32 %v7335, %v595
      %v7348 = vmul.f32 %v7336, %v595
      %v7353 = vrot.slane %v7345, 1
      %v7354 = vrot.slane %v7346, 1
      %v7355 = vsel %vm160, %v7353, %v7354
      %v7356 = vrot.slane %v7347, 1
      %v7357 = vsel %vm160, %v7354, %v7356
      %v7358 = vrot.slane %v7348, 1
      %v7359 = vsel %vm160, %v7356, %v7358
      %v7364 = vadd.f32 %v7341, %v7355
      %v7365 = vadd.f32 %v7342, %v7357
      %v7366 = vadd.f32 %v7343, %v7359
      %v7367 = vadd.f32 %v7344, %v7358
      %v7368 = vmul.f32 %v7333, %v619
      %v7369 = vmul.f32 %v7334, %v619
      %v7370 = vmul.f32 %v7335, %v619
      %v7371 = vmul.f32 %v7336, %v619
      %v7376 = vrot.slane %v7368, 2
      %v7377 = vrot.slane %v7369, 2
      %v7378 = vsel %vm185, %v7376, %v7377
      %v7379 = vrot.slane %v7370, 2
      %v7380 = vsel %vm185, %v7377, %v7379
      %v7381 = vrot.slane %v7371, 2
      %v7382 = vsel %vm185, %v7379, %v7381
      %v7387 = vadd.f32 %v7364, %v7378
      %v7388 = vadd.f32 %v7365, %v7380
      %v7389 = vadd.f32 %v7366, %v7382
      %v7390 = vadd.f32 %v7367, %v7381
      %s7391 = sadd.s32 %s7327, 960
      %s7392 = scalar_lea.vmem %s0, %s7391
      %v7393 = vld [vmem:[%s7392] sm:$0xff]
      %v7394 = vld [vmem:[%s7392 + $0x8] sm:$0xff]
      %v7395 = vld [vmem:[%s7392 + $0x10] sm:$0xff]
      %v7396 = vld [vmem:[%s7392 + $0x18] sm:$0x3f]
      %v7397 = vmax.f32 %v7393, 0.0
      %v7398 = vmax.f32 %v7394, 0.0
      %v7399 = vmax.f32 %v7395, 0.0
      %v7400 = vmax.f32 %v7396, 0.0
      %v7401 = vmul.f32 %v7397, %v653
      %v7402 = vmul.f32 %v7398, %v653
      %v7403 = vmul.f32 %v7399, %v653
      %v7404 = vmul.f32 %v7400, %v653
      %v7405 = vadd.f32 %v7387, %v7401
      %v7406 = vadd.f32 %v7388, %v7402
      %v7407 = vadd.f32 %v7389, %v7403
      %v7408 = vadd.f32 %v7390, %v7404
      %v7409 = vmul.f32 %v7397, %v662
      %v7410 = vmul.f32 %v7398, %v662
      %v7411 = vmul.f32 %v7399, %v662
      %v7412 = vmul.f32 %v7400, %v662
      %v7417 = vrot.slane %v7409, 1
      %v7418 = vrot.slane %v7410, 1
      %v7419 = vsel %vm160, %v7417, %v7418
      %v7420 = vrot.slane %v7411, 1
      %v7421 = vsel %vm160, %v7418, %v7420
      %v7422 = vrot.slane %v7412, 1
      %v7423 = vsel %vm160, %v7420, %v7422
      %v7428 = vadd.f32 %v7405, %v7419
      %v7429 = vadd.f32 %v7406, %v7421
      %v7430 = vadd.f32 %v7407, %v7423
      %v7431 = vadd.f32 %v7408, %v7422
      %s7432 = scalar_lea.vmem %s125, 416
      %7433 = vst [vmem:[%s7432] sm:$0xff] %v7428
      %7434 = vst [vmem:[%s7432 + $0x8] sm:$0xff] %v7429
      %7435 = vst [vmem:[%s7432 + $0x10] sm:$0xff] %v7430
      %7436 = vst [vmem:[%s7432 + $0x18] sm:$0xf] %v7431
      %s7437 = smul.u32 14, %s13
      %p7438 = scmp.lt.s32.totalorder %s7437, 27
      %s7439 = scalar_select %p7438, %s7437, 27
      %s7440 = smul.addr %s7439, 4
      %s7441 = smul.addr %s7440, 8
      %s7442 = scalar_lea.vmem %s2, %s7441
      // Predicated region
      $region29: #{relu_dwconv.1} parent=27 // pred_check
        %p7443 = pneg %p73
      $region30: #{relu_dwconv.1} parent=27 // pred_check_branch
        %7445 = sbr.rel (%p7443) target = $region32
      $region31: #{relu_dwconv.1} parent=27 // pred_region
        %s7446 = smul.u32 14, %s13
      $region32: #{relu_dwconv.1} parent=27 // pred_fallthru
        _
    $region28: #{relu_dwconv.1} parent=5 // pred_fallthru
      _
    %p7447 = scmp.le.s32.totalorder 2, %s8
    // Predicated region
    $region33: #{relu_dwconv.1} parent=5 // pred_check
      %p7448 = pneg %p7447
    $region34: #{relu_dwconv.1} parent=5 // pred_check_branch
      %7450 = sbr.rel (%p7448) target = $region36
    $region35: #{relu_dwconv.1} parent=5 // pred_region
      %s7451 = ssub.s32 %s8, 2
      // Predicated region
      $region37: #{relu_dwconv.1} parent=35 // pred_check
        %p7452 = pneg %p79
      $region38: #{relu_dwconv.1} parent=35 // pred_check_branch
        %7454 = sbr.rel (%p7452) target = $region40
      $region39: #{relu_dwconv.1} parent=35 // pred_region
        %s7455 = smul.u32 14, %s14
        %p7456 = scmp.lt.s32.totalorder %s7455, 27
        %s7457 = scalar_select %p7456, %s7455, 27
        %s7458 = smul.addr %s7457, 4
        %s7459 = smul.addr %s7458, 8
        %s7460 = scalar_lea.vmem %s2, %s7459
      $region40: #{relu_dwconv.1} parent=35 // pred_fallthru
        _
    $region36: #{relu_dwconv.1} parent=5 // pred_fallthru
      _
  $region6: #{relu_dwconv.1} parent=0 // loop_footer
    %s12 = sadd.s32 1, %s8
  $region7: #{relu_dwconv.1} parent=0 // loop_footer_branch
    %7 = sbr.rel target = $region3
  $region8: #{relu_dwconv.1} parent=0 // loop_exit
    _

</llo_original>
